<compile_context>
chip_gen: v6e
topology: v6e:2x2x1
jax: 0.10.0
libtpu: 0.0.40
codegen_flags: <defaults>
</compile_context>

<pallas_src>
import math
import functools

import jax
import jax.numpy as jnp
from jax.experimental import pallas as pl
from jax.experimental.pallas import tpu as pltpu


V_TH = 1.0  # IF neuron threshold (spikingjelly IFNode default); hard reset to v=0.


# ----------------------------------------------------------------------------
# Kernel 1: fused Conv2d(3x3, pad=1, no bias) + BatchNorm2d(eval) + IF neuron
#           + MaxPool2d(2, 2).   One grid step = one (n, t) image.
#
# Correctness invariant: the grid MUST stay (N, T) with T the innermost,
# sequentially executed ("arbitrary") axis -- the IF membrane potential lives in
# VMEM scratch, is carried across T, and is reset at program_id(1) == 0.
# ----------------------------------------------------------------------------
def _conv_bn_if_pool_kernel(w_ref, s_ref, b_ref, x_ref, o_ref,
                            xpad_ref, taps_ref, v_ref, *, Cin, Cout, H, W):
    Hp, Wp = H // 2, W // 2

    @pl.when(pl.program_id(1) == 0)
    def _():
        v_ref[...] = jnp.zeros_like(v_ref)        # reset membrane at t == 0
        xpad_ref[...] = jnp.zeros_like(xpad_ref)  # zero the halo border (stays 0)

    # ---- Phase 1: stage the 9 shifted, zero-padded taps per input channel ----
    # The 1-pixel border of xpad_ref is never written after the zeroing above, so
    # the edge taps see zero padding; the interior is overwritten every step.
    for ci in range(Cin):
        xpad_ref[ci, 1:H + 1, 1:W + 1] = x_ref[ci].astype(jnp.float32)
        xp = xpad_ref[ci]                              # [H+2, W+2] value
        for dy in range(3):
            for dx in range(3):
                taps_ref[ci * 9 + dy * 3 + dx] = xp[dy:dy + H, dx:dx + W]

    # 2x2 sum-pool selection matrices (spikes are binary => max-pool == sum > 0),
    # applied as two small MXU matmuls so no strided/decimating vector ops needed.
    r_i = jax.lax.broadcasted_iota(jnp.int32, (Hp, H), 0)
    c_i = jax.lax.broadcasted_iota(jnp.int32, (Hp, H), 1)
    rsel = ((c_i == 2 * r_i) | (c_i == 2 * r_i + 1)).astype(jnp.float32)   # [Hp,H]
    r_j = jax.lax.broadcasted_iota(jnp.int32, (W, Wp), 0)
    c_j = jax.lax.broadcasted_iota(jnp.int32, (W, Wp), 1)
    csel = ((r_j == 2 * c_j) | (r_j == 2 * c_j + 1)).astype(jnp.float32)   # [W,Wp]

    # ---- Phase 2: one output channel at a time (single live [H, W] acc) ----
    # TODO(synk): for the real 128-channel net this contraction should become 9
    # accumulated MXU matmuls on a channels-last layout, with weights in VMEM.
    for co in range(Cout):
        acc = None
        for k in range(Cin * 9):
            term = w_ref[co, k] * taps_ref[k]
            acc = term if acc is None else acc + term
        z = acc * s_ref[co] + b_ref[co]                 # folded BN (eval) affine
        v = v_ref[co] + z                               # IF integrate
        spk = (v >= V_TH).astype(jnp.float32)
        v_ref[co] = jnp.where(spk > 0.0, 0.0, v)        # hard reset, v_reset = 0
        pooled = jnp.dot(jnp.dot(rsel, spk, preferred_element_type=jnp.float32),
                         csel, preferred_element_type=jnp.float32)
        # TODO(synk): deep layers store sub-128-lane tiles (Wp < 128); packing the
        # pooled output lane-dense would remove the remaining masked partial stores.
        o_ref[co] = (pooled > 0.5).astype(o_ref.dtype)  # fused 2x2 max-pool


def conv_bn_if_pool_layer(x, w_flat, scale, bias):
    """x: [T, N, Cin, H, W] bf16 -> pooled IF spikes [T, N, Cout, H//2, W//2] bf16.

    w_flat: [Cout, Cin*9] with k = ci*9 + dy*3 + dx; scale/bias: [Cout] f32
    (BatchNorm folded for eval)."""
    T, N, Cin, H, W = x.shape
    Cout = w_flat.shape[0]
    Hp, Wp = H // 2, W // 2
    kern = functools.partial(_conv_bn_if_pool_kernel, Cin=Cin, Cout=Cout, H=H, W=W)
    cost = pl.CostEstimate(
        flops=2 * T * N * Cout * Cin * 9 * H * W,
        transcendentals=0,
        bytes_accessed=T * N * 2 * (Cin * H * W + Cout * Hp * Wp))
    return pl.pallas_call(
        kern,
        out_shape=jax.ShapeDtypeStruct((T, N, Cout, Hp, Wp), jnp.bfloat16),
        grid=(N, T),   # T innermost & sequential: carries the IF membrane state
        in_specs=[
            pl.BlockSpec(memory_space=pltpu.MemorySpace.SMEM),   # conv weights
            pl.BlockSpec(memory_space=pltpu.MemorySpace.SMEM),   # BN scale
            pl.BlockSpec(memory_space=pltpu.MemorySpace.SMEM),   # BN bias
            pl.BlockSpec((None, None, Cin, H, W), lambda n, t: (t, n, 0, 0, 0)),
        ],
        out_specs=pl.BlockSpec((None, None, Cout, Hp, Wp),
                               lambda n, t: (t, n, 0, 0, 0)),
        scratch_shapes=[
            pltpu.VMEM((Cin, H + 2, W + 2), jnp.float32),   # zero-bordered input
            pltpu.VMEM((Cin * 9, H, W), jnp.float32),       # staged shifted taps
            pltpu.VMEM((Cout, H, W), jnp.float32),          # IF membrane state
        ],
        compiler_params=pltpu.CompilerParams(
            dimension_semantics=("parallel", "arbitrary")),
        cost_estimate=cost,
    )(w_flat, scale, bias, x)


# ----------------------------------------------------------------------------
# Kernel 2: fused FC head — Linear(F,40) -> IF -> MultiPathChannel ->
#           Linear(40,40) -> IF -> Linear(40,110) -> IF -> VotingLayer(10).
# Single launch; membranes are loop-carried values across a static T loop.
# ----------------------------------------------------------------------------
def _fc_head_kernel(feat_ref, h_ref, n_ref, w1_ref, b1_ref, w2_ref, b2_ref,
                    w3_ref, b3_ref, vote_ref, o_ref, *, T, L, pad, inv_sqrt_2snr):
    N = feat_ref.shape[1]
    D1 = w1_ref.shape[1]

    def if_step(z, v):
        v = v + z
        spk = (v >= V_TH).astype(jnp.float32)
        return spk, jnp.where(spk > 0.0, 0.0, v)        # hard reset to 0

    # MultiPathChannel shift matrices: S_l[a, d] = 1 iff a == d + (l - pad), so
    # (s @ S_l)[n, d] = s[n, d + l - pad] with zero fill ('same' padding; odd L
    # assumed, matching the PyTorch module's ((L-1)//2, (L-1)//2) padding).
    row_i = jax.lax.broadcasted_iota(jnp.int32, (D1, D1), 0)
    col_i = jax.lax.broadcasted_iota(jnp.int32, (D1, D1), 1)
    shift_mats = [(row_i == col_i + (l - pad)).astype(jnp.float32)
                  for l in range(L)]

    v1 = jnp.zeros((N, w1_ref.shape[1]), jnp.float32)
    v2 = jnp.zeros((N, w2_ref.shape[1]), jnp.float32)
    v3 = jnp.zeros((N, w3_ref.shape[1]), jnp.float32)

    # Static unroll over T: weights stay resident in VMEM, no per-step pipeline
    # overhead.  (For very large T this should become a lax.fori_loop.)
    for t in range(T):
        feat = feat_ref[t].astype(jnp.float32)                           # [N, F]
        # Flatten -> Dropout(0.5) (eval: identity) -> Linear(F, 40) -> IF
        z = jnp.dot(feat, w1_ref[...], preferred_element_type=jnp.float32) + b1_ref[...]
        s1, v1 = if_step(z, v1)                                          # [N, D1]

        # MultiPathChannel: per-row FIR (grouped conv1d) + power-scaled AWGN.
        h = h_ref[t]                                                     # [N, L]
        acc = jnp.zeros_like(s1)
        for l in range(L):
            acc = acc + h[:, l:l + 1] * jnp.dot(
                s1, shift_mats[l], preferred_element_type=jnp.float32)
        power = jnp.sqrt(jnp.sum(s1 * s1, axis=1, keepdims=True)) * (
            1.0 / math.sqrt(D1))
        z = acc + n_ref[t] * inv_sqrt_2snr * power

        # conv_fc: Linear(40,40) -> IF -> Dropout(id) -> Linear(40,110) -> IF
        #          -> VotingLayer(10)
        z = jnp.dot(z, w2_ref[...], preferred_element_type=jnp.float32) + b2_ref[...]
        s2, v2 = if_step(z, v2)
        z = jnp.dot(s2, w3_ref[...], preferred_element_type=jnp.float32) + b3_ref[...]
        s3, v3 = if_step(z, v3)
        o_ref[t] = jnp.dot(s3, vote_ref[...], preferred_element_type=jnp.float32)


def fc_head(feat, h, noise, fc_params, snr_db):
    """feat: [T, N, F]; h: [T, N, L] channel taps; noise: [T, N, 40] AWGN draws."""
    T, N, F = feat.shape
    (w1, b1), (w2, b2), (w3, b3) = fc_params
    D1, D2, D3 = w1.shape[0], w2.shape[0], w3.shape[0]      # 40, 40, 110
    L = h.shape[-1]
    n_cls = D3 // 10
    # VotingLayer(10): average over groups of 10, expressed as a matmul.
    vote = (jnp.arange(D3)[:, None] // 10 == jnp.arange(n_cls)[None, :]
            ).astype(jnp.float32) * 0.1
    snr_lin = 10.0 ** (snr_db / 10.0)
    kern = functools.partial(_fc_head_kernel, T=T, L=L, pad=(L - 1) // 2,
                             inv_sqrt_2snr=1.0 / math.sqrt(2.0 * snr_lin))

    def full_spec(shape):
        return pl.BlockSpec(shape, lambda i: (0,) * len(shape))

    # Everything (a few KB) stays resident in VMEM for the whole head.
    # TODO(synk): for large N, add an N-blocked "parallel" grid axis so v7x's
    # second TensorCore also gets a share of the head.
    return pl.pallas_call(
        kern,
        out_shape=jax.ShapeDtypeStruct((T, N, n_cls), jnp.float32),
        grid=(1,),
        in_specs=[
            full_spec((T, N, F)),
            full_spec((T, N, L)),
            full_spec((T, N, D1)),
            full_spec((F, D1)), full_spec((1, D1)),           # Linear(F, 40)
            full_spec((D1, D2)), full_spec((1, D2)),          # Linear(40, 40)
            full_spec((D2, D3)), full_spec((1, D3)),          # Linear(40, 110)
            full_spec((D3, n_cls)),                           # voting matrix
        ],
        out_specs=full_spec((T, N, n_cls)),
        compiler_params=pltpu.CompilerParams(dimension_semantics=("arbitrary",)),
    )(feat, h, noise, w1.T, b1.reshape(1, D1), w2.T, b2.reshape(1, D2),
      w3.T, b3.reshape(1, D3), vote)


# ----------------------------------------------------------------------------
# Parameter init (synthetic, deterministic) and full forward.
# ----------------------------------------------------------------------------
def init_params(key, channels):
    params = {"conv": [], "fc": []}
    eps = 1e-5
    in_c = 2
    for _ in range(5):
        key, kw = jax.random.split(key)
        w = jax.random.normal(kw, (3, 3, in_c, channels), jnp.float32) / math.sqrt(9 * in_c)
        idx = jnp.arange(channels, dtype=jnp.float32)
        gamma = 1.0 + 0.05 * idx            # deterministic synthetic BN (eval mode)
        beta = 0.02 * idx
        running_mean = 0.01 * idx
        running_var = 1.0 + 0.1 * idx
        scale = gamma / jnp.sqrt(running_var + eps)
        bias = beta - running_mean * scale
        # [Cout, Cin*9] with k = ci*9 + dy*3 + dx (matches the kernel's tap order).
        w_flat = jnp.transpose(w, (3, 2, 0, 1)).reshape(channels, in_c * 9)
        params["conv"].append((w_flat, scale, bias))
        in_c = channels

    def linear(k, fan_in, fan_out):
        k1, k2 = jax.random.split(k)
        w = jax.random.normal(k1, (fan_out, fan_in), jnp.float32) / math.sqrt(fan_in)
        b = 0.01 * jax.random.normal(k2, (fan_out,), jnp.float32)
        return w, b

    key, k1, k2, k3 = jax.random.split(key, 4)
    params["fc"].append(linear(k1, channels * 4 * 4, 40))
    params["fc"].append(linear(k2, 40, 40))
    params["fc"].append(linear(k3, 40, 110))
    return params


def dvs_gesture_net_forward(x_tnchw, params, pdp, snr_db, key):
    T, N = x_tnchw.shape[0], x_tnchw.shape[1]
    y = x_tnchw.astype(jnp.bfloat16)                      # [T, N, C, H, W]

    # 5 x fused (Conv2d 3x3 pad=1 no-bias -> BatchNorm2d -> IF -> MaxPool2d(2,2)):
    # one pallas_call per layer, pooled bf16 spikes are the only HBM activations.
    for (w_flat, scale, bias) in params["conv"]:
        y = conv_bn_if_pool_layer(y, w_flat, scale, bias)

    C, H, W = y.shape[2], y.shape[3], y.shape[4]
    feat = y.reshape(T, N, C * H * W)          # Flatten: (C, H, W) order == PyTorch

    # MultiPathChannel randomness: rows ordered (t, n), matching x.view(B*T, -1)
    # on a [T, B, ...] tensor (T outer).  torch.randn -> deterministic jax draws.
    kh, kn = jax.random.split(key)
    L = pdp.shape[0]
    D1 = params["fc"][0][0].shape[0]
    h = ((1.0 / math.sqrt(2.0)) * jax.random.normal(kh, (T * N, L), jnp.float32)
         * pdp[None, :]).reshape(T, N, L)
    noise = jax.random.normal(kn, (T * N, D1), jnp.float32).reshape(T, N, D1)

    return fc_head(feat, h, noise, params["fc"], snr_db)


if __name__ == "__main__":
    # Spatial must be 128 so that 5 maxpools leave 4x4 (Linear(channels*4*4, 40)).
    T, N, channels, H, W = 2, 2, 4, 128, 128
    key = jax.random.PRNGKey(0)
    kx, kp, kc = jax.random.split(key, 3)
    x = jax.random.bernoulli(kx, 0.5, (T, N, 2, H, W)).astype(jnp.float32)
    params = init_params(kp, channels)
    pdp = jnp.array([0.6, 0.3, 0.1], jnp.float32)

    out = dvs_gesture_net_forward(x, params, pdp, snr_db=10.0, key=kc)
    out = jax.block_until_ready(out)
    assert out.shape == (T, N, 11) and out.dtype == jnp.float32
    print("KERNEL_OK")
</pallas_src>

<mosaic_0001>
module attributes {stable_mosaic.version = 11 : i64} {
  func.func @_conv_bn_if_pool_kernel(%arg0: i32, %arg1: i32, %arg2: memref<4x18xf32, #tpu.memory_space<smem>>, %arg3: memref<4xf32, #tpu.memory_space<smem>>, %arg4: memref<4xf32, #tpu.memory_space<smem>>, %arg5: memref<1x1x2x128x128xbf16, #tpu.memory_space<vmem>>, %arg6: memref<1x1x4x64x64xbf16, #tpu.memory_space<vmem>>, %arg7: memref<2x130x130xf32, #tpu.memory_space<vmem>>, %arg8: memref<18x128x128xf32, #tpu.memory_space<vmem>>, %arg9: memref<4x128x128xf32, #tpu.memory_space<vmem>>) attributes {dimension_semantics = [#tpu.dimension_semantics<parallel>, #tpu.dimension_semantics<arbitrary>], iteration_bounds = array<i64: 2, 2>, scalar_prefetch = 0 : i64, scratch_operands = 3 : i64, tpu.core_type = #tpu.core_type<tc>, window_params = [{transform_indices = @transform_0, window_bounds = array<i64: 4, 18>}, {transform_indices = @transform_1, window_bounds = array<i64: 4>}, {transform_indices = @transform_2, window_bounds = array<i64: 4>}, {transform_indices = @transform_3, window_bounds = array<i64: 1, 1, 2, 128, 128>}, {transform_indices = @transform_4, window_bounds = array<i64: 1, 1, 4, 64, 64>}]} {
    %c0_i32 = arith.constant 0 : i32
    %0 = arith.cmpi eq, %arg1, %c0_i32 : i32
    %1 = arith.extui %0 : i1 to i32
    %c0_i32_0 = arith.constant 0 : i32
    %2 = arith.cmpi ne, %1, %c0_i32_0 : i32
    scf.if %2 {
      %cst_498 = arith.constant 0.000000e+00 : f32
      %665 = vector.broadcast %cst_498 : f32 to vector<4x128x128xf32>
      %c0_499 = arith.constant 0 : index
      %c0_500 = arith.constant 0 : index
      %c0_501 = arith.constant 0 : index
      %666 = vector.load %arg9[%c0_499, %c0_500, %c0_501] : memref<4x128x128xf32, #tpu.memory_space<vmem>>, vector<4x128x128xf32>
      tpu.vector_store %arg9[%c0_499, %c0_500, %c0_501], %665 {strides = array<i32>} : memref<4x128x128xf32, #tpu.memory_space<vmem>>, vector<4x128x128xf32>,
      %cst_502 = arith.constant 0.000000e+00 : f32
      %667 = vector.broadcast %cst_502 : f32 to vector<2x130x130xf32>
      %c0_503 = arith.constant 0 : index
      %c0_504 = arith.constant 0 : index
      %c0_505 = arith.constant 0 : index
      %668 = vector.load %arg7[%c0_503, %c0_504, %c0_505] : memref<2x130x130xf32, #tpu.memory_space<vmem>>, vector<2x130x130xf32>
      tpu.vector_store %arg7[%c0_503, %c0_504, %c0_505], %667 {strides = array<i32>} : memref<2x130x130xf32, #tpu.memory_space<vmem>>, vector<2x130x130xf32>,
    } else {
    }
    %c0 = arith.constant 0 : index
    %c0_1 = arith.constant 0 : index
    %c0_2 = arith.constant 0 : index
    %c0_3 = arith.constant 0 : index
    %c0_4 = arith.constant 0 : index
    %3 = vector.load %arg5[%c0, %c0_1, %c0_2, %c0_3, %c0_4] : memref<1x1x2x128x128xbf16, #tpu.memory_space<vmem>>, vector<1x1x1x128x128xbf16>
    %4 = vector.shape_cast %3 : vector<1x1x1x128x128xbf16> to vector<128x128xbf16>
    %5 = arith.extf %4 : vector<128x128xbf16> to vector<128x128xf32>
    %c0_5 = arith.constant 0 : index
    %c1 = arith.constant 1 : index
    %c1_6 = arith.constant 1 : index
    %6 = vector.load %arg7[%c0_5, %c1, %c1_6] : memref<2x130x130xf32, #tpu.memory_space<vmem>>, vector<1x128x128xf32>
    %7 = vector.shape_cast %6 : vector<1x128x128xf32> to vector<128x128xf32>
    %8 = vector.shape_cast %5 : vector<128x128xf32> to vector<1x128x128xf32>
    tpu.vector_store %arg7[%c0_5, %c1, %c1_6], %8 {strides = array<i32>} : memref<2x130x130xf32, #tpu.memory_space<vmem>>, vector<1x128x128xf32>,
    %c0_7 = arith.constant 0 : index
    %c0_8 = arith.constant 0 : index
    %c0_9 = arith.constant 0 : index
    %9 = vector.load %arg7[%c0_7, %c0_8, %c0_9] : memref<2x130x130xf32, #tpu.memory_space<vmem>>, vector<1x130x130xf32>
    %10 = vector.shape_cast %9 : vector<1x130x130xf32> to vector<130x130xf32>
    %11 = vector.extract_strided_slice %10 {offsets = [0, 0], sizes = [128, 128], strides = [1, 1]} : vector<130x130xf32> to vector<128x128xf32>
    %c0_10 = arith.constant 0 : index
    %c0_11 = arith.constant 0 : index
    %c0_12 = arith.constant 0 : index
    %12 = vector.load %arg8[%c0_10, %c0_11, %c0_12] : memref<18x128x128xf32, #tpu.memory_space<vmem>>, vector<1x128x128xf32>
    %13 = vector.shape_cast %12 : vector<1x128x128xf32> to vector<128x128xf32>
    %14 = vector.shape_cast %11 : vector<128x128xf32> to vector<1x128x128xf32>
    tpu.vector_store %arg8[%c0_10, %c0_11, %c0_12], %14 {strides = array<i32>} : memref<18x128x128xf32, #tpu.memory_space<vmem>>, vector<1x128x128xf32>,
    %15 = vector.extract_strided_slice %10 {offsets = [0, 1], sizes = [128, 128], strides = [1, 1]} : vector<130x130xf32> to vector<128x128xf32>
    %c1_13 = arith.constant 1 : index
    %c0_14 = arith.constant 0 : index
    %c0_15 = arith.constant 0 : index
    %16 = vector.load %arg8[%c1_13, %c0_14, %c0_15] : memref<18x128x128xf32, #tpu.memory_space<vmem>>, vector<1x128x128xf32>
    %17 = vector.shape_cast %16 : vector<1x128x128xf32> to vector<128x128xf32>
    %18 = vector.shape_cast %15 : vector<128x128xf32> to vector<1x128x128xf32>
    tpu.vector_store %arg8[%c1_13, %c0_14, %c0_15], %18 {strides = array<i32>} : memref<18x128x128xf32, #tpu.memory_space<vmem>>, vector<1x128x128xf32>,
    %19 = vector.extract_strided_slice %10 {offsets = [0, 2], sizes = [128, 128], strides = [1, 1]} : vector<130x130xf32> to vector<128x128xf32>
    %c2 = arith.constant 2 : index
    %c0_16 = arith.constant 0 : index
    %c0_17 = arith.constant 0 : index
    %20 = vector.load %arg8[%c2, %c0_16, %c0_17] : memref<18x128x128xf32, #tpu.memory_space<vmem>>, vector<1x128x128xf32>
    %21 = vector.shape_cast %20 : vector<1x128x128xf32> to vector<128x128xf32>
    %22 = vector.shape_cast %19 : vector<128x128xf32> to vector<1x128x128xf32>
    tpu.vector_store %arg8[%c2, %c0_16, %c0_17], %22 {strides = array<i32>} : memref<18x128x128xf32, #tpu.memory_space<vmem>>, vector<1x128x128xf32>,
    %23 = vector.extract_strided_slice %10 {offsets = [1, 0], sizes = [128, 128], strides = [1, 1]} : vector<130x130xf32> to vector<128x128xf32>
    %c3 = arith.constant 3 : index
    %c0_18 = arith.constant 0 : index
    %c0_19 = arith.constant 0 : index
    %24 = vector.load %arg8[%c3, %c0_18, %c0_19] : memref<18x128x128xf32, #tpu.memory_space<vmem>>, vector<1x128x128xf32>
    %25 = vector.shape_cast %24 : vector<1x128x128xf32> to vector<128x128xf32>
    %26 = vector.shape_cast %23 : vector<128x128xf32> to vector<1x128x128xf32>
    tpu.vector_store %arg8[%c3, %c0_18, %c0_19], %26 {strides = array<i32>} : memref<18x128x128xf32, #tpu.memory_space<vmem>>, vector<1x128x128xf32>,
    %27 = vector.extract_strided_slice %10 {offsets = [1, 1], sizes = [128, 128], strides = [1, 1]} : vector<130x130xf32> to vector<128x128xf32>
    %c4 = arith.constant 4 : index
    %c0_20 = arith.constant 0 : index
    %c0_21 = arith.constant 0 : index
    %28 = vector.load %arg8[%c4, %c0_20, %c0_21] : memref<18x128x128xf32, #tpu.memory_space<vmem>>, vector<1x128x128xf32>
    %29 = vector.shape_cast %28 : vector<1x128x128xf32> to vector<128x128xf32>
    %30 = vector.shape_cast %27 : vector<128x128xf32> to vector<1x128x128xf32>
    tpu.vector_store %arg8[%c4, %c0_20, %c0_21], %30 {strides = array<i32>} : memref<18x128x128xf32, #tpu.memory_space<vmem>>, vector<1x128x128xf32>,
    %31 = vector.extract_strided_slice %10 {offsets = [1, 2], sizes = [128, 128], strides = [1, 1]} : vector<130x130xf32> to vector<128x128xf32>
    %c5 = arith.constant 5 : index
    %c0_22 = arith.constant 0 : index
    %c0_23 = arith.constant 0 : index
    %32 = vector.load %arg8[%c5, %c0_22, %c0_23] : memref<18x128x128xf32, #tpu.memory_space<vmem>>, vector<1x128x128xf32>
    %33 = vector.shape_cast %32 : vector<1x128x128xf32> to vector<128x128xf32>
    %34 = vector.shape_cast %31 : vector<128x128xf32> to vector<1x128x128xf32>
    tpu.vector_store %arg8[%c5, %c0_22, %c0_23], %34 {strides = array<i32>} : memref<18x128x128xf32, #tpu.memory_space<vmem>>, vector<1x128x128xf32>,
    %35 = vector.extract_strided_slice %10 {offsets = [2, 0], sizes = [128, 128], strides = [1, 1]} : vector<130x130xf32> to vector<128x128xf32>
    %c6 = arith.constant 6 : index
    %c0_24 = arith.constant 0 : index
    %c0_25 = arith.constant 0 : index
    %36 = vector.load %arg8[%c6, %c0_24, %c0_25] : memref<18x128x128xf32, #tpu.memory_space<vmem>>, vector<1x128x128xf32>
    %37 = vector.shape_cast %36 : vector<1x128x128xf32> to vector<128x128xf32>
    %38 = vector.shape_cast %35 : vector<128x128xf32> to vector<1x128x128xf32>
    tpu.vector_store %arg8[%c6, %c0_24, %c0_25], %38 {strides = array<i32>} : memref<18x128x128xf32, #tpu.memory_space<vmem>>, vector<1x128x128xf32>,
    %39 = vector.extract_strided_slice %10 {offsets = [2, 1], sizes = [128, 128], strides = [1, 1]} : vector<130x130xf32> to vector<128x128xf32>
    %c7 = arith.constant 7 : index
    %c0_26 = arith.constant 0 : index
    %c0_27 = arith.constant 0 : index
    %40 = vector.load %arg8[%c7, %c0_26, %c0_27] : memref<18x128x128xf32, #tpu.memory_space<vmem>>, vector<1x128x128xf32>
    %41 = vector.shape_cast %40 : vector<1x128x128xf32> to vector<128x128xf32>
    %42 = vector.shape_cast %39 : vector<128x128xf32> to vector<1x128x128xf32>
    tpu.vector_store %arg8[%c7, %c0_26, %c0_27], %42 {strides = array<i32>} : memref<18x128x128xf32, #tpu.memory_space<vmem>>, vector<1x128x128xf32>,
    %43 = vector.extract_strided_slice %10 {offsets = [2, 2], sizes = [128, 128], strides = [1, 1]} : vector<130x130xf32> to vector<128x128xf32>
    %c8 = arith.constant 8 : index
    %c0_28 = arith.constant 0 : index
    %c0_29 = arith.constant 0 : index
    %44 = vector.load %arg8[%c8, %c0_28, %c0_29] : memref<18x128x128xf32, #tpu.memory_space<vmem>>, vector<1x128x128xf32>
    %45 = vector.shape_cast %44 : vector<1x128x128xf32> to vector<128x128xf32>
    %46 = vector.shape_cast %43 : vector<128x128xf32> to vector<1x128x128xf32>
    tpu.vector_store %arg8[%c8, %c0_28, %c0_29], %46 {strides = array<i32>} : memref<18x128x128xf32, #tpu.memory_space<vmem>>, vector<1x128x128xf32>,
    %c0_30 = arith.constant 0 : index
    %c0_31 = arith.constant 0 : index
    %c1_32 = arith.constant 1 : index
    %c0_33 = arith.constant 0 : index
    %c0_34 = arith.constant 0 : index
    %47 = vector.load %arg5[%c0_30, %c0_31, %c1_32, %c0_33, %c0_34] : memref<1x1x2x128x128xbf16, #tpu.memory_space<vmem>>, vector<1x1x1x128x128xbf16>
    %48 = vector.shape_cast %47 : vector<1x1x1x128x128xbf16> to vector<128x128xbf16>
    %49 = arith.extf %48 : vector<128x128xbf16> to vector<128x128xf32>
    %c1_35 = arith.constant 1 : index
    %c1_36 = arith.constant 1 : index
    %c1_37 = arith.constant 1 : index
    %50 = vector.load %arg7[%c1_35, %c1_36, %c1_37] : memref<2x130x130xf32, #tpu.memory_space<vmem>>, vector<1x128x128xf32>
    %51 = vector.shape_cast %50 : vector<1x128x128xf32> to vector<128x128xf32>
    %52 = vector.shape_cast %49 : vector<128x128xf32> to vector<1x128x128xf32>
    tpu.vector_store %arg7[%c1_35, %c1_36, %c1_37], %52 {strides = array<i32>} : memref<2x130x130xf32, #tpu.memory_space<vmem>>, vector<1x128x128xf32>,
    %c1_38 = arith.constant 1 : index
    %c0_39 = arith.constant 0 : index
    %c0_40 = arith.constant 0 : index
    %53 = vector.load %arg7[%c1_38, %c0_39, %c0_40] : memref<2x130x130xf32, #tpu.memory_space<vmem>>, vector<1x130x130xf32>
    %54 = vector.shape_cast %53 : vector<1x130x130xf32> to vector<130x130xf32>
    %55 = vector.extract_strided_slice %54 {offsets = [0, 0], sizes = [128, 128], strides = [1, 1]} : vector<130x130xf32> to vector<128x128xf32>
    %c9 = arith.constant 9 : index
    %c0_41 = arith.constant 0 : index
    %c0_42 = arith.constant 0 : index
    %56 = vector.load %arg8[%c9, %c0_41, %c0_42] : memref<18x128x128xf32, #tpu.memory_space<vmem>>, vector<1x128x128xf32>
    %57 = vector.shape_cast %56 : vector<1x128x128xf32> to vector<128x128xf32>
    %58 = vector.shape_cast %55 : vector<128x128xf32> to vector<1x128x128xf32>
    tpu.vector_store %arg8[%c9, %c0_41, %c0_42], %58 {strides = array<i32>} : memref<18x128x128xf32, #tpu.memory_space<vmem>>, vector<1x128x128xf32>,
    %59 = vector.extract_strided_slice %54 {offsets = [0, 1], sizes = [128, 128], strides = [1, 1]} : vector<130x130xf32> to vector<128x128xf32>
    %c10 = arith.constant 10 : index
    %c0_43 = arith.constant 0 : index
    %c0_44 = arith.constant 0 : index
    %60 = vector.load %arg8[%c10, %c0_43, %c0_44] : memref<18x128x128xf32, #tpu.memory_space<vmem>>, vector<1x128x128xf32>
    %61 = vector.shape_cast %60 : vector<1x128x128xf32> to vector<128x128xf32>
    %62 = vector.shape_cast %59 : vector<128x128xf32> to vector<1x128x128xf32>
    tpu.vector_store %arg8[%c10, %c0_43, %c0_44], %62 {strides = array<i32>} : memref<18x128x128xf32, #tpu.memory_space<vmem>>, vector<1x128x128xf32>,
    %63 = vector.extract_strided_slice %54 {offsets = [0, 2], sizes = [128, 128], strides = [1, 1]} : vector<130x130xf32> to vector<128x128xf32>
    %c11 = arith.constant 11 : index
    %c0_45 = arith.constant 0 : index
    %c0_46 = arith.constant 0 : index
    %64 = vector.load %arg8[%c11, %c0_45, %c0_46] : memref<18x128x128xf32, #tpu.memory_space<vmem>>, vector<1x128x128xf32>
    %65 = vector.shape_cast %64 : vector<1x128x128xf32> to vector<128x128xf32>
    %66 = vector.shape_cast %63 : vector<128x128xf32> to vector<1x128x128xf32>
    tpu.vector_store %arg8[%c11, %c0_45, %c0_46], %66 {strides = array<i32>} : memref<18x128x128xf32, #tpu.memory_space<vmem>>, vector<1x128x128xf32>,
    %67 = vector.extract_strided_slice %54 {offsets = [1, 0], sizes = [128, 128], strides = [1, 1]} : vector<130x130xf32> to vector<128x128xf32>
    %c12 = arith.constant 12 : index
    %c0_47 = arith.constant 0 : index
    %c0_48 = arith.constant 0 : index
    %68 = vector.load %arg8[%c12, %c0_47, %c0_48] : memref<18x128x128xf32, #tpu.memory_space<vmem>>, vector<1x128x128xf32>
    %69 = vector.shape_cast %68 : vector<1x128x128xf32> to vector<128x128xf32>
    %70 = vector.shape_cast %67 : vector<128x128xf32> to vector<1x128x128xf32>
    tpu.vector_store %arg8[%c12, %c0_47, %c0_48], %70 {strides = array<i32>} : memref<18x128x128xf32, #tpu.memory_space<vmem>>, vector<1x128x128xf32>,
    %71 = vector.extract_strided_slice %54 {offsets = [1, 1], sizes = [128, 128], strides = [1, 1]} : vector<130x130xf32> to vector<128x128xf32>
    %c13 = arith.constant 13 : index
    %c0_49 = arith.constant 0 : index
    %c0_50 = arith.constant 0 : index
    %72 = vector.load %arg8[%c13, %c0_49, %c0_50] : memref<18x128x128xf32, #tpu.memory_space<vmem>>, vector<1x128x128xf32>
    %73 = vector.shape_cast %72 : vector<1x128x128xf32> to vector<128x128xf32>
    %74 = vector.shape_cast %71 : vector<128x128xf32> to vector<1x128x128xf32>
    tpu.vector_store %arg8[%c13, %c0_49, %c0_50], %74 {strides = array<i32>} : memref<18x128x128xf32, #tpu.memory_space<vmem>>, vector<1x128x128xf32>,
    %75 = vector.extract_strided_slice %54 {offsets = [1, 2], sizes = [128, 128], strides = [1, 1]} : vector<130x130xf32> to vector<128x128xf32>
    %c14 = arith.constant 14 : index
    %c0_51 = arith.constant 0 : index
    %c0_52 = arith.constant 0 : index
    %76 = vector.load %arg8[%c14, %c0_51, %c0_52] : memref<18x128x128xf32, #tpu.memory_space<vmem>>, vector<1x128x128xf32>
    %77 = vector.shape_cast %76 : vector<1x128x128xf32> to vector<128x128xf32>
    %78 = vector.shape_cast %75 : vector<128x128xf32> to vector<1x128x128xf32>
    tpu.vector_store %arg8[%c14, %c0_51, %c0_52], %78 {strides = array<i32>} : memref<18x128x128xf32, #tpu.memory_space<vmem>>, vector<1x128x128xf32>,
    %79 = vector.extract_strided_slice %54 {offsets = [2, 0], sizes = [128, 128], strides = [1, 1]} : vector<130x130xf32> to vector<128x128xf32>
    %c15 = arith.constant 15 : index
    %c0_53 = arith.constant 0 : index
    %c0_54 = arith.constant 0 : index
    %80 = vector.load %arg8[%c15, %c0_53, %c0_54] : memref<18x128x128xf32, #tpu.memory_space<vmem>>, vector<1x128x128xf32>
    %81 = vector.shape_cast %80 : vector<1x128x128xf32> to vector<128x128xf32>
    %82 = vector.shape_cast %79 : vector<128x128xf32> to vector<1x128x128xf32>
    tpu.vector_store %arg8[%c15, %c0_53, %c0_54], %82 {strides = array<i32>} : memref<18x128x128xf32, #tpu.memory_space<vmem>>, vector<1x128x128xf32>,
    %83 = vector.extract_strided_slice %54 {offsets = [2, 1], sizes = [128, 128], strides = [1, 1]} : vector<130x130xf32> to vector<128x128xf32>
    %c16 = arith.constant 16 : index
    %c0_55 = arith.constant 0 : index
    %c0_56 = arith.constant 0 : index
    %84 = vector.load %arg8[%c16, %c0_55, %c0_56] : memref<18x128x128xf32, #tpu.memory_space<vmem>>, vector<1x128x128xf32>
    %85 = vector.shape_cast %84 : vector<1x128x128xf32> to vector<128x128xf32>
    %86 = vector.shape_cast %83 : vector<128x128xf32> to vector<1x128x128xf32>
    tpu.vector_store %arg8[%c16, %c0_55, %c0_56], %86 {strides = array<i32>} : memref<18x128x128xf32, #tpu.memory_space<vmem>>, vector<1x128x128xf32>,
    %87 = vector.extract_strided_slice %54 {offsets = [2, 2], sizes = [128, 128], strides = [1, 1]} : vector<130x130xf32> to vector<128x128xf32>
    %c17 = arith.constant 17 : index
    %c0_57 = arith.constant 0 : index
    %c0_58 = arith.constant 0 : index
    %88 = vector.load %arg8[%c17, %c0_57, %c0_58] : memref<18x128x128xf32, #tpu.memory_space<vmem>>, vector<1x128x128xf32>
    %89 = vector.shape_cast %88 : vector<1x128x128xf32> to vector<128x128xf32>
    %90 = vector.shape_cast %87 : vector<128x128xf32> to vector<1x128x128xf32>
    tpu.vector_store %arg8[%c17, %c0_57, %c0_58], %90 {strides = array<i32>} : memref<18x128x128xf32, #tpu.memory_space<vmem>>, vector<1x128x128xf32>,
    %91 = tpu.iota {dimensions = array<i32: 0>} : vector<64x128xi32>
    %92 = tpu.iota {dimensions = array<i32: 1>} : vector<64x128xi32>
    %c2_i32 = arith.constant 2 : i32
    %93 = vector.broadcast %c2_i32 : i32 to vector<64x128xi32>
    %94 = arith.muli %93, %91 : vector<64x128xi32>
    %95 = arith.cmpi eq, %92, %94 : vector<64x128xi32>
    %c2_i32_59 = arith.constant 2 : i32
    %96 = vector.broadcast %c2_i32_59 : i32 to vector<64x128xi32>
    %97 = arith.muli %96, %91 : vector<64x128xi32>
    %c1_i32 = arith.constant 1 : i32
    %98 = vector.broadcast %c1_i32 : i32 to vector<64x128xi32>
    %99 = arith.addi %97, %98 : vector<64x128xi32>
    %100 = arith.cmpi eq, %92, %99 : vector<64x128xi32>
    %101 = arith.ori %95, %100 : vector<64x128xi1>
    %102 = arith.extui %101 : vector<64x128xi1> to vector<64x128xi32>
    %103 = arith.sitofp %102 : vector<64x128xi32> to vector<64x128xf32>
    %104 = tpu.iota {dimensions = array<i32: 0>} : vector<128x64xi32>
    %105 = tpu.iota {dimensions = array<i32: 1>} : vector<128x64xi32>
    %c2_i32_60 = arith.constant 2 : i32
    %106 = vector.broadcast %c2_i32_60 : i32 to vector<128x64xi32>
    %107 = arith.muli %106, %105 : vector<128x64xi32>
    %108 = arith.cmpi eq, %104, %107 : vector<128x64xi32>
    %c2_i32_61 = arith.constant 2 : i32
    %109 = vector.broadcast %c2_i32_61 : i32 to vector<128x64xi32>
    %110 = arith.muli %109, %105 : vector<128x64xi32>
    %c1_i32_62 = arith.constant 1 : i32
    %111 = vector.broadcast %c1_i32_62 : i32 to vector<128x64xi32>
    %112 = arith.addi %110, %111 : vector<128x64xi32>
    %113 = arith.cmpi eq, %104, %112 : vector<128x64xi32>
    %114 = arith.ori %108, %113 : vector<128x64xi1>
    %115 = arith.extui %114 : vector<128x64xi1> to vector<128x64xi32>
    %116 = arith.sitofp %115 : vector<128x64xi32> to vector<128x64xf32>
    %c0_63 = arith.constant 0 : index
    %c0_64 = arith.constant 0 : index
    %117 = memref.load %arg2[%c0_63, %c0_64] : memref<4x18xf32, #tpu.memory_space<smem>>
    %c0_65 = arith.constant 0 : index
    %c0_66 = arith.constant 0 : index
    %c0_67 = arith.constant 0 : index
    %118 = vector.load %arg8[%c0_65, %c0_66, %c0_67] : memref<18x128x128xf32, #tpu.memory_space<vmem>>, vector<1x128x128xf32>
    %119 = vector.shape_cast %118 : vector<1x128x128xf32> to vector<128x128xf32>
    %120 = vector.broadcast %117 : f32 to vector<128x128xf32>
    %121 = arith.mulf %120, %119 : vector<128x128xf32>
    %c0_68 = arith.constant 0 : index
    %c1_69 = arith.constant 1 : index
    %122 = memref.load %arg2[%c0_68, %c1_69] : memref<4x18xf32, #tpu.memory_space<smem>>
    %c1_70 = arith.constant 1 : index
    %c0_71 = arith.constant 0 : index
    %c0_72 = arith.constant 0 : index
    %123 = vector.load %arg8[%c1_70, %c0_71, %c0_72] : memref<18x128x128xf32, #tpu.memory_space<vmem>>, vector<1x128x128xf32>
    %124 = vector.shape_cast %123 : vector<1x128x128xf32> to vector<128x128xf32>
    %125 = vector.broadcast %122 : f32 to vector<128x128xf32>
    %126 = arith.mulf %125, %124 : vector<128x128xf32>
    %127 = arith.addf %121, %126 : vector<128x128xf32>
    %c0_73 = arith.constant 0 : index
    %c2_74 = arith.constant 2 : index
    %128 = memref.load %arg2[%c0_73, %c2_74] : memref<4x18xf32, #tpu.memory_space<smem>>
    %c2_75 = arith.constant 2 : index
    %c0_76 = arith.constant 0 : index
    %c0_77 = arith.constant 0 : index
    %129 = vector.load %arg8[%c2_75, %c0_76, %c0_77] : memref<18x128x128xf32, #tpu.memory_space<vmem>>, vector<1x128x128xf32>
    %130 = vector.shape_cast %129 : vector<1x128x128xf32> to vector<128x128xf32>
    %131 = vector.broadcast %128 : f32 to vector<128x128xf32>
    %132 = arith.mulf %131, %130 : vector<128x128xf32>
    %133 = arith.addf %127, %132 : vector<128x128xf32>
    %c0_78 = arith.constant 0 : index
    %c3_79 = arith.constant 3 : index
    %134 = memref.load %arg2[%c0_78, %c3_79] : memref<4x18xf32, #tpu.memory_space<smem>>
    %c3_80 = arith.constant 3 : index
    %c0_81 = arith.constant 0 : index
    %c0_82 = arith.constant 0 : index
    %135 = vector.load %arg8[%c3_80, %c0_81, %c0_82] : memref<18x128x128xf32, #tpu.memory_space<vmem>>, vector<1x128x128xf32>
    %136 = vector.shape_cast %135 : vector<1x128x128xf32> to vector<128x128xf32>
    %137 = vector.broadcast %134 : f32 to vector<128x128xf32>
    %138 = arith.mulf %137, %136 : vector<128x128xf32>
    %139 = arith.addf %133, %138 : vector<128x128xf32>
    %c0_83 = arith.constant 0 : index
    %c4_84 = arith.constant 4 : index
    %140 = memref.load %arg2[%c0_83, %c4_84] : memref<4x18xf32, #tpu.memory_space<smem>>
    %c4_85 = arith.constant 4 : index
    %c0_86 = arith.constant 0 : index
    %c0_87 = arith.constant 0 : index
    %141 = vector.load %arg8[%c4_85, %c0_86, %c0_87] : memref<18x128x128xf32, #tpu.memory_space<vmem>>, vector<1x128x128xf32>
    %142 = vector.shape_cast %141 : vector<1x128x128xf32> to vector<128x128xf32>
    %143 = vector.broadcast %140 : f32 to vector<128x128xf32>
    %144 = arith.mulf %143, %142 : vector<128x128xf32>
    %145 = arith.addf %139, %144 : vector<128x128xf32>
    %c0_88 = arith.constant 0 : index
    %c5_89 = arith.constant 5 : index
    %146 = memref.load %arg2[%c0_88, %c5_89] : memref<4x18xf32, #tpu.memory_space<smem>>
    %c5_90 = arith.constant 5 : index
    %c0_91 = arith.constant 0 : index
    %c0_92 = arith.constant 0 : index
    %147 = vector.load %arg8[%c5_90, %c0_91, %c0_92] : memref<18x128x128xf32, #tpu.memory_space<vmem>>, vector<1x128x128xf32>
    %148 = vector.shape_cast %147 : vector<1x128x128xf32> to vector<128x128xf32>
    %149 = vector.broadcast %146 : f32 to vector<128x128xf32>
    %150 = arith.mulf %149, %148 : vector<128x128xf32>
    %151 = arith.addf %145, %150 : vector<128x128xf32>
    %c0_93 = arith.constant 0 : index
    %c6_94 = arith.constant 6 : index
    %152 = memref.load %arg2[%c0_93, %c6_94] : memref<4x18xf32, #tpu.memory_space<smem>>
    %c6_95 = arith.constant 6 : index
    %c0_96 = arith.constant 0 : index
    %c0_97 = arith.constant 0 : index
    %153 = vector.load %arg8[%c6_95, %c0_96, %c0_97] : memref<18x128x128xf32, #tpu.memory_space<vmem>>, vector<1x128x128xf32>
    %154 = vector.shape_cast %153 : vector<1x128x128xf32> to vector<128x128xf32>
    %155 = vector.broadcast %152 : f32 to vector<128x128xf32>
    %156 = arith.mulf %155, %154 : vector<128x128xf32>
    %157 = arith.addf %151, %156 : vector<128x128xf32>
    %c0_98 = arith.constant 0 : index
    %c7_99 = arith.constant 7 : index
    %158 = memref.load %arg2[%c0_98, %c7_99] : memref<4x18xf32, #tpu.memory_space<smem>>
    %c7_100 = arith.constant 7 : index
    %c0_101 = arith.constant 0 : index
    %c0_102 = arith.constant 0 : index
    %159 = vector.load %arg8[%c7_100, %c0_101, %c0_102] : memref<18x128x128xf32, #tpu.memory_space<vmem>>, vector<1x128x128xf32>
    %160 = vector.shape_cast %159 : vector<1x128x128xf32> to vector<128x128xf32>
    %161 = vector.broadcast %158 : f32 to vector<128x128xf32>
    %162 = arith.mulf %161, %160 : vector<128x128xf32>
    %163 = arith.addf %157, %162 : vector<128x128xf32>
    %c0_103 = arith.constant 0 : index
    %c8_104 = arith.constant 8 : index
    %164 = memref.load %arg2[%c0_103, %c8_104] : memref<4x18xf32, #tpu.memory_space<smem>>
    %c8_105 = arith.constant 8 : index
    %c0_106 = arith.constant 0 : index
    %c0_107 = arith.constant 0 : index
    %165 = vector.load %arg8[%c8_105, %c0_106, %c0_107] : memref<18x128x128xf32, #tpu.memory_space<vmem>>, vector<1x128x128xf32>
    %166 = vector.shape_cast %165 : vector<1x128x128xf32> to vector<128x128xf32>
    %167 = vector.broadcast %164 : f32 to vector<128x128xf32>
    %168 = arith.mulf %167, %166 : vector<128x128xf32>
    %169 = arith.addf %163, %168 : vector<128x128xf32>
    %c0_108 = arith.constant 0 : index
    %c9_109 = arith.constant 9 : index
    %170 = memref.load %arg2[%c0_108, %c9_109] : memref<4x18xf32, #tpu.memory_space<smem>>
    %c9_110 = arith.constant 9 : index
    %c0_111 = arith.constant 0 : index
    %c0_112 = arith.constant 0 : index
    %171 = vector.load %arg8[%c9_110, %c0_111, %c0_112] : memref<18x128x128xf32, #tpu.memory_space<vmem>>, vector<1x128x128xf32>
    %172 = vector.shape_cast %171 : vector<1x128x128xf32> to vector<128x128xf32>
    %173 = vector.broadcast %170 : f32 to vector<128x128xf32>
    %174 = arith.mulf %173, %172 : vector<128x128xf32>
    %175 = arith.addf %169, %174 : vector<128x128xf32>
    %c0_113 = arith.constant 0 : index
    %c10_114 = arith.constant 10 : index
    %176 = memref.load %arg2[%c0_113, %c10_114] : memref<4x18xf32, #tpu.memory_space<smem>>
    %c10_115 = arith.constant 10 : index
    %c0_116 = arith.constant 0 : index
    %c0_117 = arith.constant 0 : index
    %177 = vector.load %arg8[%c10_115, %c0_116, %c0_117] : memref<18x128x128xf32, #tpu.memory_space<vmem>>, vector<1x128x128xf32>
    %178 = vector.shape_cast %177 : vector<1x128x128xf32> to vector<128x128xf32>
    %179 = vector.broadcast %176 : f32 to vector<128x128xf32>
    %180 = arith.mulf %179, %178 : vector<128x128xf32>
    %181 = arith.addf %175, %180 : vector<128x128xf32>
    %c0_118 = arith.constant 0 : index
    %c11_119 = arith.constant 11 : index
    %182 = memref.load %arg2[%c0_118, %c11_119] : memref<4x18xf32, #tpu.memory_space<smem>>
    %c11_120 = arith.constant 11 : index
    %c0_121 = arith.constant 0 : index
    %c0_122 = arith.constant 0 : index
    %183 = vector.load %arg8[%c11_120, %c0_121, %c0_122] : memref<18x128x128xf32, #tpu.memory_space<vmem>>, vector<1x128x128xf32>
    %184 = vector.shape_cast %183 : vector<1x128x128xf32> to vector<128x128xf32>
    %185 = vector.broadcast %182 : f32 to vector<128x128xf32>
    %186 = arith.mulf %185, %184 : vector<128x128xf32>
    %187 = arith.addf %181, %186 : vector<128x128xf32>
    %c0_123 = arith.constant 0 : index
    %c12_124 = arith.constant 12 : index
    %188 = memref.load %arg2[%c0_123, %c12_124] : memref<4x18xf32, #tpu.memory_space<smem>>
    %c12_125 = arith.constant 12 : index
    %c0_126 = arith.constant 0 : index
    %c0_127 = arith.constant 0 : index
    %189 = vector.load %arg8[%c12_125, %c0_126, %c0_127] : memref<18x128x128xf32, #tpu.memory_space<vmem>>, vector<1x128x128xf32>
    %190 = vector.shape_cast %189 : vector<1x128x128xf32> to vector<128x128xf32>
    %191 = vector.broadcast %188 : f32 to vector<128x128xf32>
    %192 = arith.mulf %191, %190 : vector<128x128xf32>
    %193 = arith.addf %187, %192 : vector<128x128xf32>
    %c0_128 = arith.constant 0 : index
    %c13_129 = arith.constant 13 : index
    %194 = memref.load %arg2[%c0_128, %c13_129] : memref<4x18xf32, #tpu.memory_space<smem>>
    %c13_130 = arith.constant 13 : index
    %c0_131 = arith.constant 0 : index
    %c0_132 = arith.constant 0 : index
    %195 = vector.load %arg8[%c13_130, %c0_131, %c0_132] : memref<18x128x128xf32, #tpu.memory_space<vmem>>, vector<1x128x128xf32>
    %196 = vector.shape_cast %195 : vector<1x128x128xf32> to vector<128x128xf32>
    %197 = vector.broadcast %194 : f32 to vector<128x128xf32>
    %198 = arith.mulf %197, %196 : vector<128x128xf32>
    %199 = arith.addf %193, %198 : vector<128x128xf32>
    %c0_133 = arith.constant 0 : index
    %c14_134 = arith.constant 14 : index
    %200 = memref.load %arg2[%c0_133, %c14_134] : memref<4x18xf32, #tpu.memory_space<smem>>
    %c14_135 = arith.constant 14 : index
    %c0_136 = arith.constant 0 : index
    %c0_137 = arith.constant 0 : index
    %201 = vector.load %arg8[%c14_135, %c0_136, %c0_137] : memref<18x128x128xf32, #tpu.memory_space<vmem>>, vector<1x128x128xf32>
    %202 = vector.shape_cast %201 : vector<1x128x128xf32> to vector<128x128xf32>
    %203 = vector.broadcast %200 : f32 to vector<128x128xf32>
    %204 = arith.mulf %203, %202 : vector<128x128xf32>
    %205 = arith.addf %199, %204 : vector<128x128xf32>
    %c0_138 = arith.constant 0 : index
    %c15_139 = arith.constant 15 : index
    %206 = memref.load %arg2[%c0_138, %c15_139] : memref<4x18xf32, #tpu.memory_space<smem>>
    %c15_140 = arith.constant 15 : index
    %c0_141 = arith.constant 0 : index
    %c0_142 = arith.constant 0 : index
    %207 = vector.load %arg8[%c15_140, %c0_141, %c0_142] : memref<18x128x128xf32, #tpu.memory_space<vmem>>, vector<1x128x128xf32>
    %208 = vector.shape_cast %207 : vector<1x128x128xf32> to vector<128x128xf32>
    %209 = vector.broadcast %206 : f32 to vector<128x128xf32>
    %210 = arith.mulf %209, %208 : vector<128x128xf32>
    %211 = arith.addf %205, %210 : vector<128x128xf32>
    %c0_143 = arith.constant 0 : index
    %c16_144 = arith.constant 16 : index
    %212 = memref.load %arg2[%c0_143, %c16_144] : memref<4x18xf32, #tpu.memory_space<smem>>
    %c16_145 = arith.constant 16 : index
    %c0_146 = arith.constant 0 : index
    %c0_147 = arith.constant 0 : index
    %213 = vector.load %arg8[%c16_145, %c0_146, %c0_147] : memref<18x128x128xf32, #tpu.memory_space<vmem>>, vector<1x128x128xf32>
    %214 = vector.shape_cast %213 : vector<1x128x128xf32> to vector<128x128xf32>
    %215 = vector.broadcast %212 : f32 to vector<128x128xf32>
    %216 = arith.mulf %215, %214 : vector<128x128xf32>
    %217 = arith.addf %211, %216 : vector<128x128xf32>
    %c0_148 = arith.constant 0 : index
    %c17_149 = arith.constant 17 : index
    %218 = memref.load %arg2[%c0_148, %c17_149] : memref<4x18xf32, #tpu.memory_space<smem>>
    %c17_150 = arith.constant 17 : index
    %c0_151 = arith.constant 0 : index
    %c0_152 = arith.constant 0 : index
    %219 = vector.load %arg8[%c17_150, %c0_151, %c0_152] : memref<18x128x128xf32, #tpu.memory_space<vmem>>, vector<1x128x128xf32>
    %220 = vector.shape_cast %219 : vector<1x128x128xf32> to vector<128x128xf32>
    %221 = vector.broadcast %218 : f32 to vector<128x128xf32>
    %222 = arith.mulf %221, %220 : vector<128x128xf32>
    %223 = arith.addf %217, %222 : vector<128x128xf32>
    %c0_153 = arith.constant 0 : index
    %224 = memref.load %arg3[%c0_153] : memref<4xf32, #tpu.memory_space<smem>>
    %225 = vector.broadcast %224 : f32 to vector<128x128xf32>
    %226 = arith.mulf %223, %225 : vector<128x128xf32>
    %c0_154 = arith.constant 0 : index
    %227 = memref.load %arg4[%c0_154] : memref<4xf32, #tpu.memory_space<smem>>
    %228 = vector.broadcast %227 : f32 to vector<128x128xf32>
    %229 = arith.addf %226, %228 : vector<128x128xf32>
    %c0_155 = arith.constant 0 : index
    %c0_156 = arith.constant 0 : index
    %c0_157 = arith.constant 0 : index
    %230 = vector.load %arg9[%c0_155, %c0_156, %c0_157] : memref<4x128x128xf32, #tpu.memory_space<vmem>>, vector<1x128x128xf32>
    %231 = vector.shape_cast %230 : vector<1x128x128xf32> to vector<128x128xf32>
    %232 = arith.addf %231, %229 : vector<128x128xf32>
    %cst = arith.constant 1.000000e+00 : f32
    %233 = vector.broadcast %cst : f32 to vector<128x128xf32>
    %234 = arith.cmpf oge, %232, %233 : vector<128x128xf32>
    %235 = arith.extui %234 : vector<128x128xi1> to vector<128x128xi32>
    %236 = arith.sitofp %235 : vector<128x128xi32> to vector<128x128xf32>
    %cst_158 = arith.constant 0.000000e+00 : f32
    %237 = vector.broadcast %cst_158 : f32 to vector<128x128xf32>
    %238 = arith.cmpf ogt, %236, %237 : vector<128x128xf32>
    %cst_159 = arith.constant 0.000000e+00 : f32
    %239 = vector.broadcast %cst_159 : f32 to vector<128x128xf32>
    %240 = arith.select %238, %239, %232 : vector<128x128xi1>, vector<128x128xf32>
    %c0_160 = arith.constant 0 : index
    %c0_161 = arith.constant 0 : index
    %c0_162 = arith.constant 0 : index
    %241 = vector.load %arg9[%c0_160, %c0_161, %c0_162] : memref<4x128x128xf32, #tpu.memory_space<vmem>>, vector<1x128x128xf32>
    %242 = vector.shape_cast %241 : vector<1x128x128xf32> to vector<128x128xf32>
    %243 = vector.shape_cast %240 : vector<128x128xf32> to vector<1x128x128xf32>
    tpu.vector_store %arg9[%c0_160, %c0_161, %c0_162], %243 {strides = array<i32>} : memref<4x128x128xf32, #tpu.memory_space<vmem>>, vector<1x128x128xf32>,
    %cst_163 = arith.constant dense<0.000000e+00> : vector<64x128xf32>
    %244 = tpu.matmul %103, %236, %cst_163 {dimension_numbers = #tpu.dot_dimension_numbers<[1], [0], [0], [1], [0, 0, 1, 1], [], []>} : vector<64x128xf32>, vector<128x128xf32>, vector<64x128xf32> -> vector<64x128xf32>
    %cst_164 = arith.constant dense<0.000000e+00> : vector<64x64xf32>
    %245 = tpu.matmul %244, %116, %cst_164 {dimension_numbers = #tpu.dot_dimension_numbers<[1], [0], [0], [1], [0, 0, 1, 1], [], []>} : vector<64x128xf32>, vector<128x64xf32>, vector<64x64xf32> -> vector<64x64xf32>
    %cst_165 = arith.constant 5.000000e-01 : f32
    %246 = vector.broadcast %cst_165 : f32 to vector<64x64xf32>
    %247 = arith.cmpf ogt, %245, %246 : vector<64x64xf32>
    %248 = arith.extui %247 : vector<64x64xi1> to vector<64x64xi32>
    %249 = arith.sitofp %248 : vector<64x64xi32> to vector<64x64xf32>
    %250 = arith.truncf %249 : vector<64x64xf32> to vector<64x64xbf16>
    %c0_166 = arith.constant 0 : index
    %c0_167 = arith.constant 0 : index
    %c0_168 = arith.constant 0 : index
    %c0_169 = arith.constant 0 : index
    %c0_170 = arith.constant 0 : index
    %251 = vector.load %arg6[%c0_166, %c0_167, %c0_168, %c0_169, %c0_170] : memref<1x1x4x64x64xbf16, #tpu.memory_space<vmem>>, vector<1x1x1x64x64xbf16>
    %252 = vector.shape_cast %251 : vector<1x1x1x64x64xbf16> to vector<64x64xbf16>
    %253 = vector.shape_cast %250 : vector<64x64xbf16> to vector<1x1x1x64x64xbf16>
    tpu.vector_store %arg6[%c0_166, %c0_167, %c0_168, %c0_169, %c0_170], %253 {strides = array<i32>} : memref<1x1x4x64x64xbf16, #tpu.memory_space<vmem>>, vector<1x1x1x64x64xbf16>,
    %c1_171 = arith.constant 1 : index
    %c0_172 = arith.constant 0 : index
    %254 = memref.load %arg2[%c1_171, %c0_172] : memref<4x18xf32, #tpu.memory_space<smem>>
    %c0_173 = arith.constant 0 : index
    %c0_174 = arith.constant 0 : index
    %c0_175 = arith.constant 0 : index
    %255 = vector.load %arg8[%c0_173, %c0_174, %c0_175] : memref<18x128x128xf32, #tpu.memory_space<vmem>>, vector<1x128x128xf32>
    %256 = vector.shape_cast %255 : vector<1x128x128xf32> to vector<128x128xf32>
    %257 = vector.broadcast %254 : f32 to vector<128x128xf32>
    %258 = arith.mulf %257, %256 : vector<128x128xf32>
    %c1_176 = arith.constant 1 : index
    %c1_177 = arith.constant 1 : index
    %259 = memref.load %arg2[%c1_176, %c1_177] : memref<4x18xf32, #tpu.memory_space<smem>>
    %c1_178 = arith.constant 1 : index
    %c0_179 = arith.constant 0 : index
    %c0_180 = arith.constant 0 : index
    %260 = vector.load %arg8[%c1_178, %c0_179, %c0_180] : memref<18x128x128xf32, #tpu.memory_space<vmem>>, vector<1x128x128xf32>
    %261 = vector.shape_cast %260 : vector<1x128x128xf32> to vector<128x128xf32>
    %262 = vector.broadcast %259 : f32 to vector<128x128xf32>
    %263 = arith.mulf %262, %261 : vector<128x128xf32>
    %264 = arith.addf %258, %263 : vector<128x128xf32>
    %c1_181 = arith.constant 1 : index
    %c2_182 = arith.constant 2 : index
    %265 = memref.load %arg2[%c1_181, %c2_182] : memref<4x18xf32, #tpu.memory_space<smem>>
    %c2_183 = arith.constant 2 : index
    %c0_184 = arith.constant 0 : index
    %c0_185 = arith.constant 0 : index
    %266 = vector.load %arg8[%c2_183, %c0_184, %c0_185] : memref<18x128x128xf32, #tpu.memory_space<vmem>>, vector<1x128x128xf32>
    %267 = vector.shape_cast %266 : vector<1x128x128xf32> to vector<128x128xf32>
    %268 = vector.broadcast %265 : f32 to vector<128x128xf32>
    %269 = arith.mulf %268, %267 : vector<128x128xf32>
    %270 = arith.addf %264, %269 : vector<128x128xf32>
    %c1_186 = arith.constant 1 : index
    %c3_187 = arith.constant 3 : index
    %271 = memref.load %arg2[%c1_186, %c3_187] : memref<4x18xf32, #tpu.memory_space<smem>>
    %c3_188 = arith.constant 3 : index
    %c0_189 = arith.constant 0 : index
    %c0_190 = arith.constant 0 : index
    %272 = vector.load %arg8[%c3_188, %c0_189, %c0_190] : memref<18x128x128xf32, #tpu.memory_space<vmem>>, vector<1x128x128xf32>
    %273 = vector.shape_cast %272 : vector<1x128x128xf32> to vector<128x128xf32>
    %274 = vector.broadcast %271 : f32 to vector<128x128xf32>
    %275 = arith.mulf %274, %273 : vector<128x128xf32>
    %276 = arith.addf %270, %275 : vector<128x128xf32>
    %c1_191 = arith.constant 1 : index
    %c4_192 = arith.constant 4 : index
    %277 = memref.load %arg2[%c1_191, %c4_192] : memref<4x18xf32, #tpu.memory_space<smem>>
    %c4_193 = arith.constant 4 : index
    %c0_194 = arith.constant 0 : index
    %c0_195 = arith.constant 0 : index
    %278 = vector.load %arg8[%c4_193, %c0_194, %c0_195] : memref<18x128x128xf32, #tpu.memory_space<vmem>>, vector<1x128x128xf32>
    %279 = vector.shape_cast %278 : vector<1x128x128xf32> to vector<128x128xf32>
    %280 = vector.broadcast %277 : f32 to vector<128x128xf32>
    %281 = arith.mulf %280, %279 : vector<128x128xf32>
    %282 = arith.addf %276, %281 : vector<128x128xf32>
    %c1_196 = arith.constant 1 : index
    %c5_197 = arith.constant 5 : index
    %283 = memref.load %arg2[%c1_196, %c5_197] : memref<4x18xf32, #tpu.memory_space<smem>>
    %c5_198 = arith.constant 5 : index
    %c0_199 = arith.constant 0 : index
    %c0_200 = arith.constant 0 : index
    %284 = vector.load %arg8[%c5_198, %c0_199, %c0_200] : memref<18x128x128xf32, #tpu.memory_space<vmem>>, vector<1x128x128xf32>
    %285 = vector.shape_cast %284 : vector<1x128x128xf32> to vector<128x128xf32>
    %286 = vector.broadcast %283 : f32 to vector<128x128xf32>
    %287 = arith.mulf %286, %285 : vector<128x128xf32>
    %288 = arith.addf %282, %287 : vector<128x128xf32>
    %c1_201 = arith.constant 1 : index
    %c6_202 = arith.constant 6 : index
    %289 = memref.load %arg2[%c1_201, %c6_202] : memref<4x18xf32, #tpu.memory_space<smem>>
    %c6_203 = arith.constant 6 : index
    %c0_204 = arith.constant 0 : index
    %c0_205 = arith.constant 0 : index
    %290 = vector.load %arg8[%c6_203, %c0_204, %c0_205] : memref<18x128x128xf32, #tpu.memory_space<vmem>>, vector<1x128x128xf32>
    %291 = vector.shape_cast %290 : vector<1x128x128xf32> to vector<128x128xf32>
    %292 = vector.broadcast %289 : f32 to vector<128x128xf32>
    %293 = arith.mulf %292, %291 : vector<128x128xf32>
    %294 = arith.addf %288, %293 : vector<128x128xf32>
    %c1_206 = arith.constant 1 : index
    %c7_207 = arith.constant 7 : index
    %295 = memref.load %arg2[%c1_206, %c7_207] : memref<4x18xf32, #tpu.memory_space<smem>>
    %c7_208 = arith.constant 7 : index
    %c0_209 = arith.constant 0 : index
    %c0_210 = arith.constant 0 : index
    %296 = vector.load %arg8[%c7_208, %c0_209, %c0_210] : memref<18x128x128xf32, #tpu.memory_space<vmem>>, vector<1x128x128xf32>
    %297 = vector.shape_cast %296 : vector<1x128x128xf32> to vector<128x128xf32>
    %298 = vector.broadcast %295 : f32 to vector<128x128xf32>
    %299 = arith.mulf %298, %297 : vector<128x128xf32>
    %300 = arith.addf %294, %299 : vector<128x128xf32>
    %c1_211 = arith.constant 1 : index
    %c8_212 = arith.constant 8 : index
    %301 = memref.load %arg2[%c1_211, %c8_212] : memref<4x18xf32, #tpu.memory_space<smem>>
    %c8_213 = arith.constant 8 : index
    %c0_214 = arith.constant 0 : index
    %c0_215 = arith.constant 0 : index
    %302 = vector.load %arg8[%c8_213, %c0_214, %c0_215] : memref<18x128x128xf32, #tpu.memory_space<vmem>>, vector<1x128x128xf32>
    %303 = vector.shape_cast %302 : vector<1x128x128xf32> to vector<128x128xf32>
    %304 = vector.broadcast %301 : f32 to vector<128x128xf32>
    %305 = arith.mulf %304, %303 : vector<128x128xf32>
    %306 = arith.addf %300, %305 : vector<128x128xf32>
    %c1_216 = arith.constant 1 : index
    %c9_217 = arith.constant 9 : index
    %307 = memref.load %arg2[%c1_216, %c9_217] : memref<4x18xf32, #tpu.memory_space<smem>>
    %c9_218 = arith.constant 9 : index
    %c0_219 = arith.constant 0 : index
    %c0_220 = arith.constant 0 : index
    %308 = vector.load %arg8[%c9_218, %c0_219, %c0_220] : memref<18x128x128xf32, #tpu.memory_space<vmem>>, vector<1x128x128xf32>
    %309 = vector.shape_cast %308 : vector<1x128x128xf32> to vector<128x128xf32>
    %310 = vector.broadcast %307 : f32 to vector<128x128xf32>
    %311 = arith.mulf %310, %309 : vector<128x128xf32>
    %312 = arith.addf %306, %311 : vector<128x128xf32>
    %c1_221 = arith.constant 1 : index
    %c10_222 = arith.constant 10 : index
    %313 = memref.load %arg2[%c1_221, %c10_222] : memref<4x18xf32, #tpu.memory_space<smem>>
    %c10_223 = arith.constant 10 : index
    %c0_224 = arith.constant 0 : index
    %c0_225 = arith.constant 0 : index
    %314 = vector.load %arg8[%c10_223, %c0_224, %c0_225] : memref<18x128x128xf32, #tpu.memory_space<vmem>>, vector<1x128x128xf32>
    %315 = vector.shape_cast %314 : vector<1x128x128xf32> to vector<128x128xf32>
    %316 = vector.broadcast %313 : f32 to vector<128x128xf32>
    %317 = arith.mulf %316, %315 : vector<128x128xf32>
    %318 = arith.addf %312, %317 : vector<128x128xf32>
    %c1_226 = arith.constant 1 : index
    %c11_227 = arith.constant 11 : index
    %319 = memref.load %arg2[%c1_226, %c11_227] : memref<4x18xf32, #tpu.memory_space<smem>>
    %c11_228 = arith.constant 11 : index
    %c0_229 = arith.constant 0 : index
    %c0_230 = arith.constant 0 : index
    %320 = vector.load %arg8[%c11_228, %c0_229, %c0_230] : memref<18x128x128xf32, #tpu.memory_space<vmem>>, vector<1x128x128xf32>
    %321 = vector.shape_cast %320 : vector<1x128x128xf32> to vector<128x128xf32>
    %322 = vector.broadcast %319 : f32 to vector<128x128xf32>
    %323 = arith.mulf %322, %321 : vector<128x128xf32>
    %324 = arith.addf %318, %323 : vector<128x128xf32>
    %c1_231 = arith.constant 1 : index
    %c12_232 = arith.constant 12 : index
    %325 = memref.load %arg2[%c1_231, %c12_232] : memref<4x18xf32, #tpu.memory_space<smem>>
    %c12_233 = arith.constant 12 : index
    %c0_234 = arith.constant 0 : index
    %c0_235 = arith.constant 0 : index
    %326 = vector.load %arg8[%c12_233, %c0_234, %c0_235] : memref<18x128x128xf32, #tpu.memory_space<vmem>>, vector<1x128x128xf32>
    %327 = vector.shape_cast %326 : vector<1x128x128xf32> to vector<128x128xf32>
    %328 = vector.broadcast %325 : f32 to vector<128x128xf32>
    %329 = arith.mulf %328, %327 : vector<128x128xf32>
    %330 = arith.addf %324, %329 : vector<128x128xf32>
    %c1_236 = arith.constant 1 : index
    %c13_237 = arith.constant 13 : index
    %331 = memref.load %arg2[%c1_236, %c13_237] : memref<4x18xf32, #tpu.memory_space<smem>>
    %c13_238 = arith.constant 13 : index
    %c0_239 = arith.constant 0 : index
    %c0_240 = arith.constant 0 : index
    %332 = vector.load %arg8[%c13_238, %c0_239, %c0_240] : memref<18x128x128xf32, #tpu.memory_space<vmem>>, vector<1x128x128xf32>
    %333 = vector.shape_cast %332 : vector<1x128x128xf32> to vector<128x128xf32>
    %334 = vector.broadcast %331 : f32 to vector<128x128xf32>
    %335 = arith.mulf %334, %333 : vector<128x128xf32>
    %336 = arith.addf %330, %335 : vector<128x128xf32>
    %c1_241 = arith.constant 1 : index
    %c14_242 = arith.constant 14 : index
    %337 = memref.load %arg2[%c1_241, %c14_242] : memref<4x18xf32, #tpu.memory_space<smem>>
    %c14_243 = arith.constant 14 : index
    %c0_244 = arith.constant 0 : index
    %c0_245 = arith.constant 0 : index
    %338 = vector.load %arg8[%c14_243, %c0_244, %c0_245] : memref<18x128x128xf32, #tpu.memory_space<vmem>>, vector<1x128x128xf32>
    %339 = vector.shape_cast %338 : vector<1x128x128xf32> to vector<128x128xf32>
    %340 = vector.broadcast %337 : f32 to vector<128x128xf32>
    %341 = arith.mulf %340, %339 : vector<128x128xf32>
    %342 = arith.addf %336, %341 : vector<128x128xf32>
    %c1_246 = arith.constant 1 : index
    %c15_247 = arith.constant 15 : index
    %343 = memref.load %arg2[%c1_246, %c15_247] : memref<4x18xf32, #tpu.memory_space<smem>>
    %c15_248 = arith.constant 15 : index
    %c0_249 = arith.constant 0 : index
    %c0_250 = arith.constant 0 : index
    %344 = vector.load %arg8[%c15_248, %c0_249, %c0_250] : memref<18x128x128xf32, #tpu.memory_space<vmem>>, vector<1x128x128xf32>
    %345 = vector.shape_cast %344 : vector<1x128x128xf32> to vector<128x128xf32>
    %346 = vector.broadcast %343 : f32 to vector<128x128xf32>
    %347 = arith.mulf %346, %345 : vector<128x128xf32>
    %348 = arith.addf %342, %347 : vector<128x128xf32>
    %c1_251 = arith.constant 1 : index
    %c16_252 = arith.constant 16 : index
    %349 = memref.load %arg2[%c1_251, %c16_252] : memref<4x18xf32, #tpu.memory_space<smem>>
    %c16_253 = arith.constant 16 : index
    %c0_254 = arith.constant 0 : index
    %c0_255 = arith.constant 0 : index
    %350 = vector.load %arg8[%c16_253, %c0_254, %c0_255] : memref<18x128x128xf32, #tpu.memory_space<vmem>>, vector<1x128x128xf32>
    %351 = vector.shape_cast %350 : vector<1x128x128xf32> to vector<128x128xf32>
    %352 = vector.broadcast %349 : f32 to vector<128x128xf32>
    %353 = arith.mulf %352, %351 : vector<128x128xf32>
    %354 = arith.addf %348, %353 : vector<128x128xf32>
    %c1_256 = arith.constant 1 : index
    %c17_257 = arith.constant 17 : index
    %355 = memref.load %arg2[%c1_256, %c17_257] : memref<4x18xf32, #tpu.memory_space<smem>>
    %c17_258 = arith.constant 17 : index
    %c0_259 = arith.constant 0 : index
    %c0_260 = arith.constant 0 : index
    %356 = vector.load %arg8[%c17_258, %c0_259, %c0_260] : memref<18x128x128xf32, #tpu.memory_space<vmem>>, vector<1x128x128xf32>
    %357 = vector.shape_cast %356 : vector<1x128x128xf32> to vector<128x128xf32>
    %358 = vector.broadcast %355 : f32 to vector<128x128xf32>
    %359 = arith.mulf %358, %357 : vector<128x128xf32>
    %360 = arith.addf %354, %359 : vector<128x128xf32>
    %c1_261 = arith.constant 1 : index
    %361 = memref.load %arg3[%c1_261] : memref<4xf32, #tpu.memory_space<smem>>
    %362 = vector.broadcast %361 : f32 to vector<128x128xf32>
    %363 = arith.mulf %360, %362 : vector<128x128xf32>
    %c1_262 = arith.constant 1 : index
    %364 = memref.load %arg4[%c1_262] : memref<4xf32, #tpu.memory_space<smem>>
    %365 = vector.broadcast %364 : f32 to vector<128x128xf32>
    %366 = arith.addf %363, %365 : vector<128x128xf32>
    %c1_263 = arith.constant 1 : index
    %c0_264 = arith.constant 0 : index
    %c0_265 = arith.constant 0 : index
    %367 = vector.load %arg9[%c1_263, %c0_264, %c0_265] : memref<4x128x128xf32, #tpu.memory_space<vmem>>, vector<1x128x128xf32>
    %368 = vector.shape_cast %367 : vector<1x128x128xf32> to vector<128x128xf32>
    %369 = arith.addf %368, %366 : vector<128x128xf32>
    %cst_266 = arith.constant 1.000000e+00 : f32
    %370 = vector.broadcast %cst_266 : f32 to vector<128x128xf32>
    %371 = arith.cmpf oge, %369, %370 : vector<128x128xf32>
    %372 = arith.extui %371 : vector<128x128xi1> to vector<128x128xi32>
    %373 = arith.sitofp %372 : vector<128x128xi32> to vector<128x128xf32>
    %cst_267 = arith.constant 0.000000e+00 : f32
    %374 = vector.broadcast %cst_267 : f32 to vector<128x128xf32>
    %375 = arith.cmpf ogt, %373, %374 : vector<128x128xf32>
    %cst_268 = arith.constant 0.000000e+00 : f32
    %376 = vector.broadcast %cst_268 : f32 to vector<128x128xf32>
    %377 = arith.select %375, %376, %369 : vector<128x128xi1>, vector<128x128xf32>
    %c1_269 = arith.constant 1 : index
    %c0_270 = arith.constant 0 : index
    %c0_271 = arith.constant 0 : index
    %378 = vector.load %arg9[%c1_269, %c0_270, %c0_271] : memref<4x128x128xf32, #tpu.memory_space<vmem>>, vector<1x128x128xf32>
    %379 = vector.shape_cast %378 : vector<1x128x128xf32> to vector<128x128xf32>
    %380 = vector.shape_cast %377 : vector<128x128xf32> to vector<1x128x128xf32>
    tpu.vector_store %arg9[%c1_269, %c0_270, %c0_271], %380 {strides = array<i32>} : memref<4x128x128xf32, #tpu.memory_space<vmem>>, vector<1x128x128xf32>,
    %cst_272 = arith.constant dense<0.000000e+00> : vector<64x128xf32>
    %381 = tpu.matmul %103, %373, %cst_272 {dimension_numbers = #tpu.dot_dimension_numbers<[1], [0], [0], [1], [0, 0, 1, 1], [], []>} : vector<64x128xf32>, vector<128x128xf32>, vector<64x128xf32> -> vector<64x128xf32>
    %cst_273 = arith.constant dense<0.000000e+00> : vector<64x64xf32>
    %382 = tpu.matmul %381, %116, %cst_273 {dimension_numbers = #tpu.dot_dimension_numbers<[1], [0], [0], [1], [0, 0, 1, 1], [], []>} : vector<64x128xf32>, vector<128x64xf32>, vector<64x64xf32> -> vector<64x64xf32>
    %cst_274 = arith.constant 5.000000e-01 : f32
    %383 = vector.broadcast %cst_274 : f32 to vector<64x64xf32>
    %384 = arith.cmpf ogt, %382, %383 : vector<64x64xf32>
    %385 = arith.extui %384 : vector<64x64xi1> to vector<64x64xi32>
    %386 = arith.sitofp %385 : vector<64x64xi32> to vector<64x64xf32>
    %387 = arith.truncf %386 : vector<64x64xf32> to vector<64x64xbf16>
    %c0_275 = arith.constant 0 : index
    %c0_276 = arith.constant 0 : index
    %c1_277 = arith.constant 1 : index
    %c0_278 = arith.constant 0 : index
    %c0_279 = arith.constant 0 : index
    %388 = vector.load %arg6[%c0_275, %c0_276, %c1_277, %c0_278, %c0_279] : memref<1x1x4x64x64xbf16, #tpu.memory_space<vmem>>, vector<1x1x1x64x64xbf16>
    %389 = vector.shape_cast %388 : vector<1x1x1x64x64xbf16> to vector<64x64xbf16>
    %390 = vector.shape_cast %387 : vector<64x64xbf16> to vector<1x1x1x64x64xbf16>
    tpu.vector_store %arg6[%c0_275, %c0_276, %c1_277, %c0_278, %c0_279], %390 {strides = array<i32>} : memref<1x1x4x64x64xbf16, #tpu.memory_space<vmem>>, vector<1x1x1x64x64xbf16>,
    %c2_280 = arith.constant 2 : index
    %c0_281 = arith.constant 0 : index
    %391 = memref.load %arg2[%c2_280, %c0_281] : memref<4x18xf32, #tpu.memory_space<smem>>
    %c0_282 = arith.constant 0 : index
    %c0_283 = arith.constant 0 : index
    %c0_284 = arith.constant 0 : index
    %392 = vector.load %arg8[%c0_282, %c0_283, %c0_284] : memref<18x128x128xf32, #tpu.memory_space<vmem>>, vector<1x128x128xf32>
    %393 = vector.shape_cast %392 : vector<1x128x128xf32> to vector<128x128xf32>
    %394 = vector.broadcast %391 : f32 to vector<128x128xf32>
    %395 = arith.mulf %394, %393 : vector<128x128xf32>
    %c2_285 = arith.constant 2 : index
    %c1_286 = arith.constant 1 : index
    %396 = memref.load %arg2[%c2_285, %c1_286] : memref<4x18xf32, #tpu.memory_space<smem>>
    %c1_287 = arith.constant 1 : index
    %c0_288 = arith.constant 0 : index
    %c0_289 = arith.constant 0 : index
    %397 = vector.load %arg8[%c1_287, %c0_288, %c0_289] : memref<18x128x128xf32, #tpu.memory_space<vmem>>, vector<1x128x128xf32>
    %398 = vector.shape_cast %397 : vector<1x128x128xf32> to vector<128x128xf32>
    %399 = vector.broadcast %396 : f32 to vector<128x128xf32>
    %400 = arith.mulf %399, %398 : vector<128x128xf32>
    %401 = arith.addf %395, %400 : vector<128x128xf32>
    %c2_290 = arith.constant 2 : index
    %c2_291 = arith.constant 2 : index
    %402 = memref.load %arg2[%c2_290, %c2_291] : memref<4x18xf32, #tpu.memory_space<smem>>
    %c2_292 = arith.constant 2 : index
    %c0_293 = arith.constant 0 : index
    %c0_294 = arith.constant 0 : index
    %403 = vector.load %arg8[%c2_292, %c0_293, %c0_294] : memref<18x128x128xf32, #tpu.memory_space<vmem>>, vector<1x128x128xf32>
    %404 = vector.shape_cast %403 : vector<1x128x128xf32> to vector<128x128xf32>
    %405 = vector.broadcast %402 : f32 to vector<128x128xf32>
    %406 = arith.mulf %405, %404 : vector<128x128xf32>
    %407 = arith.addf %401, %406 : vector<128x128xf32>
    %c2_295 = arith.constant 2 : index
    %c3_296 = arith.constant 3 : index
    %408 = memref.load %arg2[%c2_295, %c3_296] : memref<4x18xf32, #tpu.memory_space<smem>>
    %c3_297 = arith.constant 3 : index
    %c0_298 = arith.constant 0 : index
    %c0_299 = arith.constant 0 : index
    %409 = vector.load %arg8[%c3_297, %c0_298, %c0_299] : memref<18x128x128xf32, #tpu.memory_space<vmem>>, vector<1x128x128xf32>
    %410 = vector.shape_cast %409 : vector<1x128x128xf32> to vector<128x128xf32>
    %411 = vector.broadcast %408 : f32 to vector<128x128xf32>
    %412 = arith.mulf %411, %410 : vector<128x128xf32>
    %413 = arith.addf %407, %412 : vector<128x128xf32>
    %c2_300 = arith.constant 2 : index
    %c4_301 = arith.constant 4 : index
    %414 = memref.load %arg2[%c2_300, %c4_301] : memref<4x18xf32, #tpu.memory_space<smem>>
    %c4_302 = arith.constant 4 : index
    %c0_303 = arith.constant 0 : index
    %c0_304 = arith.constant 0 : index
    %415 = vector.load %arg8[%c4_302, %c0_303, %c0_304] : memref<18x128x128xf32, #tpu.memory_space<vmem>>, vector<1x128x128xf32>
    %416 = vector.shape_cast %415 : vector<1x128x128xf32> to vector<128x128xf32>
    %417 = vector.broadcast %414 : f32 to vector<128x128xf32>
    %418 = arith.mulf %417, %416 : vector<128x128xf32>
    %419 = arith.addf %413, %418 : vector<128x128xf32>
    %c2_305 = arith.constant 2 : index
    %c5_306 = arith.constant 5 : index
    %420 = memref.load %arg2[%c2_305, %c5_306] : memref<4x18xf32, #tpu.memory_space<smem>>
    %c5_307 = arith.constant 5 : index
    %c0_308 = arith.constant 0 : index
    %c0_309 = arith.constant 0 : index
    %421 = vector.load %arg8[%c5_307, %c0_308, %c0_309] : memref<18x128x128xf32, #tpu.memory_space<vmem>>, vector<1x128x128xf32>
    %422 = vector.shape_cast %421 : vector<1x128x128xf32> to vector<128x128xf32>
    %423 = vector.broadcast %420 : f32 to vector<128x128xf32>
    %424 = arith.mulf %423, %422 : vector<128x128xf32>
    %425 = arith.addf %419, %424 : vector<128x128xf32>
    %c2_310 = arith.constant 2 : index
    %c6_311 = arith.constant 6 : index
    %426 = memref.load %arg2[%c2_310, %c6_311] : memref<4x18xf32, #tpu.memory_space<smem>>
    %c6_312 = arith.constant 6 : index
    %c0_313 = arith.constant 0 : index
    %c0_314 = arith.constant 0 : index
    %427 = vector.load %arg8[%c6_312, %c0_313, %c0_314] : memref<18x128x128xf32, #tpu.memory_space<vmem>>, vector<1x128x128xf32>
    %428 = vector.shape_cast %427 : vector<1x128x128xf32> to vector<128x128xf32>
    %429 = vector.broadcast %426 : f32 to vector<128x128xf32>
    %430 = arith.mulf %429, %428 : vector<128x128xf32>
    %431 = arith.addf %425, %430 : vector<128x128xf32>
    %c2_315 = arith.constant 2 : index
    %c7_316 = arith.constant 7 : index
    %432 = memref.load %arg2[%c2_315, %c7_316] : memref<4x18xf32, #tpu.memory_space<smem>>
    %c7_317 = arith.constant 7 : index
    %c0_318 = arith.constant 0 : index
    %c0_319 = arith.constant 0 : index
    %433 = vector.load %arg8[%c7_317, %c0_318, %c0_319] : memref<18x128x128xf32, #tpu.memory_space<vmem>>, vector<1x128x128xf32>
    %434 = vector.shape_cast %433 : vector<1x128x128xf32> to vector<128x128xf32>
    %435 = vector.broadcast %432 : f32 to vector<128x128xf32>
    %436 = arith.mulf %435, %434 : vector<128x128xf32>
    %437 = arith.addf %431, %436 : vector<128x128xf32>
    %c2_320 = arith.constant 2 : index
    %c8_321 = arith.constant 8 : index
    %438 = memref.load %arg2[%c2_320, %c8_321] : memref<4x18xf32, #tpu.memory_space<smem>>
    %c8_322 = arith.constant 8 : index
    %c0_323 = arith.constant 0 : index
    %c0_324 = arith.constant 0 : index
    %439 = vector.load %arg8[%c8_322, %c0_323, %c0_324] : memref<18x128x128xf32, #tpu.memory_space<vmem>>, vector<1x128x128xf32>
    %440 = vector.shape_cast %439 : vector<1x128x128xf32> to vector<128x128xf32>
    %441 = vector.broadcast %438 : f32 to vector<128x128xf32>
    %442 = arith.mulf %441, %440 : vector<128x128xf32>
    %443 = arith.addf %437, %442 : vector<128x128xf32>
    %c2_325 = arith.constant 2 : index
    %c9_326 = arith.constant 9 : index
    %444 = memref.load %arg2[%c2_325, %c9_326] : memref<4x18xf32, #tpu.memory_space<smem>>
    %c9_327 = arith.constant 9 : index
    %c0_328 = arith.constant 0 : index
    %c0_329 = arith.constant 0 : index
    %445 = vector.load %arg8[%c9_327, %c0_328, %c0_329] : memref<18x128x128xf32, #tpu.memory_space<vmem>>, vector<1x128x128xf32>
    %446 = vector.shape_cast %445 : vector<1x128x128xf32> to vector<128x128xf32>
    %447 = vector.broadcast %444 : f32 to vector<128x128xf32>
    %448 = arith.mulf %447, %446 : vector<128x128xf32>
    %449 = arith.addf %443, %448 : vector<128x128xf32>
    %c2_330 = arith.constant 2 : index
    %c10_331 = arith.constant 10 : index
    %450 = memref.load %arg2[%c2_330, %c10_331] : memref<4x18xf32, #tpu.memory_space<smem>>
    %c10_332 = arith.constant 10 : index
    %c0_333 = arith.constant 0 : index
    %c0_334 = arith.constant 0 : index
    %451 = vector.load %arg8[%c10_332, %c0_333, %c0_334] : memref<18x128x128xf32, #tpu.memory_space<vmem>>, vector<1x128x128xf32>
    %452 = vector.shape_cast %451 : vector<1x128x128xf32> to vector<128x128xf32>
    %453 = vector.broadcast %450 : f32 to vector<128x128xf32>
    %454 = arith.mulf %453, %452 : vector<128x128xf32>
    %455 = arith.addf %449, %454 : vector<128x128xf32>
    %c2_335 = arith.constant 2 : index
    %c11_336 = arith.constant 11 : index
    %456 = memref.load %arg2[%c2_335, %c11_336] : memref<4x18xf32, #tpu.memory_space<smem>>
    %c11_337 = arith.constant 11 : index
    %c0_338 = arith.constant 0 : index
    %c0_339 = arith.constant 0 : index
    %457 = vector.load %arg8[%c11_337, %c0_338, %c0_339] : memref<18x128x128xf32, #tpu.memory_space<vmem>>, vector<1x128x128xf32>
    %458 = vector.shape_cast %457 : vector<1x128x128xf32> to vector<128x128xf32>
    %459 = vector.broadcast %456 : f32 to vector<128x128xf32>
    %460 = arith.mulf %459, %458 : vector<128x128xf32>
    %461 = arith.addf %455, %460 : vector<128x128xf32>
    %c2_340 = arith.constant 2 : index
    %c12_341 = arith.constant 12 : index
    %462 = memref.load %arg2[%c2_340, %c12_341] : memref<4x18xf32, #tpu.memory_space<smem>>
    %c12_342 = arith.constant 12 : index
    %c0_343 = arith.constant 0 : index
    %c0_344 = arith.constant 0 : index
    %463 = vector.load %arg8[%c12_342, %c0_343, %c0_344] : memref<18x128x128xf32, #tpu.memory_space<vmem>>, vector<1x128x128xf32>
    %464 = vector.shape_cast %463 : vector<1x128x128xf32> to vector<128x128xf32>
    %465 = vector.broadcast %462 : f32 to vector<128x128xf32>
    %466 = arith.mulf %465, %464 : vector<128x128xf32>
    %467 = arith.addf %461, %466 : vector<128x128xf32>
    %c2_345 = arith.constant 2 : index
    %c13_346 = arith.constant 13 : index
    %468 = memref.load %arg2[%c2_345, %c13_346] : memref<4x18xf32, #tpu.memory_space<smem>>
    %c13_347 = arith.constant 13 : index
    %c0_348 = arith.constant 0 : index
    %c0_349 = arith.constant 0 : index
    %469 = vector.load %arg8[%c13_347, %c0_348, %c0_349] : memref<18x128x128xf32, #tpu.memory_space<vmem>>, vector<1x128x128xf32>
    %470 = vector.shape_cast %469 : vector<1x128x128xf32> to vector<128x128xf32>
    %471 = vector.broadcast %468 : f32 to vector<128x128xf32>
    %472 = arith.mulf %471, %470 : vector<128x128xf32>
    %473 = arith.addf %467, %472 : vector<128x128xf32>
    %c2_350 = arith.constant 2 : index
    %c14_351 = arith.constant 14 : index
    %474 = memref.load %arg2[%c2_350, %c14_351] : memref<4x18xf32, #tpu.memory_space<smem>>
    %c14_352 = arith.constant 14 : index
    %c0_353 = arith.constant 0 : index
    %c0_354 = arith.constant 0 : index
    %475 = vector.load %arg8[%c14_352, %c0_353, %c0_354] : memref<18x128x128xf32, #tpu.memory_space<vmem>>, vector<1x128x128xf32>
    %476 = vector.shape_cast %475 : vector<1x128x128xf32> to vector<128x128xf32>
    %477 = vector.broadcast %474 : f32 to vector<128x128xf32>
    %478 = arith.mulf %477, %476 : vector<128x128xf32>
    %479 = arith.addf %473, %478 : vector<128x128xf32>
    %c2_355 = arith.constant 2 : index
    %c15_356 = arith.constant 15 : index
    %480 = memref.load %arg2[%c2_355, %c15_356] : memref<4x18xf32, #tpu.memory_space<smem>>
    %c15_357 = arith.constant 15 : index
    %c0_358 = arith.constant 0 : index
    %c0_359 = arith.constant 0 : index
    %481 = vector.load %arg8[%c15_357, %c0_358, %c0_359] : memref<18x128x128xf32, #tpu.memory_space<vmem>>, vector<1x128x128xf32>
    %482 = vector.shape_cast %481 : vector<1x128x128xf32> to vector<128x128xf32>
    %483 = vector.broadcast %480 : f32 to vector<128x128xf32>
    %484 = arith.mulf %483, %482 : vector<128x128xf32>
    %485 = arith.addf %479, %484 : vector<128x128xf32>
    %c2_360 = arith.constant 2 : index
    %c16_361 = arith.constant 16 : index
    %486 = memref.load %arg2[%c2_360, %c16_361] : memref<4x18xf32, #tpu.memory_space<smem>>
    %c16_362 = arith.constant 16 : index
    %c0_363 = arith.constant 0 : index
    %c0_364 = arith.constant 0 : index
    %487 = vector.load %arg8[%c16_362, %c0_363, %c0_364] : memref<18x128x128xf32, #tpu.memory_space<vmem>>, vector<1x128x128xf32>
    %488 = vector.shape_cast %487 : vector<1x128x128xf32> to vector<128x128xf32>
    %489 = vector.broadcast %486 : f32 to vector<128x128xf32>
    %490 = arith.mulf %489, %488 : vector<128x128xf32>
    %491 = arith.addf %485, %490 : vector<128x128xf32>
    %c2_365 = arith.constant 2 : index
    %c17_366 = arith.constant 17 : index
    %492 = memref.load %arg2[%c2_365, %c17_366] : memref<4x18xf32, #tpu.memory_space<smem>>
    %c17_367 = arith.constant 17 : index
    %c0_368 = arith.constant 0 : index
    %c0_369 = arith.constant 0 : index
    %493 = vector.load %arg8[%c17_367, %c0_368, %c0_369] : memref<18x128x128xf32, #tpu.memory_space<vmem>>, vector<1x128x128xf32>
    %494 = vector.shape_cast %493 : vector<1x128x128xf32> to vector<128x128xf32>
    %495 = vector.broadcast %492 : f32 to vector<128x128xf32>
    %496 = arith.mulf %495, %494 : vector<128x128xf32>
    %497 = arith.addf %491, %496 : vector<128x128xf32>
    %c2_370 = arith.constant 2 : index
    %498 = memref.load %arg3[%c2_370] : memref<4xf32, #tpu.memory_space<smem>>
    %499 = vector.broadcast %498 : f32 to vector<128x128xf32>
    %500 = arith.mulf %497, %499 : vector<128x128xf32>
    %c2_371 = arith.constant 2 : index
    %501 = memref.load %arg4[%c2_371] : memref<4xf32, #tpu.memory_space<smem>>
    %502 = vector.broadcast %501 : f32 to vector<128x128xf32>
    %503 = arith.addf %500, %502 : vector<128x128xf32>
    %c2_372 = arith.constant 2 : index
    %c0_373 = arith.constant 0 : index
    %c0_374 = arith.constant 0 : index
    %504 = vector.load %arg9[%c2_372, %c0_373, %c0_374] : memref<4x128x128xf32, #tpu.memory_space<vmem>>, vector<1x128x128xf32>
    %505 = vector.shape_cast %504 : vector<1x128x128xf32> to vector<128x128xf32>
    %506 = arith.addf %505, %503 : vector<128x128xf32>
    %cst_375 = arith.constant 1.000000e+00 : f32
    %507 = vector.broadcast %cst_375 : f32 to vector<128x128xf32>
    %508 = arith.cmpf oge, %506, %507 : vector<128x128xf32>
    %509 = arith.extui %508 : vector<128x128xi1> to vector<128x128xi32>
    %510 = arith.sitofp %509 : vector<128x128xi32> to vector<128x128xf32>
    %cst_376 = arith.constant 0.000000e+00 : f32
    %511 = vector.broadcast %cst_376 : f32 to vector<128x128xf32>
    %512 = arith.cmpf ogt, %510, %511 : vector<128x128xf32>
    %cst_377 = arith.constant 0.000000e+00 : f32
    %513 = vector.broadcast %cst_377 : f32 to vector<128x128xf32>
    %514 = arith.select %512, %513, %506 : vector<128x128xi1>, vector<128x128xf32>
    %c2_378 = arith.constant 2 : index
    %c0_379 = arith.constant 0 : index
    %c0_380 = arith.constant 0 : index
    %515 = vector.load %arg9[%c2_378, %c0_379, %c0_380] : memref<4x128x128xf32, #tpu.memory_space<vmem>>, vector<1x128x128xf32>
    %516 = vector.shape_cast %515 : vector<1x128x128xf32> to vector<128x128xf32>
    %517 = vector.shape_cast %514 : vector<128x128xf32> to vector<1x128x128xf32>
    tpu.vector_store %arg9[%c2_378, %c0_379, %c0_380], %517 {strides = array<i32>} : memref<4x128x128xf32, #tpu.memory_space<vmem>>, vector<1x128x128xf32>,
    %cst_381 = arith.constant dense<0.000000e+00> : vector<64x128xf32>
    %518 = tpu.matmul %103, %510, %cst_381 {dimension_numbers = #tpu.dot_dimension_numbers<[1], [0], [0], [1], [0, 0, 1, 1], [], []>} : vector<64x128xf32>, vector<128x128xf32>, vector<64x128xf32> -> vector<64x128xf32>
    %cst_382 = arith.constant dense<0.000000e+00> : vector<64x64xf32>
    %519 = tpu.matmul %518, %116, %cst_382 {dimension_numbers = #tpu.dot_dimension_numbers<[1], [0], [0], [1], [0, 0, 1, 1], [], []>} : vector<64x128xf32>, vector<128x64xf32>, vector<64x64xf32> -> vector<64x64xf32>
    %cst_383 = arith.constant 5.000000e-01 : f32
    %520 = vector.broadcast %cst_383 : f32 to vector<64x64xf32>
    %521 = arith.cmpf ogt, %519, %520 : vector<64x64xf32>
    %522 = arith.extui %521 : vector<64x64xi1> to vector<64x64xi32>
    %523 = arith.sitofp %522 : vector<64x64xi32> to vector<64x64xf32>
    %524 = arith.truncf %523 : vector<64x64xf32> to vector<64x64xbf16>
    %c0_384 = arith.constant 0 : index
    %c0_385 = arith.constant 0 : index
    %c2_386 = arith.constant 2 : index
    %c0_387 = arith.constant 0 : index
    %c0_388 = arith.constant 0 : index
    %525 = vector.load %arg6[%c0_384, %c0_385, %c2_386, %c0_387, %c0_388] : memref<1x1x4x64x64xbf16, #tpu.memory_space<vmem>>, vector<1x1x1x64x64xbf16>
    %526 = vector.shape_cast %525 : vector<1x1x1x64x64xbf16> to vector<64x64xbf16>
    %527 = vector.shape_cast %524 : vector<64x64xbf16> to vector<1x1x1x64x64xbf16>
    tpu.vector_store %arg6[%c0_384, %c0_385, %c2_386, %c0_387, %c0_388], %527 {strides = array<i32>} : memref<1x1x4x64x64xbf16, #tpu.memory_space<vmem>>, vector<1x1x1x64x64xbf16>,
    %c3_389 = arith.constant 3 : index
    %c0_390 = arith.constant 0 : index
    %528 = memref.load %arg2[%c3_389, %c0_390] : memref<4x18xf32, #tpu.memory_space<smem>>
    %c0_391 = arith.constant 0 : index
    %c0_392 = arith.constant 0 : index
    %c0_393 = arith.constant 0 : index
    %529 = vector.load %arg8[%c0_391, %c0_392, %c0_393] : memref<18x128x128xf32, #tpu.memory_space<vmem>>, vector<1x128x128xf32>
    %530 = vector.shape_cast %529 : vector<1x128x128xf32> to vector<128x128xf32>
    %531 = vector.broadcast %528 : f32 to vector<128x128xf32>
    %532 = arith.mulf %531, %530 : vector<128x128xf32>
    %c3_394 = arith.constant 3 : index
    %c1_395 = arith.constant 1 : index
    %533 = memref.load %arg2[%c3_394, %c1_395] : memref<4x18xf32, #tpu.memory_space<smem>>
    %c1_396 = arith.constant 1 : index
    %c0_397 = arith.constant 0 : index
    %c0_398 = arith.constant 0 : index
    %534 = vector.load %arg8[%c1_396, %c0_397, %c0_398] : memref<18x128x128xf32, #tpu.memory_space<vmem>>, vector<1x128x128xf32>
    %535 = vector.shape_cast %534 : vector<1x128x128xf32> to vector<128x128xf32>
    %536 = vector.broadcast %533 : f32 to vector<128x128xf32>
    %537 = arith.mulf %536, %535 : vector<128x128xf32>
    %538 = arith.addf %532, %537 : vector<128x128xf32>
    %c3_399 = arith.constant 3 : index
    %c2_400 = arith.constant 2 : index
    %539 = memref.load %arg2[%c3_399, %c2_400] : memref<4x18xf32, #tpu.memory_space<smem>>
    %c2_401 = arith.constant 2 : index
    %c0_402 = arith.constant 0 : index
    %c0_403 = arith.constant 0 : index
    %540 = vector.load %arg8[%c2_401, %c0_402, %c0_403] : memref<18x128x128xf32, #tpu.memory_space<vmem>>, vector<1x128x128xf32>
    %541 = vector.shape_cast %540 : vector<1x128x128xf32> to vector<128x128xf32>
    %542 = vector.broadcast %539 : f32 to vector<128x128xf32>
    %543 = arith.mulf %542, %541 : vector<128x128xf32>
    %544 = arith.addf %538, %543 : vector<128x128xf32>
    %c3_404 = arith.constant 3 : index
    %c3_405 = arith.constant 3 : index
    %545 = memref.load %arg2[%c3_404, %c3_405] : memref<4x18xf32, #tpu.memory_space<smem>>
    %c3_406 = arith.constant 3 : index
    %c0_407 = arith.constant 0 : index
    %c0_408 = arith.constant 0 : index
    %546 = vector.load %arg8[%c3_406, %c0_407, %c0_408] : memref<18x128x128xf32, #tpu.memory_space<vmem>>, vector<1x128x128xf32>
    %547 = vector.shape_cast %546 : vector<1x128x128xf32> to vector<128x128xf32>
    %548 = vector.broadcast %545 : f32 to vector<128x128xf32>
    %549 = arith.mulf %548, %547 : vector<128x128xf32>
    %550 = arith.addf %544, %549 : vector<128x128xf32>
    %c3_409 = arith.constant 3 : index
    %c4_410 = arith.constant 4 : index
    %551 = memref.load %arg2[%c3_409, %c4_410] : memref<4x18xf32, #tpu.memory_space<smem>>
    %c4_411 = arith.constant 4 : index
    %c0_412 = arith.constant 0 : index
    %c0_413 = arith.constant 0 : index
    %552 = vector.load %arg8[%c4_411, %c0_412, %c0_413] : memref<18x128x128xf32, #tpu.memory_space<vmem>>, vector<1x128x128xf32>
    %553 = vector.shape_cast %552 : vector<1x128x128xf32> to vector<128x128xf32>
    %554 = vector.broadcast %551 : f32 to vector<128x128xf32>
    %555 = arith.mulf %554, %553 : vector<128x128xf32>
    %556 = arith.addf %550, %555 : vector<128x128xf32>
    %c3_414 = arith.constant 3 : index
    %c5_415 = arith.constant 5 : index
    %557 = memref.load %arg2[%c3_414, %c5_415] : memref<4x18xf32, #tpu.memory_space<smem>>
    %c5_416 = arith.constant 5 : index
    %c0_417 = arith.constant 0 : index
    %c0_418 = arith.constant 0 : index
    %558 = vector.load %arg8[%c5_416, %c0_417, %c0_418] : memref<18x128x128xf32, #tpu.memory_space<vmem>>, vector<1x128x128xf32>
    %559 = vector.shape_cast %558 : vector<1x128x128xf32> to vector<128x128xf32>
    %560 = vector.broadcast %557 : f32 to vector<128x128xf32>
    %561 = arith.mulf %560, %559 : vector<128x128xf32>
    %562 = arith.addf %556, %561 : vector<128x128xf32>
    %c3_419 = arith.constant 3 : index
    %c6_420 = arith.constant 6 : index
    %563 = memref.load %arg2[%c3_419, %c6_420] : memref<4x18xf32, #tpu.memory_space<smem>>
    %c6_421 = arith.constant 6 : index
    %c0_422 = arith.constant 0 : index
    %c0_423 = arith.constant 0 : index
    %564 = vector.load %arg8[%c6_421, %c0_422, %c0_423] : memref<18x128x128xf32, #tpu.memory_space<vmem>>, vector<1x128x128xf32>
    %565 = vector.shape_cast %564 : vector<1x128x128xf32> to vector<128x128xf32>
    %566 = vector.broadcast %563 : f32 to vector<128x128xf32>
    %567 = arith.mulf %566, %565 : vector<128x128xf32>
    %568 = arith.addf %562, %567 : vector<128x128xf32>
    %c3_424 = arith.constant 3 : index
    %c7_425 = arith.constant 7 : index
    %569 = memref.load %arg2[%c3_424, %c7_425] : memref<4x18xf32, #tpu.memory_space<smem>>
    %c7_426 = arith.constant 7 : index
    %c0_427 = arith.constant 0 : index
    %c0_428 = arith.constant 0 : index
    %570 = vector.load %arg8[%c7_426, %c0_427, %c0_428] : memref<18x128x128xf32, #tpu.memory_space<vmem>>, vector<1x128x128xf32>
    %571 = vector.shape_cast %570 : vector<1x128x128xf32> to vector<128x128xf32>
    %572 = vector.broadcast %569 : f32 to vector<128x128xf32>
    %573 = arith.mulf %572, %571 : vector<128x128xf32>
    %574 = arith.addf %568, %573 : vector<128x128xf32>
    %c3_429 = arith.constant 3 : index
    %c8_430 = arith.constant 8 : index
    %575 = memref.load %arg2[%c3_429, %c8_430] : memref<4x18xf32, #tpu.memory_space<smem>>
    %c8_431 = arith.constant 8 : index
    %c0_432 = arith.constant 0 : index
    %c0_433 = arith.constant 0 : index
    %576 = vector.load %arg8[%c8_431, %c0_432, %c0_433] : memref<18x128x128xf32, #tpu.memory_space<vmem>>, vector<1x128x128xf32>
    %577 = vector.shape_cast %576 : vector<1x128x128xf32> to vector<128x128xf32>
    %578 = vector.broadcast %575 : f32 to vector<128x128xf32>
    %579 = arith.mulf %578, %577 : vector<128x128xf32>
    %580 = arith.addf %574, %579 : vector<128x128xf32>
    %c3_434 = arith.constant 3 : index
    %c9_435 = arith.constant 9 : index
    %581 = memref.load %arg2[%c3_434, %c9_435] : memref<4x18xf32, #tpu.memory_space<smem>>
    %c9_436 = arith.constant 9 : index
    %c0_437 = arith.constant 0 : index
    %c0_438 = arith.constant 0 : index
    %582 = vector.load %arg8[%c9_436, %c0_437, %c0_438] : memref<18x128x128xf32, #tpu.memory_space<vmem>>, vector<1x128x128xf32>
    %583 = vector.shape_cast %582 : vector<1x128x128xf32> to vector<128x128xf32>
    %584 = vector.broadcast %581 : f32 to vector<128x128xf32>
    %585 = arith.mulf %584, %583 : vector<128x128xf32>
    %586 = arith.addf %580, %585 : vector<128x128xf32>
    %c3_439 = arith.constant 3 : index
    %c10_440 = arith.constant 10 : index
    %587 = memref.load %arg2[%c3_439, %c10_440] : memref<4x18xf32, #tpu.memory_space<smem>>
    %c10_441 = arith.constant 10 : index
    %c0_442 = arith.constant 0 : index
    %c0_443 = arith.constant 0 : index
    %588 = vector.load %arg8[%c10_441, %c0_442, %c0_443] : memref<18x128x128xf32, #tpu.memory_space<vmem>>, vector<1x128x128xf32>
    %589 = vector.shape_cast %588 : vector<1x128x128xf32> to vector<128x128xf32>
    %590 = vector.broadcast %587 : f32 to vector<128x128xf32>
    %591 = arith.mulf %590, %589 : vector<128x128xf32>
    %592 = arith.addf %586, %591 : vector<128x128xf32>
    %c3_444 = arith.constant 3 : index
    %c11_445 = arith.constant 11 : index
    %593 = memref.load %arg2[%c3_444, %c11_445] : memref<4x18xf32, #tpu.memory_space<smem>>
    %c11_446 = arith.constant 11 : index
    %c0_447 = arith.constant 0 : index
    %c0_448 = arith.constant 0 : index
    %594 = vector.load %arg8[%c11_446, %c0_447, %c0_448] : memref<18x128x128xf32, #tpu.memory_space<vmem>>, vector<1x128x128xf32>
    %595 = vector.shape_cast %594 : vector<1x128x128xf32> to vector<128x128xf32>
    %596 = vector.broadcast %593 : f32 to vector<128x128xf32>
    %597 = arith.mulf %596, %595 : vector<128x128xf32>
    %598 = arith.addf %592, %597 : vector<128x128xf32>
    %c3_449 = arith.constant 3 : index
    %c12_450 = arith.constant 12 : index
    %599 = memref.load %arg2[%c3_449, %c12_450] : memref<4x18xf32, #tpu.memory_space<smem>>
    %c12_451 = arith.constant 12 : index
    %c0_452 = arith.constant 0 : index
    %c0_453 = arith.constant 0 : index
    %600 = vector.load %arg8[%c12_451, %c0_452, %c0_453] : memref<18x128x128xf32, #tpu.memory_space<vmem>>, vector<1x128x128xf32>
    %601 = vector.shape_cast %600 : vector<1x128x128xf32> to vector<128x128xf32>
    %602 = vector.broadcast %599 : f32 to vector<128x128xf32>
    %603 = arith.mulf %602, %601 : vector<128x128xf32>
    %604 = arith.addf %598, %603 : vector<128x128xf32>
    %c3_454 = arith.constant 3 : index
    %c13_455 = arith.constant 13 : index
    %605 = memref.load %arg2[%c3_454, %c13_455] : memref<4x18xf32, #tpu.memory_space<smem>>
    %c13_456 = arith.constant 13 : index
    %c0_457 = arith.constant 0 : index
    %c0_458 = arith.constant 0 : index
    %606 = vector.load %arg8[%c13_456, %c0_457, %c0_458] : memref<18x128x128xf32, #tpu.memory_space<vmem>>, vector<1x128x128xf32>
    %607 = vector.shape_cast %606 : vector<1x128x128xf32> to vector<128x128xf32>
    %608 = vector.broadcast %605 : f32 to vector<128x128xf32>
    %609 = arith.mulf %608, %607 : vector<128x128xf32>
    %610 = arith.addf %604, %609 : vector<128x128xf32>
    %c3_459 = arith.constant 3 : index
    %c14_460 = arith.constant 14 : index
    %611 = memref.load %arg2[%c3_459, %c14_460] : memref<4x18xf32, #tpu.memory_space<smem>>
    %c14_461 = arith.constant 14 : index
    %c0_462 = arith.constant 0 : index
    %c0_463 = arith.constant 0 : index
    %612 = vector.load %arg8[%c14_461, %c0_462, %c0_463] : memref<18x128x128xf32, #tpu.memory_space<vmem>>, vector<1x128x128xf32>
    %613 = vector.shape_cast %612 : vector<1x128x128xf32> to vector<128x128xf32>
    %614 = vector.broadcast %611 : f32 to vector<128x128xf32>
    %615 = arith.mulf %614, %613 : vector<128x128xf32>
    %616 = arith.addf %610, %615 : vector<128x128xf32>
    %c3_464 = arith.constant 3 : index
    %c15_465 = arith.constant 15 : index
    %617 = memref.load %arg2[%c3_464, %c15_465] : memref<4x18xf32, #tpu.memory_space<smem>>
    %c15_466 = arith.constant 15 : index
    %c0_467 = arith.constant 0 : index
    %c0_468 = arith.constant 0 : index
    %618 = vector.load %arg8[%c15_466, %c0_467, %c0_468] : memref<18x128x128xf32, #tpu.memory_space<vmem>>, vector<1x128x128xf32>
    %619 = vector.shape_cast %618 : vector<1x128x128xf32> to vector<128x128xf32>
    %620 = vector.broadcast %617 : f32 to vector<128x128xf32>
    %621 = arith.mulf %620, %619 : vector<128x128xf32>
    %622 = arith.addf %616, %621 : vector<128x128xf32>
    %c3_469 = arith.constant 3 : index
    %c16_470 = arith.constant 16 : index
    %623 = memref.load %arg2[%c3_469, %c16_470] : memref<4x18xf32, #tpu.memory_space<smem>>
    %c16_471 = arith.constant 16 : index
    %c0_472 = arith.constant 0 : index
    %c0_473 = arith.constant 0 : index
    %624 = vector.load %arg8[%c16_471, %c0_472, %c0_473] : memref<18x128x128xf32, #tpu.memory_space<vmem>>, vector<1x128x128xf32>
    %625 = vector.shape_cast %624 : vector<1x128x128xf32> to vector<128x128xf32>
    %626 = vector.broadcast %623 : f32 to vector<128x128xf32>
    %627 = arith.mulf %626, %625 : vector<128x128xf32>
    %628 = arith.addf %622, %627 : vector<128x128xf32>
    %c3_474 = arith.constant 3 : index
    %c17_475 = arith.constant 17 : index
    %629 = memref.load %arg2[%c3_474, %c17_475] : memref<4x18xf32, #tpu.memory_space<smem>>
    %c17_476 = arith.constant 17 : index
    %c0_477 = arith.constant 0 : index
    %c0_478 = arith.constant 0 : index
    %630 = vector.load %arg8[%c17_476, %c0_477, %c0_478] : memref<18x128x128xf32, #tpu.memory_space<vmem>>, vector<1x128x128xf32>
    %631 = vector.shape_cast %630 : vector<1x128x128xf32> to vector<128x128xf32>
    %632 = vector.broadcast %629 : f32 to vector<128x128xf32>
    %633 = arith.mulf %632, %631 : vector<128x128xf32>
    %634 = arith.addf %628, %633 : vector<128x128xf32>
    %c3_479 = arith.constant 3 : index
    %635 = memref.load %arg3[%c3_479] : memref<4xf32, #tpu.memory_space<smem>>
    %636 = vector.broadcast %635 : f32 to vector<128x128xf32>
    %637 = arith.mulf %634, %636 : vector<128x128xf32>
    %c3_480 = arith.constant 3 : index
    %638 = memref.load %arg4[%c3_480] : memref<4xf32, #tpu.memory_space<smem>>
    %639 = vector.broadcast %638 : f32 to vector<128x128xf32>
    %640 = arith.addf %637, %639 : vector<128x128xf32>
    %c3_481 = arith.constant 3 : index
    %c0_482 = arith.constant 0 : index
    %c0_483 = arith.constant 0 : index
    %641 = vector.load %arg9[%c3_481, %c0_482, %c0_483] : memref<4x128x128xf32, #tpu.memory_space<vmem>>, vector<1x128x128xf32>
    %642 = vector.shape_cast %641 : vector<1x128x128xf32> to vector<128x128xf32>
    %643 = arith.addf %642, %640 : vector<128x128xf32>
    %cst_484 = arith.constant 1.000000e+00 : f32
    %644 = vector.broadcast %cst_484 : f32 to vector<128x128xf32>
    %645 = arith.cmpf oge, %643, %644 : vector<128x128xf32>
    %646 = arith.extui %645 : vector<128x128xi1> to vector<128x128xi32>
    %647 = arith.sitofp %646 : vector<128x128xi32> to vector<128x128xf32>
    %cst_485 = arith.constant 0.000000e+00 : f32
    %648 = vector.broadcast %cst_485 : f32 to vector<128x128xf32>
    %649 = arith.cmpf ogt, %647, %648 : vector<128x128xf32>
    %cst_486 = arith.constant 0.000000e+00 : f32
    %650 = vector.broadcast %cst_486 : f32 to vector<128x128xf32>
    %651 = arith.select %649, %650, %643 : vector<128x128xi1>, vector<128x128xf32>
    %c3_487 = arith.constant 3 : index
    %c0_488 = arith.constant 0 : index
    %c0_489 = arith.constant 0 : index
    %652 = vector.load %arg9[%c3_487, %c0_488, %c0_489] : memref<4x128x128xf32, #tpu.memory_space<vmem>>, vector<1x128x128xf32>
    %653 = vector.shape_cast %652 : vector<1x128x128xf32> to vector<128x128xf32>
    %654 = vector.shape_cast %651 : vector<128x128xf32> to vector<1x128x128xf32>
    tpu.vector_store %arg9[%c3_487, %c0_488, %c0_489], %654 {strides = array<i32>} : memref<4x128x128xf32, #tpu.memory_space<vmem>>, vector<1x128x128xf32>,
    %cst_490 = arith.constant dense<0.000000e+00> : vector<64x128xf32>
    %655 = tpu.matmul %103, %647, %cst_490 {dimension_numbers = #tpu.dot_dimension_numbers<[1], [0], [0], [1], [0, 0, 1, 1], [], []>} : vector<64x128xf32>, vector<128x128xf32>, vector<64x128xf32> -> vector<64x128xf32>
    %cst_491 = arith.constant dense<0.000000e+00> : vector<64x64xf32>
    %656 = tpu.matmul %655, %116, %cst_491 {dimension_numbers = #tpu.dot_dimension_numbers<[1], [0], [0], [1], [0, 0, 1, 1], [], []>} : vector<64x128xf32>, vector<128x64xf32>, vector<64x64xf32> -> vector<64x64xf32>
    %cst_492 = arith.constant 5.000000e-01 : f32
    %657 = vector.broadcast %cst_492 : f32 to vector<64x64xf32>
    %658 = arith.cmpf ogt, %656, %657 : vector<64x64xf32>
    %659 = arith.extui %658 : vector<64x64xi1> to vector<64x64xi32>
    %660 = arith.sitofp %659 : vector<64x64xi32> to vector<64x64xf32>
    %661 = arith.truncf %660 : vector<64x64xf32> to vector<64x64xbf16>
    %c0_493 = arith.constant 0 : index
    %c0_494 = arith.constant 0 : index
    %c3_495 = arith.constant 3 : index
    %c0_496 = arith.constant 0 : index
    %c0_497 = arith.constant 0 : index
    %662 = vector.load %arg6[%c0_493, %c0_494, %c3_495, %c0_496, %c0_497] : memref<1x1x4x64x64xbf16, #tpu.memory_space<vmem>>, vector<1x1x1x64x64xbf16>
    %663 = vector.shape_cast %662 : vector<1x1x1x64x64xbf16> to vector<64x64xbf16>
    %664 = vector.shape_cast %661 : vector<64x64xbf16> to vector<1x1x1x64x64xbf16>
    tpu.vector_store %arg6[%c0_493, %c0_494, %c3_495, %c0_496, %c0_497], %664 {strides = array<i32>} : memref<1x1x4x64x64xbf16, #tpu.memory_space<vmem>>, vector<1x1x1x64x64xbf16>,
    return
  }
  func.func @transform_0(%arg0: i32, %arg1: i32) -> (i32, i32) {
    %c0_i32 = arith.constant 0 : i32
    %c0_i32_0 = arith.constant 0 : i32
    %c0_i32_1 = arith.constant 0 : i32
    return %c0_i32, %c0_i32_0 : i32, i32
  }
  func.func @transform_1(%arg0: i32, %arg1: i32) -> i32 {
    %c0_i32 = arith.constant 0 : i32
    %c0_i32_0 = arith.constant 0 : i32
    return %c0_i32 : i32
  }
  func.func @transform_2(%arg0: i32, %arg1: i32) -> i32 {
    %c0_i32 = arith.constant 0 : i32
    %c0_i32_0 = arith.constant 0 : i32
    return %c0_i32 : i32
  }
  func.func @transform_3(%arg0: i32, %arg1: i32) -> (i32, i32, i32, i32, i32) {
    %c0_i32 = arith.constant 0 : i32
    %c0_i32_0 = arith.constant 0 : i32
    %c0_i32_1 = arith.constant 0 : i32
    %c0_i32_2 = arith.constant 0 : i32
    return %arg1, %arg0, %c0_i32, %c0_i32_0, %c0_i32_1 : i32, i32, i32, i32, i32
  }
  func.func @transform_4(%arg0: i32, %arg1: i32) -> (i32, i32, i32, i32, i32) {
    %c0_i32 = arith.constant 0 : i32
    %c0_i32_0 = arith.constant 0 : i32
    %c0_i32_1 = arith.constant 0 : i32
    %c0_i32_2 = arith.constant 0 : i32
    return %arg1, %arg0, %c0_i32, %c0_i32_0, %c0_i32_1 : i32, i32, i32, i32, i32
  }
}

</mosaic_0001>

<llo_original>
// kernel: tpu_custom_call.1
$region0: #{tpu_custom_call.1}
  #allocation0 [shape = 'u32[]', space=smem, size = 0x4, offset = 0x4, fixed_abs, tag = 'smem constant byte address 0x4 - core index']
  #allocation1 [shape = 'u32[144,128]{1,0:T(1,128)}', space=vmem, size = 0x12000, scoped, tag = 'internal scratch']
  #allocation2 [shape = 'f32[2,130,130]{2,1,0:T(8,128)}', space=vmem, size = 0x44000, scoped, tag = 'scratch operand']
  #allocation3 [shape = 'f32[18,128,128]{2,1,0:T(8,128)}', space=vmem, size = 0x120000, scoped, tag = 'scratch operand']
  #allocation4 [shape = 'f32[4,128,128]{2,1,0:T(8,128)}', space=vmem, size = 0x40000, scoped, tag = 'scratch operand']
  %s0 = inlined_call_operand.hbm [shape: f32[4,18], index: 0, kind: input, shape index: {}]
  %s1 = inlined_call_operand.vmem [shape: f32[4], index: 1, kind: input, shape index: {}]
  %s2 = inlined_call_operand.vmem [shape: f32[4], index: 2, kind: input, shape index: {}]
  %s3 = inlined_call_operand.hbm [shape: bf16[2,2,2,128,128], index: 3, kind: input, shape index: {}]
  %s4 = inlined_call_operand.hbm [shape: bf16[2,2,4,64,64], index: 4, kind: output, shape index: {}]
  %s5 = sld [smem:[#allocation0]]
  $region69: #{tpu_custom_call.1} parent=0
    _
  %s7 = ssub.s32 1, %s5
  %s8 = scalar_select 0, %s7, %s5
  $region1: #{tpu_custom_call.1} parent=0
    #allocation5 [shape = 'u8[2048]{0}', space=smem, size = 0x800, scoped, tag = 'input window, operand 0, single buffered']
    #allocation6 [shape = 's32[2]{0}', space=sflag, size = 0x8, scoped, tag = 'scoped memory for tpu_custom_call.1']
    #allocation7 [shape = 's32[2]{0}', space=sflag, size = 0x8, scoped, tag = 'scoped memory for tpu_custom_call.1']
    #allocation8 [shape = 's32[2]{0}', space=sflag, size = 0x8, scoped, tag = 'scoped memory for tpu_custom_call.1']
    #allocation9 [shape = 's32[2]{0}', space=sflag, size = 0x8, scoped, tag = 'scoped memory for tpu_custom_call.1']
    #allocation10 [shape = 'u8[512]{0}', space=smem, size = 0x200, scoped, tag = 'input window, operand 1, single buffered']
    #allocation11 [shape = 'u8[512]{0}', space=smem, size = 0x200, scoped, tag = 'input window, operand 2, single buffered']
    #allocation12 [shape = 's32[1]{0}', space=sflag, size = 0x4, scoped, tag = 'scoped memory for tpu_custom_call.1']
    #allocation13 [shape = 'u8[131072]{0}', space=vmem, size = 0x20000, scoped, tag = 'input window, operand 3']
    #allocation14 [shape = 'u8[131072]{0}', space=vmem, size = 0x20000, scoped, tag = 'output window, operand 0']
    %9 = vsyncpa [#allocation8], 0
    %10 = vsyncpa [#allocation9], 0
    %11 = vsyncpa [#allocation12], 0
    %12 = vsyncpa [#allocation6], 0
    %s13 = scalar_lea.sflag [#allocation6], 1
    %14 = vsyncpa %s13, 0
    %15 = vsyncpa [#allocation7], 0
    %s16 = scalar_lea.sflag [#allocation7], 1
    %17 = vsyncpa %s16, 0
    loop: start=0, step=1, limit=6
    $region2: #{tpu_custom_call.1} parent=1 // loop_pre_header
      _
    $region3: #{tpu_custom_call.1} parent=1 // loop_header
      %s19 = sphi 0, %s23
      %p20 = scmp.ge.s32.totalorder %s19, 6
      %s26 = sphi 0, %s38
      %s27 = sphi 0, %s34
      %s28 = sphi 0, %s26
      %s29 = sphi 0, %s27
      %s30 = sphi 0, %s28
      %s31 = sphi 0, %s29
      %s39 = sphi 0, %s39
      %s41 = sphi 0, %s39
      %s42 = sphi 0, %s41
      %s56 = sphi 0, %s42
      %s60 = sphi 0, %s60
      %s62 = sphi 0, %s60
      %s63 = sphi 0, %s62
      %s77 = sphi 0, %s63
      %s81 = sphi 0, %s81
      %s83 = sphi 0, %s81
      %s84 = sphi 0, %s83
      %s98 = sphi 0, %s84
      %s106 = sphi 0, %s108
      %s109 = sphi 0, %s106
      %s110 = sphi 0, %s109
      %s126 = sphi 0, %s110
      %s134 = sphi 0, %s136
      %s137 = sphi 0, %s134
      %s138 = sphi 0, %s137
      %s154 = sphi 0, %s138
    $region4: #{tpu_custom_call.1} parent=1 // loop_header_branch
      %22 = sbr.rel (%p20) target = $region8
    $region5: #{tpu_custom_call.1} parent=1 // loop_body
      %s24 = ssub.s32 %s19, 1
      %s25 = ssub.s32 %s19, 2
      %s32 = sadd.s32 1, %s27
      %p33 = scmp.ge.s32.totalorder %s32, 2
      %s34 = scalar_select %p33, 0, %s32
      %s35 = sadd.s32 1, %s26
      %s36 = scalar_select %p33, %s35, %s26
      %p37 = scmp.ge.s32.totalorder %s36, 2
      %s38 = scalar_select %p37, 0, %s36
      %s40 = sadd.s32 %s39, 1
      %p43 = scmp.eq.s32.totalorder %s19, 3
      %p44 = scmp.ne.s32.totalorder %s39, %s41
      %p45 = scmp.eq.s32.totalorder %s19, 0
      %p46 = por %p44, %p45
      %p47 = scmp.ne.s32.totalorder %s39, %s41
      %p48 = scmp.eq.s32.totalorder %s24, 3
      %p49 = por %p47, %p48
      %p50 = scmp.ne.s32.totalorder %s41, %s42
      %p51 = scmp.eq.s32.totalorder %s24, 0
      %p52 = por %p50, %p51
      %p53 = scmp.ne.s32.totalorder %s41, %s42
      %p54 = scmp.eq.s32.totalorder %s25, 3
      %p55 = por %p53, %p54
      %p57 = scmp.ne.s32.totalorder %s42, %s56
      %p58 = scmp.eq.s32.totalorder %s25, 0
      %p59 = por %p57, %p58
      %s61 = sadd.s32 %s60, 1
      %p64 = scmp.eq.s32.totalorder %s19, 3
      %p65 = scmp.ne.s32.totalorder %s60, %s62
      %p66 = scmp.eq.s32.totalorder %s19, 0
      %p67 = por %p65, %p66
      %p68 = scmp.ne.s32.totalorder %s60, %s62
      %p69 = scmp.eq.s32.totalorder %s24, 3
      %p70 = por %p68, %p69
      %p71 = scmp.ne.s32.totalorder %s62, %s63
      %p72 = scmp.eq.s32.totalorder %s24, 0
      %p73 = por %p71, %p72
      %p74 = scmp.ne.s32.totalorder %s62, %s63
      %p75 = scmp.eq.s32.totalorder %s25, 3
      %p76 = por %p74, %p75
      %p78 = scmp.ne.s32.totalorder %s63, %s77
      %p79 = scmp.eq.s32.totalorder %s25, 0
      %p80 = por %p78, %p79
      %s82 = sadd.s32 %s81, 1
      %p85 = scmp.eq.s32.totalorder %s19, 3
      %p86 = scmp.ne.s32.totalorder %s81, %s83
      %p87 = scmp.eq.s32.totalorder %s19, 0
      %p88 = por %p86, %p87
      %p89 = scmp.ne.s32.totalorder %s81, %s83
      %p90 = scmp.eq.s32.totalorder %s24, 3
      %p91 = por %p89, %p90
      %p92 = scmp.ne.s32.totalorder %s83, %s84
      %p93 = scmp.eq.s32.totalorder %s24, 0
      %p94 = por %p92, %p93
      %p95 = scmp.ne.s32.totalorder %s83, %s84
      %p96 = scmp.eq.s32.totalorder %s25, 3
      %p97 = por %p95, %p96
      %p99 = scmp.ne.s32.totalorder %s84, %s98
      %p100 = scmp.eq.s32.totalorder %s25, 0
      %p101 = por %p99, %p100
      %s102 = ssub.s32 %s27, %s34
      %s103 = ssub.s32 %s26, %s38
      %s104 = sor.u32 %s102, %s103
      %p105 = scmp.eq.s32.totalorder %s104, 0
      %s107 = sadd.s32 %s106, 1
      %s108 = scalar_select %p105, %s106, %s107
      %p111 = pneg %p105
      %p112 = scmp.eq.s32.totalorder %s19, 3
      %p113 = por %p111, %p112
      %p114 = scmp.ne.s32.totalorder %s106, %s109
      %p115 = scmp.eq.s32.totalorder %s19, 0
      %p116 = por %p114, %p115
      %p117 = scmp.ne.s32.totalorder %s106, %s109
      %p118 = scmp.eq.s32.totalorder %s24, 3
      %p119 = por %p117, %p118
      %p120 = scmp.ne.s32.totalorder %s109, %s110
      %p121 = scmp.eq.s32.totalorder %s24, 0
      %p122 = por %p120, %p121
      %p123 = scmp.ne.s32.totalorder %s109, %s110
      %p124 = scmp.eq.s32.totalorder %s25, 3
      %p125 = por %p123, %p124
      %p127 = scmp.ne.s32.totalorder %s110, %s126
      %p128 = scmp.eq.s32.totalorder %s25, 0
      %p129 = por %p127, %p128
      %s130 = ssub.s32 %s27, %s34
      %s131 = ssub.s32 %s26, %s38
      %s132 = sor.u32 %s130, %s131
      %p133 = scmp.eq.s32.totalorder %s132, 0
      %s135 = sadd.s32 %s134, 1
      %s136 = scalar_select %p133, %s134, %s135
      %p139 = pneg %p133
      %p140 = scmp.eq.s32.totalorder %s19, 3
      %p141 = por %p139, %p140
      %p142 = scmp.ne.s32.totalorder %s134, %s137
      %p143 = scmp.eq.s32.totalorder %s19, 0
      %p144 = por %p142, %p143
      %p145 = scmp.ne.s32.totalorder %s134, %s137
      %p146 = scmp.eq.s32.totalorder %s24, 3
      %p147 = por %p145, %p146
      %p148 = scmp.ne.s32.totalorder %s137, %s138
      %p149 = scmp.eq.s32.totalorder %s24, 0
      %p150 = por %p148, %p149
      %p151 = scmp.ne.s32.totalorder %s137, %s138
      %p152 = scmp.eq.s32.totalorder %s25, 3
      %p153 = por %p151, %p152
      %p155 = scmp.ne.s32.totalorder %s138, %s154
      %p156 = scmp.eq.s32.totalorder %s25, 0
      %p157 = por %p155, %p156
      %p158 = scmp.le.s32.totalorder 1, %s19
      %p159 = scmp.lt.s32.totalorder %s19, 5
      %p160 = pnand %p158, %p159
      %p161 = pneg %p160
      // Predicated region
      $region9: #{tpu_custom_call.1} parent=5 // pred_check
        _
      $region10: #{tpu_custom_call.1} parent=5 // pred_check_branch
        %163 = sbr.rel (%p160) target = $region12
      $region11: #{tpu_custom_call.1} parent=5 // pred_region
        %s164 = ssub.s32 %s19, 1
        // Predicated region
        $region13: #{tpu_custom_call.1} parent=11 // pred_check
          %p165 = pneg %p52
        $region14: #{tpu_custom_call.1} parent=11 // pred_check_branch
          %167 = sbr.rel (%p165) target = $region16
        $region15: #{tpu_custom_call.1} parent=11 // pred_region
          %s169 = ssub.s32 64, 64
          %170 = vsyncadd [#allocation8], %s169
          %173 = dma.hbm_to_smem %s0, 64, [#allocation5], [#allocation8]
        $region16: #{tpu_custom_call.1} parent=11 // pred_fallthru
          _
        // Predicated region
        $region17: #{tpu_custom_call.1} parent=11 // pred_check
          %p174 = pneg %p73
        $region18: #{tpu_custom_call.1} parent=11 // pred_check_branch
          %176 = sbr.rel (%p174) target = $region20
        $region19: #{tpu_custom_call.1} parent=11 // pred_region
          %s178 = ssub.s32 16, 16
          %179 = vsyncadd [#allocation9], %s178
          %s181 = sshll.u32 %s1, 4
          %s182 = int_to_ptr.vmem [resolvable:$true] %s181
          %184 = dma.vmem_to_smem %s182, 16, [#allocation10], [#allocation9]
        $region20: #{tpu_custom_call.1} parent=11 // pred_fallthru
          _
        // Predicated region
        $region21: #{tpu_custom_call.1} parent=11 // pred_check
          %p185 = pneg %p94
        $region22: #{tpu_custom_call.1} parent=11 // pred_check_branch
          %187 = sbr.rel (%p185) target = $region24
        $region23: #{tpu_custom_call.1} parent=11 // pred_region
          %s189 = ssub.s32 16, 16
          %190 = vsyncadd [#allocation12], %s189
          %s192 = sshll.u32 %s2, 4
          %s193 = int_to_ptr.vmem [resolvable:$true] %s192
          %195 = dma.vmem_to_smem %s193, 16, [#allocation11], [#allocation12]
        $region24: #{tpu_custom_call.1} parent=11 // pred_fallthru
          _
      $region12: #{tpu_custom_call.1} parent=5 // pred_fallthru
        _
      %p196 = scmp.lt.s32.totalorder %s19, 4
      // Predicated region
      $region25: #{tpu_custom_call.1} parent=5 // pred_check
        %p197 = pneg %p196
      $region26: #{tpu_custom_call.1} parent=5 // pred_check_branch
        %199 = sbr.rel (%p197) target = $region28
      $region27: #{tpu_custom_call.1} parent=5 // pred_region
        // Predicated region
        $region29: #{tpu_custom_call.1} parent=27 // pred_check
          %p200 = pneg %p116
        $region30: #{tpu_custom_call.1} parent=27 // pred_check_branch
          %202 = sbr.rel (%p200) target = $region32
        $region31: #{tpu_custom_call.1} parent=27 // pred_region
          %s203 = sand.u32 %s106, 1
          %s204 = scalar_lea.sflag [#allocation6], %s203
          %s205 = sand.u32 %s106, 1
          %s206 = smul.addr %s205, 128
          %s207 = scalar_lea.vmem [#allocation13], %s206
          %s209 = ssub.s32 2048, 2048
          %210 = vsyncadd %s204, %s209
          %s211 = smul.addr %s26, 32
          %s212 = smul.addr %s27, 64
          %s213 = sadd.s32 %s211, %s212
          %s214 = smul.addr %s213, 64
          %s215 = scalar_lea.hbm %s3, %s214
          %s216 = sshll.u32 %s207, 4
          %s217 = int_to_ptr.vmem [resolvable:$true] %s216
          %222 = dma.hbm_to_vmem [thread:$0]  %s215, 2048, %s217, %s204, 64, 64, 4
        $region32: #{tpu_custom_call.1} parent=27 // pred_fallthru
          _
      $region28: #{tpu_custom_call.1} parent=5 // pred_fallthru
        _
      %p223 = scmp.le.s32.totalorder 1, %s19
      %p224 = scmp.lt.s32.totalorder %s19, 5
      %p225 = pnand %p223, %p224
      %p226 = pneg %p225
      // Predicated region
      $region33: #{tpu_custom_call.1} parent=5 // pred_check
        _
      $region34: #{tpu_custom_call.1} parent=5 // pred_check_branch
        %228 = sbr.rel (%p225) target = $region36
      $region35: #{tpu_custom_call.1} parent=5 // pred_region
        %s229 = ssub.s32 %s19, 1
        // Predicated region
        $region37: #{tpu_custom_call.1} parent=35 // pred_check
          %p230 = pneg %p52
        $region38: #{tpu_custom_call.1} parent=35 // pred_check_branch
          %232 = sbr.rel (%p230) target = $region40
        $region39: #{tpu_custom_call.1} parent=35 // pred_region
          %233 = dma.done [#allocation8], 64
        $region40: #{tpu_custom_call.1} parent=35 // pred_fallthru
          _
        // Predicated region
        $region41: #{tpu_custom_call.1} parent=35 // pred_check
          %p234 = pneg %p73
        $region42: #{tpu_custom_call.1} parent=35 // pred_check_branch
          %236 = sbr.rel (%p234) target = $region44
        $region43: #{tpu_custom_call.1} parent=35 // pred_region
          %237 = dma.done [#allocation9], 16
        $region44: #{tpu_custom_call.1} parent=35 // pred_fallthru
          _
        // Predicated region
        $region45: #{tpu_custom_call.1} parent=35 // pred_check
          %p238 = pneg %p94
        $region46: #{tpu_custom_call.1} parent=35 // pred_check_branch
          %240 = sbr.rel (%p238) target = $region48
        $region47: #{tpu_custom_call.1} parent=35 // pred_region
          %241 = dma.done [#allocation12], 16
        $region48: #{tpu_custom_call.1} parent=35 // pred_fallthru
          _
        %s242 = sand.u32 %s109, 1
        %s243 = scalar_lea.sflag [#allocation6], %s242
        %s244 = sand.u32 %s109, 1
        %s245 = smul.addr %s244, 128
        %s246 = scalar_lea.vmem [#allocation13], %s245
        // Predicated region
        $region49: #{tpu_custom_call.1} parent=35 // pred_check
          %p247 = pneg %p122
        $region50: #{tpu_custom_call.1} parent=35 // pred_check_branch
          %249 = sbr.rel (%p247) target = $region52
        $region51: #{tpu_custom_call.1} parent=35 // pred_region
          %250 = dma.done %s243, 2048
        $region52: #{tpu_custom_call.1} parent=35 // pred_fallthru
          _
        %251 = sfence
        %p252 = pneg %p52
        %p253 = pneg %p49
        %p254 = pneg %p73
        %p255 = pneg %p70
        %p256 = pneg %p94
        %p257 = pneg %p91
        %s258 = sand.u32 %s109, 1
        %s259 = scalar_lea.sflag [#allocation6], %s258
        %s260 = sand.u32 %s109, 1
        %s261 = smul.addr %s260, 128
        %s262 = scalar_lea.vmem [#allocation13], %s261
        %p263 = pneg %p122
        %p264 = pneg %p119
        %p265 = pneg %p150
        %p266 = pneg %p147
        %s267 = sand.u32 %s137, 1
        %s268 = scalar_lea.sflag [#allocation7], %s267
        %s269 = sand.u32 %s137, 1
        %s270 = smul.addr %s269, 128
        %s271 = scalar_lea.vmem [#allocation14], %s270
        %p272 = scmp.eq.s32.totalorder %s29, 0
        // Predicated region
        $region53: #{tpu_custom_call.1} parent=35 // pred_check
          %p273 = pneg %p272
        $region54: #{tpu_custom_call.1} parent=35 // pred_check_branch
          %275 = sbr.rel (%p273) target = $region56
        $region55: #{tpu_custom_call.1} parent=35 // pred_region
          %276 = vst [vmem:[#allocation4] sm:$0xff] 0.0
          %277 = vst [vmem:[#allocation4 + $0x8] sm:$0xff] 0.0
          %278 = vst [vmem:[#allocation4 + $0x10] sm:$0xff] 0.0
          %279 = vst [vmem:[#allocation4 + $0x18] sm:$0xff] 0.0
          %280 = vst [vmem:[#allocation4 + $0x20] sm:$0xff] 0.0
          %281 = vst [vmem:[#allocation4 + $0x28] sm:$0xff] 0.0
          %282 = vst [vmem:[#allocation4 + $0x30] sm:$0xff] 0.0
          %283 = vst [vmem:[#allocation4 + $0x38] sm:$0xff] 0.0
          %284 = vst [vmem:[#allocation4 + $0x40] sm:$0xff] 0.0
          %285 = vst [vmem:[#allocation4 + $0x48] sm:$0xff] 0.0
          %286 = vst [vmem:[#allocation4 + $0x50] sm:$0xff] 0.0
          %287 = vst [vmem:[#allocation4 + $0x58] sm:$0xff] 0.0
          %288 = vst [vmem:[#allocation4 + $0x60] sm:$0xff] 0.0
          %289 = vst [vmem:[#allocation4 + $0x68] sm:$0xff] 0.0
          %290 = vst [vmem:[#allocation4 + $0x70] sm:$0xff] 0.0
          %291 = vst [vmem:[#allocation4 + $0x78] sm:$0xff] 0.0
          %292 = vst [vmem:[#allocation4 + $0x80] sm:$0xff] 0.0
          %293 = vst [vmem:[#allocation4 + $0x88] sm:$0xff] 0.0
          %294 = vst [vmem:[#allocation4 + $0x90] sm:$0xff] 0.0
          %295 = vst [vmem:[#allocation4 + $0x98] sm:$0xff] 0.0
          %296 = vst [vmem:[#allocation4 + $0xa0] sm:$0xff] 0.0
          %297 = vst [vmem:[#allocation4 + $0xa8] sm:$0xff] 0.0
          %298 = vst [vmem:[#allocation4 + $0xb0] sm:$0xff] 0.0
          %299 = vst [vmem:[#allocation4 + $0xb8] sm:$0xff] 0.0
          %300 = vst [vmem:[#allocation4 + $0xc0] sm:$0xff] 0.0
          %301 = vst [vmem:[#allocation4 + $0xc8] sm:$0xff] 0.0
          %302 = vst [vmem:[#allocation4 + $0xd0] sm:$0xff] 0.0
          %303 = vst [vmem:[#allocation4 + $0xd8] sm:$0xff] 0.0
          %304 = vst [vmem:[#allocation4 + $0xe0] sm:$0xff] 0.0
          %305 = vst [vmem:[#allocation4 + $0xe8] sm:$0xff] 0.0
          %306 = vst [vmem:[#allocation4 + $0xf0] sm:$0xff] 0.0
          %307 = vst [vmem:[#allocation4 + $0xf8] sm:$0xff] 0.0
          %308 = vst [vmem:[#allocation4 + $0x100] sm:$0xff] 0.0
          %309 = vst [vmem:[#allocation4 + $0x108] sm:$0xff] 0.0
          %310 = vst [vmem:[#allocation4 + $0x110] sm:$0xff] 0.0
          %311 = vst [vmem:[#allocation4 + $0x118] sm:$0xff] 0.0
          %312 = vst [vmem:[#allocation4 + $0x120] sm:$0xff] 0.0
          %313 = vst [vmem:[#allocation4 + $0x128] sm:$0xff] 0.0
          %314 = vst [vmem:[#allocation4 + $0x130] sm:$0xff] 0.0
          %315 = vst [vmem:[#allocation4 + $0x138] sm:$0xff] 0.0
          %316 = vst [vmem:[#allocation4 + $0x140] sm:$0xff] 0.0
          %317 = vst [vmem:[#allocation4 + $0x148] sm:$0xff] 0.0
          %318 = vst [vmem:[#allocation4 + $0x150] sm:$0xff] 0.0
          %319 = vst [vmem:[#allocation4 + $0x158] sm:$0xff] 0.0
          %320 = vst [vmem:[#allocation4 + $0x160] sm:$0xff] 0.0
          %321 = vst [vmem:[#allocation4 + $0x168] sm:$0xff] 0.0
          %322 = vst [vmem:[#allocation4 + $0x170] sm:$0xff] 0.0
          %323 = vst [vmem:[#allocation4 + $0x178] sm:$0xff] 0.0
          %324 = vst [vmem:[#allocation4 + $0x180] sm:$0xff] 0.0
          %325 = vst [vmem:[#allocation4 + $0x188] sm:$0xff] 0.0
          %326 = vst [vmem:[#allocation4 + $0x190] sm:$0xff] 0.0
          %327 = vst [vmem:[#allocation4 + $0x198] sm:$0xff] 0.0
          %328 = vst [vmem:[#allocation4 + $0x1a0] sm:$0xff] 0.0
          %329 = vst [vmem:[#allocation4 + $0x1a8] sm:$0xff] 0.0
          %330 = vst [vmem:[#allocation4 + $0x1b0] sm:$0xff] 0.0
          %331 = vst [vmem:[#allocation4 + $0x1b8] sm:$0xff] 0.0
          %332 = vst [vmem:[#allocation4 + $0x1c0] sm:$0xff] 0.0
          %333 = vst [vmem:[#allocation4 + $0x1c8] sm:$0xff] 0.0
          %334 = vst [vmem:[#allocation4 + $0x1d0] sm:$0xff] 0.0
          %335 = vst [vmem:[#allocation4 + $0x1d8] sm:$0xff] 0.0
          %336 = vst [vmem:[#allocation4 + $0x1e0] sm:$0xff] 0.0
          %337 = vst [vmem:[#allocation4 + $0x1e8] sm:$0xff] 0.0
          %338 = vst [vmem:[#allocation4 + $0x1f0] sm:$0xff] 0.0
          %339 = vst [vmem:[#allocation4 + $0x1f8] sm:$0xff] 0.0
          %340 = vst [vmem:[#allocation2] sm:$0xff] 0.0
          %vm341 = vcmask 15360
          %342 = vst.msk [vmem:[#allocation2 + $0x8] sm:$0xff] %vm341, 0.0
          %343 = vst [vmem:[#allocation2 + $0x10] sm:$0xff] 0.0
          %344 = vst.msk [vmem:[#allocation2 + $0x18] sm:$0xff] %vm341, 0.0
          %345 = vst [vmem:[#allocation2 + $0x20] sm:$0xff] 0.0
          %346 = vst.msk [vmem:[#allocation2 + $0x28] sm:$0xff] %vm341, 0.0
          %347 = vst [vmem:[#allocation2 + $0x30] sm:$0xff] 0.0
          %348 = vst.msk [vmem:[#allocation2 + $0x38] sm:$0xff] %vm341, 0.0
          %349 = vst [vmem:[#allocation2 + $0x40] sm:$0xff] 0.0
          %350 = vst.msk [vmem:[#allocation2 + $0x48] sm:$0xff] %vm341, 0.0
          %351 = vst [vmem:[#allocation2 + $0x50] sm:$0xff] 0.0
          %352 = vst.msk [vmem:[#allocation2 + $0x58] sm:$0xff] %vm341, 0.0
          %353 = vst [vmem:[#allocation2 + $0x60] sm:$0xff] 0.0
          %354 = vst.msk [vmem:[#allocation2 + $0x68] sm:$0xff] %vm341, 0.0
          %355 = vst [vmem:[#allocation2 + $0x70] sm:$0xff] 0.0
          %356 = vst.msk [vmem:[#allocation2 + $0x78] sm:$0xff] %vm341, 0.0
          %357 = vst [vmem:[#allocation2 + $0x80] sm:$0xff] 0.0
          %358 = vst.msk [vmem:[#allocation2 + $0x88] sm:$0xff] %vm341, 0.0
          %359 = vst [vmem:[#allocation2 + $0x90] sm:$0xff] 0.0
          %360 = vst.msk [vmem:[#allocation2 + $0x98] sm:$0xff] %vm341, 0.0
          %361 = vst [vmem:[#allocation2 + $0xa0] sm:$0xff] 0.0
          %362 = vst.msk [vmem:[#allocation2 + $0xa8] sm:$0xff] %vm341, 0.0
          %363 = vst [vmem:[#allocation2 + $0xb0] sm:$0xff] 0.0
          %364 = vst.msk [vmem:[#allocation2 + $0xb8] sm:$0xff] %vm341, 0.0
          %365 = vst [vmem:[#allocation2 + $0xc0] sm:$0xff] 0.0
          %366 = vst.msk [vmem:[#allocation2 + $0xc8] sm:$0xff] %vm341, 0.0
          %367 = vst [vmem:[#allocation2 + $0xd0] sm:$0xff] 0.0
          %368 = vst.msk [vmem:[#allocation2 + $0xd8] sm:$0xff] %vm341, 0.0
          %369 = vst [vmem:[#allocation2 + $0xe0] sm:$0xff] 0.0
          %370 = vst.msk [vmem:[#allocation2 + $0xe8] sm:$0xff] %vm341, 0.0
          %371 = vst [vmem:[#allocation2 + $0xf0] sm:$0xff] 0.0
          %372 = vst.msk [vmem:[#allocation2 + $0xf8] sm:$0xff] %vm341, 0.0
          %373 = vst [vmem:[#allocation2 + $0x100] sm:$0x3] 0.0
          %vm374 = vcmask 9216
          %375 = vst.msk [vmem:[#allocation2 + $0x108] sm:$0x3] %vm374, 0.0
          %376 = vst [vmem:[#allocation2 + $0x110] sm:$0xff] 0.0
          %377 = vst.msk [vmem:[#allocation2 + $0x118] sm:$0xff] %vm341, 0.0
          %378 = vst [vmem:[#allocation2 + $0x120] sm:$0xff] 0.0
          %379 = vst.msk [vmem:[#allocation2 + $0x128] sm:$0xff] %vm341, 0.0
          %380 = vst [vmem:[#allocation2 + $0x130] sm:$0xff] 0.0
          %381 = vst.msk [vmem:[#allocation2 + $0x138] sm:$0xff] %vm341, 0.0
          %382 = vst [vmem:[#allocation2 + $0x140] sm:$0xff] 0.0
          %383 = vst.msk [vmem:[#allocation2 + $0x148] sm:$0xff] %vm341, 0.0
          %384 = vst [vmem:[#allocation2 + $0x150] sm:$0xff] 0.0
          %385 = vst.msk [vmem:[#allocation2 + $0x158] sm:$0xff] %vm341, 0.0
          %386 = vst [vmem:[#allocation2 + $0x160] sm:$0xff] 0.0
          %387 = vst.msk [vmem:[#allocation2 + $0x168] sm:$0xff] %vm341, 0.0
          %388 = vst [vmem:[#allocation2 + $0x170] sm:$0xff] 0.0
          %389 = vst.msk [vmem:[#allocation2 + $0x178] sm:$0xff] %vm341, 0.0
          %390 = vst [vmem:[#allocation2 + $0x180] sm:$0xff] 0.0
          %391 = vst.msk [vmem:[#allocation2 + $0x188] sm:$0xff] %vm341, 0.0
          %392 = vst [vmem:[#allocation2 + $0x190] sm:$0xff] 0.0
          %393 = vst.msk [vmem:[#allocation2 + $0x198] sm:$0xff] %vm341, 0.0
          %394 = vst [vmem:[#allocation2 + $0x1a0] sm:$0xff] 0.0
          %395 = vst.msk [vmem:[#allocation2 + $0x1a8] sm:$0xff] %vm341, 0.0
          %396 = vst [vmem:[#allocation2 + $0x1b0] sm:$0xff] 0.0
          %397 = vst.msk [vmem:[#allocation2 + $0x1b8] sm:$0xff] %vm341, 0.0
          %398 = vst [vmem:[#allocation2 + $0x1c0] sm:$0xff] 0.0
          %399 = vst.msk [vmem:[#allocation2 + $0x1c8] sm:$0xff] %vm341, 0.0
          %400 = vst [vmem:[#allocation2 + $0x1d0] sm:$0xff] 0.0
          %401 = vst.msk [vmem:[#allocation2 + $0x1d8] sm:$0xff] %vm341, 0.0
          %402 = vst [vmem:[#allocation2 + $0x1e0] sm:$0xff] 0.0
          %403 = vst.msk [vmem:[#allocation2 + $0x1e8] sm:$0xff] %vm341, 0.0
          %404 = vst [vmem:[#allocation2 + $0x1f0] sm:$0xff] 0.0
          %405 = vst.msk [vmem:[#allocation2 + $0x1f8] sm:$0xff] %vm341, 0.0
          %406 = vst [vmem:[#allocation2 + $0x200] sm:$0xff] 0.0
          %407 = vst.msk [vmem:[#allocation2 + $0x208] sm:$0xff] %vm341, 0.0
          %408 = vst [vmem:[#allocation2 + $0x210] sm:$0x3] 0.0
          %409 = vst.msk [vmem:[#allocation2 + $0x218] sm:$0x3] %vm374, 0.0
        $region56: #{tpu_custom_call.1} parent=35 // pred_fallthru
          _
        %v410 = vld [vmem:[%s246] sm:$0xf]
        %v411 = vld [vmem:[%s246 + $0x4] sm:$0xf]
        %v412 = vld [vmem:[%s246 + $0x8] sm:$0xf]
        %v413 = vld [vmem:[%s246 + $0xc] sm:$0xf]
        %v414 = vld [vmem:[%s246 + $0x10] sm:$0xf]
        %v415 = vld [vmem:[%s246 + $0x14] sm:$0xf]
        %v416 = vld [vmem:[%s246 + $0x18] sm:$0xf]
        %v417 = vld [vmem:[%s246 + $0x1c] sm:$0xf]
        %v418 = vld [vmem:[%s246 + $0x20] sm:$0xf]
        %v419 = vld [vmem:[%s246 + $0x24] sm:$0xf]
        %v420 = vld [vmem:[%s246 + $0x28] sm:$0xf]
        %v421 = vld [vmem:[%s246 + $0x2c] sm:$0xf]
        %v422 = vld [vmem:[%s246 + $0x30] sm:$0xf]
        %v423 = vld [vmem:[%s246 + $0x34] sm:$0xf]
        %v424 = vld [vmem:[%s246 + $0x38] sm:$0xf]
        %v425 = vld [vmem:[%s246 + $0x3c] sm:$0xf]
        %v426 = vunpack.c.l.bf16 %v410
        %v427 = vunpack.c.l.bf16 %v411
        %v428 = vunpack.c.l.bf16 %v412
        %v429 = vunpack.c.l.bf16 %v413
        %v430 = vunpack.c.l.bf16 %v414
        %v431 = vunpack.c.l.bf16 %v415
        %v432 = vunpack.c.l.bf16 %v416
        %v433 = vunpack.c.l.bf16 %v417
        %v434 = vunpack.c.l.bf16 %v418
        %v435 = vunpack.c.l.bf16 %v419
        %v436 = vunpack.c.l.bf16 %v420
        %v437 = vunpack.c.l.bf16 %v421
        %v438 = vunpack.c.l.bf16 %v422
        %v439 = vunpack.c.l.bf16 %v423
        %v440 = vunpack.c.l.bf16 %v424
        %v441 = vunpack.c.l.bf16 %v425
        %vm458 = vcmask 1040384
        %v459 = vrot.slane %v426, 7
        %v460 = vrot.slane %v427, 7
        %v461 = vsel %vm458, %v459, %v460
        %v462 = vrot.slane %v428, 7
        %v463 = vsel %vm458, %v460, %v462
        %v464 = vrot.slane %v429, 7
        %v465 = vsel %vm458, %v462, %v464
        %v466 = vrot.slane %v430, 7
        %v467 = vsel %vm458, %v464, %v466
        %v468 = vrot.slane %v431, 7
        %v469 = vsel %vm458, %v466, %v468
        %v470 = vrot.slane %v432, 7
        %v471 = vsel %vm458, %v468, %v470
        %v472 = vrot.slane %v433, 7
        %v473 = vsel %vm458, %v470, %v472
        %v474 = vrot.slane %v434, 7
        %v475 = vsel %vm458, %v472, %v474
        %v476 = vrot.slane %v435, 7
        %v477 = vsel %vm458, %v474, %v476
        %v478 = vrot.slane %v436, 7
        %v479 = vsel %vm458, %v476, %v478
        %v480 = vrot.slane %v437, 7
        %v481 = vsel %vm458, %v478, %v480
        %v482 = vrot.slane %v438, 7
        %v483 = vsel %vm458, %v480, %v482
        %v484 = vrot.slane %v439, 7
        %v485 = vsel %vm458, %v482, %v484
        %v486 = vrot.slane %v440, 7
        %v487 = vsel %vm458, %v484, %v486
        %v488 = vrot.slane %v441, 7
        %v489 = vsel %vm458, %v486, %v488
        %490 = vrot.lane.b32.xlu0 %v459, 1
        %v491 = vpop.permute.xlu0 %490
        %492 = vrot.lane.b32.xlu0 %v461, 1
        %v493 = vpop.permute.xlu0 %492
        %494 = vrot.lane.b32.xlu0 %v463, 1
        %v495 = vpop.permute.xlu0 %494
        %496 = vrot.lane.b32.xlu0 %v465, 1
        %v497 = vpop.permute.xlu0 %496
        %498 = vrot.lane.b32.xlu0 %v467, 1
        %v499 = vpop.permute.xlu0 %498
        %500 = vrot.lane.b32.xlu0 %v469, 1
        %v501 = vpop.permute.xlu0 %500
        %502 = vrot.lane.b32.xlu0 %v471, 1
        %v503 = vpop.permute.xlu0 %502
        %504 = vrot.lane.b32.xlu0 %v473, 1
        %v505 = vpop.permute.xlu0 %504
        %506 = vrot.lane.b32.xlu0 %v475, 1
        %v507 = vpop.permute.xlu0 %506
        %508 = vrot.lane.b32.xlu0 %v477, 1
        %v509 = vpop.permute.xlu0 %508
        %510 = vrot.lane.b32.xlu0 %v479, 1
        %v511 = vpop.permute.xlu0 %510
        %512 = vrot.lane.b32.xlu0 %v481, 1
        %v513 = vpop.permute.xlu0 %512
        %514 = vrot.lane.b32.xlu0 %v483, 1
        %v515 = vpop.permute.xlu0 %514
        %516 = vrot.lane.b32.xlu0 %v485, 1
        %v517 = vpop.permute.xlu0 %516
        %518 = vrot.lane.b32.xlu0 %v487, 1
        %v519 = vpop.permute.xlu0 %518
        %520 = vrot.lane.b32.xlu0 %v489, 1
        %v521 = vpop.permute.xlu0 %520
        %522 = vrot.lane.b32.xlu0 %v488, 1
        %v523 = vpop.permute.xlu0 %522
        %vm541 = vcmask 1047561
        %542 = vst.msk [vmem:[#allocation2] sm:$0xfe] %vm541, %v491
        %vm543 = vcmask 7169
        %544 = vst.msk [vmem:[#allocation2 + $0x8] sm:$0xfe] %vm543, %v491
        %vm545 = vcmask 1047560
        %546 = vst.msk [vmem:[#allocation2 + $0x10] sm:$0xff] %vm545, %v493
        %vm547 = vcmask 7168
        %548 = vst.msk [vmem:[#allocation2 + $0x18] sm:$0xff] %vm547, %v493
        %549 = vst.msk [vmem:[#allocation2 + $0x20] sm:$0xff] %vm545, %v495
        %550 = vst.msk [vmem:[#allocation2 + $0x28] sm:$0xff] %vm547, %v495
        %551 = vst.msk [vmem:[#allocation2 + $0x30] sm:$0xff] %vm545, %v497
        %552 = vst.msk [vmem:[#allocation2 + $0x38] sm:$0xff] %vm547, %v497
        %553 = vst.msk [vmem:[#allocation2 + $0x40] sm:$0xff] %vm545, %v499
        %554 = vst.msk [vmem:[#allocation2 + $0x48] sm:$0xff] %vm547, %v499
        %555 = vst.msk [vmem:[#allocation2 + $0x50] sm:$0xff] %vm545, %v501
        %556 = vst.msk [vmem:[#allocation2 + $0x58] sm:$0xff] %vm547, %v501
        %557 = vst.msk [vmem:[#allocation2 + $0x60] sm:$0xff] %vm545, %v503
        %558 = vst.msk [vmem:[#allocation2 + $0x68] sm:$0xff] %vm547, %v503
        %559 = vst.msk [vmem:[#allocation2 + $0x70] sm:$0xff] %vm545, %v505
        %560 = vst.msk [vmem:[#allocation2 + $0x78] sm:$0xff] %vm547, %v505
        %561 = vst.msk [vmem:[#allocation2 + $0x80] sm:$0xff] %vm545, %v507
        %562 = vst.msk [vmem:[#allocation2 + $0x88] sm:$0xff] %vm547, %v507
        %563 = vst.msk [vmem:[#allocation2 + $0x90] sm:$0xff] %vm545, %v509
        %564 = vst.msk [vmem:[#allocation2 + $0x98] sm:$0xff] %vm547, %v509
        %565 = vst.msk [vmem:[#allocation2 + $0xa0] sm:$0xff] %vm545, %v511
        %566 = vst.msk [vmem:[#allocation2 + $0xa8] sm:$0xff] %vm547, %v511
        %567 = vst.msk [vmem:[#allocation2 + $0xb0] sm:$0xff] %vm545, %v513
        %568 = vst.msk [vmem:[#allocation2 + $0xb8] sm:$0xff] %vm547, %v513
        %569 = vst.msk [vmem:[#allocation2 + $0xc0] sm:$0xff] %vm545, %v515
        %570 = vst.msk [vmem:[#allocation2 + $0xc8] sm:$0xff] %vm547, %v515
        %571 = vst.msk [vmem:[#allocation2 + $0xd0] sm:$0xff] %vm545, %v517
        %572 = vst.msk [vmem:[#allocation2 + $0xd8] sm:$0xff] %vm547, %v517
        %573 = vst.msk [vmem:[#allocation2 + $0xe0] sm:$0xff] %vm545, %v519
        %574 = vst.msk [vmem:[#allocation2 + $0xe8] sm:$0xff] %vm547, %v519
        %575 = vst.msk [vmem:[#allocation2 + $0xf0] sm:$0xff] %vm545, %v521
        %576 = vst.msk [vmem:[#allocation2 + $0xf8] sm:$0xff] %vm547, %v521
        %vm577 = vcmask 1040392
        %578 = vst.msk [vmem:[#allocation2 + $0x100] sm:$0x1] %vm577, %v523
        %vm579 = vcmask 0
        %580 = vst.msk [vmem:[#allocation2 + $0x108] sm:$0x1] %vm579, %v523
        %v581 = vld [vmem:[#allocation2] sm:$0xff]
        %v582 = vld [vmem:[#allocation2 + $0x8] sm:$0xff]
        %v583 = vld [vmem:[#allocation2 + $0x10] sm:$0xff]
        %v584 = vld [vmem:[#allocation2 + $0x18] sm:$0xff]
        %v585 = vld [vmem:[#allocation2 + $0x20] sm:$0xff]
        %v586 = vld [vmem:[#allocation2 + $0x28] sm:$0xff]
        %v587 = vld [vmem:[#allocation2 + $0x30] sm:$0xff]
        %v588 = vld [vmem:[#allocation2 + $0x38] sm:$0xff]
        %v589 = vld [vmem:[#allocation2 + $0x40] sm:$0xff]
        %v590 = vld [vmem:[#allocation2 + $0x48] sm:$0xff]
        %v591 = vld [vmem:[#allocation2 + $0x50] sm:$0xff]
        %v592 = vld [vmem:[#allocation2 + $0x58] sm:$0xff]
        %v593 = vld [vmem:[#allocation2 + $0x60] sm:$0xff]
        %v594 = vld [vmem:[#allocation2 + $0x68] sm:$0xff]
        %v595 = vld [vmem:[#allocation2 + $0x70] sm:$0xff]
        %v596 = vld [vmem:[#allocation2 + $0x78] sm:$0xff]
        %v597 = vld [vmem:[#allocation2 + $0x80] sm:$0xff]
        %v598 = vld [vmem:[#allocation2 + $0x88] sm:$0xff]
        %v599 = vld [vmem:[#allocation2 + $0x90] sm:$0xff]
        %v600 = vld [vmem:[#allocation2 + $0x98] sm:$0xff]
        %v601 = vld [vmem:[#allocation2 + $0xa0] sm:$0xff]
        %v602 = vld [vmem:[#allocation2 + $0xa8] sm:$0xff]
        %v603 = vld [vmem:[#allocation2 + $0xb0] sm:$0xff]
        %v604 = vld [vmem:[#allocation2 + $0xb8] sm:$0xff]
        %v605 = vld [vmem:[#allocation2 + $0xc0] sm:$0xff]
        %v606 = vld [vmem:[#allocation2 + $0xc8] sm:$0xff]
        %v607 = vld [vmem:[#allocation2 + $0xd0] sm:$0xff]
        %v608 = vld [vmem:[#allocation2 + $0xd8] sm:$0xff]
        %v609 = vld [vmem:[#allocation2 + $0xe0] sm:$0xff]
        %v610 = vld [vmem:[#allocation2 + $0xe8] sm:$0xff]
        %v611 = vld [vmem:[#allocation2 + $0xf0] sm:$0xff]
        %v612 = vld [vmem:[#allocation2 + $0xf8] sm:$0xff]
        %v613 = vld [vmem:[#allocation2 + $0x100] sm:$0x3]
        %v614 = vld [vmem:[#allocation2 + $0x108] sm:$0x3]
        %615 = vst [vmem:[#allocation3] sm:$0xff] %v581
        %616 = vst [vmem:[#allocation3 + $0x8] sm:$0xff] %v583
        %617 = vst [vmem:[#allocation3 + $0x10] sm:$0xff] %v585
        %618 = vst [vmem:[#allocation3 + $0x18] sm:$0xff] %v587
        %619 = vst [vmem:[#allocation3 + $0x20] sm:$0xff] %v589
        %620 = vst [vmem:[#allocation3 + $0x28] sm:$0xff] %v591
        %621 = vst [vmem:[#allocation3 + $0x30] sm:$0xff] %v593
        %622 = vst [vmem:[#allocation3 + $0x38] sm:$0xff] %v595
        %623 = vst [vmem:[#allocation3 + $0x40] sm:$0xff] %v597
        %624 = vst [vmem:[#allocation3 + $0x48] sm:$0xff] %v599
        %625 = vst [vmem:[#allocation3 + $0x50] sm:$0xff] %v601
        %626 = vst [vmem:[#allocation3 + $0x58] sm:$0xff] %v603
        %627 = vst [vmem:[#allocation3 + $0x60] sm:$0xff] %v605
        %628 = vst [vmem:[#allocation3 + $0x68] sm:$0xff] %v607
        %629 = vst [vmem:[#allocation3 + $0x70] sm:$0xff] %v609
        %630 = vst [vmem:[#allocation3 + $0x78] sm:$0xff] %v611
        %663 = vrot.lane.b32.xlu0 %v581, 127
        %v664 = vpop.permute.xlu0 %663
        %665 = vrot.lane.b32.xlu0 %v582, 127
        %v666 = vpop.permute.xlu0 %665
        %667 = vrot.lane.b32.xlu0 %v583, 127
        %v668 = vpop.permute.xlu0 %667
        %669 = vrot.lane.b32.xlu0 %v584, 127
        %v670 = vpop.permute.xlu0 %669
        %671 = vrot.lane.b32.xlu0 %v585, 127
        %v672 = vpop.permute.xlu0 %671
        %673 = vrot.lane.b32.xlu0 %v586, 127
        %v674 = vpop.permute.xlu0 %673
        %675 = vrot.lane.b32.xlu0 %v587, 127
        %v676 = vpop.permute.xlu0 %675
        %677 = vrot.lane.b32.xlu0 %v588, 127
        %v678 = vpop.permute.xlu0 %677
        %679 = vrot.lane.b32.xlu0 %v589, 127
        %v680 = vpop.permute.xlu0 %679
        %681 = vrot.lane.b32.xlu0 %v590, 127
        %v682 = vpop.permute.xlu0 %681
        %683 = vrot.lane.b32.xlu0 %v591, 127
        %v684 = vpop.permute.xlu0 %683
        %685 = vrot.lane.b32.xlu0 %v592, 127
        %v686 = vpop.permute.xlu0 %685
        %687 = vrot.lane.b32.xlu0 %v593, 127
        %v688 = vpop.permute.xlu0 %687
        %689 = vrot.lane.b32.xlu0 %v594, 127
        %v690 = vpop.permute.xlu0 %689
        %691 = vrot.lane.b32.xlu0 %v595, 127
        %v692 = vpop.permute.xlu0 %691
        %693 = vrot.lane.b32.xlu0 %v596, 127
        %v694 = vpop.permute.xlu0 %693
        %695 = vrot.lane.b32.xlu0 %v597, 127
        %v696 = vpop.permute.xlu0 %695
        %697 = vrot.lane.b32.xlu0 %v598, 127
        %v698 = vpop.permute.xlu0 %697
        %699 = vrot.lane.b32.xlu0 %v599, 127
        %v700 = vpop.permute.xlu0 %699
        %701 = vrot.lane.b32.xlu0 %v600, 127
        %v702 = vpop.permute.xlu0 %701
        %703 = vrot.lane.b32.xlu0 %v601, 127
        %v704 = vpop.permute.xlu0 %703
        %705 = vrot.lane.b32.xlu0 %v602, 127
        %v706 = vpop.permute.xlu0 %705
        %707 = vrot.lane.b32.xlu0 %v603, 127
        %v708 = vpop.permute.xlu0 %707
        %709 = vrot.lane.b32.xlu0 %v604, 127
        %v710 = vpop.permute.xlu0 %709
        %711 = vrot.lane.b32.xlu0 %v605, 127
        %v712 = vpop.permute.xlu0 %711
        %713 = vrot.lane.b32.xlu0 %v606, 127
        %v714 = vpop.permute.xlu0 %713
        %715 = vrot.lane.b32.xlu0 %v607, 127
        %v716 = vpop.permute.xlu0 %715
        %717 = vrot.lane.b32.xlu0 %v608, 127
        %v718 = vpop.permute.xlu0 %717
        %719 = vrot.lane.b32.xlu0 %v609, 127
        %v720 = vpop.permute.xlu0 %719
        %721 = vrot.lane.b32.xlu0 %v610, 127
        %v722 = vpop.permute.xlu0 %721
        %723 = vrot.lane.b32.xlu0 %v611, 127
        %v724 = vpop.permute.xlu0 %723
        %725 = vrot.lane.b32.xlu0 %v612, 127
        %v726 = vpop.permute.xlu0 %725
        %vm727 = vcmask 1039360
        %v728 = vsel %vm727, %v664, %v666
        %v729 = vsel %vm727, %v668, %v670
        %v730 = vsel %vm727, %v672, %v674
        %v731 = vsel %vm727, %v676, %v678
        %v732 = vsel %vm727, %v680, %v682
        %v733 = vsel %vm727, %v684, %v686
        %v734 = vsel %vm727, %v688, %v690
        %v735 = vsel %vm727, %v692, %v694
        %v736 = vsel %vm727, %v696, %v698
        %v737 = vsel %vm727, %v700, %v702
        %v738 = vsel %vm727, %v704, %v706
        %v739 = vsel %vm727, %v708, %v710
        %v740 = vsel %vm727, %v712, %v714
        %v741 = vsel %vm727, %v716, %v718
        %v742 = vsel %vm727, %v720, %v722
        %v743 = vsel %vm727, %v724, %v726
        %s760 = scalar_lea.vmem [#allocation3], 128
        %761 = vst [vmem:[%s760] sm:$0xff] %v728
        %762 = vst [vmem:[%s760 + $0x8] sm:$0xff] %v729
        %763 = vst [vmem:[%s760 + $0x10] sm:$0xff] %v730
        %764 = vst [vmem:[%s760 + $0x18] sm:$0xff] %v731
        %765 = vst [vmem:[%s760 + $0x20] sm:$0xff] %v732
        %766 = vst [vmem:[%s760 + $0x28] sm:$0xff] %v733
        %767 = vst [vmem:[%s760 + $0x30] sm:$0xff] %v734
        %768 = vst [vmem:[%s760 + $0x38] sm:$0xff] %v735
        %769 = vst [vmem:[%s760 + $0x40] sm:$0xff] %v736
        %770 = vst [vmem:[%s760 + $0x48] sm:$0xff] %v737
        %771 = vst [vmem:[%s760 + $0x50] sm:$0xff] %v738
        %772 = vst [vmem:[%s760 + $0x58] sm:$0xff] %v739
        %773 = vst [vmem:[%s760 + $0x60] sm:$0xff] %v740
        %774 = vst [vmem:[%s760 + $0x68] sm:$0xff] %v741
        %775 = vst [vmem:[%s760 + $0x70] sm:$0xff] %v742
        %776 = vst [vmem:[%s760 + $0x78] sm:$0xff] %v743
        %777 = vrot.lane.b32.xlu0 %v581, 126
        %v778 = vpop.permute.xlu0 %777
        %779 = vrot.lane.b32.xlu0 %v582, 126
        %v780 = vpop.permute.xlu0 %779
        %781 = vrot.lane.b32.xlu0 %v583, 126
        %v782 = vpop.permute.xlu0 %781
        %783 = vrot.lane.b32.xlu0 %v584, 126
        %v784 = vpop.permute.xlu0 %783
        %785 = vrot.lane.b32.xlu0 %v585, 126
        %v786 = vpop.permute.xlu0 %785
        %787 = vrot.lane.b32.xlu0 %v586, 126
        %v788 = vpop.permute.xlu0 %787
        %789 = vrot.lane.b32.xlu0 %v587, 126
        %v790 = vpop.permute.xlu0 %789
        %791 = vrot.lane.b32.xlu0 %v588, 126
        %v792 = vpop.permute.xlu0 %791
        %793 = vrot.lane.b32.xlu0 %v589, 126
        %v794 = vpop.permute.xlu0 %793
        %795 = vrot.lane.b32.xlu0 %v590, 126
        %v796 = vpop.permute.xlu0 %795
        %797 = vrot.lane.b32.xlu0 %v591, 126
        %v798 = vpop.permute.xlu0 %797
        %799 = vrot.lane.b32.xlu0 %v592, 126
        %v800 = vpop.permute.xlu0 %799
        %801 = vrot.lane.b32.xlu0 %v593, 126
        %v802 = vpop.permute.xlu0 %801
        %803 = vrot.lane.b32.xlu0 %v594, 126
        %v804 = vpop.permute.xlu0 %803
        %805 = vrot.lane.b32.xlu0 %v595, 126
        %v806 = vpop.permute.xlu0 %805
        %807 = vrot.lane.b32.xlu0 %v596, 126
        %v808 = vpop.permute.xlu0 %807
        %809 = vrot.lane.b32.xlu0 %v597, 126
        %v810 = vpop.permute.xlu0 %809
        %811 = vrot.lane.b32.xlu0 %v598, 126
        %v812 = vpop.permute.xlu0 %811
        %813 = vrot.lane.b32.xlu0 %v599, 126
        %v814 = vpop.permute.xlu0 %813
        %815 = vrot.lane.b32.xlu0 %v600, 126
        %v816 = vpop.permute.xlu0 %815
        %817 = vrot.lane.b32.xlu0 %v601, 126
        %v818 = vpop.permute.xlu0 %817
        %819 = vrot.lane.b32.xlu0 %v602, 126
        %v820 = vpop.permute.xlu0 %819
        %821 = vrot.lane.b32.xlu0 %v603, 126
        %v822 = vpop.permute.xlu0 %821
        %823 = vrot.lane.b32.xlu0 %v604, 126
        %v824 = vpop.permute.xlu0 %823
        %825 = vrot.lane.b32.xlu0 %v605, 126
        %v826 = vpop.permute.xlu0 %825
        %827 = vrot.lane.b32.xlu0 %v606, 126
        %v828 = vpop.permute.xlu0 %827
        %829 = vrot.lane.b32.xlu0 %v607, 126
        %v830 = vpop.permute.xlu0 %829
        %831 = vrot.lane.b32.xlu0 %v608, 126
        %v832 = vpop.permute.xlu0 %831
        %833 = vrot.lane.b32.xlu0 %v609, 126
        %v834 = vpop.permute.xlu0 %833
        %835 = vrot.lane.b32.xlu0 %v610, 126
        %v836 = vpop.permute.xlu0 %835
        %837 = vrot.lane.b32.xlu0 %v611, 126
        %v838 = vpop.permute.xlu0 %837
        %839 = vrot.lane.b32.xlu0 %v612, 126
        %v840 = vpop.permute.xlu0 %839
        %vm841 = vcmask 1031168
        %v842 = vsel %vm841, %v778, %v780
        %v843 = vsel %vm841, %v782, %v784
        %v844 = vsel %vm841, %v786, %v788
        %v845 = vsel %vm841, %v790, %v792
        %v846 = vsel %vm841, %v794, %v796
        %v847 = vsel %vm841, %v798, %v800
        %v848 = vsel %vm841, %v802, %v804
        %v849 = vsel %vm841, %v806, %v808
        %v850 = vsel %vm841, %v810, %v812
        %v851 = vsel %vm841, %v814, %v816
        %v852 = vsel %vm841, %v818, %v820
        %v853 = vsel %vm841, %v822, %v824
        %v854 = vsel %vm841, %v826, %v828
        %v855 = vsel %vm841, %v830, %v832
        %v856 = vsel %vm841, %v834, %v836
        %v857 = vsel %vm841, %v838, %v840
        %s874 = scalar_lea.vmem [#allocation3], 256
        %875 = vst [vmem:[%s874] sm:$0xff] %v842
        %876 = vst [vmem:[%s874 + $0x8] sm:$0xff] %v843
        %877 = vst [vmem:[%s874 + $0x10] sm:$0xff] %v844
        %878 = vst [vmem:[%s874 + $0x18] sm:$0xff] %v845
        %879 = vst [vmem:[%s874 + $0x20] sm:$0xff] %v846
        %880 = vst [vmem:[%s874 + $0x28] sm:$0xff] %v847
        %881 = vst [vmem:[%s874 + $0x30] sm:$0xff] %v848
        %882 = vst [vmem:[%s874 + $0x38] sm:$0xff] %v849
        %883 = vst [vmem:[%s874 + $0x40] sm:$0xff] %v850
        %884 = vst [vmem:[%s874 + $0x48] sm:$0xff] %v851
        %885 = vst [vmem:[%s874 + $0x50] sm:$0xff] %v852
        %886 = vst [vmem:[%s874 + $0x58] sm:$0xff] %v853
        %887 = vst [vmem:[%s874 + $0x60] sm:$0xff] %v854
        %888 = vst [vmem:[%s874 + $0x68] sm:$0xff] %v855
        %889 = vst [vmem:[%s874 + $0x70] sm:$0xff] %v856
        %890 = vst [vmem:[%s874 + $0x78] sm:$0xff] %v857
        %s891 = scalar_lea.vmem [#allocation3], 384
        %892 = vst [vmem:[%s891 - $0x1] sm:$0xfe] %v581
        %893 = vst [vmem:[%s891 + $0x7] sm:$0xff] %v583
        %894 = vst [vmem:[%s891 + $0xf] sm:$0xff] %v585
        %895 = vst [vmem:[%s891 + $0x17] sm:$0xff] %v587
        %896 = vst [vmem:[%s891 + $0x1f] sm:$0xff] %v589
        %897 = vst [vmem:[%s891 + $0x27] sm:$0xff] %v591
        %898 = vst [vmem:[%s891 + $0x2f] sm:$0xff] %v593
        %899 = vst [vmem:[%s891 + $0x37] sm:$0xff] %v595
        %900 = vst [vmem:[%s891 + $0x3f] sm:$0xff] %v597
        %901 = vst [vmem:[%s891 + $0x47] sm:$0xff] %v599
        %902 = vst [vmem:[%s891 + $0x4f] sm:$0xff] %v601
        %903 = vst [vmem:[%s891 + $0x57] sm:$0xff] %v603
        %904 = vst [vmem:[%s891 + $0x5f] sm:$0xff] %v605
        %905 = vst [vmem:[%s891 + $0x67] sm:$0xff] %v607
        %906 = vst [vmem:[%s891 + $0x6f] sm:$0xff] %v609
        %907 = vst [vmem:[%s891 + $0x77] sm:$0xff] %v611
        %908 = vst [vmem:[%s891 + $0x7f] sm:$0x1] %v613
        %911 = vrot.lane.b32.xlu0 %v613, 127
        %v912 = vpop.permute.xlu0 %911
        %913 = vrot.lane.b32.xlu0 %v614, 127
        %v914 = vpop.permute.xlu0 %913
        %v915 = vsel %vm727, %v912, %v914
        %s917 = scalar_lea.vmem [#allocation3], 512
        %918 = vst [vmem:[%s917 - $0x1] sm:$0xfe] %v728
        %919 = vst [vmem:[%s917 + $0x7] sm:$0xff] %v729
        %920 = vst [vmem:[%s917 + $0xf] sm:$0xff] %v730
        %921 = vst [vmem:[%s917 + $0x17] sm:$0xff] %v731
        %922 = vst [vmem:[%s917 + $0x1f] sm:$0xff] %v732
        %923 = vst [vmem:[%s917 + $0x27] sm:$0xff] %v733
        %924 = vst [vmem:[%s917 + $0x2f] sm:$0xff] %v734
        %925 = vst [vmem:[%s917 + $0x37] sm:$0xff] %v735
        %926 = vst [vmem:[%s917 + $0x3f] sm:$0xff] %v736
        %927 = vst [vmem:[%s917 + $0x47] sm:$0xff] %v737
        %928 = vst [vmem:[%s917 + $0x4f] sm:$0xff] %v738
        %929 = vst [vmem:[%s917 + $0x57] sm:$0xff] %v739
        %930 = vst [vmem:[%s917 + $0x5f] sm:$0xff] %v740
        %931 = vst [vmem:[%s917 + $0x67] sm:$0xff] %v741
        %932 = vst [vmem:[%s917 + $0x6f] sm:$0xff] %v742
        %933 = vst [vmem:[%s917 + $0x77] sm:$0xff] %v743
        %934 = vst [vmem:[%s917 + $0x7f] sm:$0x1] %v915
        %935 = vrot.lane.b32.xlu0 %v613, 126
        %v936 = vpop.permute.xlu0 %935
        %937 = vrot.lane.b32.xlu0 %v614, 126
        %v938 = vpop.permute.xlu0 %937
        %v939 = vsel %vm841, %v936, %v938
        %s941 = scalar_lea.vmem [#allocation3], 640
        %942 = vst [vmem:[%s941 - $0x1] sm:$0xfe] %v842
        %943 = vst [vmem:[%s941 + $0x7] sm:$0xff] %v843
        %944 = vst [vmem:[%s941 + $0xf] sm:$0xff] %v844
        %945 = vst [vmem:[%s941 + $0x17] sm:$0xff] %v845
        %946 = vst [vmem:[%s941 + $0x1f] sm:$0xff] %v846
        %947 = vst [vmem:[%s941 + $0x27] sm:$0xff] %v847
        %948 = vst [vmem:[%s941 + $0x2f] sm:$0xff] %v848
        %949 = vst [vmem:[%s941 + $0x37] sm:$0xff] %v849
        %950 = vst [vmem:[%s941 + $0x3f] sm:$0xff] %v850
        %951 = vst [vmem:[%s941 + $0x47] sm:$0xff] %v851
        %952 = vst [vmem:[%s941 + $0x4f] sm:$0xff] %v852
        %953 = vst [vmem:[%s941 + $0x57] sm:$0xff] %v853
        %954 = vst [vmem:[%s941 + $0x5f] sm:$0xff] %v854
        %955 = vst [vmem:[%s941 + $0x67] sm:$0xff] %v855
        %956 = vst [vmem:[%s941 + $0x6f] sm:$0xff] %v856
        %957 = vst [vmem:[%s941 + $0x77] sm:$0xff] %v857
        %958 = vst [vmem:[%s941 + $0x7f] sm:$0x1] %v939
        %s959 = scalar_lea.vmem [#allocation3], 768
        %960 = vst [vmem:[%s959 - $0x2] sm:$0xfc] %v581
        %961 = vst [vmem:[%s959 + $0x6] sm:$0xff] %v583
        %962 = vst [vmem:[%s959 + $0xe] sm:$0xff] %v585
        %963 = vst [vmem:[%s959 + $0x16] sm:$0xff] %v587
        %964 = vst [vmem:[%s959 + $0x1e] sm:$0xff] %v589
        %965 = vst [vmem:[%s959 + $0x26] sm:$0xff] %v591
        %966 = vst [vmem:[%s959 + $0x2e] sm:$0xff] %v593
        %967 = vst [vmem:[%s959 + $0x36] sm:$0xff] %v595
        %968 = vst [vmem:[%s959 + $0x3e] sm:$0xff] %v597
        %969 = vst [vmem:[%s959 + $0x46] sm:$0xff] %v599
        %970 = vst [vmem:[%s959 + $0x4e] sm:$0xff] %v601
        %971 = vst [vmem:[%s959 + $0x56] sm:$0xff] %v603
        %972 = vst [vmem:[%s959 + $0x5e] sm:$0xff] %v605
        %973 = vst [vmem:[%s959 + $0x66] sm:$0xff] %v607
        %974 = vst [vmem:[%s959 + $0x6e] sm:$0xff] %v609
        %975 = vst [vmem:[%s959 + $0x76] sm:$0xff] %v611
        %976 = vst [vmem:[%s959 + $0x7e] sm:$0x3] %v613
        %s977 = scalar_lea.vmem [#allocation3], 896
        %978 = vst [vmem:[%s977 - $0x2] sm:$0xfc] %v728
        %979 = vst [vmem:[%s977 + $0x6] sm:$0xff] %v729
        %980 = vst [vmem:[%s977 + $0xe] sm:$0xff] %v730
        %981 = vst [vmem:[%s977 + $0x16] sm:$0xff] %v731
        %982 = vst [vmem:[%s977 + $0x1e] sm:$0xff] %v732
        %983 = vst [vmem:[%s977 + $0x26] sm:$0xff] %v733
        %984 = vst [vmem:[%s977 + $0x2e] sm:$0xff] %v734
        %985 = vst [vmem:[%s977 + $0x36] sm:$0xff] %v735
        %986 = vst [vmem:[%s977 + $0x3e] sm:$0xff] %v736
        %987 = vst [vmem:[%s977 + $0x46] sm:$0xff] %v737
        %988 = vst [vmem:[%s977 + $0x4e] sm:$0xff] %v738
        %989 = vst [vmem:[%s977 + $0x56] sm:$0xff] %v739
        %990 = vst [vmem:[%s977 + $0x5e] sm:$0xff] %v740
        %991 = vst [vmem:[%s977 + $0x66] sm:$0xff] %v741
        %992 = vst [vmem:[%s977 + $0x6e] sm:$0xff] %v742
        %993 = vst [vmem:[%s977 + $0x76] sm:$0xff] %v743
        %994 = vst [vmem:[%s977 + $0x7e] sm:$0x3] %v915
        %s995 = scalar_lea.vmem [#allocation3], 1024
        %996 = vst [vmem:[%s995 - $0x2] sm:$0xfc] %v842
        %997 = vst [vmem:[%s995 + $0x6] sm:$0xff] %v843
        %998 = vst [vmem:[%s995 + $0xe] sm:$0xff] %v844
        %999 = vst [vmem:[%s995 + $0x16] sm:$0xff] %v845
        %1000 = vst [vmem:[%s995 + $0x1e] sm:$0xff] %v846
        %1001 = vst [vmem:[%s995 + $0x26] sm:$0xff] %v847
        %1002 = vst [vmem:[%s995 + $0x2e] sm:$0xff] %v848
        %1003 = vst [vmem:[%s995 + $0x36] sm:$0xff] %v849
        %1004 = vst [vmem:[%s995 + $0x3e] sm:$0xff] %v850
        %1005 = vst [vmem:[%s995 + $0x46] sm:$0xff] %v851
        %1006 = vst [vmem:[%s995 + $0x4e] sm:$0xff] %v852
        %1007 = vst [vmem:[%s995 + $0x56] sm:$0xff] %v853
        %1008 = vst [vmem:[%s995 + $0x5e] sm:$0xff] %v854
        %1009 = vst [vmem:[%s995 + $0x66] sm:$0xff] %v855
        %1010 = vst [vmem:[%s995 + $0x6e] sm:$0xff] %v856
        %1011 = vst [vmem:[%s995 + $0x76] sm:$0xff] %v857
        %1012 = vst [vmem:[%s995 + $0x7e] sm:$0x3] %v939
        %s1013 = scalar_lea.vmem %s246, 64 [#allocation13]
        %v1014 = vld [vmem:[%s1013] sm:$0xf]
        %v1015 = vld [vmem:[%s1013 + $0x4] sm:$0xf]
        %v1016 = vld [vmem:[%s1013 + $0x8] sm:$0xf]
        %v1017 = vld [vmem:[%s1013 + $0xc] sm:$0xf]
        %v1018 = vld [vmem:[%s1013 + $0x10] sm:$0xf]
        %v1019 = vld [vmem:[%s1013 + $0x14] sm:$0xf]
        %v1020 = vld [vmem:[%s1013 + $0x18] sm:$0xf]
        %v1021 = vld [vmem:[%s1013 + $0x1c] sm:$0xf]
        %v1022 = vld [vmem:[%s1013 + $0x20] sm:$0xf]
        %v1023 = vld [vmem:[%s1013 + $0x24] sm:$0xf]
        %v1024 = vld [vmem:[%s1013 + $0x28] sm:$0xf]
        %v1025 = vld [vmem:[%s1013 + $0x2c] sm:$0xf]
        %v1026 = vld [vmem:[%s1013 + $0x30] sm:$0xf]
        %v1027 = vld [vmem:[%s1013 + $0x34] sm:$0xf]
        %v1028 = vld [vmem:[%s1013 + $0x38] sm:$0xf]
        %v1029 = vld [vmem:[%s1013 + $0x3c] sm:$0xf]
        %v1030 = vunpack.c.l.bf16 %v1014
        %v1031 = vunpack.c.l.bf16 %v1015
        %v1032 = vunpack.c.l.bf16 %v1016
        %v1033 = vunpack.c.l.bf16 %v1017
        %v1034 = vunpack.c.l.bf16 %v1018
        %v1035 = vunpack.c.l.bf16 %v1019
        %v1036 = vunpack.c.l.bf16 %v1020
        %v1037 = vunpack.c.l.bf16 %v1021
        %v1038 = vunpack.c.l.bf16 %v1022
        %v1039 = vunpack.c.l.bf16 %v1023
        %v1040 = vunpack.c.l.bf16 %v1024
        %v1041 = vunpack.c.l.bf16 %v1025
        %v1042 = vunpack.c.l.bf16 %v1026
        %v1043 = vunpack.c.l.bf16 %v1027
        %v1044 = vunpack.c.l.bf16 %v1028
        %v1045 = vunpack.c.l.bf16 %v1029
        %v1062 = vrot.slane %v1030, 7
        %v1063 = vrot.slane %v1031, 7
        %v1064 = vsel %vm458, %v1062, %v1063
        %v1065 = vrot.slane %v1032, 7
        %v1066 = vsel %vm458, %v1063, %v1065
        %v1067 = vrot.slane %v1033, 7
        %v1068 = vsel %vm458, %v1065, %v1067
        %v1069 = vrot.slane %v1034, 7
        %v1070 = vsel %vm458, %v1067, %v1069
        %v1071 = vrot.slane %v1035, 7
        %v1072 = vsel %vm458, %v1069, %v1071
        %v1073 = vrot.slane %v1036, 7
        %v1074 = vsel %vm458, %v1071, %v1073
        %v1075 = vrot.slane %v1037, 7
        %v1076 = vsel %vm458, %v1073, %v1075
        %v1077 = vrot.slane %v1038, 7
        %v1078 = vsel %vm458, %v1075, %v1077
        %v1079 = vrot.slane %v1039, 7
        %v1080 = vsel %vm458, %v1077, %v1079
        %v1081 = vrot.slane %v1040, 7
        %v1082 = vsel %vm458, %v1079, %v1081
        %v1083 = vrot.slane %v1041, 7
        %v1084 = vsel %vm458, %v1081, %v1083
        %v1085 = vrot.slane %v1042, 7
        %v1086 = vsel %vm458, %v1083, %v1085
        %v1087 = vrot.slane %v1043, 7
        %v1088 = vsel %vm458, %v1085, %v1087
        %v1089 = vrot.slane %v1044, 7
        %v1090 = vsel %vm458, %v1087, %v1089
        %v1091 = vrot.slane %v1045, 7
        %v1092 = vsel %vm458, %v1089, %v1091
        %1093 = vrot.lane.b32.xlu0 %v1062, 1
        %v1094 = vpop.permute.xlu0 %1093
        %1095 = vrot.lane.b32.xlu0 %v1064, 1
        %v1096 = vpop.permute.xlu0 %1095
        %1097 = vrot.lane.b32.xlu0 %v1066, 1
        %v1098 = vpop.permute.xlu0 %1097
        %1099 = vrot.lane.b32.xlu0 %v1068, 1
        %v1100 = vpop.permute.xlu0 %1099
        %1101 = vrot.lane.b32.xlu0 %v1070, 1
        %v1102 = vpop.permute.xlu0 %1101
        %1103 = vrot.lane.b32.xlu0 %v1072, 1
        %v1104 = vpop.permute.xlu0 %1103
        %1105 = vrot.lane.b32.xlu0 %v1074, 1
        %v1106 = vpop.permute.xlu0 %1105
        %1107 = vrot.lane.b32.xlu0 %v1076, 1
        %v1108 = vpop.permute.xlu0 %1107
        %1109 = vrot.lane.b32.xlu0 %v1078, 1
        %v1110 = vpop.permute.xlu0 %1109
        %1111 = vrot.lane.b32.xlu0 %v1080, 1
        %v1112 = vpop.permute.xlu0 %1111
        %1113 = vrot.lane.b32.xlu0 %v1082, 1
        %v1114 = vpop.permute.xlu0 %1113
        %1115 = vrot.lane.b32.xlu0 %v1084, 1
        %v1116 = vpop.permute.xlu0 %1115
        %1117 = vrot.lane.b32.xlu0 %v1086, 1
        %v1118 = vpop.permute.xlu0 %1117
        %1119 = vrot.lane.b32.xlu0 %v1088, 1
        %v1120 = vpop.permute.xlu0 %1119
        %1121 = vrot.lane.b32.xlu0 %v1090, 1
        %v1122 = vpop.permute.xlu0 %1121
        %1123 = vrot.lane.b32.xlu0 %v1092, 1
        %v1124 = vpop.permute.xlu0 %1123
        %1125 = vrot.lane.b32.xlu0 %v1091, 1
        %v1126 = vpop.permute.xlu0 %1125
        %s1144 = scalar_lea.vmem [#allocation2], 272
        %1145 = vst.msk [vmem:[%s1144] sm:$0xfe] %vm541, %v1094
        %1146 = vst.msk [vmem:[%s1144 + $0x8] sm:$0xfe] %vm543, %v1094
        %1147 = vst.msk [vmem:[%s1144 + $0x10] sm:$0xff] %vm545, %v1096
        %1148 = vst.msk [vmem:[%s1144 + $0x18] sm:$0xff] %vm547, %v1096
        %1149 = vst.msk [vmem:[%s1144 + $0x20] sm:$0xff] %vm545, %v1098
        %1150 = vst.msk [vmem:[%s1144 + $0x28] sm:$0xff] %vm547, %v1098
        %1151 = vst.msk [vmem:[%s1144 + $0x30] sm:$0xff] %vm545, %v1100
        %1152 = vst.msk [vmem:[%s1144 + $0x38] sm:$0xff] %vm547, %v1100
        %1153 = vst.msk [vmem:[%s1144 + $0x40] sm:$0xff] %vm545, %v1102
        %1154 = vst.msk [vmem:[%s1144 + $0x48] sm:$0xff] %vm547, %v1102
        %1155 = vst.msk [vmem:[%s1144 + $0x50] sm:$0xff] %vm545, %v1104
        %1156 = vst.msk [vmem:[%s1144 + $0x58] sm:$0xff] %vm547, %v1104
        %1157 = vst.msk [vmem:[%s1144 + $0x60] sm:$0xff] %vm545, %v1106
        %1158 = vst.msk [vmem:[%s1144 + $0x68] sm:$0xff] %vm547, %v1106
        %1159 = vst.msk [vmem:[%s1144 + $0x70] sm:$0xff] %vm545, %v1108
        %1160 = vst.msk [vmem:[%s1144 + $0x78] sm:$0xff] %vm547, %v1108
        %1161 = vst.msk [vmem:[%s1144 + $0x80] sm:$0xff] %vm545, %v1110
        %1162 = vst.msk [vmem:[%s1144 + $0x88] sm:$0xff] %vm547, %v1110
        %1163 = vst.msk [vmem:[%s1144 + $0x90] sm:$0xff] %vm545, %v1112
        %1164 = vst.msk [vmem:[%s1144 + $0x98] sm:$0xff] %vm547, %v1112
        %1165 = vst.msk [vmem:[%s1144 + $0xa0] sm:$0xff] %vm545, %v1114
        %1166 = vst.msk [vmem:[%s1144 + $0xa8] sm:$0xff] %vm547, %v1114
        %1167 = vst.msk [vmem:[%s1144 + $0xb0] sm:$0xff] %vm545, %v1116
        %1168 = vst.msk [vmem:[%s1144 + $0xb8] sm:$0xff] %vm547, %v1116
        %1169 = vst.msk [vmem:[%s1144 + $0xc0] sm:$0xff] %vm545, %v1118
        %1170 = vst.msk [vmem:[%s1144 + $0xc8] sm:$0xff] %vm547, %v1118
        %1171 = vst.msk [vmem:[%s1144 + $0xd0] sm:$0xff] %vm545, %v1120
        %1172 = vst.msk [vmem:[%s1144 + $0xd8] sm:$0xff] %vm547, %v1120
        %1173 = vst.msk [vmem:[%s1144 + $0xe0] sm:$0xff] %vm545, %v1122
        %1174 = vst.msk [vmem:[%s1144 + $0xe8] sm:$0xff] %vm547, %v1122
        %1175 = vst.msk [vmem:[%s1144 + $0xf0] sm:$0xff] %vm545, %v1124
        %1176 = vst.msk [vmem:[%s1144 + $0xf8] sm:$0xff] %vm547, %v1124
        %1177 = vst.msk [vmem:[%s1144 + $0x100] sm:$0x1] %vm577, %v1126
        %1178 = vst.msk [vmem:[%s1144 + $0x108] sm:$0x1] %vm579, %v1126
        %v1179 = vld [vmem:[%s1144] sm:$0xff]
        %v1180 = vld [vmem:[%s1144 + $0x8] sm:$0xff]
        %v1181 = vld [vmem:[%s1144 + $0x10] sm:$0xff]
        %v1182 = vld [vmem:[%s1144 + $0x18] sm:$0xff]
        %v1183 = vld [vmem:[%s1144 + $0x20] sm:$0xff]
        %v1184 = vld [vmem:[%s1144 + $0x28] sm:$0xff]
        %v1185 = vld [vmem:[%s1144 + $0x30] sm:$0xff]
        %v1186 = vld [vmem:[%s1144 + $0x38] sm:$0xff]
        %v1187 = vld [vmem:[%s1144 + $0x40] sm:$0xff]
        %v1188 = vld [vmem:[%s1144 + $0x48] sm:$0xff]
        %v1189 = vld [vmem:[%s1144 + $0x50] sm:$0xff]
        %v1190 = vld [vmem:[%s1144 + $0x58] sm:$0xff]
        %v1191 = vld [vmem:[%s1144 + $0x60] sm:$0xff]
        %v1192 = vld [vmem:[%s1144 + $0x68] sm:$0xff]
        %v1193 = vld [vmem:[%s1144 + $0x70] sm:$0xff]
        %v1194 = vld [vmem:[%s1144 + $0x78] sm:$0xff]
        %v1195 = vld [vmem:[%s1144 + $0x80] sm:$0xff]
        %v1196 = vld [vmem:[%s1144 + $0x88] sm:$0xff]
        %v1197 = vld [vmem:[%s1144 + $0x90] sm:$0xff]
        %v1198 = vld [vmem:[%s1144 + $0x98] sm:$0xff]
        %v1199 = vld [vmem:[%s1144 + $0xa0] sm:$0xff]
        %v1200 = vld [vmem:[%s1144 + $0xa8] sm:$0xff]
        %v1201 = vld [vmem:[%s1144 + $0xb0] sm:$0xff]
        %v1202 = vld [vmem:[%s1144 + $0xb8] sm:$0xff]
        %v1203 = vld [vmem:[%s1144 + $0xc0] sm:$0xff]
        %v1204 = vld [vmem:[%s1144 + $0xc8] sm:$0xff]
        %v1205 = vld [vmem:[%s1144 + $0xd0] sm:$0xff]
        %v1206 = vld [vmem:[%s1144 + $0xd8] sm:$0xff]
        %v1207 = vld [vmem:[%s1144 + $0xe0] sm:$0xff]
        %v1208 = vld [vmem:[%s1144 + $0xe8] sm:$0xff]
        %v1209 = vld [vmem:[%s1144 + $0xf0] sm:$0xff]
        %v1210 = vld [vmem:[%s1144 + $0xf8] sm:$0xff]
        %v1211 = vld [vmem:[%s1144 + $0x100] sm:$0x3]
        %v1212 = vld [vmem:[%s1144 + $0x108] sm:$0x3]
        %s1213 = scalar_lea.vmem [#allocation3], 1152
        %1214 = vst [vmem:[%s1213] sm:$0xff] %v1179
        %1215 = vst [vmem:[%s1213 + $0x8] sm:$0xff] %v1181
        %1216 = vst [vmem:[%s1213 + $0x10] sm:$0xff] %v1183
        %1217 = vst [vmem:[%s1213 + $0x18] sm:$0xff] %v1185
        %1218 = vst [vmem:[%s1213 + $0x20] sm:$0xff] %v1187
        %1219 = vst [vmem:[%s1213 + $0x28] sm:$0xff] %v1189
        %1220 = vst [vmem:[%s1213 + $0x30] sm:$0xff] %v1191
        %1221 = vst [vmem:[%s1213 + $0x38] sm:$0xff] %v1193
        %1222 = vst [vmem:[%s1213 + $0x40] sm:$0xff] %v1195
        %1223 = vst [vmem:[%s1213 + $0x48] sm:$0xff] %v1197
        %1224 = vst [vmem:[%s1213 + $0x50] sm:$0xff] %v1199
        %1225 = vst [vmem:[%s1213 + $0x58] sm:$0xff] %v1201
        %1226 = vst [vmem:[%s1213 + $0x60] sm:$0xff] %v1203
        %1227 = vst [vmem:[%s1213 + $0x68] sm:$0xff] %v1205
        %1228 = vst [vmem:[%s1213 + $0x70] sm:$0xff] %v1207
        %1229 = vst [vmem:[%s1213 + $0x78] sm:$0xff] %v1209
        %1262 = vrot.lane.b32.xlu0 %v1179, 127
        %v1263 = vpop.permute.xlu0 %1262
        %1264 = vrot.lane.b32.xlu0 %v1180, 127
        %v1265 = vpop.permute.xlu0 %1264
        %1266 = vrot.lane.b32.xlu0 %v1181, 127
        %v1267 = vpop.permute.xlu0 %1266
        %1268 = vrot.lane.b32.xlu0 %v1182, 127
        %v1269 = vpop.permute.xlu0 %1268
        %1270 = vrot.lane.b32.xlu0 %v1183, 127
        %v1271 = vpop.permute.xlu0 %1270
        %1272 = vrot.lane.b32.xlu0 %v1184, 127
        %v1273 = vpop.permute.xlu0 %1272
        %1274 = vrot.lane.b32.xlu0 %v1185, 127
        %v1275 = vpop.permute.xlu0 %1274
        %1276 = vrot.lane.b32.xlu0 %v1186, 127
        %v1277 = vpop.permute.xlu0 %1276
        %1278 = vrot.lane.b32.xlu0 %v1187, 127
        %v1279 = vpop.permute.xlu0 %1278
        %1280 = vrot.lane.b32.xlu0 %v1188, 127
        %v1281 = vpop.permute.xlu0 %1280
        %1282 = vrot.lane.b32.xlu0 %v1189, 127
        %v1283 = vpop.permute.xlu0 %1282
        %1284 = vrot.lane.b32.xlu0 %v1190, 127
        %v1285 = vpop.permute.xlu0 %1284
        %1286 = vrot.lane.b32.xlu0 %v1191, 127
        %v1287 = vpop.permute.xlu0 %1286
        %1288 = vrot.lane.b32.xlu0 %v1192, 127
        %v1289 = vpop.permute.xlu0 %1288
        %1290 = vrot.lane.b32.xlu0 %v1193, 127
        %v1291 = vpop.permute.xlu0 %1290
        %1292 = vrot.lane.b32.xlu0 %v1194, 127
        %v1293 = vpop.permute.xlu0 %1292
        %1294 = vrot.lane.b32.xlu0 %v1195, 127
        %v1295 = vpop.permute.xlu0 %1294
        %1296 = vrot.lane.b32.xlu0 %v1196, 127
        %v1297 = vpop.permute.xlu0 %1296
        %1298 = vrot.lane.b32.xlu0 %v1197, 127
        %v1299 = vpop.permute.xlu0 %1298
        %1300 = vrot.lane.b32.xlu0 %v1198, 127
        %v1301 = vpop.permute.xlu0 %1300
        %1302 = vrot.lane.b32.xlu0 %v1199, 127
        %v1303 = vpop.permute.xlu0 %1302
        %1304 = vrot.lane.b32.xlu0 %v1200, 127
        %v1305 = vpop.permute.xlu0 %1304
        %1306 = vrot.lane.b32.xlu0 %v1201, 127
        %v1307 = vpop.permute.xlu0 %1306
        %1308 = vrot.lane.b32.xlu0 %v1202, 127
        %v1309 = vpop.permute.xlu0 %1308
        %1310 = vrot.lane.b32.xlu0 %v1203, 127
        %v1311 = vpop.permute.xlu0 %1310
        %1312 = vrot.lane.b32.xlu0 %v1204, 127
        %v1313 = vpop.permute.xlu0 %1312
        %1314 = vrot.lane.b32.xlu0 %v1205, 127
        %v1315 = vpop.permute.xlu0 %1314
        %1316 = vrot.lane.b32.xlu0 %v1206, 127
        %v1317 = vpop.permute.xlu0 %1316
        %1318 = vrot.lane.b32.xlu0 %v1207, 127
        %v1319 = vpop.permute.xlu0 %1318
        %1320 = vrot.lane.b32.xlu0 %v1208, 127
        %v1321 = vpop.permute.xlu0 %1320
        %1322 = vrot.lane.b32.xlu0 %v1209, 127
        %v1323 = vpop.permute.xlu0 %1322
        %1324 = vrot.lane.b32.xlu0 %v1210, 127
        %v1325 = vpop.permute.xlu0 %1324
        %v1326 = vsel %vm727, %v1263, %v1265
        %v1327 = vsel %vm727, %v1267, %v1269
        %v1328 = vsel %vm727, %v1271, %v1273
        %v1329 = vsel %vm727, %v1275, %v1277
        %v1330 = vsel %vm727, %v1279, %v1281
        %v1331 = vsel %vm727, %v1283, %v1285
        %v1332 = vsel %vm727, %v1287, %v1289
        %v1333 = vsel %vm727, %v1291, %v1293
        %v1334 = vsel %vm727, %v1295, %v1297
        %v1335 = vsel %vm727, %v1299, %v1301
        %v1336 = vsel %vm727, %v1303, %v1305
        %v1337 = vsel %vm727, %v1307, %v1309
        %v1338 = vsel %vm727, %v1311, %v1313
        %v1339 = vsel %vm727, %v1315, %v1317
        %v1340 = vsel %vm727, %v1319, %v1321
        %v1341 = vsel %vm727, %v1323, %v1325
        %s1358 = scalar_lea.vmem [#allocation3], 1280
        %1359 = vst [vmem:[%s1358] sm:$0xff] %v1326
        %1360 = vst [vmem:[%s1358 + $0x8] sm:$0xff] %v1327
        %1361 = vst [vmem:[%s1358 + $0x10] sm:$0xff] %v1328
        %1362 = vst [vmem:[%s1358 + $0x18] sm:$0xff] %v1329
        %1363 = vst [vmem:[%s1358 + $0x20] sm:$0xff] %v1330
        %1364 = vst [vmem:[%s1358 + $0x28] sm:$0xff] %v1331
        %1365 = vst [vmem:[%s1358 + $0x30] sm:$0xff] %v1332
        %1366 = vst [vmem:[%s1358 + $0x38] sm:$0xff] %v1333
        %1367 = vst [vmem:[%s1358 + $0x40] sm:$0xff] %v1334
        %1368 = vst [vmem:[%s1358 + $0x48] sm:$0xff] %v1335
        %1369 = vst [vmem:[%s1358 + $0x50] sm:$0xff] %v1336
        %1370 = vst [vmem:[%s1358 + $0x58] sm:$0xff] %v1337
        %1371 = vst [vmem:[%s1358 + $0x60] sm:$0xff] %v1338
        %1372 = vst [vmem:[%s1358 + $0x68] sm:$0xff] %v1339
        %1373 = vst [vmem:[%s1358 + $0x70] sm:$0xff] %v1340
        %1374 = vst [vmem:[%s1358 + $0x78] sm:$0xff] %v1341
        %1375 = vrot.lane.b32.xlu0 %v1179, 126
        %v1376 = vpop.permute.xlu0 %1375
        %1377 = vrot.lane.b32.xlu0 %v1180, 126
        %v1378 = vpop.permute.xlu0 %1377
        %1379 = vrot.lane.b32.xlu0 %v1181, 126
        %v1380 = vpop.permute.xlu0 %1379
        %1381 = vrot.lane.b32.xlu0 %v1182, 126
        %v1382 = vpop.permute.xlu0 %1381
        %1383 = vrot.lane.b32.xlu0 %v1183, 126
        %v1384 = vpop.permute.xlu0 %1383
        %1385 = vrot.lane.b32.xlu0 %v1184, 126
        %v1386 = vpop.permute.xlu0 %1385
        %1387 = vrot.lane.b32.xlu0 %v1185, 126
        %v1388 = vpop.permute.xlu0 %1387
        %1389 = vrot.lane.b32.xlu0 %v1186, 126
        %v1390 = vpop.permute.xlu0 %1389
        %1391 = vrot.lane.b32.xlu0 %v1187, 126
        %v1392 = vpop.permute.xlu0 %1391
        %1393 = vrot.lane.b32.xlu0 %v1188, 126
        %v1394 = vpop.permute.xlu0 %1393
        %1395 = vrot.lane.b32.xlu0 %v1189, 126
        %v1396 = vpop.permute.xlu0 %1395
        %1397 = vrot.lane.b32.xlu0 %v1190, 126
        %v1398 = vpop.permute.xlu0 %1397
        %1399 = vrot.lane.b32.xlu0 %v1191, 126
        %v1400 = vpop.permute.xlu0 %1399
        %1401 = vrot.lane.b32.xlu0 %v1192, 126
        %v1402 = vpop.permute.xlu0 %1401
        %1403 = vrot.lane.b32.xlu0 %v1193, 126
        %v1404 = vpop.permute.xlu0 %1403
        %1405 = vrot.lane.b32.xlu0 %v1194, 126
        %v1406 = vpop.permute.xlu0 %1405
        %1407 = vrot.lane.b32.xlu0 %v1195, 126
        %v1408 = vpop.permute.xlu0 %1407
        %1409 = vrot.lane.b32.xlu0 %v1196, 126
        %v1410 = vpop.permute.xlu0 %1409
        %1411 = vrot.lane.b32.xlu0 %v1197, 126
        %v1412 = vpop.permute.xlu0 %1411
        %1413 = vrot.lane.b32.xlu0 %v1198, 126
        %v1414 = vpop.permute.xlu0 %1413
        %1415 = vrot.lane.b32.xlu0 %v1199, 126
        %v1416 = vpop.permute.xlu0 %1415
        %1417 = vrot.lane.b32.xlu0 %v1200, 126
        %v1418 = vpop.permute.xlu0 %1417
        %1419 = vrot.lane.b32.xlu0 %v1201, 126
        %v1420 = vpop.permute.xlu0 %1419
        %1421 = vrot.lane.b32.xlu0 %v1202, 126
        %v1422 = vpop.permute.xlu0 %1421
        %1423 = vrot.lane.b32.xlu0 %v1203, 126
        %v1424 = vpop.permute.xlu0 %1423
        %1425 = vrot.lane.b32.xlu0 %v1204, 126
        %v1426 = vpop.permute.xlu0 %1425
        %1427 = vrot.lane.b32.xlu0 %v1205, 126
        %v1428 = vpop.permute.xlu0 %1427
        %1429 = vrot.lane.b32.xlu0 %v1206, 126
        %v1430 = vpop.permute.xlu0 %1429
        %1431 = vrot.lane.b32.xlu0 %v1207, 126
        %v1432 = vpop.permute.xlu0 %1431
        %1433 = vrot.lane.b32.xlu0 %v1208, 126
        %v1434 = vpop.permute.xlu0 %1433
        %1435 = vrot.lane.b32.xlu0 %v1209, 126
        %v1436 = vpop.permute.xlu0 %1435
        %1437 = vrot.lane.b32.xlu0 %v1210, 126
        %v1438 = vpop.permute.xlu0 %1437
        %v1439 = vsel %vm841, %v1376, %v1378
        %v1440 = vsel %vm841, %v1380, %v1382
        %v1441 = vsel %vm841, %v1384, %v1386
        %v1442 = vsel %vm841, %v1388, %v1390
        %v1443 = vsel %vm841, %v1392, %v1394
        %v1444 = vsel %vm841, %v1396, %v1398
        %v1445 = vsel %vm841, %v1400, %v1402
        %v1446 = vsel %vm841, %v1404, %v1406
        %v1447 = vsel %vm841, %v1408, %v1410
        %v1448 = vsel %vm841, %v1412, %v1414
        %v1449 = vsel %vm841, %v1416, %v1418
        %v1450 = vsel %vm841, %v1420, %v1422
        %v1451 = vsel %vm841, %v1424, %v1426
        %v1452 = vsel %vm841, %v1428, %v1430
        %v1453 = vsel %vm841, %v1432, %v1434
        %v1454 = vsel %vm841, %v1436, %v1438
        %s1471 = scalar_lea.vmem [#allocation3], 1408
        %1472 = vst [vmem:[%s1471] sm:$0xff] %v1439
        %1473 = vst [vmem:[%s1471 + $0x8] sm:$0xff] %v1440
        %1474 = vst [vmem:[%s1471 + $0x10] sm:$0xff] %v1441
        %1475 = vst [vmem:[%s1471 + $0x18] sm:$0xff] %v1442
        %1476 = vst [vmem:[%s1471 + $0x20] sm:$0xff] %v1443
        %1477 = vst [vmem:[%s1471 + $0x28] sm:$0xff] %v1444
        %1478 = vst [vmem:[%s1471 + $0x30] sm:$0xff] %v1445
        %1479 = vst [vmem:[%s1471 + $0x38] sm:$0xff] %v1446
        %1480 = vst [vmem:[%s1471 + $0x40] sm:$0xff] %v1447
        %1481 = vst [vmem:[%s1471 + $0x48] sm:$0xff] %v1448
        %1482 = vst [vmem:[%s1471 + $0x50] sm:$0xff] %v1449
        %1483 = vst [vmem:[%s1471 + $0x58] sm:$0xff] %v1450
        %1484 = vst [vmem:[%s1471 + $0x60] sm:$0xff] %v1451
        %1485 = vst [vmem:[%s1471 + $0x68] sm:$0xff] %v1452
        %1486 = vst [vmem:[%s1471 + $0x70] sm:$0xff] %v1453
        %1487 = vst [vmem:[%s1471 + $0x78] sm:$0xff] %v1454
        %s1488 = scalar_lea.vmem [#allocation3], 1536
        %1489 = vst [vmem:[%s1488 - $0x1] sm:$0xfe] %v1179
        %1490 = vst [vmem:[%s1488 + $0x7] sm:$0xff] %v1181
        %1491 = vst [vmem:[%s1488 + $0xf] sm:$0xff] %v1183
        %1492 = vst [vmem:[%s1488 + $0x17] sm:$0xff] %v1185
        %1493 = vst [vmem:[%s1488 + $0x1f] sm:$0xff] %v1187
        %1494 = vst [vmem:[%s1488 + $0x27] sm:$0xff] %v1189
        %1495 = vst [vmem:[%s1488 + $0x2f] sm:$0xff] %v1191
        %1496 = vst [vmem:[%s1488 + $0x37] sm:$0xff] %v1193
        %1497 = vst [vmem:[%s1488 + $0x3f] sm:$0xff] %v1195
        %1498 = vst [vmem:[%s1488 + $0x47] sm:$0xff] %v1197
        %1499 = vst [vmem:[%s1488 + $0x4f] sm:$0xff] %v1199
        %1500 = vst [vmem:[%s1488 + $0x57] sm:$0xff] %v1201
        %1501 = vst [vmem:[%s1488 + $0x5f] sm:$0xff] %v1203
        %1502 = vst [vmem:[%s1488 + $0x67] sm:$0xff] %v1205
        %1503 = vst [vmem:[%s1488 + $0x6f] sm:$0xff] %v1207
        %1504 = vst [vmem:[%s1488 + $0x77] sm:$0xff] %v1209
        %1505 = vst [vmem:[%s1488 + $0x7f] sm:$0x1] %v1211
        %1508 = vrot.lane.b32.xlu0 %v1211, 127
        %v1509 = vpop.permute.xlu0 %1508
        %1510 = vrot.lane.b32.xlu0 %v1212, 127
        %v1511 = vpop.permute.xlu0 %1510
        %v1512 = vsel %vm727, %v1509, %v1511
        %s1514 = scalar_lea.vmem [#allocation3], 1664
        %1515 = vst [vmem:[%s1514 - $0x1] sm:$0xfe] %v1326
        %1516 = vst [vmem:[%s1514 + $0x7] sm:$0xff] %v1327
        %1517 = vst [vmem:[%s1514 + $0xf] sm:$0xff] %v1328
        %1518 = vst [vmem:[%s1514 + $0x17] sm:$0xff] %v1329
        %1519 = vst [vmem:[%s1514 + $0x1f] sm:$0xff] %v1330
        %1520 = vst [vmem:[%s1514 + $0x27] sm:$0xff] %v1331
        %1521 = vst [vmem:[%s1514 + $0x2f] sm:$0xff] %v1332
        %1522 = vst [vmem:[%s1514 + $0x37] sm:$0xff] %v1333
        %1523 = vst [vmem:[%s1514 + $0x3f] sm:$0xff] %v1334
        %1524 = vst [vmem:[%s1514 + $0x47] sm:$0xff] %v1335
        %1525 = vst [vmem:[%s1514 + $0x4f] sm:$0xff] %v1336
        %1526 = vst [vmem:[%s1514 + $0x57] sm:$0xff] %v1337
        %1527 = vst [vmem:[%s1514 + $0x5f] sm:$0xff] %v1338
        %1528 = vst [vmem:[%s1514 + $0x67] sm:$0xff] %v1339
        %1529 = vst [vmem:[%s1514 + $0x6f] sm:$0xff] %v1340
        %1530 = vst [vmem:[%s1514 + $0x77] sm:$0xff] %v1341
        %1531 = vst [vmem:[%s1514 + $0x7f] sm:$0x1] %v1512
        %1532 = vrot.lane.b32.xlu0 %v1211, 126
        %v1533 = vpop.permute.xlu0 %1532
        %1534 = vrot.lane.b32.xlu0 %v1212, 126
        %v1535 = vpop.permute.xlu0 %1534
        %v1536 = vsel %vm841, %v1533, %v1535
        %s1538 = scalar_lea.vmem [#allocation3], 1792
        %1539 = vst [vmem:[%s1538 - $0x1] sm:$0xfe] %v1439
        %1540 = vst [vmem:[%s1538 + $0x7] sm:$0xff] %v1440
        %1541 = vst [vmem:[%s1538 + $0xf] sm:$0xff] %v1441
        %1542 = vst [vmem:[%s1538 + $0x17] sm:$0xff] %v1442
        %1543 = vst [vmem:[%s1538 + $0x1f] sm:$0xff] %v1443
        %1544 = vst [vmem:[%s1538 + $0x27] sm:$0xff] %v1444
        %1545 = vst [vmem:[%s1538 + $0x2f] sm:$0xff] %v1445
        %1546 = vst [vmem:[%s1538 + $0x37] sm:$0xff] %v1446
        %1547 = vst [vmem:[%s1538 + $0x3f] sm:$0xff] %v1447
        %1548 = vst [vmem:[%s1538 + $0x47] sm:$0xff] %v1448
        %1549 = vst [vmem:[%s1538 + $0x4f] sm:$0xff] %v1449
        %1550 = vst [vmem:[%s1538 + $0x57] sm:$0xff] %v1450
        %1551 = vst [vmem:[%s1538 + $0x5f] sm:$0xff] %v1451
        %1552 = vst [vmem:[%s1538 + $0x67] sm:$0xff] %v1452
        %1553 = vst [vmem:[%s1538 + $0x6f] sm:$0xff] %v1453
        %1554 = vst [vmem:[%s1538 + $0x77] sm:$0xff] %v1454
        %1555 = vst [vmem:[%s1538 + $0x7f] sm:$0x1] %v1536
        %s1556 = scalar_lea.vmem [#allocation3], 1920
        %1557 = vst [vmem:[%s1556 - $0x2] sm:$0xfc] %v1179
        %1558 = vst [vmem:[%s1556 + $0x6] sm:$0xff] %v1181
        %1559 = vst [vmem:[%s1556 + $0xe] sm:$0xff] %v1183
        %1560 = vst [vmem:[%s1556 + $0x16] sm:$0xff] %v1185
        %1561 = vst [vmem:[%s1556 + $0x1e] sm:$0xff] %v1187
        %1562 = vst [vmem:[%s1556 + $0x26] sm:$0xff] %v1189
        %1563 = vst [vmem:[%s1556 + $0x2e] sm:$0xff] %v1191
        %1564 = vst [vmem:[%s1556 + $0x36] sm:$0xff] %v1193
        %1565 = vst [vmem:[%s1556 + $0x3e] sm:$0xff] %v1195
        %1566 = vst [vmem:[%s1556 + $0x46] sm:$0xff] %v1197
        %1567 = vst [vmem:[%s1556 + $0x4e] sm:$0xff] %v1199
        %1568 = vst [vmem:[%s1556 + $0x56] sm:$0xff] %v1201
        %1569 = vst [vmem:[%s1556 + $0x5e] sm:$0xff] %v1203
        %1570 = vst [vmem:[%s1556 + $0x66] sm:$0xff] %v1205
        %1571 = vst [vmem:[%s1556 + $0x6e] sm:$0xff] %v1207
        %1572 = vst [vmem:[%s1556 + $0x76] sm:$0xff] %v1209
        %1573 = vst [vmem:[%s1556 + $0x7e] sm:$0x3] %v1211
        %s1574 = scalar_lea.vmem [#allocation3], 2048
        %1575 = vst [vmem:[%s1574 - $0x2] sm:$0xfc] %v1326
        %1576 = vst [vmem:[%s1574 + $0x6] sm:$0xff] %v1327
        %1577 = vst [vmem:[%s1574 + $0xe] sm:$0xff] %v1328
        %1578 = vst [vmem:[%s1574 + $0x16] sm:$0xff] %v1329
        %1579 = vst [vmem:[%s1574 + $0x1e] sm:$0xff] %v1330
        %1580 = vst [vmem:[%s1574 + $0x26] sm:$0xff] %v1331
        %1581 = vst [vmem:[%s1574 + $0x2e] sm:$0xff] %v1332
        %1582 = vst [vmem:[%s1574 + $0x36] sm:$0xff] %v1333
        %1583 = vst [vmem:[%s1574 + $0x3e] sm:$0xff] %v1334
        %1584 = vst [vmem:[%s1574 + $0x46] sm:$0xff] %v1335
        %1585 = vst [vmem:[%s1574 + $0x4e] sm:$0xff] %v1336
        %1586 = vst [vmem:[%s1574 + $0x56] sm:$0xff] %v1337
        %1587 = vst [vmem:[%s1574 + $0x5e] sm:$0xff] %v1338
        %1588 = vst [vmem:[%s1574 + $0x66] sm:$0xff] %v1339
        %1589 = vst [vmem:[%s1574 + $0x6e] sm:$0xff] %v1340
        %1590 = vst [vmem:[%s1574 + $0x76] sm:$0xff] %v1341
        %1591 = vst [vmem:[%s1574 + $0x7e] sm:$0x3] %v1512
        %s1592 = scalar_lea.vmem [#allocation3], 2176
        %1593 = vst [vmem:[%s1592 - $0x2] sm:$0xfc] %v1439
        %1594 = vst [vmem:[%s1592 + $0x6] sm:$0xff] %v1440
        %1595 = vst [vmem:[%s1592 + $0xe] sm:$0xff] %v1441
        %1596 = vst [vmem:[%s1592 + $0x16] sm:$0xff] %v1442
        %1597 = vst [vmem:[%s1592 + $0x1e] sm:$0xff] %v1443
        %1598 = vst [vmem:[%s1592 + $0x26] sm:$0xff] %v1444
        %1599 = vst [vmem:[%s1592 + $0x2e] sm:$0xff] %v1445
        %1600 = vst [vmem:[%s1592 + $0x36] sm:$0xff] %v1446
        %1601 = vst [vmem:[%s1592 + $0x3e] sm:$0xff] %v1447
        %1602 = vst [vmem:[%s1592 + $0x46] sm:$0xff] %v1448
        %1603 = vst [vmem:[%s1592 + $0x4e] sm:$0xff] %v1449
        %1604 = vst [vmem:[%s1592 + $0x56] sm:$0xff] %v1450
        %1605 = vst [vmem:[%s1592 + $0x5e] sm:$0xff] %v1451
        %1606 = vst [vmem:[%s1592 + $0x66] sm:$0xff] %v1452
        %1607 = vst [vmem:[%s1592 + $0x6e] sm:$0xff] %v1453
        %1608 = vst [vmem:[%s1592 + $0x76] sm:$0xff] %v1454
        %1609 = vst [vmem:[%s1592 + $0x7e] sm:$0x3] %v1536
        %v1610 = vlaneseq
        %v1611 = vshrl.u32 %v1610, 7
        %v1612 = vadd.s32 %v1611, 8
        %v1613 = vadd.s32 %v1611, 16
        %v1614 = vadd.s32 %v1611, 24
        %v1615 = vadd.s32 %v1611, 32
        %v1616 = vadd.s32 %v1611, 40
        %v1617 = vadd.s32 %v1611, 48
        %v1618 = vadd.s32 %v1611, 56
        %v1619 = vlaneseq
        %v1620 = vand.u32 %v1619, 127
        %v1621 = vmul.u32 %v1611, 2
        %v1622 = vmul.u32 %v1612, 2
        %v1623 = vmul.u32 %v1613, 2
        %v1624 = vmul.u32 %v1614, 2
        %v1625 = vmul.u32 %v1615, 2
        %v1626 = vmul.u32 %v1616, 2
        %v1627 = vmul.u32 %v1617, 2
        %v1628 = vmul.u32 %v1618, 2
        %vm1629 = vcmp.eq.s32.totalorder %v1620, %v1621
        %vm1630 = vcmp.eq.s32.totalorder %v1620, %v1622
        %vm1631 = vcmp.eq.s32.totalorder %v1620, %v1623
        %vm1632 = vcmp.eq.s32.totalorder %v1620, %v1624
        %vm1633 = vcmp.eq.s32.totalorder %v1620, %v1625
        %vm1634 = vcmp.eq.s32.totalorder %v1620, %v1626
        %vm1635 = vcmp.eq.s32.totalorder %v1620, %v1627
        %vm1636 = vcmp.eq.s32.totalorder %v1620, %v1628
        %v1637 = vadd.s32 %v1621, 1
        %v1638 = vadd.s32 %v1622, 1
        %v1639 = vadd.s32 %v1623, 1
        %v1640 = vadd.s32 %v1624, 1
        %v1641 = vadd.s32 %v1625, 1
        %v1642 = vadd.s32 %v1626, 1
        %v1643 = vadd.s32 %v1627, 1
        %v1644 = vadd.s32 %v1628, 1
        %vm1645 = vcmp.eq.s32.totalorder %v1620, %v1637
        %vm1646 = vcmp.eq.s32.totalorder %v1620, %v1638
        %vm1647 = vcmp.eq.s32.totalorder %v1620, %v1639
        %vm1648 = vcmp.eq.s32.totalorder %v1620, %v1640
        %vm1649 = vcmp.eq.s32.totalorder %v1620, %v1641
        %vm1650 = vcmp.eq.s32.totalorder %v1620, %v1642
        %vm1651 = vcmp.eq.s32.totalorder %v1620, %v1643
        %vm1652 = vcmp.eq.s32.totalorder %v1620, %v1644
        %vm1653 = vmor %vm1629, %vm1645
        %vm1654 = vmor %vm1630, %vm1646
        %vm1655 = vmor %vm1631, %vm1647
        %vm1656 = vmor %vm1632, %vm1648
        %vm1657 = vmor %vm1633, %vm1649
        %vm1658 = vmor %vm1634, %vm1650
        %vm1659 = vmor %vm1635, %vm1651
        %vm1660 = vmor %vm1636, %vm1652
        %v1661 = vsel %vm1653, 1, 0
        %v1662 = vsel %vm1654, 1, 0
        %v1663 = vsel %vm1655, 1, 0
        %v1664 = vsel %vm1656, 1, 0
        %v1665 = vsel %vm1657, 1, 0
        %v1666 = vsel %vm1658, 1, 0
        %v1667 = vsel %vm1659, 1, 0
        %v1668 = vsel %vm1660, 1, 0
        %v1669 = vcvt.s32.f32 %v1661
        %v1670 = vcvt.s32.f32 %v1662
        %v1671 = vcvt.s32.f32 %v1663
        %v1672 = vcvt.s32.f32 %v1664
        %v1673 = vcvt.s32.f32 %v1665
        %v1674 = vcvt.s32.f32 %v1666
        %v1675 = vcvt.s32.f32 %v1667
        %v1676 = vcvt.s32.f32 %v1668
        %v1677 = vadd.s32 %v1611, 64
        %v1678 = vadd.s32 %v1611, 72
        %v1679 = vadd.s32 %v1611, 80
        %v1680 = vadd.s32 %v1611, 88
        %v1681 = vadd.s32 %v1611, 96
        %v1682 = vadd.s32 %v1611, 104
        %v1683 = vadd.s32 %v1611, 112
        %v1684 = vadd.s32 %v1611, 120
        %v1685 = vmul.u32 %v1620, 2
        %vm1686 = vcmp.eq.s32.totalorder %v1611, %v1685
        %vm1687 = vcmp.eq.s32.totalorder %v1612, %v1685
        %vm1688 = vcmp.eq.s32.totalorder %v1613, %v1685
        %vm1689 = vcmp.eq.s32.totalorder %v1614, %v1685
        %vm1690 = vcmp.eq.s32.totalorder %v1615, %v1685
        %vm1691 = vcmp.eq.s32.totalorder %v1616, %v1685
        %vm1692 = vcmp.eq.s32.totalorder %v1617, %v1685
        %vm1693 = vcmp.eq.s32.totalorder %v1618, %v1685
        %vm1694 = vcmp.eq.s32.totalorder %v1677, %v1685
        %vm1695 = vcmp.eq.s32.totalorder %v1678, %v1685
        %vm1696 = vcmp.eq.s32.totalorder %v1679, %v1685
        %vm1697 = vcmp.eq.s32.totalorder %v1680, %v1685
        %vm1698 = vcmp.eq.s32.totalorder %v1681, %v1685
        %vm1699 = vcmp.eq.s32.totalorder %v1682, %v1685
        %vm1700 = vcmp.eq.s32.totalorder %v1683, %v1685
        %vm1701 = vcmp.eq.s32.totalorder %v1684, %v1685
        %v1702 = vadd.s32 %v1685, 1
        %vm1703 = vcmp.eq.s32.totalorder %v1611, %v1702
        %vm1704 = vcmp.eq.s32.totalorder %v1612, %v1702
        %vm1705 = vcmp.eq.s32.totalorder %v1613, %v1702
        %vm1706 = vcmp.eq.s32.totalorder %v1614, %v1702
        %vm1707 = vcmp.eq.s32.totalorder %v1615, %v1702
        %vm1708 = vcmp.eq.s32.totalorder %v1616, %v1702
        %vm1709 = vcmp.eq.s32.totalorder %v1617, %v1702
        %vm1710 = vcmp.eq.s32.totalorder %v1618, %v1702
        %vm1711 = vcmp.eq.s32.totalorder %v1677, %v1702
        %vm1712 = vcmp.eq.s32.totalorder %v1678, %v1702
        %vm1713 = vcmp.eq.s32.totalorder %v1679, %v1702
        %vm1714 = vcmp.eq.s32.totalorder %v1680, %v1702
        %vm1715 = vcmp.eq.s32.totalorder %v1681, %v1702
        %vm1716 = vcmp.eq.s32.totalorder %v1682, %v1702
        %vm1717 = vcmp.eq.s32.totalorder %v1683, %v1702
        %vm1718 = vcmp.eq.s32.totalorder %v1684, %v1702
        %vm1719 = vmor %vm1686, %vm1703
        %vm1720 = vmor %vm1687, %vm1704
        %vm1721 = vmor %vm1688, %vm1705
        %vm1722 = vmor %vm1689, %vm1706
        %vm1723 = vmor %vm1690, %vm1707
        %vm1724 = vmor %vm1691, %vm1708
        %vm1725 = vmor %vm1692, %vm1709
        %vm1726 = vmor %vm1693, %vm1710
        %vm1727 = vmor %vm1694, %vm1711
        %vm1728 = vmor %vm1695, %vm1712
        %vm1729 = vmor %vm1696, %vm1713
        %vm1730 = vmor %vm1697, %vm1714
        %vm1731 = vmor %vm1698, %vm1715
        %vm1732 = vmor %vm1699, %vm1716
        %vm1733 = vmor %vm1700, %vm1717
        %vm1734 = vmor %vm1701, %vm1718
        %v1735 = vsel %vm1719, 1, 0
        %v1736 = vsel %vm1720, 1, 0
        %v1737 = vsel %vm1721, 1, 0
        %v1738 = vsel %vm1722, 1, 0
        %v1739 = vsel %vm1723, 1, 0
        %v1740 = vsel %vm1724, 1, 0
        %v1741 = vsel %vm1725, 1, 0
        %v1742 = vsel %vm1726, 1, 0
        %v1743 = vsel %vm1727, 1, 0
        %v1744 = vsel %vm1728, 1, 0
        %v1745 = vsel %vm1729, 1, 0
        %v1746 = vsel %vm1730, 1, 0
        %v1747 = vsel %vm1731, 1, 0
        %v1748 = vsel %vm1732, 1, 0
        %v1749 = vsel %vm1733, 1, 0
        %v1750 = vsel %vm1734, 1, 0
        %v1751 = vcvt.s32.f32 %v1735
        %v1752 = vcvt.s32.f32 %v1736
        %v1753 = vcvt.s32.f32 %v1737
        %v1754 = vcvt.s32.f32 %v1738
        %v1755 = vcvt.s32.f32 %v1739
        %v1756 = vcvt.s32.f32 %v1740
        %v1757 = vcvt.s32.f32 %v1741
        %v1758 = vcvt.s32.f32 %v1742
        %v1759 = vcvt.s32.f32 %v1743
        %v1760 = vcvt.s32.f32 %v1744
        %v1761 = vcvt.s32.f32 %v1745
        %v1762 = vcvt.s32.f32 %v1746
        %v1763 = vcvt.s32.f32 %v1747
        %v1764 = vcvt.s32.f32 %v1748
        %v1765 = vcvt.s32.f32 %v1749
        %v1766 = vcvt.s32.f32 %v1750
        %s1767 = sld [smem:[#allocation5]]
        %v1768 = vld [vmem:[#allocation3] sm:$0xff]
        %v1769 = vld [vmem:[#allocation3 + $0x8] sm:$0xff]
        %v1770 = vld [vmem:[#allocation3 + $0x10] sm:$0xff]
        %v1771 = vld [vmem:[#allocation3 + $0x18] sm:$0xff]
        %v1772 = vld [vmem:[#allocation3 + $0x20] sm:$0xff]
        %v1773 = vld [vmem:[#allocation3 + $0x28] sm:$0xff]
        %v1774 = vld [vmem:[#allocation3 + $0x30] sm:$0xff]
        %v1775 = vld [vmem:[#allocation3 + $0x38] sm:$0xff]
        %v1776 = vld [vmem:[#allocation3 + $0x40] sm:$0xff]
        %v1777 = vld [vmem:[#allocation3 + $0x48] sm:$0xff]
        %v1778 = vld [vmem:[#allocation3 + $0x50] sm:$0xff]
        %v1779 = vld [vmem:[#allocation3 + $0x58] sm:$0xff]
        %v1780 = vld [vmem:[#allocation3 + $0x60] sm:$0xff]
        %v1781 = vld [vmem:[#allocation3 + $0x68] sm:$0xff]
        %v1782 = vld [vmem:[#allocation3 + $0x70] sm:$0xff]
        %v1783 = vld [vmem:[#allocation3 + $0x78] sm:$0xff]
        %v1784 = vstv %s1767
        %v1785 = vmul.f32 %v1784, %v1768
        %v1786 = vmul.f32 %v1784, %v1769
        %v1787 = vmul.f32 %v1784, %v1770
        %v1788 = vmul.f32 %v1784, %v1771
        %v1789 = vmul.f32 %v1784, %v1772
        %v1790 = vmul.f32 %v1784, %v1773
        %v1791 = vmul.f32 %v1784, %v1774
        %v1792 = vmul.f32 %v1784, %v1775
        %v1793 = vmul.f32 %v1784, %v1776
        %v1794 = vmul.f32 %v1784, %v1777
        %v1795 = vmul.f32 %v1784, %v1778
        %v1796 = vmul.f32 %v1784, %v1779
        %v1797 = vmul.f32 %v1784, %v1780
        %v1798 = vmul.f32 %v1784, %v1781
        %v1799 = vmul.f32 %v1784, %v1782
        %v1800 = vmul.f32 %v1784, %v1783
        %s1801 = sld [smem:[#allocation5 + $0x1]]
        %v1802 = vld [vmem:[%s760] sm:$0xff]
        %v1803 = vld [vmem:[%s760 + $0x8] sm:$0xff]
        %v1804 = vld [vmem:[%s760 + $0x10] sm:$0xff]
        %v1805 = vld [vmem:[%s760 + $0x18] sm:$0xff]
        %v1806 = vld [vmem:[%s760 + $0x20] sm:$0xff]
        %v1807 = vld [vmem:[%s760 + $0x28] sm:$0xff]
        %v1808 = vld [vmem:[%s760 + $0x30] sm:$0xff]
        %v1809 = vld [vmem:[%s760 + $0x38] sm:$0xff]
        %v1810 = vld [vmem:[%s760 + $0x40] sm:$0xff]
        %v1811 = vld [vmem:[%s760 + $0x48] sm:$0xff]
        %v1812 = vld [vmem:[%s760 + $0x50] sm:$0xff]
        %v1813 = vld [vmem:[%s760 + $0x58] sm:$0xff]
        %v1814 = vld [vmem:[%s760 + $0x60] sm:$0xff]
        %v1815 = vld [vmem:[%s760 + $0x68] sm:$0xff]
        %v1816 = vld [vmem:[%s760 + $0x70] sm:$0xff]
        %v1817 = vld [vmem:[%s760 + $0x78] sm:$0xff]
        %v1818 = vstv %s1801
        %v1819 = vmul.f32 %v1818, %v1802
        %v1820 = vmul.f32 %v1818, %v1803
        %v1821 = vmul.f32 %v1818, %v1804
        %v1822 = vmul.f32 %v1818, %v1805
        %v1823 = vmul.f32 %v1818, %v1806
        %v1824 = vmul.f32 %v1818, %v1807
        %v1825 = vmul.f32 %v1818, %v1808
        %v1826 = vmul.f32 %v1818, %v1809
        %v1827 = vmul.f32 %v1818, %v1810
        %v1828 = vmul.f32 %v1818, %v1811
        %v1829 = vmul.f32 %v1818, %v1812
        %v1830 = vmul.f32 %v1818, %v1813
        %v1831 = vmul.f32 %v1818, %v1814
        %v1832 = vmul.f32 %v1818, %v1815
        %v1833 = vmul.f32 %v1818, %v1816
        %v1834 = vmul.f32 %v1818, %v1817
        %v1835 = vadd.f32 %v1785, %v1819
        %v1836 = vadd.f32 %v1786, %v1820
        %v1837 = vadd.f32 %v1787, %v1821
        %v1838 = vadd.f32 %v1788, %v1822
        %v1839 = vadd.f32 %v1789, %v1823
        %v1840 = vadd.f32 %v1790, %v1824
        %v1841 = vadd.f32 %v1791, %v1825
        %v1842 = vadd.f32 %v1792, %v1826
        %v1843 = vadd.f32 %v1793, %v1827
        %v1844 = vadd.f32 %v1794, %v1828
        %v1845 = vadd.f32 %v1795, %v1829
        %v1846 = vadd.f32 %v1796, %v1830
        %v1847 = vadd.f32 %v1797, %v1831
        %v1848 = vadd.f32 %v1798, %v1832
        %v1849 = vadd.f32 %v1799, %v1833
        %v1850 = vadd.f32 %v1800, %v1834
        %s1851 = sld [smem:[#allocation5 + $0x2]]
        %v1852 = vld [vmem:[%s874] sm:$0xff]
        %v1853 = vld [vmem:[%s874 + $0x8] sm:$0xff]
        %v1854 = vld [vmem:[%s874 + $0x10] sm:$0xff]
        %v1855 = vld [vmem:[%s874 + $0x18] sm:$0xff]
        %v1856 = vld [vmem:[%s874 + $0x20] sm:$0xff]
        %v1857 = vld [vmem:[%s874 + $0x28] sm:$0xff]
        %v1858 = vld [vmem:[%s874 + $0x30] sm:$0xff]
        %v1859 = vld [vmem:[%s874 + $0x38] sm:$0xff]
        %v1860 = vld [vmem:[%s874 + $0x40] sm:$0xff]
        %v1861 = vld [vmem:[%s874 + $0x48] sm:$0xff]
        %v1862 = vld [vmem:[%s874 + $0x50] sm:$0xff]
        %v1863 = vld [vmem:[%s874 + $0x58] sm:$0xff]
        %v1864 = vld [vmem:[%s874 + $0x60] sm:$0xff]
        %v1865 = vld [vmem:[%s874 + $0x68] sm:$0xff]
        %v1866 = vld [vmem:[%s874 + $0x70] sm:$0xff]
        %v1867 = vld [vmem:[%s874 + $0x78] sm:$0xff]
        %v1868 = vstv %s1851
        %v1869 = vmul.f32 %v1868, %v1852
        %v1870 = vmul.f32 %v1868, %v1853
        %v1871 = vmul.f32 %v1868, %v1854
        %v1872 = vmul.f32 %v1868, %v1855
        %v1873 = vmul.f32 %v1868, %v1856
        %v1874 = vmul.f32 %v1868, %v1857
        %v1875 = vmul.f32 %v1868, %v1858
        %v1876 = vmul.f32 %v1868, %v1859
        %v1877 = vmul.f32 %v1868, %v1860
        %v1878 = vmul.f32 %v1868, %v1861
        %v1879 = vmul.f32 %v1868, %v1862
        %v1880 = vmul.f32 %v1868, %v1863
        %v1881 = vmul.f32 %v1868, %v1864
        %v1882 = vmul.f32 %v1868, %v1865
        %v1883 = vmul.f32 %v1868, %v1866
        %v1884 = vmul.f32 %v1868, %v1867
        %v1885 = vadd.f32 %v1835, %v1869
        %v1886 = vadd.f32 %v1836, %v1870
        %v1887 = vadd.f32 %v1837, %v1871
        %v1888 = vadd.f32 %v1838, %v1872
        %v1889 = vadd.f32 %v1839, %v1873
        %v1890 = vadd.f32 %v1840, %v1874
        %v1891 = vadd.f32 %v1841, %v1875
        %v1892 = vadd.f32 %v1842, %v1876
        %v1893 = vadd.f32 %v1843, %v1877
        %v1894 = vadd.f32 %v1844, %v1878
        %v1895 = vadd.f32 %v1845, %v1879
        %v1896 = vadd.f32 %v1846, %v1880
        %v1897 = vadd.f32 %v1847, %v1881
        %v1898 = vadd.f32 %v1848, %v1882
        %v1899 = vadd.f32 %v1849, %v1883
        %v1900 = vadd.f32 %v1850, %v1884
        %s1901 = sld [smem:[#allocation5 + $0x3]]
        %v1902 = vld [vmem:[%s891] sm:$0xff]
        %v1903 = vld [vmem:[%s891 + $0x8] sm:$0xff]
        %v1904 = vld [vmem:[%s891 + $0x10] sm:$0xff]
        %v1905 = vld [vmem:[%s891 + $0x18] sm:$0xff]
        %v1906 = vld [vmem:[%s891 + $0x20] sm:$0xff]
        %v1907 = vld [vmem:[%s891 + $0x28] sm:$0xff]
        %v1908 = vld [vmem:[%s891 + $0x30] sm:$0xff]
        %v1909 = vld [vmem:[%s891 + $0x38] sm:$0xff]
        %v1910 = vld [vmem:[%s891 + $0x40] sm:$0xff]
        %v1911 = vld [vmem:[%s891 + $0x48] sm:$0xff]
        %v1912 = vld [vmem:[%s891 + $0x50] sm:$0xff]
        %v1913 = vld [vmem:[%s891 + $0x58] sm:$0xff]
        %v1914 = vld [vmem:[%s891 + $0x60] sm:$0xff]
        %v1915 = vld [vmem:[%s891 + $0x68] sm:$0xff]
        %v1916 = vld [vmem:[%s891 + $0x70] sm:$0xff]
        %v1917 = vld [vmem:[%s891 + $0x78] sm:$0xff]
        %v1918 = vstv %s1901
        %v1919 = vmul.f32 %v1918, %v1902
        %v1920 = vmul.f32 %v1918, %v1903
        %v1921 = vmul.f32 %v1918, %v1904
        %v1922 = vmul.f32 %v1918, %v1905
        %v1923 = vmul.f32 %v1918, %v1906
        %v1924 = vmul.f32 %v1918, %v1907
        %v1925 = vmul.f32 %v1918, %v1908
        %v1926 = vmul.f32 %v1918, %v1909
        %v1927 = vmul.f32 %v1918, %v1910
        %v1928 = vmul.f32 %v1918, %v1911
        %v1929 = vmul.f32 %v1918, %v1912
        %v1930 = vmul.f32 %v1918, %v1913
        %v1931 = vmul.f32 %v1918, %v1914
        %v1932 = vmul.f32 %v1918, %v1915
        %v1933 = vmul.f32 %v1918, %v1916
        %v1934 = vmul.f32 %v1918, %v1917
        %v1935 = vadd.f32 %v1885, %v1919
        %v1936 = vadd.f32 %v1886, %v1920
        %v1937 = vadd.f32 %v1887, %v1921
        %v1938 = vadd.f32 %v1888, %v1922
        %v1939 = vadd.f32 %v1889, %v1923
        %v1940 = vadd.f32 %v1890, %v1924
        %v1941 = vadd.f32 %v1891, %v1925
        %v1942 = vadd.f32 %v1892, %v1926
        %v1943 = vadd.f32 %v1893, %v1927
        %v1944 = vadd.f32 %v1894, %v1928
        %v1945 = vadd.f32 %v1895, %v1929
        %v1946 = vadd.f32 %v1896, %v1930
        %v1947 = vadd.f32 %v1897, %v1931
        %v1948 = vadd.f32 %v1898, %v1932
        %v1949 = vadd.f32 %v1899, %v1933
        %v1950 = vadd.f32 %v1900, %v1934
        %s1951 = sld [smem:[#allocation5 + $0x4]]
        %v1952 = vld [vmem:[%s917] sm:$0xff]
        %v1953 = vld [vmem:[%s917 + $0x8] sm:$0xff]
        %v1954 = vld [vmem:[%s917 + $0x10] sm:$0xff]
        %v1955 = vld [vmem:[%s917 + $0x18] sm:$0xff]
        %v1956 = vld [vmem:[%s917 + $0x20] sm:$0xff]
        %v1957 = vld [vmem:[%s917 + $0x28] sm:$0xff]
        %v1958 = vld [vmem:[%s917 + $0x30] sm:$0xff]
        %v1959 = vld [vmem:[%s917 + $0x38] sm:$0xff]
        %v1960 = vld [vmem:[%s917 + $0x40] sm:$0xff]
        %v1961 = vld [vmem:[%s917 + $0x48] sm:$0xff]
        %v1962 = vld [vmem:[%s917 + $0x50] sm:$0xff]
        %v1963 = vld [vmem:[%s917 + $0x58] sm:$0xff]
        %v1964 = vld [vmem:[%s917 + $0x60] sm:$0xff]
        %v1965 = vld [vmem:[%s917 + $0x68] sm:$0xff]
        %v1966 = vld [vmem:[%s917 + $0x70] sm:$0xff]
        %v1967 = vld [vmem:[%s917 + $0x78] sm:$0xff]
        %v1968 = vstv %s1951
        %v1969 = vmul.f32 %v1968, %v1952
        %v1970 = vmul.f32 %v1968, %v1953
        %v1971 = vmul.f32 %v1968, %v1954
        %v1972 = vmul.f32 %v1968, %v1955
        %v1973 = vmul.f32 %v1968, %v1956
        %v1974 = vmul.f32 %v1968, %v1957
        %v1975 = vmul.f32 %v1968, %v1958
        %v1976 = vmul.f32 %v1968, %v1959
        %v1977 = vmul.f32 %v1968, %v1960
        %v1978 = vmul.f32 %v1968, %v1961
        %v1979 = vmul.f32 %v1968, %v1962
        %v1980 = vmul.f32 %v1968, %v1963
        %v1981 = vmul.f32 %v1968, %v1964
        %v1982 = vmul.f32 %v1968, %v1965
        %v1983 = vmul.f32 %v1968, %v1966
        %v1984 = vmul.f32 %v1968, %v1967
        %v1985 = vadd.f32 %v1935, %v1969
        %v1986 = vadd.f32 %v1936, %v1970
        %v1987 = vadd.f32 %v1937, %v1971
        %v1988 = vadd.f32 %v1938, %v1972
        %v1989 = vadd.f32 %v1939, %v1973
        %v1990 = vadd.f32 %v1940, %v1974
        %v1991 = vadd.f32 %v1941, %v1975
        %v1992 = vadd.f32 %v1942, %v1976
        %v1993 = vadd.f32 %v1943, %v1977
        %v1994 = vadd.f32 %v1944, %v1978
        %v1995 = vadd.f32 %v1945, %v1979
        %v1996 = vadd.f32 %v1946, %v1980
        %v1997 = vadd.f32 %v1947, %v1981
        %v1998 = vadd.f32 %v1948, %v1982
        %v1999 = vadd.f32 %v1949, %v1983
        %v2000 = vadd.f32 %v1950, %v1984
        %s2001 = sld [smem:[#allocation5 + $0x5]]
        %v2002 = vld [vmem:[%s941] sm:$0xff]
        %v2003 = vld [vmem:[%s941 + $0x8] sm:$0xff]
        %v2004 = vld [vmem:[%s941 + $0x10] sm:$0xff]
        %v2005 = vld [vmem:[%s941 + $0x18] sm:$0xff]
        %v2006 = vld [vmem:[%s941 + $0x20] sm:$0xff]
        %v2007 = vld [vmem:[%s941 + $0x28] sm:$0xff]
        %v2008 = vld [vmem:[%s941 + $0x30] sm:$0xff]
        %v2009 = vld [vmem:[%s941 + $0x38] sm:$0xff]
        %v2010 = vld [vmem:[%s941 + $0x40] sm:$0xff]
        %v2011 = vld [vmem:[%s941 + $0x48] sm:$0xff]
        %v2012 = vld [vmem:[%s941 + $0x50] sm:$0xff]
        %v2013 = vld [vmem:[%s941 + $0x58] sm:$0xff]
        %v2014 = vld [vmem:[%s941 + $0x60] sm:$0xff]
        %v2015 = vld [vmem:[%s941 + $0x68] sm:$0xff]
        %v2016 = vld [vmem:[%s941 + $0x70] sm:$0xff]
        %v2017 = vld [vmem:[%s941 + $0x78] sm:$0xff]
        %v2018 = vstv %s2001
        %v2019 = vmul.f32 %v2018, %v2002
        %v2020 = vmul.f32 %v2018, %v2003
        %v2021 = vmul.f32 %v2018, %v2004
        %v2022 = vmul.f32 %v2018, %v2005
        %v2023 = vmul.f32 %v2018, %v2006
        %v2024 = vmul.f32 %v2018, %v2007
        %v2025 = vmul.f32 %v2018, %v2008
        %v2026 = vmul.f32 %v2018, %v2009
        %v2027 = vmul.f32 %v2018, %v2010
        %v2028 = vmul.f32 %v2018, %v2011
        %v2029 = vmul.f32 %v2018, %v2012
        %v2030 = vmul.f32 %v2018, %v2013
        %v2031 = vmul.f32 %v2018, %v2014
        %v2032 = vmul.f32 %v2018, %v2015
        %v2033 = vmul.f32 %v2018, %v2016
        %v2034 = vmul.f32 %v2018, %v2017
        %v2035 = vadd.f32 %v1985, %v2019
        %v2036 = vadd.f32 %v1986, %v2020
        %v2037 = vadd.f32 %v1987, %v2021
        %v2038 = vadd.f32 %v1988, %v2022
        %v2039 = vadd.f32 %v1989, %v2023
        %v2040 = vadd.f32 %v1990, %v2024
        %v2041 = vadd.f32 %v1991, %v2025
        %v2042 = vadd.f32 %v1992, %v2026
        %v2043 = vadd.f32 %v1993, %v2027
        %v2044 = vadd.f32 %v1994, %v2028
        %v2045 = vadd.f32 %v1995, %v2029
        %v2046 = vadd.f32 %v1996, %v2030
        %v2047 = vadd.f32 %v1997, %v2031
        %v2048 = vadd.f32 %v1998, %v2032
        %v2049 = vadd.f32 %v1999, %v2033
        %v2050 = vadd.f32 %v2000, %v2034
        %s2051 = sld [smem:[#allocation5 + $0x6]]
        %v2052 = vld [vmem:[%s959] sm:$0xff]
        %v2053 = vld [vmem:[%s959 + $0x8] sm:$0xff]
        %v2054 = vld [vmem:[%s959 + $0x10] sm:$0xff]
        %v2055 = vld [vmem:[%s959 + $0x18] sm:$0xff]
        %v2056 = vld [vmem:[%s959 + $0x20] sm:$0xff]
        %v2057 = vld [vmem:[%s959 + $0x28] sm:$0xff]
        %v2058 = vld [vmem:[%s959 + $0x30] sm:$0xff]
        %v2059 = vld [vmem:[%s959 + $0x38] sm:$0xff]
        %v2060 = vld [vmem:[%s959 + $0x40] sm:$0xff]
        %v2061 = vld [vmem:[%s959 + $0x48] sm:$0xff]
        %v2062 = vld [vmem:[%s959 + $0x50] sm:$0xff]
        %v2063 = vld [vmem:[%s959 + $0x58] sm:$0xff]
        %v2064 = vld [vmem:[%s959 + $0x60] sm:$0xff]
        %v2065 = vld [vmem:[%s959 + $0x68] sm:$0xff]
        %v2066 = vld [vmem:[%s959 + $0x70] sm:$0xff]
        %v2067 = vld [vmem:[%s959 + $0x78] sm:$0xff]
        %v2068 = vstv %s2051
        %v2069 = vmul.f32 %v2068, %v2052
        %v2070 = vmul.f32 %v2068, %v2053
        %v2071 = vmul.f32 %v2068, %v2054
        %v2072 = vmul.f32 %v2068, %v2055
        %v2073 = vmul.f32 %v2068, %v2056
        %v2074 = vmul.f32 %v2068, %v2057
        %v2075 = vmul.f32 %v2068, %v2058
        %v2076 = vmul.f32 %v2068, %v2059
        %v2077 = vmul.f32 %v2068, %v2060
        %v2078 = vmul.f32 %v2068, %v2061
        %v2079 = vmul.f32 %v2068, %v2062
        %v2080 = vmul.f32 %v2068, %v2063
        %v2081 = vmul.f32 %v2068, %v2064
        %v2082 = vmul.f32 %v2068, %v2065
        %v2083 = vmul.f32 %v2068, %v2066
        %v2084 = vmul.f32 %v2068, %v2067
        %v2085 = vadd.f32 %v2035, %v2069
        %v2086 = vadd.f32 %v2036, %v2070
        %v2087 = vadd.f32 %v2037, %v2071
        %v2088 = vadd.f32 %v2038, %v2072
        %v2089 = vadd.f32 %v2039, %v2073
        %v2090 = vadd.f32 %v2040, %v2074
        %v2091 = vadd.f32 %v2041, %v2075
        %v2092 = vadd.f32 %v2042, %v2076
        %v2093 = vadd.f32 %v2043, %v2077
        %v2094 = vadd.f32 %v2044, %v2078
        %v2095 = vadd.f32 %v2045, %v2079
        %v2096 = vadd.f32 %v2046, %v2080
        %v2097 = vadd.f32 %v2047, %v2081
        %v2098 = vadd.f32 %v2048, %v2082
        %v2099 = vadd.f32 %v2049, %v2083
        %v2100 = vadd.f32 %v2050, %v2084
        %s2101 = sld [smem:[#allocation5 + $0x7]]
        %v2102 = vld [vmem:[%s977] sm:$0xff]
        %v2103 = vld [vmem:[%s977 + $0x8] sm:$0xff]
        %v2104 = vld [vmem:[%s977 + $0x10] sm:$0xff]
        %v2105 = vld [vmem:[%s977 + $0x18] sm:$0xff]
        %v2106 = vld [vmem:[%s977 + $0x20] sm:$0xff]
        %v2107 = vld [vmem:[%s977 + $0x28] sm:$0xff]
        %v2108 = vld [vmem:[%s977 + $0x30] sm:$0xff]
        %v2109 = vld [vmem:[%s977 + $0x38] sm:$0xff]
        %v2110 = vld [vmem:[%s977 + $0x40] sm:$0xff]
        %v2111 = vld [vmem:[%s977 + $0x48] sm:$0xff]
        %v2112 = vld [vmem:[%s977 + $0x50] sm:$0xff]
        %v2113 = vld [vmem:[%s977 + $0x58] sm:$0xff]
        %v2114 = vld [vmem:[%s977 + $0x60] sm:$0xff]
        %v2115 = vld [vmem:[%s977 + $0x68] sm:$0xff]
        %v2116 = vld [vmem:[%s977 + $0x70] sm:$0xff]
        %v2117 = vld [vmem:[%s977 + $0x78] sm:$0xff]
        %v2118 = vstv %s2101
        %v2119 = vmul.f32 %v2118, %v2102
        %v2120 = vmul.f32 %v2118, %v2103
        %v2121 = vmul.f32 %v2118, %v2104
        %v2122 = vmul.f32 %v2118, %v2105
        %v2123 = vmul.f32 %v2118, %v2106
        %v2124 = vmul.f32 %v2118, %v2107
        %v2125 = vmul.f32 %v2118, %v2108
        %v2126 = vmul.f32 %v2118, %v2109
        %v2127 = vmul.f32 %v2118, %v2110
        %v2128 = vmul.f32 %v2118, %v2111
        %v2129 = vmul.f32 %v2118, %v2112
        %v2130 = vmul.f32 %v2118, %v2113
        %v2131 = vmul.f32 %v2118, %v2114
        %v2132 = vmul.f32 %v2118, %v2115
        %v2133 = vmul.f32 %v2118, %v2116
        %v2134 = vmul.f32 %v2118, %v2117
        %v2135 = vadd.f32 %v2085, %v2119
        %v2136 = vadd.f32 %v2086, %v2120
        %v2137 = vadd.f32 %v2087, %v2121
        %v2138 = vadd.f32 %v2088, %v2122
        %v2139 = vadd.f32 %v2089, %v2123
        %v2140 = vadd.f32 %v2090, %v2124
        %v2141 = vadd.f32 %v2091, %v2125
        %v2142 = vadd.f32 %v2092, %v2126
        %v2143 = vadd.f32 %v2093, %v2127
        %v2144 = vadd.f32 %v2094, %v2128
        %v2145 = vadd.f32 %v2095, %v2129
        %v2146 = vadd.f32 %v2096, %v2130
        %v2147 = vadd.f32 %v2097, %v2131
        %v2148 = vadd.f32 %v2098, %v2132
        %v2149 = vadd.f32 %v2099, %v2133
        %v2150 = vadd.f32 %v2100, %v2134
        %s2151 = sld [smem:[#allocation5 + $0x8]]
        %v2152 = vld [vmem:[%s995] sm:$0xff]
        %v2153 = vld [vmem:[%s995 + $0x8] sm:$0xff]
        %v2154 = vld [vmem:[%s995 + $0x10] sm:$0xff]
        %v2155 = vld [vmem:[%s995 + $0x18] sm:$0xff]
        %v2156 = vld [vmem:[%s995 + $0x20] sm:$0xff]
        %v2157 = vld [vmem:[%s995 + $0x28] sm:$0xff]
        %v2158 = vld [vmem:[%s995 + $0x30] sm:$0xff]
        %v2159 = vld [vmem:[%s995 + $0x38] sm:$0xff]
        %v2160 = vld [vmem:[%s995 + $0x40] sm:$0xff]
        %v2161 = vld [vmem:[%s995 + $0x48] sm:$0xff]
        %v2162 = vld [vmem:[%s995 + $0x50] sm:$0xff]
        %v2163 = vld [vmem:[%s995 + $0x58] sm:$0xff]
        %v2164 = vld [vmem:[%s995 + $0x60] sm:$0xff]
        %v2165 = vld [vmem:[%s995 + $0x68] sm:$0xff]
        %v2166 = vld [vmem:[%s995 + $0x70] sm:$0xff]
        %v2167 = vld [vmem:[%s995 + $0x78] sm:$0xff]
        %v2168 = vstv %s2151
        %v2169 = vmul.f32 %v2168, %v2152
        %v2170 = vmul.f32 %v2168, %v2153
        %v2171 = vmul.f32 %v2168, %v2154
        %v2172 = vmul.f32 %v2168, %v2155
        %v2173 = vmul.f32 %v2168, %v2156
        %v2174 = vmul.f32 %v2168, %v2157
        %v2175 = vmul.f32 %v2168, %v2158
        %v2176 = vmul.f32 %v2168, %v2159
        %v2177 = vmul.f32 %v2168, %v2160
        %v2178 = vmul.f32 %v2168, %v2161
        %v2179 = vmul.f32 %v2168, %v2162
        %v2180 = vmul.f32 %v2168, %v2163
        %v2181 = vmul.f32 %v2168, %v2164
        %v2182 = vmul.f32 %v2168, %v2165
        %v2183 = vmul.f32 %v2168, %v2166
        %v2184 = vmul.f32 %v2168, %v2167
        %v2185 = vadd.f32 %v2135, %v2169
        %v2186 = vadd.f32 %v2136, %v2170
        %v2187 = vadd.f32 %v2137, %v2171
        %v2188 = vadd.f32 %v2138, %v2172
        %v2189 = vadd.f32 %v2139, %v2173
        %v2190 = vadd.f32 %v2140, %v2174
        %v2191 = vadd.f32 %v2141, %v2175
        %v2192 = vadd.f32 %v2142, %v2176
        %v2193 = vadd.f32 %v2143, %v2177
        %v2194 = vadd.f32 %v2144, %v2178
        %v2195 = vadd.f32 %v2145, %v2179
        %v2196 = vadd.f32 %v2146, %v2180
        %v2197 = vadd.f32 %v2147, %v2181
        %v2198 = vadd.f32 %v2148, %v2182
        %v2199 = vadd.f32 %v2149, %v2183
        %v2200 = vadd.f32 %v2150, %v2184
        %s2201 = sld [smem:[#allocation5 + $0x9]]
        %v2202 = vld [vmem:[%s1213] sm:$0xff]
        %v2203 = vld [vmem:[%s1213 + $0x8] sm:$0xff]
        %v2204 = vld [vmem:[%s1213 + $0x10] sm:$0xff]
        %v2205 = vld [vmem:[%s1213 + $0x18] sm:$0xff]
        %v2206 = vld [vmem:[%s1213 + $0x20] sm:$0xff]
        %v2207 = vld [vmem:[%s1213 + $0x28] sm:$0xff]
        %v2208 = vld [vmem:[%s1213 + $0x30] sm:$0xff]
        %v2209 = vld [vmem:[%s1213 + $0x38] sm:$0xff]
        %v2210 = vld [vmem:[%s1213 + $0x40] sm:$0xff]
        %v2211 = vld [vmem:[%s1213 + $0x48] sm:$0xff]
        %v2212 = vld [vmem:[%s1213 + $0x50] sm:$0xff]
        %v2213 = vld [vmem:[%s1213 + $0x58] sm:$0xff]
        %v2214 = vld [vmem:[%s1213 + $0x60] sm:$0xff]
        %v2215 = vld [vmem:[%s1213 + $0x68] sm:$0xff]
        %v2216 = vld [vmem:[%s1213 + $0x70] sm:$0xff]
        %v2217 = vld [vmem:[%s1213 + $0x78] sm:$0xff]
        %v2218 = vstv %s2201
        %v2219 = vmul.f32 %v2218, %v2202
        %v2220 = vmul.f32 %v2218, %v2203
        %v2221 = vmul.f32 %v2218, %v2204
        %v2222 = vmul.f32 %v2218, %v2205
        %v2223 = vmul.f32 %v2218, %v2206
        %v2224 = vmul.f32 %v2218, %v2207
        %v2225 = vmul.f32 %v2218, %v2208
        %v2226 = vmul.f32 %v2218, %v2209
        %v2227 = vmul.f32 %v2218, %v2210
        %v2228 = vmul.f32 %v2218, %v2211
        %v2229 = vmul.f32 %v2218, %v2212
        %v2230 = vmul.f32 %v2218, %v2213
        %v2231 = vmul.f32 %v2218, %v2214
        %v2232 = vmul.f32 %v2218, %v2215
        %v2233 = vmul.f32 %v2218, %v2216
        %v2234 = vmul.f32 %v2218, %v2217
        %v2235 = vadd.f32 %v2185, %v2219
        %v2236 = vadd.f32 %v2186, %v2220
        %v2237 = vadd.f32 %v2187, %v2221
        %v2238 = vadd.f32 %v2188, %v2222
        %v2239 = vadd.f32 %v2189, %v2223
        %v2240 = vadd.f32 %v2190, %v2224
        %v2241 = vadd.f32 %v2191, %v2225
        %v2242 = vadd.f32 %v2192, %v2226
        %v2243 = vadd.f32 %v2193, %v2227
        %v2244 = vadd.f32 %v2194, %v2228
        %v2245 = vadd.f32 %v2195, %v2229
        %v2246 = vadd.f32 %v2196, %v2230
        %v2247 = vadd.f32 %v2197, %v2231
        %v2248 = vadd.f32 %v2198, %v2232
        %v2249 = vadd.f32 %v2199, %v2233
        %v2250 = vadd.f32 %v2200, %v2234
        %s2251 = sld [smem:[#allocation5 + $0xa]]
        %v2252 = vld [vmem:[%s1358] sm:$0xff]
        %v2253 = vld [vmem:[%s1358 + $0x8] sm:$0xff]
        %v2254 = vld [vmem:[%s1358 + $0x10] sm:$0xff]
        %v2255 = vld [vmem:[%s1358 + $0x18] sm:$0xff]
        %v2256 = vld [vmem:[%s1358 + $0x20] sm:$0xff]
        %v2257 = vld [vmem:[%s1358 + $0x28] sm:$0xff]
        %v2258 = vld [vmem:[%s1358 + $0x30] sm:$0xff]
        %v2259 = vld [vmem:[%s1358 + $0x38] sm:$0xff]
        %v2260 = vld [vmem:[%s1358 + $0x40] sm:$0xff]
        %v2261 = vld [vmem:[%s1358 + $0x48] sm:$0xff]
        %v2262 = vld [vmem:[%s1358 + $0x50] sm:$0xff]
        %v2263 = vld [vmem:[%s1358 + $0x58] sm:$0xff]
        %v2264 = vld [vmem:[%s1358 + $0x60] sm:$0xff]
        %v2265 = vld [vmem:[%s1358 + $0x68] sm:$0xff]
        %v2266 = vld [vmem:[%s1358 + $0x70] sm:$0xff]
        %v2267 = vld [vmem:[%s1358 + $0x78] sm:$0xff]
        %v2268 = vstv %s2251
        %v2269 = vmul.f32 %v2268, %v2252
        %v2270 = vmul.f32 %v2268, %v2253
        %v2271 = vmul.f32 %v2268, %v2254
        %v2272 = vmul.f32 %v2268, %v2255
        %v2273 = vmul.f32 %v2268, %v2256
        %v2274 = vmul.f32 %v2268, %v2257
        %v2275 = vmul.f32 %v2268, %v2258
        %v2276 = vmul.f32 %v2268, %v2259
        %v2277 = vmul.f32 %v2268, %v2260
        %v2278 = vmul.f32 %v2268, %v2261
        %v2279 = vmul.f32 %v2268, %v2262
        %v2280 = vmul.f32 %v2268, %v2263
        %v2281 = vmul.f32 %v2268, %v2264
        %v2282 = vmul.f32 %v2268, %v2265
        %v2283 = vmul.f32 %v2268, %v2266
        %v2284 = vmul.f32 %v2268, %v2267
        %v2285 = vadd.f32 %v2235, %v2269
        %v2286 = vadd.f32 %v2236, %v2270
        %v2287 = vadd.f32 %v2237, %v2271
        %v2288 = vadd.f32 %v2238, %v2272
        %v2289 = vadd.f32 %v2239, %v2273
        %v2290 = vadd.f32 %v2240, %v2274
        %v2291 = vadd.f32 %v2241, %v2275
        %v2292 = vadd.f32 %v2242, %v2276
        %v2293 = vadd.f32 %v2243, %v2277
        %v2294 = vadd.f32 %v2244, %v2278
        %v2295 = vadd.f32 %v2245, %v2279
        %v2296 = vadd.f32 %v2246, %v2280
        %v2297 = vadd.f32 %v2247, %v2281
        %v2298 = vadd.f32 %v2248, %v2282
        %v2299 = vadd.f32 %v2249, %v2283
        %v2300 = vadd.f32 %v2250, %v2284
        %s2301 = sld [smem:[#allocation5 + $0xb]]
        %v2302 = vld [vmem:[%s1471] sm:$0xff]
        %v2303 = vld [vmem:[%s1471 + $0x8] sm:$0xff]
        %v2304 = vld [vmem:[%s1471 + $0x10] sm:$0xff]
        %v2305 = vld [vmem:[%s1471 + $0x18] sm:$0xff]
        %v2306 = vld [vmem:[%s1471 + $0x20] sm:$0xff]
        %v2307 = vld [vmem:[%s1471 + $0x28] sm:$0xff]
        %v2308 = vld [vmem:[%s1471 + $0x30] sm:$0xff]
        %v2309 = vld [vmem:[%s1471 + $0x38] sm:$0xff]
        %v2310 = vld [vmem:[%s1471 + $0x40] sm:$0xff]
        %v2311 = vld [vmem:[%s1471 + $0x48] sm:$0xff]
        %v2312 = vld [vmem:[%s1471 + $0x50] sm:$0xff]
        %v2313 = vld [vmem:[%s1471 + $0x58] sm:$0xff]
        %v2314 = vld [vmem:[%s1471 + $0x60] sm:$0xff]
        %v2315 = vld [vmem:[%s1471 + $0x68] sm:$0xff]
        %v2316 = vld [vmem:[%s1471 + $0x70] sm:$0xff]
        %v2317 = vld [vmem:[%s1471 + $0x78] sm:$0xff]
        %v2318 = vstv %s2301
        %v2319 = vmul.f32 %v2318, %v2302
        %v2320 = vmul.f32 %v2318, %v2303
        %v2321 = vmul.f32 %v2318, %v2304
        %v2322 = vmul.f32 %v2318, %v2305
        %v2323 = vmul.f32 %v2318, %v2306
        %v2324 = vmul.f32 %v2318, %v2307
        %v2325 = vmul.f32 %v2318, %v2308
        %v2326 = vmul.f32 %v2318, %v2309
        %v2327 = vmul.f32 %v2318, %v2310
        %v2328 = vmul.f32 %v2318, %v2311
        %v2329 = vmul.f32 %v2318, %v2312
        %v2330 = vmul.f32 %v2318, %v2313
        %v2331 = vmul.f32 %v2318, %v2314
        %v2332 = vmul.f32 %v2318, %v2315
        %v2333 = vmul.f32 %v2318, %v2316
        %v2334 = vmul.f32 %v2318, %v2317
        %v2335 = vadd.f32 %v2285, %v2319
        %v2336 = vadd.f32 %v2286, %v2320
        %v2337 = vadd.f32 %v2287, %v2321
        %v2338 = vadd.f32 %v2288, %v2322
        %v2339 = vadd.f32 %v2289, %v2323
        %v2340 = vadd.f32 %v2290, %v2324
        %v2341 = vadd.f32 %v2291, %v2325
        %v2342 = vadd.f32 %v2292, %v2326
        %v2343 = vadd.f32 %v2293, %v2327
        %v2344 = vadd.f32 %v2294, %v2328
        %v2345 = vadd.f32 %v2295, %v2329
        %v2346 = vadd.f32 %v2296, %v2330
        %v2347 = vadd.f32 %v2297, %v2331
        %v2348 = vadd.f32 %v2298, %v2332
        %v2349 = vadd.f32 %v2299, %v2333
        %v2350 = vadd.f32 %v2300, %v2334
        %s2351 = sld [smem:[#allocation5 + $0xc]]
        %v2352 = vld [vmem:[%s1488] sm:$0xff]
        %v2353 = vld [vmem:[%s1488 + $0x8] sm:$0xff]
        %v2354 = vld [vmem:[%s1488 + $0x10] sm:$0xff]
        %v2355 = vld [vmem:[%s1488 + $0x18] sm:$0xff]
        %v2356 = vld [vmem:[%s1488 + $0x20] sm:$0xff]
        %v2357 = vld [vmem:[%s1488 + $0x28] sm:$0xff]
        %v2358 = vld [vmem:[%s1488 + $0x30] sm:$0xff]
        %v2359 = vld [vmem:[%s1488 + $0x38] sm:$0xff]
        %v2360 = vld [vmem:[%s1488 + $0x40] sm:$0xff]
        %v2361 = vld [vmem:[%s1488 + $0x48] sm:$0xff]
        %v2362 = vld [vmem:[%s1488 + $0x50] sm:$0xff]
        %v2363 = vld [vmem:[%s1488 + $0x58] sm:$0xff]
        %v2364 = vld [vmem:[%s1488 + $0x60] sm:$0xff]
        %v2365 = vld [vmem:[%s1488 + $0x68] sm:$0xff]
        %v2366 = vld [vmem:[%s1488 + $0x70] sm:$0xff]
        %v2367 = vld [vmem:[%s1488 + $0x78] sm:$0xff]
        %v2368 = vstv %s2351
        %v2369 = vmul.f32 %v2368, %v2352
        %v2370 = vmul.f32 %v2368, %v2353
        %v2371 = vmul.f32 %v2368, %v2354
        %v2372 = vmul.f32 %v2368, %v2355
        %v2373 = vmul.f32 %v2368, %v2356
        %v2374 = vmul.f32 %v2368, %v2357
        %v2375 = vmul.f32 %v2368, %v2358
        %v2376 = vmul.f32 %v2368, %v2359
        %v2377 = vmul.f32 %v2368, %v2360
        %v2378 = vmul.f32 %v2368, %v2361
        %v2379 = vmul.f32 %v2368, %v2362
        %v2380 = vmul.f32 %v2368, %v2363
        %v2381 = vmul.f32 %v2368, %v2364
        %v2382 = vmul.f32 %v2368, %v2365
        %v2383 = vmul.f32 %v2368, %v2366
        %v2384 = vmul.f32 %v2368, %v2367
        %v2385 = vadd.f32 %v2335, %v2369
        %v2386 = vadd.f32 %v2336, %v2370
        %v2387 = vadd.f32 %v2337, %v2371
        %v2388 = vadd.f32 %v2338, %v2372
        %v2389 = vadd.f32 %v2339, %v2373
        %v2390 = vadd.f32 %v2340, %v2374
        %v2391 = vadd.f32 %v2341, %v2375
        %v2392 = vadd.f32 %v2342, %v2376
        %v2393 = vadd.f32 %v2343, %v2377
        %v2394 = vadd.f32 %v2344, %v2378
        %v2395 = vadd.f32 %v2345, %v2379
        %v2396 = vadd.f32 %v2346, %v2380
        %v2397 = vadd.f32 %v2347, %v2381
        %v2398 = vadd.f32 %v2348, %v2382
        %v2399 = vadd.f32 %v2349, %v2383
        %v2400 = vadd.f32 %v2350, %v2384
        %s2401 = sld [smem:[#allocation5 + $0xd]]
        %v2402 = vld [vmem:[%s1514] sm:$0xff]
        %v2403 = vld [vmem:[%s1514 + $0x8] sm:$0xff]
        %v2404 = vld [vmem:[%s1514 + $0x10] sm:$0xff]
        %v2405 = vld [vmem:[%s1514 + $0x18] sm:$0xff]
        %v2406 = vld [vmem:[%s1514 + $0x20] sm:$0xff]
        %v2407 = vld [vmem:[%s1514 + $0x28] sm:$0xff]
        %v2408 = vld [vmem:[%s1514 + $0x30] sm:$0xff]
        %v2409 = vld [vmem:[%s1514 + $0x38] sm:$0xff]
        %v2410 = vld [vmem:[%s1514 + $0x40] sm:$0xff]
        %v2411 = vld [vmem:[%s1514 + $0x48] sm:$0xff]
        %v2412 = vld [vmem:[%s1514 + $0x50] sm:$0xff]
        %v2413 = vld [vmem:[%s1514 + $0x58] sm:$0xff]
        %v2414 = vld [vmem:[%s1514 + $0x60] sm:$0xff]
        %v2415 = vld [vmem:[%s1514 + $0x68] sm:$0xff]
        %v2416 = vld [vmem:[%s1514 + $0x70] sm:$0xff]
        %v2417 = vld [vmem:[%s1514 + $0x78] sm:$0xff]
        %v2418 = vstv %s2401
        %v2419 = vmul.f32 %v2418, %v2402
        %v2420 = vmul.f32 %v2418, %v2403
        %v2421 = vmul.f32 %v2418, %v2404
        %v2422 = vmul.f32 %v2418, %v2405
        %v2423 = vmul.f32 %v2418, %v2406
        %v2424 = vmul.f32 %v2418, %v2407
        %v2425 = vmul.f32 %v2418, %v2408
        %v2426 = vmul.f32 %v2418, %v2409
        %v2427 = vmul.f32 %v2418, %v2410
        %v2428 = vmul.f32 %v2418, %v2411
        %v2429 = vmul.f32 %v2418, %v2412
        %v2430 = vmul.f32 %v2418, %v2413
        %v2431 = vmul.f32 %v2418, %v2414
        %v2432 = vmul.f32 %v2418, %v2415
        %v2433 = vmul.f32 %v2418, %v2416
        %v2434 = vmul.f32 %v2418, %v2417
        %v2435 = vadd.f32 %v2385, %v2419
        %v2436 = vadd.f32 %v2386, %v2420
        %v2437 = vadd.f32 %v2387, %v2421
        %v2438 = vadd.f32 %v2388, %v2422
        %v2439 = vadd.f32 %v2389, %v2423
        %v2440 = vadd.f32 %v2390, %v2424
        %v2441 = vadd.f32 %v2391, %v2425
        %v2442 = vadd.f32 %v2392, %v2426
        %v2443 = vadd.f32 %v2393, %v2427
        %v2444 = vadd.f32 %v2394, %v2428
        %v2445 = vadd.f32 %v2395, %v2429
        %v2446 = vadd.f32 %v2396, %v2430
        %v2447 = vadd.f32 %v2397, %v2431
        %v2448 = vadd.f32 %v2398, %v2432
        %v2449 = vadd.f32 %v2399, %v2433
        %v2450 = vadd.f32 %v2400, %v2434
        %s2451 = sld [smem:[#allocation5 + $0xe]]
        %v2452 = vld [vmem:[%s1538] sm:$0xff]
        %v2453 = vld [vmem:[%s1538 + $0x8] sm:$0xff]
        %v2454 = vld [vmem:[%s1538 + $0x10] sm:$0xff]
        %v2455 = vld [vmem:[%s1538 + $0x18] sm:$0xff]
        %v2456 = vld [vmem:[%s1538 + $0x20] sm:$0xff]
        %v2457 = vld [vmem:[%s1538 + $0x28] sm:$0xff]
        %v2458 = vld [vmem:[%s1538 + $0x30] sm:$0xff]
        %v2459 = vld [vmem:[%s1538 + $0x38] sm:$0xff]
        %v2460 = vld [vmem:[%s1538 + $0x40] sm:$0xff]
        %v2461 = vld [vmem:[%s1538 + $0x48] sm:$0xff]
        %v2462 = vld [vmem:[%s1538 + $0x50] sm:$0xff]
        %v2463 = vld [vmem:[%s1538 + $0x58] sm:$0xff]
        %v2464 = vld [vmem:[%s1538 + $0x60] sm:$0xff]
        %v2465 = vld [vmem:[%s1538 + $0x68] sm:$0xff]
        %v2466 = vld [vmem:[%s1538 + $0x70] sm:$0xff]
        %v2467 = vld [vmem:[%s1538 + $0x78] sm:$0xff]
        %v2468 = vstv %s2451
        %v2469 = vmul.f32 %v2468, %v2452
        %v2470 = vmul.f32 %v2468, %v2453
        %v2471 = vmul.f32 %v2468, %v2454
        %v2472 = vmul.f32 %v2468, %v2455
        %v2473 = vmul.f32 %v2468, %v2456
        %v2474 = vmul.f32 %v2468, %v2457
        %v2475 = vmul.f32 %v2468, %v2458
        %v2476 = vmul.f32 %v2468, %v2459
        %v2477 = vmul.f32 %v2468, %v2460
        %v2478 = vmul.f32 %v2468, %v2461
        %v2479 = vmul.f32 %v2468, %v2462
        %v2480 = vmul.f32 %v2468, %v2463
        %v2481 = vmul.f32 %v2468, %v2464
        %v2482 = vmul.f32 %v2468, %v2465
        %v2483 = vmul.f32 %v2468, %v2466
        %v2484 = vmul.f32 %v2468, %v2467
        %v2485 = vadd.f32 %v2435, %v2469
        %v2486 = vadd.f32 %v2436, %v2470
        %v2487 = vadd.f32 %v2437, %v2471
        %v2488 = vadd.f32 %v2438, %v2472
        %v2489 = vadd.f32 %v2439, %v2473
        %v2490 = vadd.f32 %v2440, %v2474
        %v2491 = vadd.f32 %v2441, %v2475
        %v2492 = vadd.f32 %v2442, %v2476
        %v2493 = vadd.f32 %v2443, %v2477
        %v2494 = vadd.f32 %v2444, %v2478
        %v2495 = vadd.f32 %v2445, %v2479
        %v2496 = vadd.f32 %v2446, %v2480
        %v2497 = vadd.f32 %v2447, %v2481
        %v2498 = vadd.f32 %v2448, %v2482
        %v2499 = vadd.f32 %v2449, %v2483
        %v2500 = vadd.f32 %v2450, %v2484
        %s2501 = sld [smem:[#allocation5 + $0xf]]
        %v2502 = vld [vmem:[%s1556] sm:$0xff]
        %v2503 = vld [vmem:[%s1556 + $0x8] sm:$0xff]
        %v2504 = vld [vmem:[%s1556 + $0x10] sm:$0xff]
        %v2505 = vld [vmem:[%s1556 + $0x18] sm:$0xff]
        %v2506 = vld [vmem:[%s1556 + $0x20] sm:$0xff]
        %v2507 = vld [vmem:[%s1556 + $0x28] sm:$0xff]
        %v2508 = vld [vmem:[%s1556 + $0x30] sm:$0xff]
        %v2509 = vld [vmem:[%s1556 + $0x38] sm:$0xff]
        %v2510 = vld [vmem:[%s1556 + $0x40] sm:$0xff]
        %v2511 = vld [vmem:[%s1556 + $0x48] sm:$0xff]
        %v2512 = vld [vmem:[%s1556 + $0x50] sm:$0xff]
        %v2513 = vld [vmem:[%s1556 + $0x58] sm:$0xff]
        %v2514 = vld [vmem:[%s1556 + $0x60] sm:$0xff]
        %v2515 = vld [vmem:[%s1556 + $0x68] sm:$0xff]
        %v2516 = vld [vmem:[%s1556 + $0x70] sm:$0xff]
        %v2517 = vld [vmem:[%s1556 + $0x78] sm:$0xff]
        %v2518 = vstv %s2501
        %v2519 = vmul.f32 %v2518, %v2502
        %v2520 = vmul.f32 %v2518, %v2503
        %v2521 = vmul.f32 %v2518, %v2504
        %v2522 = vmul.f32 %v2518, %v2505
        %v2523 = vmul.f32 %v2518, %v2506
        %v2524 = vmul.f32 %v2518, %v2507
        %v2525 = vmul.f32 %v2518, %v2508
        %v2526 = vmul.f32 %v2518, %v2509
        %v2527 = vmul.f32 %v2518, %v2510
        %v2528 = vmul.f32 %v2518, %v2511
        %v2529 = vmul.f32 %v2518, %v2512
        %v2530 = vmul.f32 %v2518, %v2513
        %v2531 = vmul.f32 %v2518, %v2514
        %v2532 = vmul.f32 %v2518, %v2515
        %v2533 = vmul.f32 %v2518, %v2516
        %v2534 = vmul.f32 %v2518, %v2517
        %v2535 = vadd.f32 %v2485, %v2519
        %v2536 = vadd.f32 %v2486, %v2520
        %v2537 = vadd.f32 %v2487, %v2521
        %v2538 = vadd.f32 %v2488, %v2522
        %v2539 = vadd.f32 %v2489, %v2523
        %v2540 = vadd.f32 %v2490, %v2524
        %v2541 = vadd.f32 %v2491, %v2525
        %v2542 = vadd.f32 %v2492, %v2526
        %v2543 = vadd.f32 %v2493, %v2527
        %v2544 = vadd.f32 %v2494, %v2528
        %v2545 = vadd.f32 %v2495, %v2529
        %v2546 = vadd.f32 %v2496, %v2530
        %v2547 = vadd.f32 %v2497, %v2531
        %v2548 = vadd.f32 %v2498, %v2532
        %v2549 = vadd.f32 %v2499, %v2533
        %v2550 = vadd.f32 %v2500, %v2534
        %s2551 = sld [smem:[#allocation5 + $0x10]]
        %v2552 = vld [vmem:[%s1574] sm:$0xff]
        %v2553 = vld [vmem:[%s1574 + $0x8] sm:$0xff]
        %v2554 = vld [vmem:[%s1574 + $0x10] sm:$0xff]
        %v2555 = vld [vmem:[%s1574 + $0x18] sm:$0xff]
        %v2556 = vld [vmem:[%s1574 + $0x20] sm:$0xff]
        %v2557 = vld [vmem:[%s1574 + $0x28] sm:$0xff]
        %v2558 = vld [vmem:[%s1574 + $0x30] sm:$0xff]
        %v2559 = vld [vmem:[%s1574 + $0x38] sm:$0xff]
        %v2560 = vld [vmem:[%s1574 + $0x40] sm:$0xff]
        %v2561 = vld [vmem:[%s1574 + $0x48] sm:$0xff]
        %v2562 = vld [vmem:[%s1574 + $0x50] sm:$0xff]
        %v2563 = vld [vmem:[%s1574 + $0x58] sm:$0xff]
        %v2564 = vld [vmem:[%s1574 + $0x60] sm:$0xff]
        %v2565 = vld [vmem:[%s1574 + $0x68] sm:$0xff]
        %v2566 = vld [vmem:[%s1574 + $0x70] sm:$0xff]
        %v2567 = vld [vmem:[%s1574 + $0x78] sm:$0xff]
        %v2568 = vstv %s2551
        %v2569 = vmul.f32 %v2568, %v2552
        %v2570 = vmul.f32 %v2568, %v2553
        %v2571 = vmul.f32 %v2568, %v2554
        %v2572 = vmul.f32 %v2568, %v2555
        %v2573 = vmul.f32 %v2568, %v2556
        %v2574 = vmul.f32 %v2568, %v2557
        %v2575 = vmul.f32 %v2568, %v2558
        %v2576 = vmul.f32 %v2568, %v2559
        %v2577 = vmul.f32 %v2568, %v2560
        %v2578 = vmul.f32 %v2568, %v2561
        %v2579 = vmul.f32 %v2568, %v2562
        %v2580 = vmul.f32 %v2568, %v2563
        %v2581 = vmul.f32 %v2568, %v2564
        %v2582 = vmul.f32 %v2568, %v2565
        %v2583 = vmul.f32 %v2568, %v2566
        %v2584 = vmul.f32 %v2568, %v2567
        %v2585 = vadd.f32 %v2535, %v2569
        %v2586 = vadd.f32 %v2536, %v2570
        %v2587 = vadd.f32 %v2537, %v2571
        %v2588 = vadd.f32 %v2538, %v2572
        %v2589 = vadd.f32 %v2539, %v2573
        %v2590 = vadd.f32 %v2540, %v2574
        %v2591 = vadd.f32 %v2541, %v2575
        %v2592 = vadd.f32 %v2542, %v2576
        %v2593 = vadd.f32 %v2543, %v2577
        %v2594 = vadd.f32 %v2544, %v2578
        %v2595 = vadd.f32 %v2545, %v2579
        %v2596 = vadd.f32 %v2546, %v2580
        %v2597 = vadd.f32 %v2547, %v2581
        %v2598 = vadd.f32 %v2548, %v2582
        %v2599 = vadd.f32 %v2549, %v2583
        %v2600 = vadd.f32 %v2550, %v2584
        %s2601 = sld [smem:[#allocation5 + $0x11]]
        %v2602 = vld [vmem:[%s1592] sm:$0xff]
        %v2603 = vld [vmem:[%s1592 + $0x8] sm:$0xff]
        %v2604 = vld [vmem:[%s1592 + $0x10] sm:$0xff]
        %v2605 = vld [vmem:[%s1592 + $0x18] sm:$0xff]
        %v2606 = vld [vmem:[%s1592 + $0x20] sm:$0xff]
        %v2607 = vld [vmem:[%s1592 + $0x28] sm:$0xff]
        %v2608 = vld [vmem:[%s1592 + $0x30] sm:$0xff]
        %v2609 = vld [vmem:[%s1592 + $0x38] sm:$0xff]
        %v2610 = vld [vmem:[%s1592 + $0x40] sm:$0xff]
        %v2611 = vld [vmem:[%s1592 + $0x48] sm:$0xff]
        %v2612 = vld [vmem:[%s1592 + $0x50] sm:$0xff]
        %v2613 = vld [vmem:[%s1592 + $0x58] sm:$0xff]
        %v2614 = vld [vmem:[%s1592 + $0x60] sm:$0xff]
        %v2615 = vld [vmem:[%s1592 + $0x68] sm:$0xff]
        %v2616 = vld [vmem:[%s1592 + $0x70] sm:$0xff]
        %v2617 = vld [vmem:[%s1592 + $0x78] sm:$0xff]
        %v2618 = vstv %s2601
        %v2619 = vmul.f32 %v2618, %v2602
        %v2620 = vmul.f32 %v2618, %v2603
        %v2621 = vmul.f32 %v2618, %v2604
        %v2622 = vmul.f32 %v2618, %v2605
        %v2623 = vmul.f32 %v2618, %v2606
        %v2624 = vmul.f32 %v2618, %v2607
        %v2625 = vmul.f32 %v2618, %v2608
        %v2626 = vmul.f32 %v2618, %v2609
        %v2627 = vmul.f32 %v2618, %v2610
        %v2628 = vmul.f32 %v2618, %v2611
        %v2629 = vmul.f32 %v2618, %v2612
        %v2630 = vmul.f32 %v2618, %v2613
        %v2631 = vmul.f32 %v2618, %v2614
        %v2632 = vmul.f32 %v2618, %v2615
        %v2633 = vmul.f32 %v2618, %v2616
        %v2634 = vmul.f32 %v2618, %v2617
        %v2635 = vadd.f32 %v2585, %v2619
        %v2636 = vadd.f32 %v2586, %v2620
        %v2637 = vadd.f32 %v2587, %v2621
        %v2638 = vadd.f32 %v2588, %v2622
        %v2639 = vadd.f32 %v2589, %v2623
        %v2640 = vadd.f32 %v2590, %v2624
        %v2641 = vadd.f32 %v2591, %v2625
        %v2642 = vadd.f32 %v2592, %v2626
        %v2643 = vadd.f32 %v2593, %v2627
        %v2644 = vadd.f32 %v2594, %v2628
        %v2645 = vadd.f32 %v2595, %v2629
        %v2646 = vadd.f32 %v2596, %v2630
        %v2647 = vadd.f32 %v2597, %v2631
        %v2648 = vadd.f32 %v2598, %v2632
        %v2649 = vadd.f32 %v2599, %v2633
        %v2650 = vadd.f32 %v2600, %v2634
        %s2651 = sld [smem:[#allocation10]]
        %v2652 = vstv %s2651
        %v2653 = vmul.f32 %v2635, %v2652
        %v2654 = vmul.f32 %v2636, %v2652
        %v2655 = vmul.f32 %v2637, %v2652
        %v2656 = vmul.f32 %v2638, %v2652
        %v2657 = vmul.f32 %v2639, %v2652
        %v2658 = vmul.f32 %v2640, %v2652
        %v2659 = vmul.f32 %v2641, %v2652
        %v2660 = vmul.f32 %v2642, %v2652
        %v2661 = vmul.f32 %v2643, %v2652
        %v2662 = vmul.f32 %v2644, %v2652
        %v2663 = vmul.f32 %v2645, %v2652
        %v2664 = vmul.f32 %v2646, %v2652
        %v2665 = vmul.f32 %v2647, %v2652
        %v2666 = vmul.f32 %v2648, %v2652
        %v2667 = vmul.f32 %v2649, %v2652
        %v2668 = vmul.f32 %v2650, %v2652
        %s2669 = sld [smem:[#allocation11]]
        %v2670 = vstv %s2669
        %v2671 = vadd.f32 %v2653, %v2670
        %v2672 = vadd.f32 %v2654, %v2670
        %v2673 = vadd.f32 %v2655, %v2670
        %v2674 = vadd.f32 %v2656, %v2670
        %v2675 = vadd.f32 %v2657, %v2670
        %v2676 = vadd.f32 %v2658, %v2670
        %v2677 = vadd.f32 %v2659, %v2670
        %v2678 = vadd.f32 %v2660, %v2670
        %v2679 = vadd.f32 %v2661, %v2670
        %v2680 = vadd.f32 %v2662, %v2670
        %v2681 = vadd.f32 %v2663, %v2670
        %v2682 = vadd.f32 %v2664, %v2670
        %v2683 = vadd.f32 %v2665, %v2670
        %v2684 = vadd.f32 %v2666, %v2670
        %v2685 = vadd.f32 %v2667, %v2670
        %v2686 = vadd.f32 %v2668, %v2670
        %v2687 = vld [vmem:[#allocation4] sm:$0xff]
        %v2688 = vld [vmem:[#allocation4 + $0x8] sm:$0xff]
        %v2689 = vld [vmem:[#allocation4 + $0x10] sm:$0xff]
        %v2690 = vld [vmem:[#allocation4 + $0x18] sm:$0xff]
        %v2691 = vld [vmem:[#allocation4 + $0x20] sm:$0xff]
        %v2692 = vld [vmem:[#allocation4 + $0x28] sm:$0xff]
        %v2693 = vld [vmem:[#allocation4 + $0x30] sm:$0xff]
        %v2694 = vld [vmem:[#allocation4 + $0x38] sm:$0xff]
        %v2695 = vld [vmem:[#allocation4 + $0x40] sm:$0xff]
        %v2696 = vld [vmem:[#allocation4 + $0x48] sm:$0xff]
        %v2697 = vld [vmem:[#allocation4 + $0x50] sm:$0xff]
        %v2698 = vld [vmem:[#allocation4 + $0x58] sm:$0xff]
        %v2699 = vld [vmem:[#allocation4 + $0x60] sm:$0xff]
        %v2700 = vld [vmem:[#allocation4 + $0x68] sm:$0xff]
        %v2701 = vld [vmem:[#allocation4 + $0x70] sm:$0xff]
        %v2702 = vld [vmem:[#allocation4 + $0x78] sm:$0xff]
        %v2703 = vadd.f32 %v2687, %v2671
        %v2704 = vadd.f32 %v2688, %v2672
        %v2705 = vadd.f32 %v2689, %v2673
        %v2706 = vadd.f32 %v2690, %v2674
        %v2707 = vadd.f32 %v2691, %v2675
        %v2708 = vadd.f32 %v2692, %v2676
        %v2709 = vadd.f32 %v2693, %v2677
        %v2710 = vadd.f32 %v2694, %v2678
        %v2711 = vadd.f32 %v2695, %v2679
        %v2712 = vadd.f32 %v2696, %v2680
        %v2713 = vadd.f32 %v2697, %v2681
        %v2714 = vadd.f32 %v2698, %v2682
        %v2715 = vadd.f32 %v2699, %v2683
        %v2716 = vadd.f32 %v2700, %v2684
        %v2717 = vadd.f32 %v2701, %v2685
        %v2718 = vadd.f32 %v2702, %v2686
        %vm2719 = vcmp.ge.f32.partialorder %v2703, 1.0
        %vm2720 = vcmp.ge.f32.partialorder %v2704, 1.0
        %vm2721 = vcmp.ge.f32.partialorder %v2705, 1.0
        %vm2722 = vcmp.ge.f32.partialorder %v2706, 1.0
        %vm2723 = vcmp.ge.f32.partialorder %v2707, 1.0
        %vm2724 = vcmp.ge.f32.partialorder %v2708, 1.0
        %vm2725 = vcmp.ge.f32.partialorder %v2709, 1.0
        %vm2726 = vcmp.ge.f32.partialorder %v2710, 1.0
        %vm2727 = vcmp.ge.f32.partialorder %v2711, 1.0
        %vm2728 = vcmp.ge.f32.partialorder %v2712, 1.0
        %vm2729 = vcmp.ge.f32.partialorder %v2713, 1.0
        %vm2730 = vcmp.ge.f32.partialorder %v2714, 1.0
        %vm2731 = vcmp.ge.f32.partialorder %v2715, 1.0
        %vm2732 = vcmp.ge.f32.partialorder %v2716, 1.0
        %vm2733 = vcmp.ge.f32.partialorder %v2717, 1.0
        %vm2734 = vcmp.ge.f32.partialorder %v2718, 1.0
        %v2735 = vsel %vm2719, 1, 0
        %v2736 = vsel %vm2720, 1, 0
        %v2737 = vsel %vm2721, 1, 0
        %v2738 = vsel %vm2722, 1, 0
        %v2739 = vsel %vm2723, 1, 0
        %v2740 = vsel %vm2724, 1, 0
        %v2741 = vsel %vm2725, 1, 0
        %v2742 = vsel %vm2726, 1, 0
        %v2743 = vsel %vm2727, 1, 0
        %v2744 = vsel %vm2728, 1, 0
        %v2745 = vsel %vm2729, 1, 0
        %v2746 = vsel %vm2730, 1, 0
        %v2747 = vsel %vm2731, 1, 0
        %v2748 = vsel %vm2732, 1, 0
        %v2749 = vsel %vm2733, 1, 0
        %v2750 = vsel %vm2734, 1, 0
        %v2751 = vcvt.s32.f32 %v2735
        %v2752 = vcvt.s32.f32 %v2736
        %v2753 = vcvt.s32.f32 %v2737
        %v2754 = vcvt.s32.f32 %v2738
        %v2755 = vcvt.s32.f32 %v2739
        %v2756 = vcvt.s32.f32 %v2740
        %v2757 = vcvt.s32.f32 %v2741
        %v2758 = vcvt.s32.f32 %v2742
        %v2759 = vcvt.s32.f32 %v2743
        %v2760 = vcvt.s32.f32 %v2744
        %v2761 = vcvt.s32.f32 %v2745
        %v2762 = vcvt.s32.f32 %v2746
        %v2763 = vcvt.s32.f32 %v2747
        %v2764 = vcvt.s32.f32 %v2748
        %v2765 = vcvt.s32.f32 %v2749
        %v2766 = vcvt.s32.f32 %v2750
        %vm2767 = vcmp.gt.f32.partialorder %v2751, 0.0
        %vm2768 = vcmp.gt.f32.partialorder %v2752, 0.0
        %vm2769 = vcmp.gt.f32.partialorder %v2753, 0.0
        %vm2770 = vcmp.gt.f32.partialorder %v2754, 0.0
        %vm2771 = vcmp.gt.f32.partialorder %v2755, 0.0
        %vm2772 = vcmp.gt.f32.partialorder %v2756, 0.0
        %vm2773 = vcmp.gt.f32.partialorder %v2757, 0.0
        %vm2774 = vcmp.gt.f32.partialorder %v2758, 0.0
        %vm2775 = vcmp.gt.f32.partialorder %v2759, 0.0
        %vm2776 = vcmp.gt.f32.partialorder %v2760, 0.0
        %vm2777 = vcmp.gt.f32.partialorder %v2761, 0.0
        %vm2778 = vcmp.gt.f32.partialorder %v2762, 0.0
        %vm2779 = vcmp.gt.f32.partialorder %v2763, 0.0
        %vm2780 = vcmp.gt.f32.partialorder %v2764, 0.0
        %vm2781 = vcmp.gt.f32.partialorder %v2765, 0.0
        %vm2782 = vcmp.gt.f32.partialorder %v2766, 0.0
        %v2783 = vsel %vm2767, 0.0, %v2703
        %v2784 = vsel %vm2768, 0.0, %v2704
        %v2785 = vsel %vm2769, 0.0, %v2705
        %v2786 = vsel %vm2770, 0.0, %v2706
        %v2787 = vsel %vm2771, 0.0, %v2707
        %v2788 = vsel %vm2772, 0.0, %v2708
        %v2789 = vsel %vm2773, 0.0, %v2709
        %v2790 = vsel %vm2774, 0.0, %v2710
        %v2791 = vsel %vm2775, 0.0, %v2711
        %v2792 = vsel %vm2776, 0.0, %v2712
        %v2793 = vsel %vm2777, 0.0, %v2713
        %v2794 = vsel %vm2778, 0.0, %v2714
        %v2795 = vsel %vm2779, 0.0, %v2715
        %v2796 = vsel %vm2780, 0.0, %v2716
        %v2797 = vsel %vm2781, 0.0, %v2717
        %v2798 = vsel %vm2782, 0.0, %v2718
        %2799 = vst [vmem:[#allocation4] sm:$0xff] %v2783
        %2800 = vst [vmem:[#allocation4 + $0x8] sm:$0xff] %v2784
        %2801 = vst [vmem:[#allocation4 + $0x10] sm:$0xff] %v2785
        %2802 = vst [vmem:[#allocation4 + $0x18] sm:$0xff] %v2786
        %2803 = vst [vmem:[#allocation4 + $0x20] sm:$0xff] %v2787
        %2804 = vst [vmem:[#allocation4 + $0x28] sm:$0xff] %v2788
        %2805 = vst [vmem:[#allocation4 + $0x30] sm:$0xff] %v2789
        %2806 = vst [vmem:[#allocation4 + $0x38] sm:$0xff] %v2790
        %2807 = vst [vmem:[#allocation4 + $0x40] sm:$0xff] %v2791
        %2808 = vst [vmem:[#allocation4 + $0x48] sm:$0xff] %v2792
        %2809 = vst [vmem:[#allocation4 + $0x50] sm:$0xff] %v2793
        %2810 = vst [vmem:[#allocation4 + $0x58] sm:$0xff] %v2794
        %2811 = vst [vmem:[#allocation4 + $0x60] sm:$0xff] %v2795
        %2812 = vst [vmem:[#allocation4 + $0x68] sm:$0xff] %v2796
        %2813 = vst [vmem:[#allocation4 + $0x70] sm:$0xff] %v2797
        %2814 = vst [vmem:[#allocation4 + $0x78] sm:$0xff] %v2798
        %2815 = vmatprep.subr.mxu0 0.0
        %2816 = vmatpush1.msra.mxu0 %v2766
        %2817 = vmatprep.subr.mxu0 0.0
        %2818 = vmatpush1.msra.mxu0 %v2765
        %2819 = vmatprep.subr.mxu0 0.0
        %2820 = vmatpush1.msra.mxu0 %v2764
        %2821 = vmatprep.subr.mxu0 0.0
        %2822 = vmatpush1.msra.mxu0 %v2763
        %2823 = vmatprep.subr.mxu0 0.0
        %2824 = vmatpush1.msra.mxu0 %v2762
        %2825 = vmatprep.subr.mxu0 0.0
        %2826 = vmatpush1.msra.mxu0 %v2761
        %2827 = vmatprep.subr.mxu0 0.0
        %2828 = vmatpush1.msra.mxu0 %v2760
        %2829 = vmatprep.subr.mxu0 0.0
        %2830 = vmatpush1.msra.mxu0 %v2759
        %2831 = vmatprep.subr.mxu0 0.0
        %2832 = vmatpush1.msra.mxu0 %v2758
        %2833 = vmatprep.subr.mxu0 0.0
        %2834 = vmatpush1.msra.mxu0 %v2757
        %2835 = vmatprep.subr.mxu0 0.0
        %2836 = vmatpush1.msra.mxu0 %v2756
        %2837 = vmatprep.subr.mxu0 0.0
        %2838 = vmatpush1.msra.mxu0 %v2755
        %2839 = vmatprep.subr.mxu0 0.0
        %2840 = vmatpush1.msra.mxu0 %v2754
        %2841 = vmatprep.subr.mxu0 0.0
        %2842 = vmatpush1.msra.mxu0 %v2753
        %2843 = vmatprep.subr.mxu0 0.0
        %2844 = vmatpush1.msra.mxu0 %v2752
        %2845 = vmatprep.subr.mxu0 0.0
        %2846 = vmatpush1.msra.mxu0 %v2751
        %2847 = vmatprep.subr.mxu0 0.0
        %2848 = vmatpush2.msra.mxu0 0.0
        %2849 = vmatprep.subr.mxu0 0.0
        %2850 = vmatpush2.msra.mxu0 0.0
        %2851 = vmatprep.subr.mxu0 0.0
        %2852 = vmatpush2.msra.mxu0 0.0
        %2853 = vmatprep.subr.mxu0 0.0
        %2854 = vmatpush2.msra.mxu0 0.0
        %2855 = vmatprep.subr.mxu0 0.0
        %2856 = vmatpush2.msra.mxu0 0.0
        %2857 = vmatprep.subr.mxu0 0.0
        %2858 = vmatpush2.msra.mxu0 0.0
        %2859 = vmatprep.subr.mxu0 0.0
        %2860 = vmatpush2.msra.mxu0 0.0
        %2861 = vmatprep.subr.mxu0 0.0
        %2862 = vmatpush2.msra.mxu0 0.0
        %2863 = vmatprep.subr.mxu0 0.0
        %2864 = vmatpush2.msra.mxu0 0.0
        %2865 = vmatprep.subr.mxu0 0.0
        %2866 = vmatpush2.msra.mxu0 0.0
        %2867 = vmatprep.subr.mxu0 0.0
        %2868 = vmatpush2.msra.mxu0 0.0
        %2869 = vmatprep.subr.mxu0 0.0
        %2870 = vmatpush2.msra.mxu0 0.0
        %2871 = vmatprep.subr.mxu0 0.0
        %2872 = vmatpush2.msra.mxu0 0.0
        %2873 = vmatprep.subr.mxu0 0.0
        %2874 = vmatpush2.msra.mxu0 0.0
        %2875 = vmatprep.subr.mxu0 0.0
        %2876 = vmatpush2.msra.mxu0 0.0
        %2877 = vmatprep.subr.mxu0 0.0
        %2878 = vmatpush2.msra.mxu0 0.0
        %2879 = vmatprep.mubr.f32.mxu0 0.0
        %2880 = vmatmul.mubr.f32.gmra.mxu0 %v1669
        %v2881 = vpop.f32.mrf.mxu0
        %v2882 = vadd.f32 0.0, %v2881
        %v2883 = vpop.f32.mrf.mxu0
        %2884 = vmatprep.mubr.f32.mxu0 0.0
        %2885 = vmatmul.mubr.f32.gmra.mxu0 %v1670
        %v2886 = vpop.f32.mrf.mxu0
        %v2887 = vadd.f32 0.0, %v2886
        %v2888 = vpop.f32.mrf.mxu0
        %2889 = vmatprep.mubr.f32.mxu0 0.0
        %2890 = vmatmul.mubr.f32.gmra.mxu0 %v1671
        %v2891 = vpop.f32.mrf.mxu0
        %v2892 = vadd.f32 0.0, %v2891
        %v2893 = vpop.f32.mrf.mxu0
        %2894 = vmatprep.mubr.f32.mxu0 0.0
        %2895 = vmatmul.mubr.f32.gmra.mxu0 %v1672
        %v2896 = vpop.f32.mrf.mxu0
        %v2897 = vadd.f32 0.0, %v2896
        %v2898 = vpop.f32.mrf.mxu0
        %2899 = vmatprep.mubr.f32.mxu0 0.0
        %2900 = vmatmul.mubr.f32.gmra.mxu0 %v1673
        %v2901 = vpop.f32.mrf.mxu0
        %v2902 = vadd.f32 0.0, %v2901
        %v2903 = vpop.f32.mrf.mxu0
        %2904 = vmatprep.mubr.f32.mxu0 0.0
        %2905 = vmatmul.mubr.f32.gmra.mxu0 %v1674
        %v2906 = vpop.f32.mrf.mxu0
        %v2907 = vadd.f32 0.0, %v2906
        %v2908 = vpop.f32.mrf.mxu0
        %2909 = vmatprep.mubr.f32.mxu0 0.0
        %2910 = vmatmul.mubr.f32.gmra.mxu0 %v1675
        %v2911 = vpop.f32.mrf.mxu0
        %v2912 = vadd.f32 0.0, %v2911
        %v2913 = vpop.f32.mrf.mxu0
        %2914 = vmatprep.mubr.f32.mxu0 0.0
        %2915 = vmatmul.mubr.f32.gmra.mxu0 %v1676
        %v2916 = vpop.f32.mrf.mxu0
        %v2917 = vadd.f32 0.0, %v2916
        %v2918 = vpop.f32.mrf.mxu0
        %2919 = vdwg.mxu0
        %2920 = vmatprep.subr.mxu0 0.0
        %2921 = vmatpush1.msra.mxu0 %v1766
        %2922 = vmatprep.subr.mxu0 0.0
        %2923 = vmatpush1.msra.mxu0 %v1765
        %2924 = vmatprep.subr.mxu0 0.0
        %2925 = vmatpush1.msra.mxu0 %v1764
        %2926 = vmatprep.subr.mxu0 0.0
        %2927 = vmatpush1.msra.mxu0 %v1763
        %2928 = vmatprep.subr.mxu0 0.0
        %2929 = vmatpush1.msra.mxu0 %v1762
        %2930 = vmatprep.subr.mxu0 0.0
        %2931 = vmatpush1.msra.mxu0 %v1761
        %2932 = vmatprep.subr.mxu0 0.0
        %2933 = vmatpush1.msra.mxu0 %v1760
        %2934 = vmatprep.subr.mxu0 0.0
        %2935 = vmatpush1.msra.mxu0 %v1759
        %2936 = vmatprep.subr.mxu0 0.0
        %2937 = vmatpush1.msra.mxu0 %v1758
        %2938 = vmatprep.subr.mxu0 0.0
        %2939 = vmatpush1.msra.mxu0 %v1757
        %2940 = vmatprep.subr.mxu0 0.0
        %2941 = vmatpush1.msra.mxu0 %v1756
        %2942 = vmatprep.subr.mxu0 0.0
        %2943 = vmatpush1.msra.mxu0 %v1755
        %2944 = vmatprep.subr.mxu0 0.0
        %2945 = vmatpush1.msra.mxu0 %v1754
        %2946 = vmatprep.subr.mxu0 0.0
        %2947 = vmatpush1.msra.mxu0 %v1753
        %2948 = vmatprep.subr.mxu0 0.0
        %2949 = vmatpush1.msra.mxu0 %v1752
        %2950 = vmatprep.subr.mxu0 0.0
        %2951 = vmatpush1.msra.mxu0 %v1751
        %2952 = vmatprep.subr.mxu0 0.0
        %2953 = vmatpush2.msra.mxu0 0.0
        %2954 = vmatprep.subr.mxu0 0.0
        %2955 = vmatpush2.msra.mxu0 0.0
        %2956 = vmatprep.subr.mxu0 0.0
        %2957 = vmatpush2.msra.mxu0 0.0
        %2958 = vmatprep.subr.mxu0 0.0
        %2959 = vmatpush2.msra.mxu0 0.0
        %2960 = vmatprep.subr.mxu0 0.0
        %2961 = vmatpush2.msra.mxu0 0.0
        %2962 = vmatprep.subr.mxu0 0.0
        %2963 = vmatpush2.msra.mxu0 0.0
        %2964 = vmatprep.subr.mxu0 0.0
        %2965 = vmatpush2.msra.mxu0 0.0
        %2966 = vmatprep.subr.mxu0 0.0
        %2967 = vmatpush2.msra.mxu0 0.0
        %2968 = vmatprep.subr.mxu0 0.0
        %2969 = vmatpush2.msra.mxu0 0.0
        %2970 = vmatprep.subr.mxu0 0.0
        %2971 = vmatpush2.msra.mxu0 0.0
        %2972 = vmatprep.subr.mxu0 0.0
        %2973 = vmatpush2.msra.mxu0 0.0
        %2974 = vmatprep.subr.mxu0 0.0
        %2975 = vmatpush2.msra.mxu0 0.0
        %2976 = vmatprep.subr.mxu0 0.0
        %2977 = vmatpush2.msra.mxu0 0.0
        %2978 = vmatprep.subr.mxu0 0.0
        %2979 = vmatpush2.msra.mxu0 0.0
        %2980 = vmatprep.subr.mxu0 0.0
        %2981 = vmatpush2.msra.mxu0 0.0
        %2982 = vmatprep.subr.mxu0 0.0
        %2983 = vmatpush2.msra.mxu0 0.0
        %2984 = vmatprep.mubr.f32.mxu0 0.0
        %2985 = vmatmul.mubr.f32.gmra.mxu0 %v2882
        %v2986 = vpop.f32.mrf.mxu0
        %v2987 = vadd.f32 0.0, %v2986
        %v2988 = vpop.f32.mrf.mxu0
        %2989 = vmatprep.mubr.f32.mxu0 0.0
        %2990 = vmatmul.mubr.f32.gmra.mxu0 %v2887
        %v2991 = vpop.f32.mrf.mxu0
        %v2992 = vadd.f32 0.0, %v2991
        %v2993 = vpop.f32.mrf.mxu0
        %2994 = vmatprep.mubr.f32.mxu0 0.0
        %2995 = vmatmul.mubr.f32.gmra.mxu0 %v2892
        %v2996 = vpop.f32.mrf.mxu0
        %v2997 = vadd.f32 0.0, %v2996
        %v2998 = vpop.f32.mrf.mxu0
        %2999 = vmatprep.mubr.f32.mxu0 0.0
        %3000 = vmatmul.mubr.f32.gmra.mxu0 %v2897
        %v3001 = vpop.f32.mrf.mxu0
        %v3002 = vadd.f32 0.0, %v3001
        %v3003 = vpop.f32.mrf.mxu0
        %3004 = vmatprep.mubr.f32.mxu0 0.0
        %3005 = vmatmul.mubr.f32.gmra.mxu0 %v2902
        %v3006 = vpop.f32.mrf.mxu0
        %v3007 = vadd.f32 0.0, %v3006
        %v3008 = vpop.f32.mrf.mxu0
        %3009 = vmatprep.mubr.f32.mxu0 0.0
        %3010 = vmatmul.mubr.f32.gmra.mxu0 %v2907
        %v3011 = vpop.f32.mrf.mxu0
        %v3012 = vadd.f32 0.0, %v3011
        %v3013 = vpop.f32.mrf.mxu0
        %3014 = vmatprep.mubr.f32.mxu0 0.0
        %3015 = vmatmul.mubr.f32.gmra.mxu0 %v2912
        %v3016 = vpop.f32.mrf.mxu0
        %v3017 = vadd.f32 0.0, %v3016
        %v3018 = vpop.f32.mrf.mxu0
        %3019 = vmatprep.mubr.f32.mxu0 0.0
        %3020 = vmatmul.mubr.f32.gmra.mxu0 %v2917
        %v3021 = vpop.f32.mrf.mxu0
        %v3022 = vadd.f32 0.0, %v3021
        %v3023 = vpop.f32.mrf.mxu0
        %3024 = vdwg.mxu0
        %vm3025 = vcmp.gt.f32.partialorder %v2987, 0.5
        %vm3026 = vcmp.gt.f32.partialorder %v2992, 0.5
        %vm3027 = vcmp.gt.f32.partialorder %v2997, 0.5
        %vm3028 = vcmp.gt.f32.partialorder %v3002, 0.5
        %vm3029 = vcmp.gt.f32.partialorder %v3007, 0.5
        %vm3030 = vcmp.gt.f32.partialorder %v3012, 0.5
        %vm3031 = vcmp.gt.f32.partialorder %v3017, 0.5
        %vm3032 = vcmp.gt.f32.partialorder %v3022, 0.5
        %v3033 = vsel %vm3025, 1, 0
        %v3034 = vsel %vm3026, 1, 0
        %v3035 = vsel %vm3027, 1, 0
        %v3036 = vsel %vm3028, 1, 0
        %v3037 = vsel %vm3029, 1, 0
        %v3038 = vsel %vm3030, 1, 0
        %v3039 = vsel %vm3031, 1, 0
        %v3040 = vsel %vm3032, 1, 0
        %v3041 = vcvt.s32.f32 %v3033
        %v3042 = vcvt.s32.f32 %v3034
        %v3043 = vcvt.s32.f32 %v3035
        %v3044 = vcvt.s32.f32 %v3036
        %v3045 = vcvt.s32.f32 %v3037
        %v3046 = vcvt.s32.f32 %v3038
        %v3047 = vcvt.s32.f32 %v3039
        %v3048 = vcvt.s32.f32 %v3040
        %v3049 = vpack.c.bf16 %v3042, %v3041
        %v3050 = vpack.c.bf16 %v3044, %v3043
        %v3051 = vpack.c.bf16 %v3046, %v3045
        %v3052 = vpack.c.bf16 %v3048, %v3047
        %v3057 = vunpack.c.l.b16 %v3049
        %v3058 = vunpack.c.h.b16 %v3049
        %v3059 = vunpack.c.l.b16 %v3050
        %v3060 = vunpack.c.h.b16 %v3050
        %v3061 = vunpack.c.l.b16 %v3051
        %v3062 = vunpack.c.h.b16 %v3051
        %v3063 = vunpack.c.l.b16 %v3052
        %v3064 = vunpack.c.h.b16 %v3052
        %v3065 = vpack.c.b16 %v3057, %v3057
        %v3066 = vpack.c.b16 %v3058, %v3058
        %v3067 = vpack.c.b16 %v3059, %v3059
        %v3068 = vpack.c.b16 %v3060, %v3060
        %v3069 = vpack.c.b16 %v3061, %v3061
        %v3070 = vpack.c.b16 %v3062, %v3062
        %v3071 = vpack.c.b16 %v3063, %v3063
        %v3072 = vpack.c.b16 %v3064, %v3064
        %vm3081 = vcmask 519168
        %3082 = vst.msk [vmem:[%s271] sm:$0xf] %vm3081, %v3065
        %3083 = vst.msk [vmem:[%s271 + $0x4] sm:$0xf] %vm3081, %v3066
        %3084 = vst.msk [vmem:[%s271 + $0x8] sm:$0xf] %vm3081, %v3067
        %3085 = vst.msk [vmem:[%s271 + $0xc] sm:$0xf] %vm3081, %v3068
        %3086 = vst.msk [vmem:[%s271 + $0x10] sm:$0xf] %vm3081, %v3069
        %3087 = vst.msk [vmem:[%s271 + $0x14] sm:$0xf] %vm3081, %v3070
        %3088 = vst.msk [vmem:[%s271 + $0x18] sm:$0xf] %vm3081, %v3071
        %3089 = vst.msk [vmem:[%s271 + $0x1c] sm:$0xf] %vm3081, %v3072
        %s3090 = sld [smem:[#allocation5 + $0x80]]
        %v3091 = vld [vmem:[#allocation3] sm:$0xff]
        %v3092 = vld [vmem:[#allocation3 + $0x8] sm:$0xff]
        %v3093 = vld [vmem:[#allocation3 + $0x10] sm:$0xff]
        %v3094 = vld [vmem:[#allocation3 + $0x18] sm:$0xff]
        %v3095 = vld [vmem:[#allocation3 + $0x20] sm:$0xff]
        %v3096 = vld [vmem:[#allocation3 + $0x28] sm:$0xff]
        %v3097 = vld [vmem:[#allocation3 + $0x30] sm:$0xff]
        %v3098 = vld [vmem:[#allocation3 + $0x38] sm:$0xff]
        %v3099 = vld [vmem:[#allocation3 + $0x40] sm:$0xff]
        %v3100 = vld [vmem:[#allocation3 + $0x48] sm:$0xff]
        %v3101 = vld [vmem:[#allocation3 + $0x50] sm:$0xff]
        %v3102 = vld [vmem:[#allocation3 + $0x58] sm:$0xff]
        %v3103 = vld [vmem:[#allocation3 + $0x60] sm:$0xff]
        %v3104 = vld [vmem:[#allocation3 + $0x68] sm:$0xff]
        %v3105 = vld [vmem:[#allocation3 + $0x70] sm:$0xff]
        %v3106 = vld [vmem:[#allocation3 + $0x78] sm:$0xff]
        %v3107 = vstv %s3090
        %v3108 = vmul.f32 %v3107, %v3091
        %v3109 = vmul.f32 %v3107, %v3092
        %v3110 = vmul.f32 %v3107, %v3093
        %v3111 = vmul.f32 %v3107, %v3094
        %v3112 = vmul.f32 %v3107, %v3095
        %v3113 = vmul.f32 %v3107, %v3096
        %v3114 = vmul.f32 %v3107, %v3097
        %v3115 = vmul.f32 %v3107, %v3098
        %v3116 = vmul.f32 %v3107, %v3099
        %v3117 = vmul.f32 %v3107, %v3100
        %v3118 = vmul.f32 %v3107, %v3101
        %v3119 = vmul.f32 %v3107, %v3102
        %v3120 = vmul.f32 %v3107, %v3103
        %v3121 = vmul.f32 %v3107, %v3104
        %v3122 = vmul.f32 %v3107, %v3105
        %v3123 = vmul.f32 %v3107, %v3106
        %s3124 = sld [smem:[#allocation5 + $0x81]]
        %v3125 = vld [vmem:[%s760] sm:$0xff]
        %v3126 = vld [vmem:[%s760 + $0x8] sm:$0xff]
        %v3127 = vld [vmem:[%s760 + $0x10] sm:$0xff]
        %v3128 = vld [vmem:[%s760 + $0x18] sm:$0xff]
        %v3129 = vld [vmem:[%s760 + $0x20] sm:$0xff]
        %v3130 = vld [vmem:[%s760 + $0x28] sm:$0xff]
        %v3131 = vld [vmem:[%s760 + $0x30] sm:$0xff]
        %v3132 = vld [vmem:[%s760 + $0x38] sm:$0xff]
        %v3133 = vld [vmem:[%s760 + $0x40] sm:$0xff]
        %v3134 = vld [vmem:[%s760 + $0x48] sm:$0xff]
        %v3135 = vld [vmem:[%s760 + $0x50] sm:$0xff]
        %v3136 = vld [vmem:[%s760 + $0x58] sm:$0xff]
        %v3137 = vld [vmem:[%s760 + $0x60] sm:$0xff]
        %v3138 = vld [vmem:[%s760 + $0x68] sm:$0xff]
        %v3139 = vld [vmem:[%s760 + $0x70] sm:$0xff]
        %v3140 = vld [vmem:[%s760 + $0x78] sm:$0xff]
        %v3141 = vstv %s3124
        %v3142 = vmul.f32 %v3141, %v3125
        %v3143 = vmul.f32 %v3141, %v3126
        %v3144 = vmul.f32 %v3141, %v3127
        %v3145 = vmul.f32 %v3141, %v3128
        %v3146 = vmul.f32 %v3141, %v3129
        %v3147 = vmul.f32 %v3141, %v3130
        %v3148 = vmul.f32 %v3141, %v3131
        %v3149 = vmul.f32 %v3141, %v3132
        %v3150 = vmul.f32 %v3141, %v3133
        %v3151 = vmul.f32 %v3141, %v3134
        %v3152 = vmul.f32 %v3141, %v3135
        %v3153 = vmul.f32 %v3141, %v3136
        %v3154 = vmul.f32 %v3141, %v3137
        %v3155 = vmul.f32 %v3141, %v3138
        %v3156 = vmul.f32 %v3141, %v3139
        %v3157 = vmul.f32 %v3141, %v3140
        %v3158 = vadd.f32 %v3108, %v3142
        %v3159 = vadd.f32 %v3109, %v3143
        %v3160 = vadd.f32 %v3110, %v3144
        %v3161 = vadd.f32 %v3111, %v3145
        %v3162 = vadd.f32 %v3112, %v3146
        %v3163 = vadd.f32 %v3113, %v3147
        %v3164 = vadd.f32 %v3114, %v3148
        %v3165 = vadd.f32 %v3115, %v3149
        %v3166 = vadd.f32 %v3116, %v3150
        %v3167 = vadd.f32 %v3117, %v3151
        %v3168 = vadd.f32 %v3118, %v3152
        %v3169 = vadd.f32 %v3119, %v3153
        %v3170 = vadd.f32 %v3120, %v3154
        %v3171 = vadd.f32 %v3121, %v3155
        %v3172 = vadd.f32 %v3122, %v3156
        %v3173 = vadd.f32 %v3123, %v3157
        %s3174 = sld [smem:[#allocation5 + $0x82]]
        %v3175 = vld [vmem:[%s874] sm:$0xff]
        %v3176 = vld [vmem:[%s874 + $0x8] sm:$0xff]
        %v3177 = vld [vmem:[%s874 + $0x10] sm:$0xff]
        %v3178 = vld [vmem:[%s874 + $0x18] sm:$0xff]
        %v3179 = vld [vmem:[%s874 + $0x20] sm:$0xff]
        %v3180 = vld [vmem:[%s874 + $0x28] sm:$0xff]
        %v3181 = vld [vmem:[%s874 + $0x30] sm:$0xff]
        %v3182 = vld [vmem:[%s874 + $0x38] sm:$0xff]
        %v3183 = vld [vmem:[%s874 + $0x40] sm:$0xff]
        %v3184 = vld [vmem:[%s874 + $0x48] sm:$0xff]
        %v3185 = vld [vmem:[%s874 + $0x50] sm:$0xff]
        %v3186 = vld [vmem:[%s874 + $0x58] sm:$0xff]
        %v3187 = vld [vmem:[%s874 + $0x60] sm:$0xff]
        %v3188 = vld [vmem:[%s874 + $0x68] sm:$0xff]
        %v3189 = vld [vmem:[%s874 + $0x70] sm:$0xff]
        %v3190 = vld [vmem:[%s874 + $0x78] sm:$0xff]
        %v3191 = vstv %s3174
        %v3192 = vmul.f32 %v3191, %v3175
        %v3193 = vmul.f32 %v3191, %v3176
        %v3194 = vmul.f32 %v3191, %v3177
        %v3195 = vmul.f32 %v3191, %v3178
        %v3196 = vmul.f32 %v3191, %v3179
        %v3197 = vmul.f32 %v3191, %v3180
        %v3198 = vmul.f32 %v3191, %v3181
        %v3199 = vmul.f32 %v3191, %v3182
        %v3200 = vmul.f32 %v3191, %v3183
        %v3201 = vmul.f32 %v3191, %v3184
        %v3202 = vmul.f32 %v3191, %v3185
        %v3203 = vmul.f32 %v3191, %v3186
        %v3204 = vmul.f32 %v3191, %v3187
        %v3205 = vmul.f32 %v3191, %v3188
        %v3206 = vmul.f32 %v3191, %v3189
        %v3207 = vmul.f32 %v3191, %v3190
        %v3208 = vadd.f32 %v3158, %v3192
        %v3209 = vadd.f32 %v3159, %v3193
        %v3210 = vadd.f32 %v3160, %v3194
        %v3211 = vadd.f32 %v3161, %v3195
        %v3212 = vadd.f32 %v3162, %v3196
        %v3213 = vadd.f32 %v3163, %v3197
        %v3214 = vadd.f32 %v3164, %v3198
        %v3215 = vadd.f32 %v3165, %v3199
        %v3216 = vadd.f32 %v3166, %v3200
        %v3217 = vadd.f32 %v3167, %v3201
        %v3218 = vadd.f32 %v3168, %v3202
        %v3219 = vadd.f32 %v3169, %v3203
        %v3220 = vadd.f32 %v3170, %v3204
        %v3221 = vadd.f32 %v3171, %v3205
        %v3222 = vadd.f32 %v3172, %v3206
        %v3223 = vadd.f32 %v3173, %v3207
        %s3224 = sld [smem:[#allocation5 + $0x83]]
        %v3225 = vld [vmem:[%s891] sm:$0xff]
        %v3226 = vld [vmem:[%s891 + $0x8] sm:$0xff]
        %v3227 = vld [vmem:[%s891 + $0x10] sm:$0xff]
        %v3228 = vld [vmem:[%s891 + $0x18] sm:$0xff]
        %v3229 = vld [vmem:[%s891 + $0x20] sm:$0xff]
        %v3230 = vld [vmem:[%s891 + $0x28] sm:$0xff]
        %v3231 = vld [vmem:[%s891 + $0x30] sm:$0xff]
        %v3232 = vld [vmem:[%s891 + $0x38] sm:$0xff]
        %v3233 = vld [vmem:[%s891 + $0x40] sm:$0xff]
        %v3234 = vld [vmem:[%s891 + $0x48] sm:$0xff]
        %v3235 = vld [vmem:[%s891 + $0x50] sm:$0xff]
        %v3236 = vld [vmem:[%s891 + $0x58] sm:$0xff]
        %v3237 = vld [vmem:[%s891 + $0x60] sm:$0xff]
        %v3238 = vld [vmem:[%s891 + $0x68] sm:$0xff]
        %v3239 = vld [vmem:[%s891 + $0x70] sm:$0xff]
        %v3240 = vld [vmem:[%s891 + $0x78] sm:$0xff]
        %v3241 = vstv %s3224
        %v3242 = vmul.f32 %v3241, %v3225
        %v3243 = vmul.f32 %v3241, %v3226
        %v3244 = vmul.f32 %v3241, %v3227
        %v3245 = vmul.f32 %v3241, %v3228
        %v3246 = vmul.f32 %v3241, %v3229
        %v3247 = vmul.f32 %v3241, %v3230
        %v3248 = vmul.f32 %v3241, %v3231
        %v3249 = vmul.f32 %v3241, %v3232
        %v3250 = vmul.f32 %v3241, %v3233
        %v3251 = vmul.f32 %v3241, %v3234
        %v3252 = vmul.f32 %v3241, %v3235
        %v3253 = vmul.f32 %v3241, %v3236
        %v3254 = vmul.f32 %v3241, %v3237
        %v3255 = vmul.f32 %v3241, %v3238
        %v3256 = vmul.f32 %v3241, %v3239
        %v3257 = vmul.f32 %v3241, %v3240
        %v3258 = vadd.f32 %v3208, %v3242
        %v3259 = vadd.f32 %v3209, %v3243
        %v3260 = vadd.f32 %v3210, %v3244
        %v3261 = vadd.f32 %v3211, %v3245
        %v3262 = vadd.f32 %v3212, %v3246
        %v3263 = vadd.f32 %v3213, %v3247
        %v3264 = vadd.f32 %v3214, %v3248
        %v3265 = vadd.f32 %v3215, %v3249
        %v3266 = vadd.f32 %v3216, %v3250
        %v3267 = vadd.f32 %v3217, %v3251
        %v3268 = vadd.f32 %v3218, %v3252
        %v3269 = vadd.f32 %v3219, %v3253
        %v3270 = vadd.f32 %v3220, %v3254
        %v3271 = vadd.f32 %v3221, %v3255
        %v3272 = vadd.f32 %v3222, %v3256
        %v3273 = vadd.f32 %v3223, %v3257
        %s3274 = sld [smem:[#allocation5 + $0x84]]
        %v3275 = vld [vmem:[%s917] sm:$0xff]
        %v3276 = vld [vmem:[%s917 + $0x8] sm:$0xff]
        %v3277 = vld [vmem:[%s917 + $0x10] sm:$0xff]
        %v3278 = vld [vmem:[%s917 + $0x18] sm:$0xff]
        %v3279 = vld [vmem:[%s917 + $0x20] sm:$0xff]
        %v3280 = vld [vmem:[%s917 + $0x28] sm:$0xff]
        %v3281 = vld [vmem:[%s917 + $0x30] sm:$0xff]
        %v3282 = vld [vmem:[%s917 + $0x38] sm:$0xff]
        %v3283 = vld [vmem:[%s917 + $0x40] sm:$0xff]
        %v3284 = vld [vmem:[%s917 + $0x48] sm:$0xff]
        %v3285 = vld [vmem:[%s917 + $0x50] sm:$0xff]
        %v3286 = vld [vmem:[%s917 + $0x58] sm:$0xff]
        %v3287 = vld [vmem:[%s917 + $0x60] sm:$0xff]
        %v3288 = vld [vmem:[%s917 + $0x68] sm:$0xff]
        %v3289 = vld [vmem:[%s917 + $0x70] sm:$0xff]
        %v3290 = vld [vmem:[%s917 + $0x78] sm:$0xff]
        %v3291 = vstv %s3274
        %v3292 = vmul.f32 %v3291, %v3275
        %v3293 = vmul.f32 %v3291, %v3276
        %v3294 = vmul.f32 %v3291, %v3277
        %v3295 = vmul.f32 %v3291, %v3278
        %v3296 = vmul.f32 %v3291, %v3279
        %v3297 = vmul.f32 %v3291, %v3280
        %v3298 = vmul.f32 %v3291, %v3281
        %v3299 = vmul.f32 %v3291, %v3282
        %v3300 = vmul.f32 %v3291, %v3283
        %v3301 = vmul.f32 %v3291, %v3284
        %v3302 = vmul.f32 %v3291, %v3285
        %v3303 = vmul.f32 %v3291, %v3286
        %v3304 = vmul.f32 %v3291, %v3287
        %v3305 = vmul.f32 %v3291, %v3288
        %v3306 = vmul.f32 %v3291, %v3289
        %v3307 = vmul.f32 %v3291, %v3290
        %v3308 = vadd.f32 %v3258, %v3292
        %v3309 = vadd.f32 %v3259, %v3293
        %v3310 = vadd.f32 %v3260, %v3294
        %v3311 = vadd.f32 %v3261, %v3295
        %v3312 = vadd.f32 %v3262, %v3296
        %v3313 = vadd.f32 %v3263, %v3297
        %v3314 = vadd.f32 %v3264, %v3298
        %v3315 = vadd.f32 %v3265, %v3299
        %v3316 = vadd.f32 %v3266, %v3300
        %v3317 = vadd.f32 %v3267, %v3301
        %v3318 = vadd.f32 %v3268, %v3302
        %v3319 = vadd.f32 %v3269, %v3303
        %v3320 = vadd.f32 %v3270, %v3304
        %v3321 = vadd.f32 %v3271, %v3305
        %v3322 = vadd.f32 %v3272, %v3306
        %v3323 = vadd.f32 %v3273, %v3307
        %s3324 = sld [smem:[#allocation5 + $0x85]]
        %v3325 = vld [vmem:[%s941] sm:$0xff]
        %v3326 = vld [vmem:[%s941 + $0x8] sm:$0xff]
        %v3327 = vld [vmem:[%s941 + $0x10] sm:$0xff]
        %v3328 = vld [vmem:[%s941 + $0x18] sm:$0xff]
        %v3329 = vld [vmem:[%s941 + $0x20] sm:$0xff]
        %v3330 = vld [vmem:[%s941 + $0x28] sm:$0xff]
        %v3331 = vld [vmem:[%s941 + $0x30] sm:$0xff]
        %v3332 = vld [vmem:[%s941 + $0x38] sm:$0xff]
        %v3333 = vld [vmem:[%s941 + $0x40] sm:$0xff]
        %v3334 = vld [vmem:[%s941 + $0x48] sm:$0xff]
        %v3335 = vld [vmem:[%s941 + $0x50] sm:$0xff]
        %v3336 = vld [vmem:[%s941 + $0x58] sm:$0xff]
        %v3337 = vld [vmem:[%s941 + $0x60] sm:$0xff]
        %v3338 = vld [vmem:[%s941 + $0x68] sm:$0xff]
        %v3339 = vld [vmem:[%s941 + $0x70] sm:$0xff]
        %v3340 = vld [vmem:[%s941 + $0x78] sm:$0xff]
        %v3341 = vstv %s3324
        %v3342 = vmul.f32 %v3341, %v3325
        %v3343 = vmul.f32 %v3341, %v3326
        %v3344 = vmul.f32 %v3341, %v3327
        %v3345 = vmul.f32 %v3341, %v3328
        %v3346 = vmul.f32 %v3341, %v3329
        %v3347 = vmul.f32 %v3341, %v3330
        %v3348 = vmul.f32 %v3341, %v3331
        %v3349 = vmul.f32 %v3341, %v3332
        %v3350 = vmul.f32 %v3341, %v3333
        %v3351 = vmul.f32 %v3341, %v3334
        %v3352 = vmul.f32 %v3341, %v3335
        %v3353 = vmul.f32 %v3341, %v3336
        %v3354 = vmul.f32 %v3341, %v3337
        %v3355 = vmul.f32 %v3341, %v3338
        %v3356 = vmul.f32 %v3341, %v3339
        %v3357 = vmul.f32 %v3341, %v3340
        %v3358 = vadd.f32 %v3308, %v3342
        %v3359 = vadd.f32 %v3309, %v3343
        %v3360 = vadd.f32 %v3310, %v3344
        %v3361 = vadd.f32 %v3311, %v3345
        %v3362 = vadd.f32 %v3312, %v3346
        %v3363 = vadd.f32 %v3313, %v3347
        %v3364 = vadd.f32 %v3314, %v3348
        %v3365 = vadd.f32 %v3315, %v3349
        %v3366 = vadd.f32 %v3316, %v3350
        %v3367 = vadd.f32 %v3317, %v3351
        %v3368 = vadd.f32 %v3318, %v3352
        %v3369 = vadd.f32 %v3319, %v3353
        %v3370 = vadd.f32 %v3320, %v3354
        %v3371 = vadd.f32 %v3321, %v3355
        %v3372 = vadd.f32 %v3322, %v3356
        %v3373 = vadd.f32 %v3323, %v3357
        %s3374 = sld [smem:[#allocation5 + $0x86]]
        %v3375 = vld [vmem:[%s959] sm:$0xff]
        %v3376 = vld [vmem:[%s959 + $0x8] sm:$0xff]
        %v3377 = vld [vmem:[%s959 + $0x10] sm:$0xff]
        %v3378 = vld [vmem:[%s959 + $0x18] sm:$0xff]
        %v3379 = vld [vmem:[%s959 + $0x20] sm:$0xff]
        %v3380 = vld [vmem:[%s959 + $0x28] sm:$0xff]
        %v3381 = vld [vmem:[%s959 + $0x30] sm:$0xff]
        %v3382 = vld [vmem:[%s959 + $0x38] sm:$0xff]
        %v3383 = vld [vmem:[%s959 + $0x40] sm:$0xff]
        %v3384 = vld [vmem:[%s959 + $0x48] sm:$0xff]
        %v3385 = vld [vmem:[%s959 + $0x50] sm:$0xff]
        %v3386 = vld [vmem:[%s959 + $0x58] sm:$0xff]
        %v3387 = vld [vmem:[%s959 + $0x60] sm:$0xff]
        %v3388 = vld [vmem:[%s959 + $0x68] sm:$0xff]
        %v3389 = vld [vmem:[%s959 + $0x70] sm:$0xff]
        %v3390 = vld [vmem:[%s959 + $0x78] sm:$0xff]
        %v3391 = vstv %s3374
        %v3392 = vmul.f32 %v3391, %v3375
        %v3393 = vmul.f32 %v3391, %v3376
        %v3394 = vmul.f32 %v3391, %v3377
        %v3395 = vmul.f32 %v3391, %v3378
        %v3396 = vmul.f32 %v3391, %v3379
        %v3397 = vmul.f32 %v3391, %v3380
        %v3398 = vmul.f32 %v3391, %v3381
        %v3399 = vmul.f32 %v3391, %v3382
        %v3400 = vmul.f32 %v3391, %v3383
        %v3401 = vmul.f32 %v3391, %v3384
        %v3402 = vmul.f32 %v3391, %v3385
        %v3403 = vmul.f32 %v3391, %v3386
        %v3404 = vmul.f32 %v3391, %v3387
        %v3405 = vmul.f32 %v3391, %v3388
        %v3406 = vmul.f32 %v3391, %v3389
        %v3407 = vmul.f32 %v3391, %v3390
        %v3408 = vadd.f32 %v3358, %v3392
        %v3409 = vadd.f32 %v3359, %v3393
        %v3410 = vadd.f32 %v3360, %v3394
        %v3411 = vadd.f32 %v3361, %v3395
        %v3412 = vadd.f32 %v3362, %v3396
        %v3413 = vadd.f32 %v3363, %v3397
        %v3414 = vadd.f32 %v3364, %v3398
        %v3415 = vadd.f32 %v3365, %v3399
        %v3416 = vadd.f32 %v3366, %v3400
        %v3417 = vadd.f32 %v3367, %v3401
        %v3418 = vadd.f32 %v3368, %v3402
        %v3419 = vadd.f32 %v3369, %v3403
        %v3420 = vadd.f32 %v3370, %v3404
        %v3421 = vadd.f32 %v3371, %v3405
        %v3422 = vadd.f32 %v3372, %v3406
        %v3423 = vadd.f32 %v3373, %v3407
        %s3424 = sld [smem:[#allocation5 + $0x87]]
        %v3425 = vld [vmem:[%s977] sm:$0xff]
        %v3426 = vld [vmem:[%s977 + $0x8] sm:$0xff]
        %v3427 = vld [vmem:[%s977 + $0x10] sm:$0xff]
        %v3428 = vld [vmem:[%s977 + $0x18] sm:$0xff]
        %v3429 = vld [vmem:[%s977 + $0x20] sm:$0xff]
        %v3430 = vld [vmem:[%s977 + $0x28] sm:$0xff]
        %v3431 = vld [vmem:[%s977 + $0x30] sm:$0xff]
        %v3432 = vld [vmem:[%s977 + $0x38] sm:$0xff]
        %v3433 = vld [vmem:[%s977 + $0x40] sm:$0xff]
        %v3434 = vld [vmem:[%s977 + $0x48] sm:$0xff]
        %v3435 = vld [vmem:[%s977 + $0x50] sm:$0xff]
        %v3436 = vld [vmem:[%s977 + $0x58] sm:$0xff]
        %v3437 = vld [vmem:[%s977 + $0x60] sm:$0xff]
        %v3438 = vld [vmem:[%s977 + $0x68] sm:$0xff]
        %v3439 = vld [vmem:[%s977 + $0x70] sm:$0xff]
        %v3440 = vld [vmem:[%s977 + $0x78] sm:$0xff]
        %v3441 = vstv %s3424
        %v3442 = vmul.f32 %v3441, %v3425
        %v3443 = vmul.f32 %v3441, %v3426
        %v3444 = vmul.f32 %v3441, %v3427
        %v3445 = vmul.f32 %v3441, %v3428
        %v3446 = vmul.f32 %v3441, %v3429
        %v3447 = vmul.f32 %v3441, %v3430
        %v3448 = vmul.f32 %v3441, %v3431
        %v3449 = vmul.f32 %v3441, %v3432
        %v3450 = vmul.f32 %v3441, %v3433
        %v3451 = vmul.f32 %v3441, %v3434
        %v3452 = vmul.f32 %v3441, %v3435
        %v3453 = vmul.f32 %v3441, %v3436
        %v3454 = vmul.f32 %v3441, %v3437
        %v3455 = vmul.f32 %v3441, %v3438
        %v3456 = vmul.f32 %v3441, %v3439
        %v3457 = vmul.f32 %v3441, %v3440
        %v3458 = vadd.f32 %v3408, %v3442
        %v3459 = vadd.f32 %v3409, %v3443
        %v3460 = vadd.f32 %v3410, %v3444
        %v3461 = vadd.f32 %v3411, %v3445
        %v3462 = vadd.f32 %v3412, %v3446
        %v3463 = vadd.f32 %v3413, %v3447
        %v3464 = vadd.f32 %v3414, %v3448
        %v3465 = vadd.f32 %v3415, %v3449
        %v3466 = vadd.f32 %v3416, %v3450
        %v3467 = vadd.f32 %v3417, %v3451
        %v3468 = vadd.f32 %v3418, %v3452
        %v3469 = vadd.f32 %v3419, %v3453
        %v3470 = vadd.f32 %v3420, %v3454
        %v3471 = vadd.f32 %v3421, %v3455
        %v3472 = vadd.f32 %v3422, %v3456
        %v3473 = vadd.f32 %v3423, %v3457
        %s3474 = sld [smem:[#allocation5 + $0x88]]
        %v3475 = vld [vmem:[%s995] sm:$0xff]
        %v3476 = vld [vmem:[%s995 + $0x8] sm:$0xff]
        %v3477 = vld [vmem:[%s995 + $0x10] sm:$0xff]
        %v3478 = vld [vmem:[%s995 + $0x18] sm:$0xff]
        %v3479 = vld [vmem:[%s995 + $0x20] sm:$0xff]
        %v3480 = vld [vmem:[%s995 + $0x28] sm:$0xff]
        %v3481 = vld [vmem:[%s995 + $0x30] sm:$0xff]
        %v3482 = vld [vmem:[%s995 + $0x38] sm:$0xff]
        %v3483 = vld [vmem:[%s995 + $0x40] sm:$0xff]
        %v3484 = vld [vmem:[%s995 + $0x48] sm:$0xff]
        %v3485 = vld [vmem:[%s995 + $0x50] sm:$0xff]
        %v3486 = vld [vmem:[%s995 + $0x58] sm:$0xff]
        %v3487 = vld [vmem:[%s995 + $0x60] sm:$0xff]
        %v3488 = vld [vmem:[%s995 + $0x68] sm:$0xff]
        %v3489 = vld [vmem:[%s995 + $0x70] sm:$0xff]
        %v3490 = vld [vmem:[%s995 + $0x78] sm:$0xff]
        %v3491 = vstv %s3474
        %v3492 = vmul.f32 %v3491, %v3475
        %v3493 = vmul.f32 %v3491, %v3476
        %v3494 = vmul.f32 %v3491, %v3477
        %v3495 = vmul.f32 %v3491, %v3478
        %v3496 = vmul.f32 %v3491, %v3479
        %v3497 = vmul.f32 %v3491, %v3480
        %v3498 = vmul.f32 %v3491, %v3481
        %v3499 = vmul.f32 %v3491, %v3482
        %v3500 = vmul.f32 %v3491, %v3483
        %v3501 = vmul.f32 %v3491, %v3484
        %v3502 = vmul.f32 %v3491, %v3485
        %v3503 = vmul.f32 %v3491, %v3486
        %v3504 = vmul.f32 %v3491, %v3487
        %v3505 = vmul.f32 %v3491, %v3488
        %v3506 = vmul.f32 %v3491, %v3489
        %v3507 = vmul.f32 %v3491, %v3490
        %v3508 = vadd.f32 %v3458, %v3492
        %v3509 = vadd.f32 %v3459, %v3493
        %v3510 = vadd.f32 %v3460, %v3494
        %v3511 = vadd.f32 %v3461, %v3495
        %v3512 = vadd.f32 %v3462, %v3496
        %v3513 = vadd.f32 %v3463, %v3497
        %v3514 = vadd.f32 %v3464, %v3498
        %v3515 = vadd.f32 %v3465, %v3499
        %v3516 = vadd.f32 %v3466, %v3500
        %v3517 = vadd.f32 %v3467, %v3501
        %v3518 = vadd.f32 %v3468, %v3502
        %v3519 = vadd.f32 %v3469, %v3503
        %v3520 = vadd.f32 %v3470, %v3504
        %v3521 = vadd.f32 %v3471, %v3505
        %v3522 = vadd.f32 %v3472, %v3506
        %v3523 = vadd.f32 %v3473, %v3507
        %s3524 = sld [smem:[#allocation5 + $0x89]]
        %v3525 = vld [vmem:[%s1213] sm:$0xff]
        %v3526 = vld [vmem:[%s1213 + $0x8] sm:$0xff]
        %v3527 = vld [vmem:[%s1213 + $0x10] sm:$0xff]
        %v3528 = vld [vmem:[%s1213 + $0x18] sm:$0xff]
        %v3529 = vld [vmem:[%s1213 + $0x20] sm:$0xff]
        %v3530 = vld [vmem:[%s1213 + $0x28] sm:$0xff]
        %v3531 = vld [vmem:[%s1213 + $0x30] sm:$0xff]
        %v3532 = vld [vmem:[%s1213 + $0x38] sm:$0xff]
        %v3533 = vld [vmem:[%s1213 + $0x40] sm:$0xff]
        %v3534 = vld [vmem:[%s1213 + $0x48] sm:$0xff]
        %v3535 = vld [vmem:[%s1213 + $0x50] sm:$0xff]
        %v3536 = vld [vmem:[%s1213 + $0x58] sm:$0xff]
        %v3537 = vld [vmem:[%s1213 + $0x60] sm:$0xff]
        %v3538 = vld [vmem:[%s1213 + $0x68] sm:$0xff]
        %v3539 = vld [vmem:[%s1213 + $0x70] sm:$0xff]
        %v3540 = vld [vmem:[%s1213 + $0x78] sm:$0xff]
        %v3541 = vstv %s3524
        %v3542 = vmul.f32 %v3541, %v3525
        %v3543 = vmul.f32 %v3541, %v3526
        %v3544 = vmul.f32 %v3541, %v3527
        %v3545 = vmul.f32 %v3541, %v3528
        %v3546 = vmul.f32 %v3541, %v3529
        %v3547 = vmul.f32 %v3541, %v3530
        %v3548 = vmul.f32 %v3541, %v3531
        %v3549 = vmul.f32 %v3541, %v3532
        %v3550 = vmul.f32 %v3541, %v3533
        %v3551 = vmul.f32 %v3541, %v3534
        %v3552 = vmul.f32 %v3541, %v3535
        %v3553 = vmul.f32 %v3541, %v3536
        %v3554 = vmul.f32 %v3541, %v3537
        %v3555 = vmul.f32 %v3541, %v3538
        %v3556 = vmul.f32 %v3541, %v3539
        %v3557 = vmul.f32 %v3541, %v3540
        %v3558 = vadd.f32 %v3508, %v3542
        %v3559 = vadd.f32 %v3509, %v3543
        %v3560 = vadd.f32 %v3510, %v3544
        %v3561 = vadd.f32 %v3511, %v3545
        %v3562 = vadd.f32 %v3512, %v3546
        %v3563 = vadd.f32 %v3513, %v3547
        %v3564 = vadd.f32 %v3514, %v3548
        %v3565 = vadd.f32 %v3515, %v3549
        %v3566 = vadd.f32 %v3516, %v3550
        %v3567 = vadd.f32 %v3517, %v3551
        %v3568 = vadd.f32 %v3518, %v3552
        %v3569 = vadd.f32 %v3519, %v3553
        %v3570 = vadd.f32 %v3520, %v3554
        %v3571 = vadd.f32 %v3521, %v3555
        %v3572 = vadd.f32 %v3522, %v3556
        %v3573 = vadd.f32 %v3523, %v3557
        %s3574 = sld [smem:[#allocation5 + $0x8a]]
        %v3575 = vld [vmem:[%s1358] sm:$0xff]
        %v3576 = vld [vmem:[%s1358 + $0x8] sm:$0xff]
        %v3577 = vld [vmem:[%s1358 + $0x10] sm:$0xff]
        %v3578 = vld [vmem:[%s1358 + $0x18] sm:$0xff]
        %v3579 = vld [vmem:[%s1358 + $0x20] sm:$0xff]
        %v3580 = vld [vmem:[%s1358 + $0x28] sm:$0xff]
        %v3581 = vld [vmem:[%s1358 + $0x30] sm:$0xff]
        %v3582 = vld [vmem:[%s1358 + $0x38] sm:$0xff]
        %v3583 = vld [vmem:[%s1358 + $0x40] sm:$0xff]
        %v3584 = vld [vmem:[%s1358 + $0x48] sm:$0xff]
        %v3585 = vld [vmem:[%s1358 + $0x50] sm:$0xff]
        %v3586 = vld [vmem:[%s1358 + $0x58] sm:$0xff]
        %v3587 = vld [vmem:[%s1358 + $0x60] sm:$0xff]
        %v3588 = vld [vmem:[%s1358 + $0x68] sm:$0xff]
        %v3589 = vld [vmem:[%s1358 + $0x70] sm:$0xff]
        %v3590 = vld [vmem:[%s1358 + $0x78] sm:$0xff]
        %v3591 = vstv %s3574
        %v3592 = vmul.f32 %v3591, %v3575
        %v3593 = vmul.f32 %v3591, %v3576
        %v3594 = vmul.f32 %v3591, %v3577
        %v3595 = vmul.f32 %v3591, %v3578
        %v3596 = vmul.f32 %v3591, %v3579
        %v3597 = vmul.f32 %v3591, %v3580
        %v3598 = vmul.f32 %v3591, %v3581
        %v3599 = vmul.f32 %v3591, %v3582
        %v3600 = vmul.f32 %v3591, %v3583
        %v3601 = vmul.f32 %v3591, %v3584
        %v3602 = vmul.f32 %v3591, %v3585
        %v3603 = vmul.f32 %v3591, %v3586
        %v3604 = vmul.f32 %v3591, %v3587
        %v3605 = vmul.f32 %v3591, %v3588
        %v3606 = vmul.f32 %v3591, %v3589
        %v3607 = vmul.f32 %v3591, %v3590
        %v3608 = vadd.f32 %v3558, %v3592
        %v3609 = vadd.f32 %v3559, %v3593
        %v3610 = vadd.f32 %v3560, %v3594
        %v3611 = vadd.f32 %v3561, %v3595
        %v3612 = vadd.f32 %v3562, %v3596
        %v3613 = vadd.f32 %v3563, %v3597
        %v3614 = vadd.f32 %v3564, %v3598
        %v3615 = vadd.f32 %v3565, %v3599
        %v3616 = vadd.f32 %v3566, %v3600
        %v3617 = vadd.f32 %v3567, %v3601
        %v3618 = vadd.f32 %v3568, %v3602
        %v3619 = vadd.f32 %v3569, %v3603
        %v3620 = vadd.f32 %v3570, %v3604
        %v3621 = vadd.f32 %v3571, %v3605
        %v3622 = vadd.f32 %v3572, %v3606
        %v3623 = vadd.f32 %v3573, %v3607
        %s3624 = sld [smem:[#allocation5 + $0x8b]]
        %v3625 = vld [vmem:[%s1471] sm:$0xff]
        %v3626 = vld [vmem:[%s1471 + $0x8] sm:$0xff]
        %v3627 = vld [vmem:[%s1471 + $0x10] sm:$0xff]
        %v3628 = vld [vmem:[%s1471 + $0x18] sm:$0xff]
        %v3629 = vld [vmem:[%s1471 + $0x20] sm:$0xff]
        %v3630 = vld [vmem:[%s1471 + $0x28] sm:$0xff]
        %v3631 = vld [vmem:[%s1471 + $0x30] sm:$0xff]
        %v3632 = vld [vmem:[%s1471 + $0x38] sm:$0xff]
        %v3633 = vld [vmem:[%s1471 + $0x40] sm:$0xff]
        %v3634 = vld [vmem:[%s1471 + $0x48] sm:$0xff]
        %v3635 = vld [vmem:[%s1471 + $0x50] sm:$0xff]
        %v3636 = vld [vmem:[%s1471 + $0x58] sm:$0xff]
        %v3637 = vld [vmem:[%s1471 + $0x60] sm:$0xff]
        %v3638 = vld [vmem:[%s1471 + $0x68] sm:$0xff]
        %v3639 = vld [vmem:[%s1471 + $0x70] sm:$0xff]
        %v3640 = vld [vmem:[%s1471 + $0x78] sm:$0xff]
        %v3641 = vstv %s3624
        %v3642 = vmul.f32 %v3641, %v3625
        %v3643 = vmul.f32 %v3641, %v3626
        %v3644 = vmul.f32 %v3641, %v3627
        %v3645 = vmul.f32 %v3641, %v3628
        %v3646 = vmul.f32 %v3641, %v3629
        %v3647 = vmul.f32 %v3641, %v3630
        %v3648 = vmul.f32 %v3641, %v3631
        %v3649 = vmul.f32 %v3641, %v3632
        %v3650 = vmul.f32 %v3641, %v3633
        %v3651 = vmul.f32 %v3641, %v3634
        %v3652 = vmul.f32 %v3641, %v3635
        %v3653 = vmul.f32 %v3641, %v3636
        %v3654 = vmul.f32 %v3641, %v3637
        %v3655 = vmul.f32 %v3641, %v3638
        %v3656 = vmul.f32 %v3641, %v3639
        %v3657 = vmul.f32 %v3641, %v3640
        %v3658 = vadd.f32 %v3608, %v3642
        %v3659 = vadd.f32 %v3609, %v3643
        %v3660 = vadd.f32 %v3610, %v3644
        %v3661 = vadd.f32 %v3611, %v3645
        %v3662 = vadd.f32 %v3612, %v3646
        %v3663 = vadd.f32 %v3613, %v3647
        %v3664 = vadd.f32 %v3614, %v3648
        %v3665 = vadd.f32 %v3615, %v3649
        %v3666 = vadd.f32 %v3616, %v3650
        %v3667 = vadd.f32 %v3617, %v3651
        %v3668 = vadd.f32 %v3618, %v3652
        %v3669 = vadd.f32 %v3619, %v3653
        %v3670 = vadd.f32 %v3620, %v3654
        %v3671 = vadd.f32 %v3621, %v3655
        %v3672 = vadd.f32 %v3622, %v3656
        %v3673 = vadd.f32 %v3623, %v3657
        %s3674 = sld [smem:[#allocation5 + $0x8c]]
        %v3675 = vld [vmem:[%s1488] sm:$0xff]
        %v3676 = vld [vmem:[%s1488 + $0x8] sm:$0xff]
        %v3677 = vld [vmem:[%s1488 + $0x10] sm:$0xff]
        %v3678 = vld [vmem:[%s1488 + $0x18] sm:$0xff]
        %v3679 = vld [vmem:[%s1488 + $0x20] sm:$0xff]
        %v3680 = vld [vmem:[%s1488 + $0x28] sm:$0xff]
        %v3681 = vld [vmem:[%s1488 + $0x30] sm:$0xff]
        %v3682 = vld [vmem:[%s1488 + $0x38] sm:$0xff]
        %v3683 = vld [vmem:[%s1488 + $0x40] sm:$0xff]
        %v3684 = vld [vmem:[%s1488 + $0x48] sm:$0xff]
        %v3685 = vld [vmem:[%s1488 + $0x50] sm:$0xff]
        %v3686 = vld [vmem:[%s1488 + $0x58] sm:$0xff]
        %v3687 = vld [vmem:[%s1488 + $0x60] sm:$0xff]
        %v3688 = vld [vmem:[%s1488 + $0x68] sm:$0xff]
        %v3689 = vld [vmem:[%s1488 + $0x70] sm:$0xff]
        %v3690 = vld [vmem:[%s1488 + $0x78] sm:$0xff]
        %v3691 = vstv %s3674
        %v3692 = vmul.f32 %v3691, %v3675
        %v3693 = vmul.f32 %v3691, %v3676
        %v3694 = vmul.f32 %v3691, %v3677
        %v3695 = vmul.f32 %v3691, %v3678
        %v3696 = vmul.f32 %v3691, %v3679
        %v3697 = vmul.f32 %v3691, %v3680
        %v3698 = vmul.f32 %v3691, %v3681
        %v3699 = vmul.f32 %v3691, %v3682
        %v3700 = vmul.f32 %v3691, %v3683
        %v3701 = vmul.f32 %v3691, %v3684
        %v3702 = vmul.f32 %v3691, %v3685
        %v3703 = vmul.f32 %v3691, %v3686
        %v3704 = vmul.f32 %v3691, %v3687
        %v3705 = vmul.f32 %v3691, %v3688
        %v3706 = vmul.f32 %v3691, %v3689
        %v3707 = vmul.f32 %v3691, %v3690
        %v3708 = vadd.f32 %v3658, %v3692
        %v3709 = vadd.f32 %v3659, %v3693
        %v3710 = vadd.f32 %v3660, %v3694
        %v3711 = vadd.f32 %v3661, %v3695
        %v3712 = vadd.f32 %v3662, %v3696
        %v3713 = vadd.f32 %v3663, %v3697
        %v3714 = vadd.f32 %v3664, %v3698
        %v3715 = vadd.f32 %v3665, %v3699
        %v3716 = vadd.f32 %v3666, %v3700
        %v3717 = vadd.f32 %v3667, %v3701
        %v3718 = vadd.f32 %v3668, %v3702
        %v3719 = vadd.f32 %v3669, %v3703
        %v3720 = vadd.f32 %v3670, %v3704
        %v3721 = vadd.f32 %v3671, %v3705
        %v3722 = vadd.f32 %v3672, %v3706
        %v3723 = vadd.f32 %v3673, %v3707
        %s3724 = sld [smem:[#allocation5 + $0x8d]]
        %v3725 = vld [vmem:[%s1514] sm:$0xff]
        %v3726 = vld [vmem:[%s1514 + $0x8] sm:$0xff]
        %v3727 = vld [vmem:[%s1514 + $0x10] sm:$0xff]
        %v3728 = vld [vmem:[%s1514 + $0x18] sm:$0xff]
        %v3729 = vld [vmem:[%s1514 + $0x20] sm:$0xff]
        %v3730 = vld [vmem:[%s1514 + $0x28] sm:$0xff]
        %v3731 = vld [vmem:[%s1514 + $0x30] sm:$0xff]
        %v3732 = vld [vmem:[%s1514 + $0x38] sm:$0xff]
        %v3733 = vld [vmem:[%s1514 + $0x40] sm:$0xff]
        %v3734 = vld [vmem:[%s1514 + $0x48] sm:$0xff]
        %v3735 = vld [vmem:[%s1514 + $0x50] sm:$0xff]
        %v3736 = vld [vmem:[%s1514 + $0x58] sm:$0xff]
        %v3737 = vld [vmem:[%s1514 + $0x60] sm:$0xff]
        %v3738 = vld [vmem:[%s1514 + $0x68] sm:$0xff]
        %v3739 = vld [vmem:[%s1514 + $0x70] sm:$0xff]
        %v3740 = vld [vmem:[%s1514 + $0x78] sm:$0xff]
        %v3741 = vstv %s3724
        %v3742 = vmul.f32 %v3741, %v3725
        %v3743 = vmul.f32 %v3741, %v3726
        %v3744 = vmul.f32 %v3741, %v3727
        %v3745 = vmul.f32 %v3741, %v3728
        %v3746 = vmul.f32 %v3741, %v3729
        %v3747 = vmul.f32 %v3741, %v3730
        %v3748 = vmul.f32 %v3741, %v3731
        %v3749 = vmul.f32 %v3741, %v3732
        %v3750 = vmul.f32 %v3741, %v3733
        %v3751 = vmul.f32 %v3741, %v3734
        %v3752 = vmul.f32 %v3741, %v3735
        %v3753 = vmul.f32 %v3741, %v3736
        %v3754 = vmul.f32 %v3741, %v3737
        %v3755 = vmul.f32 %v3741, %v3738
        %v3756 = vmul.f32 %v3741, %v3739
        %v3757 = vmul.f32 %v3741, %v3740
        %v3758 = vadd.f32 %v3708, %v3742
        %v3759 = vadd.f32 %v3709, %v3743
        %v3760 = vadd.f32 %v3710, %v3744
        %v3761 = vadd.f32 %v3711, %v3745
        %v3762 = vadd.f32 %v3712, %v3746
        %v3763 = vadd.f32 %v3713, %v3747
        %v3764 = vadd.f32 %v3714, %v3748
        %v3765 = vadd.f32 %v3715, %v3749
        %v3766 = vadd.f32 %v3716, %v3750
        %v3767 = vadd.f32 %v3717, %v3751
        %v3768 = vadd.f32 %v3718, %v3752
        %v3769 = vadd.f32 %v3719, %v3753
        %v3770 = vadd.f32 %v3720, %v3754
        %v3771 = vadd.f32 %v3721, %v3755
        %v3772 = vadd.f32 %v3722, %v3756
        %v3773 = vadd.f32 %v3723, %v3757
        %s3774 = sld [smem:[#allocation5 + $0x8e]]
        %v3775 = vld [vmem:[%s1538] sm:$0xff]
        %v3776 = vld [vmem:[%s1538 + $0x8] sm:$0xff]
        %v3777 = vld [vmem:[%s1538 + $0x10] sm:$0xff]
        %v3778 = vld [vmem:[%s1538 + $0x18] sm:$0xff]
        %v3779 = vld [vmem:[%s1538 + $0x20] sm:$0xff]
        %v3780 = vld [vmem:[%s1538 + $0x28] sm:$0xff]
        %v3781 = vld [vmem:[%s1538 + $0x30] sm:$0xff]
        %v3782 = vld [vmem:[%s1538 + $0x38] sm:$0xff]
        %v3783 = vld [vmem:[%s1538 + $0x40] sm:$0xff]
        %v3784 = vld [vmem:[%s1538 + $0x48] sm:$0xff]
        %v3785 = vld [vmem:[%s1538 + $0x50] sm:$0xff]
        %v3786 = vld [vmem:[%s1538 + $0x58] sm:$0xff]
        %v3787 = vld [vmem:[%s1538 + $0x60] sm:$0xff]
        %v3788 = vld [vmem:[%s1538 + $0x68] sm:$0xff]
        %v3789 = vld [vmem:[%s1538 + $0x70] sm:$0xff]
        %v3790 = vld [vmem:[%s1538 + $0x78] sm:$0xff]
        %v3791 = vstv %s3774
        %v3792 = vmul.f32 %v3791, %v3775
        %v3793 = vmul.f32 %v3791, %v3776
        %v3794 = vmul.f32 %v3791, %v3777
        %v3795 = vmul.f32 %v3791, %v3778
        %v3796 = vmul.f32 %v3791, %v3779
        %v3797 = vmul.f32 %v3791, %v3780
        %v3798 = vmul.f32 %v3791, %v3781
        %v3799 = vmul.f32 %v3791, %v3782
        %v3800 = vmul.f32 %v3791, %v3783
        %v3801 = vmul.f32 %v3791, %v3784
        %v3802 = vmul.f32 %v3791, %v3785
        %v3803 = vmul.f32 %v3791, %v3786
        %v3804 = vmul.f32 %v3791, %v3787
        %v3805 = vmul.f32 %v3791, %v3788
        %v3806 = vmul.f32 %v3791, %v3789
        %v3807 = vmul.f32 %v3791, %v3790
        %v3808 = vadd.f32 %v3758, %v3792
        %v3809 = vadd.f32 %v3759, %v3793
        %v3810 = vadd.f32 %v3760, %v3794
        %v3811 = vadd.f32 %v3761, %v3795
        %v3812 = vadd.f32 %v3762, %v3796
        %v3813 = vadd.f32 %v3763, %v3797
        %v3814 = vadd.f32 %v3764, %v3798
        %v3815 = vadd.f32 %v3765, %v3799
        %v3816 = vadd.f32 %v3766, %v3800
        %v3817 = vadd.f32 %v3767, %v3801
        %v3818 = vadd.f32 %v3768, %v3802
        %v3819 = vadd.f32 %v3769, %v3803
        %v3820 = vadd.f32 %v3770, %v3804
        %v3821 = vadd.f32 %v3771, %v3805
        %v3822 = vadd.f32 %v3772, %v3806
        %v3823 = vadd.f32 %v3773, %v3807
        %s3824 = sld [smem:[#allocation5 + $0x8f]]
        %v3825 = vld [vmem:[%s1556] sm:$0xff]
        %v3826 = vld [vmem:[%s1556 + $0x8] sm:$0xff]
        %v3827 = vld [vmem:[%s1556 + $0x10] sm:$0xff]
        %v3828 = vld [vmem:[%s1556 + $0x18] sm:$0xff]
        %v3829 = vld [vmem:[%s1556 + $0x20] sm:$0xff]
        %v3830 = vld [vmem:[%s1556 + $0x28] sm:$0xff]
        %v3831 = vld [vmem:[%s1556 + $0x30] sm:$0xff]
        %v3832 = vld [vmem:[%s1556 + $0x38] sm:$0xff]
        %v3833 = vld [vmem:[%s1556 + $0x40] sm:$0xff]
        %v3834 = vld [vmem:[%s1556 + $0x48] sm:$0xff]
        %v3835 = vld [vmem:[%s1556 + $0x50] sm:$0xff]
        %v3836 = vld [vmem:[%s1556 + $0x58] sm:$0xff]
        %v3837 = vld [vmem:[%s1556 + $0x60] sm:$0xff]
        %v3838 = vld [vmem:[%s1556 + $0x68] sm:$0xff]
        %v3839 = vld [vmem:[%s1556 + $0x70] sm:$0xff]
        %v3840 = vld [vmem:[%s1556 + $0x78] sm:$0xff]
        %v3841 = vstv %s3824
        %v3842 = vmul.f32 %v3841, %v3825
        %v3843 = vmul.f32 %v3841, %v3826
        %v3844 = vmul.f32 %v3841, %v3827
        %v3845 = vmul.f32 %v3841, %v3828
        %v3846 = vmul.f32 %v3841, %v3829
        %v3847 = vmul.f32 %v3841, %v3830
        %v3848 = vmul.f32 %v3841, %v3831
        %v3849 = vmul.f32 %v3841, %v3832
        %v3850 = vmul.f32 %v3841, %v3833
        %v3851 = vmul.f32 %v3841, %v3834
        %v3852 = vmul.f32 %v3841, %v3835
        %v3853 = vmul.f32 %v3841, %v3836
        %v3854 = vmul.f32 %v3841, %v3837
        %v3855 = vmul.f32 %v3841, %v3838
        %v3856 = vmul.f32 %v3841, %v3839
        %v3857 = vmul.f32 %v3841, %v3840
        %v3858 = vadd.f32 %v3808, %v3842
        %v3859 = vadd.f32 %v3809, %v3843
        %v3860 = vadd.f32 %v3810, %v3844
        %v3861 = vadd.f32 %v3811, %v3845
        %v3862 = vadd.f32 %v3812, %v3846
        %v3863 = vadd.f32 %v3813, %v3847
        %v3864 = vadd.f32 %v3814, %v3848
        %v3865 = vadd.f32 %v3815, %v3849
        %v3866 = vadd.f32 %v3816, %v3850
        %v3867 = vadd.f32 %v3817, %v3851
        %v3868 = vadd.f32 %v3818, %v3852
        %v3869 = vadd.f32 %v3819, %v3853
        %v3870 = vadd.f32 %v3820, %v3854
        %v3871 = vadd.f32 %v3821, %v3855
        %v3872 = vadd.f32 %v3822, %v3856
        %v3873 = vadd.f32 %v3823, %v3857
        %s3874 = sld [smem:[#allocation5 + $0x90]]
        %v3875 = vld [vmem:[%s1574] sm:$0xff]
        %v3876 = vld [vmem:[%s1574 + $0x8] sm:$0xff]
        %v3877 = vld [vmem:[%s1574 + $0x10] sm:$0xff]
        %v3878 = vld [vmem:[%s1574 + $0x18] sm:$0xff]
        %v3879 = vld [vmem:[%s1574 + $0x20] sm:$0xff]
        %v3880 = vld [vmem:[%s1574 + $0x28] sm:$0xff]
        %v3881 = vld [vmem:[%s1574 + $0x30] sm:$0xff]
        %v3882 = vld [vmem:[%s1574 + $0x38] sm:$0xff]
        %v3883 = vld [vmem:[%s1574 + $0x40] sm:$0xff]
        %v3884 = vld [vmem:[%s1574 + $0x48] sm:$0xff]
        %v3885 = vld [vmem:[%s1574 + $0x50] sm:$0xff]
        %v3886 = vld [vmem:[%s1574 + $0x58] sm:$0xff]
        %v3887 = vld [vmem:[%s1574 + $0x60] sm:$0xff]
        %v3888 = vld [vmem:[%s1574 + $0x68] sm:$0xff]
        %v3889 = vld [vmem:[%s1574 + $0x70] sm:$0xff]
        %v3890 = vld [vmem:[%s1574 + $0x78] sm:$0xff]
        %v3891 = vstv %s3874
        %v3892 = vmul.f32 %v3891, %v3875
        %v3893 = vmul.f32 %v3891, %v3876
        %v3894 = vmul.f32 %v3891, %v3877
        %v3895 = vmul.f32 %v3891, %v3878
        %v3896 = vmul.f32 %v3891, %v3879
        %v3897 = vmul.f32 %v3891, %v3880
        %v3898 = vmul.f32 %v3891, %v3881
        %v3899 = vmul.f32 %v3891, %v3882
        %v3900 = vmul.f32 %v3891, %v3883
        %v3901 = vmul.f32 %v3891, %v3884
        %v3902 = vmul.f32 %v3891, %v3885
        %v3903 = vmul.f32 %v3891, %v3886
        %v3904 = vmul.f32 %v3891, %v3887
        %v3905 = vmul.f32 %v3891, %v3888
        %v3906 = vmul.f32 %v3891, %v3889
        %v3907 = vmul.f32 %v3891, %v3890
        %v3908 = vadd.f32 %v3858, %v3892
        %v3909 = vadd.f32 %v3859, %v3893
        %v3910 = vadd.f32 %v3860, %v3894
        %v3911 = vadd.f32 %v3861, %v3895
        %v3912 = vadd.f32 %v3862, %v3896
        %v3913 = vadd.f32 %v3863, %v3897
        %v3914 = vadd.f32 %v3864, %v3898
        %v3915 = vadd.f32 %v3865, %v3899
        %v3916 = vadd.f32 %v3866, %v3900
        %v3917 = vadd.f32 %v3867, %v3901
        %v3918 = vadd.f32 %v3868, %v3902
        %v3919 = vadd.f32 %v3869, %v3903
        %v3920 = vadd.f32 %v3870, %v3904
        %v3921 = vadd.f32 %v3871, %v3905
        %v3922 = vadd.f32 %v3872, %v3906
        %v3923 = vadd.f32 %v3873, %v3907
        %s3924 = sld [smem:[#allocation5 + $0x91]]
        %v3925 = vld [vmem:[%s1592] sm:$0xff]
        %v3926 = vld [vmem:[%s1592 + $0x8] sm:$0xff]
        %v3927 = vld [vmem:[%s1592 + $0x10] sm:$0xff]
        %v3928 = vld [vmem:[%s1592 + $0x18] sm:$0xff]
        %v3929 = vld [vmem:[%s1592 + $0x20] sm:$0xff]
        %v3930 = vld [vmem:[%s1592 + $0x28] sm:$0xff]
        %v3931 = vld [vmem:[%s1592 + $0x30] sm:$0xff]
        %v3932 = vld [vmem:[%s1592 + $0x38] sm:$0xff]
        %v3933 = vld [vmem:[%s1592 + $0x40] sm:$0xff]
        %v3934 = vld [vmem:[%s1592 + $0x48] sm:$0xff]
        %v3935 = vld [vmem:[%s1592 + $0x50] sm:$0xff]
        %v3936 = vld [vmem:[%s1592 + $0x58] sm:$0xff]
        %v3937 = vld [vmem:[%s1592 + $0x60] sm:$0xff]
        %v3938 = vld [vmem:[%s1592 + $0x68] sm:$0xff]
        %v3939 = vld [vmem:[%s1592 + $0x70] sm:$0xff]
        %v3940 = vld [vmem:[%s1592 + $0x78] sm:$0xff]
        %v3941 = vstv %s3924
        %v3942 = vmul.f32 %v3941, %v3925
        %v3943 = vmul.f32 %v3941, %v3926
        %v3944 = vmul.f32 %v3941, %v3927
        %v3945 = vmul.f32 %v3941, %v3928
        %v3946 = vmul.f32 %v3941, %v3929
        %v3947 = vmul.f32 %v3941, %v3930
        %v3948 = vmul.f32 %v3941, %v3931
        %v3949 = vmul.f32 %v3941, %v3932
        %v3950 = vmul.f32 %v3941, %v3933
        %v3951 = vmul.f32 %v3941, %v3934
        %v3952 = vmul.f32 %v3941, %v3935
        %v3953 = vmul.f32 %v3941, %v3936
        %v3954 = vmul.f32 %v3941, %v3937
        %v3955 = vmul.f32 %v3941, %v3938
        %v3956 = vmul.f32 %v3941, %v3939
        %v3957 = vmul.f32 %v3941, %v3940
        %v3958 = vadd.f32 %v3908, %v3942
        %v3959 = vadd.f32 %v3909, %v3943
        %v3960 = vadd.f32 %v3910, %v3944
        %v3961 = vadd.f32 %v3911, %v3945
        %v3962 = vadd.f32 %v3912, %v3946
        %v3963 = vadd.f32 %v3913, %v3947
        %v3964 = vadd.f32 %v3914, %v3948
        %v3965 = vadd.f32 %v3915, %v3949
        %v3966 = vadd.f32 %v3916, %v3950
        %v3967 = vadd.f32 %v3917, %v3951
        %v3968 = vadd.f32 %v3918, %v3952
        %v3969 = vadd.f32 %v3919, %v3953
        %v3970 = vadd.f32 %v3920, %v3954
        %v3971 = vadd.f32 %v3921, %v3955
        %v3972 = vadd.f32 %v3922, %v3956
        %v3973 = vadd.f32 %v3923, %v3957
        %s3974 = sld [smem:[#allocation10 + $0x1]]
        %v3975 = vstv %s3974
        %v3976 = vmul.f32 %v3958, %v3975
        %v3977 = vmul.f32 %v3959, %v3975
        %v3978 = vmul.f32 %v3960, %v3975
        %v3979 = vmul.f32 %v3961, %v3975
        %v3980 = vmul.f32 %v3962, %v3975
        %v3981 = vmul.f32 %v3963, %v3975
        %v3982 = vmul.f32 %v3964, %v3975
        %v3983 = vmul.f32 %v3965, %v3975
        %v3984 = vmul.f32 %v3966, %v3975
        %v3985 = vmul.f32 %v3967, %v3975
        %v3986 = vmul.f32 %v3968, %v3975
        %v3987 = vmul.f32 %v3969, %v3975
        %v3988 = vmul.f32 %v3970, %v3975
        %v3989 = vmul.f32 %v3971, %v3975
        %v3990 = vmul.f32 %v3972, %v3975
        %v3991 = vmul.f32 %v3973, %v3975
        %s3992 = sld [smem:[#allocation11 + $0x1]]
        %v3993 = vstv %s3992
        %v3994 = vadd.f32 %v3976, %v3993
        %v3995 = vadd.f32 %v3977, %v3993
        %v3996 = vadd.f32 %v3978, %v3993
        %v3997 = vadd.f32 %v3979, %v3993
        %v3998 = vadd.f32 %v3980, %v3993
        %v3999 = vadd.f32 %v3981, %v3993
        %v4000 = vadd.f32 %v3982, %v3993
        %v4001 = vadd.f32 %v3983, %v3993
        %v4002 = vadd.f32 %v3984, %v3993
        %v4003 = vadd.f32 %v3985, %v3993
        %v4004 = vadd.f32 %v3986, %v3993
        %v4005 = vadd.f32 %v3987, %v3993
        %v4006 = vadd.f32 %v3988, %v3993
        %v4007 = vadd.f32 %v3989, %v3993
        %v4008 = vadd.f32 %v3990, %v3993
        %v4009 = vadd.f32 %v3991, %v3993
        %s4010 = scalar_lea.vmem [#allocation4], 128
        %v4011 = vld [vmem:[%s4010] sm:$0xff]
        %v4012 = vld [vmem:[%s4010 + $0x8] sm:$0xff]
        %v4013 = vld [vmem:[%s4010 + $0x10] sm:$0xff]
        %v4014 = vld [vmem:[%s4010 + $0x18] sm:$0xff]
        %v4015 = vld [vmem:[%s4010 + $0x20] sm:$0xff]
        %v4016 = vld [vmem:[%s4010 + $0x28] sm:$0xff]
        %v4017 = vld [vmem:[%s4010 + $0x30] sm:$0xff]
        %v4018 = vld [vmem:[%s4010 + $0x38] sm:$0xff]
        %v4019 = vld [vmem:[%s4010 + $0x40] sm:$0xff]
        %v4020 = vld [vmem:[%s4010 + $0x48] sm:$0xff]
        %v4021 = vld [vmem:[%s4010 + $0x50] sm:$0xff]
        %v4022 = vld [vmem:[%s4010 + $0x58] sm:$0xff]
        %v4023 = vld [vmem:[%s4010 + $0x60] sm:$0xff]
        %v4024 = vld [vmem:[%s4010 + $0x68] sm:$0xff]
        %v4025 = vld [vmem:[%s4010 + $0x70] sm:$0xff]
        %v4026 = vld [vmem:[%s4010 + $0x78] sm:$0xff]
        %v4027 = vadd.f32 %v4011, %v3994
        %v4028 = vadd.f32 %v4012, %v3995
        %v4029 = vadd.f32 %v4013, %v3996
        %v4030 = vadd.f32 %v4014, %v3997
        %v4031 = vadd.f32 %v4015, %v3998
        %v4032 = vadd.f32 %v4016, %v3999
        %v4033 = vadd.f32 %v4017, %v4000
        %v4034 = vadd.f32 %v4018, %v4001
        %v4035 = vadd.f32 %v4019, %v4002
        %v4036 = vadd.f32 %v4020, %v4003
        %v4037 = vadd.f32 %v4021, %v4004
        %v4038 = vadd.f32 %v4022, %v4005
        %v4039 = vadd.f32 %v4023, %v4006
        %v4040 = vadd.f32 %v4024, %v4007
        %v4041 = vadd.f32 %v4025, %v4008
        %v4042 = vadd.f32 %v4026, %v4009
        %vm4043 = vcmp.ge.f32.partialorder %v4027, 1.0
        %vm4044 = vcmp.ge.f32.partialorder %v4028, 1.0
        %vm4045 = vcmp.ge.f32.partialorder %v4029, 1.0
        %vm4046 = vcmp.ge.f32.partialorder %v4030, 1.0
        %vm4047 = vcmp.ge.f32.partialorder %v4031, 1.0
        %vm4048 = vcmp.ge.f32.partialorder %v4032, 1.0
        %vm4049 = vcmp.ge.f32.partialorder %v4033, 1.0
        %vm4050 = vcmp.ge.f32.partialorder %v4034, 1.0
        %vm4051 = vcmp.ge.f32.partialorder %v4035, 1.0
        %vm4052 = vcmp.ge.f32.partialorder %v4036, 1.0
        %vm4053 = vcmp.ge.f32.partialorder %v4037, 1.0
        %vm4054 = vcmp.ge.f32.partialorder %v4038, 1.0
        %vm4055 = vcmp.ge.f32.partialorder %v4039, 1.0
        %vm4056 = vcmp.ge.f32.partialorder %v4040, 1.0
        %vm4057 = vcmp.ge.f32.partialorder %v4041, 1.0
        %vm4058 = vcmp.ge.f32.partialorder %v4042, 1.0
        %v4059 = vsel %vm4043, 1, 0
        %v4060 = vsel %vm4044, 1, 0
        %v4061 = vsel %vm4045, 1, 0
        %v4062 = vsel %vm4046, 1, 0
        %v4063 = vsel %vm4047, 1, 0
        %v4064 = vsel %vm4048, 1, 0
        %v4065 = vsel %vm4049, 1, 0
        %v4066 = vsel %vm4050, 1, 0
        %v4067 = vsel %vm4051, 1, 0
        %v4068 = vsel %vm4052, 1, 0
        %v4069 = vsel %vm4053, 1, 0
        %v4070 = vsel %vm4054, 1, 0
        %v4071 = vsel %vm4055, 1, 0
        %v4072 = vsel %vm4056, 1, 0
        %v4073 = vsel %vm4057, 1, 0
        %v4074 = vsel %vm4058, 1, 0
        %v4075 = vcvt.s32.f32 %v4059
        %v4076 = vcvt.s32.f32 %v4060
        %v4077 = vcvt.s32.f32 %v4061
        %v4078 = vcvt.s32.f32 %v4062
        %v4079 = vcvt.s32.f32 %v4063
        %v4080 = vcvt.s32.f32 %v4064
        %v4081 = vcvt.s32.f32 %v4065
        %v4082 = vcvt.s32.f32 %v4066
        %v4083 = vcvt.s32.f32 %v4067
        %v4084 = vcvt.s32.f32 %v4068
        %v4085 = vcvt.s32.f32 %v4069
        %v4086 = vcvt.s32.f32 %v4070
        %v4087 = vcvt.s32.f32 %v4071
        %v4088 = vcvt.s32.f32 %v4072
        %v4089 = vcvt.s32.f32 %v4073
        %v4090 = vcvt.s32.f32 %v4074
        %vm4091 = vcmp.gt.f32.partialorder %v4075, 0.0
        %vm4092 = vcmp.gt.f32.partialorder %v4076, 0.0
        %vm4093 = vcmp.gt.f32.partialorder %v4077, 0.0
        %vm4094 = vcmp.gt.f32.partialorder %v4078, 0.0
        %vm4095 = vcmp.gt.f32.partialorder %v4079, 0.0
        %vm4096 = vcmp.gt.f32.partialorder %v4080, 0.0
        %vm4097 = vcmp.gt.f32.partialorder %v4081, 0.0
        %vm4098 = vcmp.gt.f32.partialorder %v4082, 0.0
        %vm4099 = vcmp.gt.f32.partialorder %v4083, 0.0
        %vm4100 = vcmp.gt.f32.partialorder %v4084, 0.0
        %vm4101 = vcmp.gt.f32.partialorder %v4085, 0.0
        %vm4102 = vcmp.gt.f32.partialorder %v4086, 0.0
        %vm4103 = vcmp.gt.f32.partialorder %v4087, 0.0
        %vm4104 = vcmp.gt.f32.partialorder %v4088, 0.0
        %vm4105 = vcmp.gt.f32.partialorder %v4089, 0.0
        %vm4106 = vcmp.gt.f32.partialorder %v4090, 0.0
        %v4107 = vsel %vm4091, 0.0, %v4027
        %v4108 = vsel %vm4092, 0.0, %v4028
        %v4109 = vsel %vm4093, 0.0, %v4029
        %v4110 = vsel %vm4094, 0.0, %v4030
        %v4111 = vsel %vm4095, 0.0, %v4031
        %v4112 = vsel %vm4096, 0.0, %v4032
        %v4113 = vsel %vm4097, 0.0, %v4033
        %v4114 = vsel %vm4098, 0.0, %v4034
        %v4115 = vsel %vm4099, 0.0, %v4035
        %v4116 = vsel %vm4100, 0.0, %v4036
        %v4117 = vsel %vm4101, 0.0, %v4037
        %v4118 = vsel %vm4102, 0.0, %v4038
        %v4119 = vsel %vm4103, 0.0, %v4039
        %v4120 = vsel %vm4104, 0.0, %v4040
        %v4121 = vsel %vm4105, 0.0, %v4041
        %v4122 = vsel %vm4106, 0.0, %v4042
        %4123 = vst [vmem:[%s4010] sm:$0xff] %v4107
        %4124 = vst [vmem:[%s4010 + $0x8] sm:$0xff] %v4108
        %4125 = vst [vmem:[%s4010 + $0x10] sm:$0xff] %v4109
        %4126 = vst [vmem:[%s4010 + $0x18] sm:$0xff] %v4110
        %4127 = vst [vmem:[%s4010 + $0x20] sm:$0xff] %v4111
        %4128 = vst [vmem:[%s4010 + $0x28] sm:$0xff] %v4112
        %4129 = vst [vmem:[%s4010 + $0x30] sm:$0xff] %v4113
        %4130 = vst [vmem:[%s4010 + $0x38] sm:$0xff] %v4114
        %4131 = vst [vmem:[%s4010 + $0x40] sm:$0xff] %v4115
        %4132 = vst [vmem:[%s4010 + $0x48] sm:$0xff] %v4116
        %4133 = vst [vmem:[%s4010 + $0x50] sm:$0xff] %v4117
        %4134 = vst [vmem:[%s4010 + $0x58] sm:$0xff] %v4118
        %4135 = vst [vmem:[%s4010 + $0x60] sm:$0xff] %v4119
        %4136 = vst [vmem:[%s4010 + $0x68] sm:$0xff] %v4120
        %4137 = vst [vmem:[%s4010 + $0x70] sm:$0xff] %v4121
        %4138 = vst [vmem:[%s4010 + $0x78] sm:$0xff] %v4122
        %4139 = vmatprep.subr.mxu0 0.0
        %4140 = vmatpush1.msra.mxu0 %v4090
        %4141 = vmatprep.subr.mxu0 0.0
        %4142 = vmatpush1.msra.mxu0 %v4089
        %4143 = vmatprep.subr.mxu0 0.0
        %4144 = vmatpush1.msra.mxu0 %v4088
        %4145 = vmatprep.subr.mxu0 0.0
        %4146 = vmatpush1.msra.mxu0 %v4087
        %4147 = vmatprep.subr.mxu0 0.0
        %4148 = vmatpush1.msra.mxu0 %v4086
        %4149 = vmatprep.subr.mxu0 0.0
        %4150 = vmatpush1.msra.mxu0 %v4085
        %4151 = vmatprep.subr.mxu0 0.0
        %4152 = vmatpush1.msra.mxu0 %v4084
        %4153 = vmatprep.subr.mxu0 0.0
        %4154 = vmatpush1.msra.mxu0 %v4083
        %4155 = vmatprep.subr.mxu0 0.0
        %4156 = vmatpush1.msra.mxu0 %v4082
        %4157 = vmatprep.subr.mxu0 0.0
        %4158 = vmatpush1.msra.mxu0 %v4081
        %4159 = vmatprep.subr.mxu0 0.0
        %4160 = vmatpush1.msra.mxu0 %v4080
        %4161 = vmatprep.subr.mxu0 0.0
        %4162 = vmatpush1.msra.mxu0 %v4079
        %4163 = vmatprep.subr.mxu0 0.0
        %4164 = vmatpush1.msra.mxu0 %v4078
        %4165 = vmatprep.subr.mxu0 0.0
        %4166 = vmatpush1.msra.mxu0 %v4077
        %4167 = vmatprep.subr.mxu0 0.0
        %4168 = vmatpush1.msra.mxu0 %v4076
        %4169 = vmatprep.subr.mxu0 0.0
        %4170 = vmatpush1.msra.mxu0 %v4075
        %4171 = vmatprep.subr.mxu0 0.0
        %4172 = vmatpush2.msra.mxu0 0.0
        %4173 = vmatprep.subr.mxu0 0.0
        %4174 = vmatpush2.msra.mxu0 0.0
        %4175 = vmatprep.subr.mxu0 0.0
        %4176 = vmatpush2.msra.mxu0 0.0
        %4177 = vmatprep.subr.mxu0 0.0
        %4178 = vmatpush2.msra.mxu0 0.0
        %4179 = vmatprep.subr.mxu0 0.0
        %4180 = vmatpush2.msra.mxu0 0.0
        %4181 = vmatprep.subr.mxu0 0.0
        %4182 = vmatpush2.msra.mxu0 0.0
        %4183 = vmatprep.subr.mxu0 0.0
        %4184 = vmatpush2.msra.mxu0 0.0
        %4185 = vmatprep.subr.mxu0 0.0
        %4186 = vmatpush2.msra.mxu0 0.0
        %4187 = vmatprep.subr.mxu0 0.0
        %4188 = vmatpush2.msra.mxu0 0.0
        %4189 = vmatprep.subr.mxu0 0.0
        %4190 = vmatpush2.msra.mxu0 0.0
        %4191 = vmatprep.subr.mxu0 0.0
        %4192 = vmatpush2.msra.mxu0 0.0
        %4193 = vmatprep.subr.mxu0 0.0
        %4194 = vmatpush2.msra.mxu0 0.0
        %4195 = vmatprep.subr.mxu0 0.0
        %4196 = vmatpush2.msra.mxu0 0.0
        %4197 = vmatprep.subr.mxu0 0.0
        %4198 = vmatpush2.msra.mxu0 0.0
        %4199 = vmatprep.subr.mxu0 0.0
        %4200 = vmatpush2.msra.mxu0 0.0
        %4201 = vmatprep.subr.mxu0 0.0
        %4202 = vmatpush2.msra.mxu0 0.0
        %4203 = vmatprep.mubr.f32.mxu0 0.0
        %4204 = vmatmul.mubr.f32.gmra.mxu0 %v1669
        %v4205 = vpop.f32.mrf.mxu0
        %v4206 = vadd.f32 0.0, %v4205
        %v4207 = vpop.f32.mrf.mxu0
        %4208 = vmatprep.mubr.f32.mxu0 0.0
        %4209 = vmatmul.mubr.f32.gmra.mxu0 %v1670
        %v4210 = vpop.f32.mrf.mxu0
        %v4211 = vadd.f32 0.0, %v4210
        %v4212 = vpop.f32.mrf.mxu0
        %4213 = vmatprep.mubr.f32.mxu0 0.0
        %4214 = vmatmul.mubr.f32.gmra.mxu0 %v1671
        %v4215 = vpop.f32.mrf.mxu0
        %v4216 = vadd.f32 0.0, %v4215
        %v4217 = vpop.f32.mrf.mxu0
        %4218 = vmatprep.mubr.f32.mxu0 0.0
        %4219 = vmatmul.mubr.f32.gmra.mxu0 %v1672
        %v4220 = vpop.f32.mrf.mxu0
        %v4221 = vadd.f32 0.0, %v4220
        %v4222 = vpop.f32.mrf.mxu0
        %4223 = vmatprep.mubr.f32.mxu0 0.0
        %4224 = vmatmul.mubr.f32.gmra.mxu0 %v1673
        %v4225 = vpop.f32.mrf.mxu0
        %v4226 = vadd.f32 0.0, %v4225
        %v4227 = vpop.f32.mrf.mxu0
        %4228 = vmatprep.mubr.f32.mxu0 0.0
        %4229 = vmatmul.mubr.f32.gmra.mxu0 %v1674
        %v4230 = vpop.f32.mrf.mxu0
        %v4231 = vadd.f32 0.0, %v4230
        %v4232 = vpop.f32.mrf.mxu0
        %4233 = vmatprep.mubr.f32.mxu0 0.0
        %4234 = vmatmul.mubr.f32.gmra.mxu0 %v1675
        %v4235 = vpop.f32.mrf.mxu0
        %v4236 = vadd.f32 0.0, %v4235
        %v4237 = vpop.f32.mrf.mxu0
        %4238 = vmatprep.mubr.f32.mxu0 0.0
        %4239 = vmatmul.mubr.f32.gmra.mxu0 %v1676
        %v4240 = vpop.f32.mrf.mxu0
        %v4241 = vadd.f32 0.0, %v4240
        %v4242 = vpop.f32.mrf.mxu0
        %4243 = vdwg.mxu0
        %4244 = vmatprep.subr.mxu0 0.0
        %4245 = vmatpush1.msra.mxu0 %v1766
        %4246 = vmatprep.subr.mxu0 0.0
        %4247 = vmatpush1.msra.mxu0 %v1765
        %4248 = vmatprep.subr.mxu0 0.0
        %4249 = vmatpush1.msra.mxu0 %v1764
        %4250 = vmatprep.subr.mxu0 0.0
        %4251 = vmatpush1.msra.mxu0 %v1763
        %4252 = vmatprep.subr.mxu0 0.0
        %4253 = vmatpush1.msra.mxu0 %v1762
        %4254 = vmatprep.subr.mxu0 0.0
        %4255 = vmatpush1.msra.mxu0 %v1761
        %4256 = vmatprep.subr.mxu0 0.0
        %4257 = vmatpush1.msra.mxu0 %v1760
        %4258 = vmatprep.subr.mxu0 0.0
        %4259 = vmatpush1.msra.mxu0 %v1759
        %4260 = vmatprep.subr.mxu0 0.0
        %4261 = vmatpush1.msra.mxu0 %v1758
        %4262 = vmatprep.subr.mxu0 0.0
        %4263 = vmatpush1.msra.mxu0 %v1757
        %4264 = vmatprep.subr.mxu0 0.0
        %4265 = vmatpush1.msra.mxu0 %v1756
        %4266 = vmatprep.subr.mxu0 0.0
        %4267 = vmatpush1.msra.mxu0 %v1755
        %4268 = vmatprep.subr.mxu0 0.0
        %4269 = vmatpush1.msra.mxu0 %v1754
        %4270 = vmatprep.subr.mxu0 0.0
        %4271 = vmatpush1.msra.mxu0 %v1753
        %4272 = vmatprep.subr.mxu0 0.0
        %4273 = vmatpush1.msra.mxu0 %v1752
        %4274 = vmatprep.subr.mxu0 0.0
        %4275 = vmatpush1.msra.mxu0 %v1751
        %4276 = vmatprep.subr.mxu0 0.0
        %4277 = vmatpush2.msra.mxu0 0.0
        %4278 = vmatprep.subr.mxu0 0.0
        %4279 = vmatpush2.msra.mxu0 0.0
        %4280 = vmatprep.subr.mxu0 0.0
        %4281 = vmatpush2.msra.mxu0 0.0
        %4282 = vmatprep.subr.mxu0 0.0
        %4283 = vmatpush2.msra.mxu0 0.0
        %4284 = vmatprep.subr.mxu0 0.0
        %4285 = vmatpush2.msra.mxu0 0.0
        %4286 = vmatprep.subr.mxu0 0.0
        %4287 = vmatpush2.msra.mxu0 0.0
        %4288 = vmatprep.subr.mxu0 0.0
        %4289 = vmatpush2.msra.mxu0 0.0
        %4290 = vmatprep.subr.mxu0 0.0
        %4291 = vmatpush2.msra.mxu0 0.0
        %4292 = vmatprep.subr.mxu0 0.0
        %4293 = vmatpush2.msra.mxu0 0.0
        %4294 = vmatprep.subr.mxu0 0.0
        %4295 = vmatpush2.msra.mxu0 0.0
        %4296 = vmatprep.subr.mxu0 0.0
        %4297 = vmatpush2.msra.mxu0 0.0
        %4298 = vmatprep.subr.mxu0 0.0
        %4299 = vmatpush2.msra.mxu0 0.0
        %4300 = vmatprep.subr.mxu0 0.0
        %4301 = vmatpush2.msra.mxu0 0.0
        %4302 = vmatprep.subr.mxu0 0.0
        %4303 = vmatpush2.msra.mxu0 0.0
        %4304 = vmatprep.subr.mxu0 0.0
        %4305 = vmatpush2.msra.mxu0 0.0
        %4306 = vmatprep.subr.mxu0 0.0
        %4307 = vmatpush2.msra.mxu0 0.0
        %4308 = vmatprep.mubr.f32.mxu0 0.0
        %4309 = vmatmul.mubr.f32.gmra.mxu0 %v4206
        %v4310 = vpop.f32.mrf.mxu0
        %v4311 = vadd.f32 0.0, %v4310
        %v4312 = vpop.f32.mrf.mxu0
        %4313 = vmatprep.mubr.f32.mxu0 0.0
        %4314 = vmatmul.mubr.f32.gmra.mxu0 %v4211
        %v4315 = vpop.f32.mrf.mxu0
        %v4316 = vadd.f32 0.0, %v4315
        %v4317 = vpop.f32.mrf.mxu0
        %4318 = vmatprep.mubr.f32.mxu0 0.0
        %4319 = vmatmul.mubr.f32.gmra.mxu0 %v4216
        %v4320 = vpop.f32.mrf.mxu0
        %v4321 = vadd.f32 0.0, %v4320
        %v4322 = vpop.f32.mrf.mxu0
        %4323 = vmatprep.mubr.f32.mxu0 0.0
        %4324 = vmatmul.mubr.f32.gmra.mxu0 %v4221
        %v4325 = vpop.f32.mrf.mxu0
        %v4326 = vadd.f32 0.0, %v4325
        %v4327 = vpop.f32.mrf.mxu0
        %4328 = vmatprep.mubr.f32.mxu0 0.0
        %4329 = vmatmul.mubr.f32.gmra.mxu0 %v4226
        %v4330 = vpop.f32.mrf.mxu0
        %v4331 = vadd.f32 0.0, %v4330
        %v4332 = vpop.f32.mrf.mxu0
        %4333 = vmatprep.mubr.f32.mxu0 0.0
        %4334 = vmatmul.mubr.f32.gmra.mxu0 %v4231
        %v4335 = vpop.f32.mrf.mxu0
        %v4336 = vadd.f32 0.0, %v4335
        %v4337 = vpop.f32.mrf.mxu0
        %4338 = vmatprep.mubr.f32.mxu0 0.0
        %4339 = vmatmul.mubr.f32.gmra.mxu0 %v4236
        %v4340 = vpop.f32.mrf.mxu0
        %v4341 = vadd.f32 0.0, %v4340
        %v4342 = vpop.f32.mrf.mxu0
        %4343 = vmatprep.mubr.f32.mxu0 0.0
        %4344 = vmatmul.mubr.f32.gmra.mxu0 %v4241
        %v4345 = vpop.f32.mrf.mxu0
        %v4346 = vadd.f32 0.0, %v4345
        %v4347 = vpop.f32.mrf.mxu0
        %4348 = vdwg.mxu0
        %vm4349 = vcmp.gt.f32.partialorder %v4311, 0.5
        %vm4350 = vcmp.gt.f32.partialorder %v4316, 0.5
        %vm4351 = vcmp.gt.f32.partialorder %v4321, 0.5
        %vm4352 = vcmp.gt.f32.partialorder %v4326, 0.5
        %vm4353 = vcmp.gt.f32.partialorder %v4331, 0.5
        %vm4354 = vcmp.gt.f32.partialorder %v4336, 0.5
        %vm4355 = vcmp.gt.f32.partialorder %v4341, 0.5
        %vm4356 = vcmp.gt.f32.partialorder %v4346, 0.5
        %v4357 = vsel %vm4349, 1, 0
        %v4358 = vsel %vm4350, 1, 0
        %v4359 = vsel %vm4351, 1, 0
        %v4360 = vsel %vm4352, 1, 0
        %v4361 = vsel %vm4353, 1, 0
        %v4362 = vsel %vm4354, 1, 0
        %v4363 = vsel %vm4355, 1, 0
        %v4364 = vsel %vm4356, 1, 0
        %v4365 = vcvt.s32.f32 %v4357
        %v4366 = vcvt.s32.f32 %v4358
        %v4367 = vcvt.s32.f32 %v4359
        %v4368 = vcvt.s32.f32 %v4360
        %v4369 = vcvt.s32.f32 %v4361
        %v4370 = vcvt.s32.f32 %v4362
        %v4371 = vcvt.s32.f32 %v4363
        %v4372 = vcvt.s32.f32 %v4364
        %v4373 = vpack.c.bf16 %v4366, %v4365
        %v4374 = vpack.c.bf16 %v4368, %v4367
        %v4375 = vpack.c.bf16 %v4370, %v4369
        %v4376 = vpack.c.bf16 %v4372, %v4371
        %v4381 = vunpack.c.l.b16 %v4373
        %v4382 = vunpack.c.h.b16 %v4373
        %v4383 = vunpack.c.l.b16 %v4374
        %v4384 = vunpack.c.h.b16 %v4374
        %v4385 = vunpack.c.l.b16 %v4375
        %v4386 = vunpack.c.h.b16 %v4375
        %v4387 = vunpack.c.l.b16 %v4376
        %v4388 = vunpack.c.h.b16 %v4376
        %v4389 = vpack.c.b16 %v4381, %v4381
        %v4390 = vpack.c.b16 %v4382, %v4382
        %v4391 = vpack.c.b16 %v4383, %v4383
        %v4392 = vpack.c.b16 %v4384, %v4384
        %v4393 = vpack.c.b16 %v4385, %v4385
        %v4394 = vpack.c.b16 %v4386, %v4386
        %v4395 = vpack.c.b16 %v4387, %v4387
        %v4396 = vpack.c.b16 %v4388, %v4388
        %s4405 = scalar_lea.vmem %s271, 32 [#allocation14]
        %4406 = vst.msk [vmem:[%s4405] sm:$0xf] %vm3081, %v4389
        %4407 = vst.msk [vmem:[%s4405 + $0x4] sm:$0xf] %vm3081, %v4390
        %4408 = vst.msk [vmem:[%s4405 + $0x8] sm:$0xf] %vm3081, %v4391
        %4409 = vst.msk [vmem:[%s4405 + $0xc] sm:$0xf] %vm3081, %v4392
        %4410 = vst.msk [vmem:[%s4405 + $0x10] sm:$0xf] %vm3081, %v4393
        %4411 = vst.msk [vmem:[%s4405 + $0x14] sm:$0xf] %vm3081, %v4394
        %4412 = vst.msk [vmem:[%s4405 + $0x18] sm:$0xf] %vm3081, %v4395
        %4413 = vst.msk [vmem:[%s4405 + $0x1c] sm:$0xf] %vm3081, %v4396
        %s4414 = sld [smem:[#allocation5 + $0x100]]
        %v4415 = vld [vmem:[#allocation3] sm:$0xff]
        %v4416 = vld [vmem:[#allocation3 + $0x8] sm:$0xff]
        %v4417 = vld [vmem:[#allocation3 + $0x10] sm:$0xff]
        %v4418 = vld [vmem:[#allocation3 + $0x18] sm:$0xff]
        %v4419 = vld [vmem:[#allocation3 + $0x20] sm:$0xff]
        %v4420 = vld [vmem:[#allocation3 + $0x28] sm:$0xff]
        %v4421 = vld [vmem:[#allocation3 + $0x30] sm:$0xff]
        %v4422 = vld [vmem:[#allocation3 + $0x38] sm:$0xff]
        %v4423 = vld [vmem:[#allocation3 + $0x40] sm:$0xff]
        %v4424 = vld [vmem:[#allocation3 + $0x48] sm:$0xff]
        %v4425 = vld [vmem:[#allocation3 + $0x50] sm:$0xff]
        %v4426 = vld [vmem:[#allocation3 + $0x58] sm:$0xff]
        %v4427 = vld [vmem:[#allocation3 + $0x60] sm:$0xff]
        %v4428 = vld [vmem:[#allocation3 + $0x68] sm:$0xff]
        %v4429 = vld [vmem:[#allocation3 + $0x70] sm:$0xff]
        %v4430 = vld [vmem:[#allocation3 + $0x78] sm:$0xff]
        %v4431 = vstv %s4414
        %v4432 = vmul.f32 %v4431, %v4415
        %v4433 = vmul.f32 %v4431, %v4416
        %v4434 = vmul.f32 %v4431, %v4417
        %v4435 = vmul.f32 %v4431, %v4418
        %v4436 = vmul.f32 %v4431, %v4419
        %v4437 = vmul.f32 %v4431, %v4420
        %v4438 = vmul.f32 %v4431, %v4421
        %v4439 = vmul.f32 %v4431, %v4422
        %v4440 = vmul.f32 %v4431, %v4423
        %v4441 = vmul.f32 %v4431, %v4424
        %v4442 = vmul.f32 %v4431, %v4425
        %v4443 = vmul.f32 %v4431, %v4426
        %v4444 = vmul.f32 %v4431, %v4427
        %v4445 = vmul.f32 %v4431, %v4428
        %v4446 = vmul.f32 %v4431, %v4429
        %v4447 = vmul.f32 %v4431, %v4430
        %s4448 = sld [smem:[#allocation5 + $0x101]]
        %v4449 = vld [vmem:[%s760] sm:$0xff]
        %v4450 = vld [vmem:[%s760 + $0x8] sm:$0xff]
        %v4451 = vld [vmem:[%s760 + $0x10] sm:$0xff]
        %v4452 = vld [vmem:[%s760 + $0x18] sm:$0xff]
        %v4453 = vld [vmem:[%s760 + $0x20] sm:$0xff]
        %v4454 = vld [vmem:[%s760 + $0x28] sm:$0xff]
        %v4455 = vld [vmem:[%s760 + $0x30] sm:$0xff]
        %v4456 = vld [vmem:[%s760 + $0x38] sm:$0xff]
        %v4457 = vld [vmem:[%s760 + $0x40] sm:$0xff]
        %v4458 = vld [vmem:[%s760 + $0x48] sm:$0xff]
        %v4459 = vld [vmem:[%s760 + $0x50] sm:$0xff]
        %v4460 = vld [vmem:[%s760 + $0x58] sm:$0xff]
        %v4461 = vld [vmem:[%s760 + $0x60] sm:$0xff]
        %v4462 = vld [vmem:[%s760 + $0x68] sm:$0xff]
        %v4463 = vld [vmem:[%s760 + $0x70] sm:$0xff]
        %v4464 = vld [vmem:[%s760 + $0x78] sm:$0xff]
        %v4465 = vstv %s4448
        %v4466 = vmul.f32 %v4465, %v4449
        %v4467 = vmul.f32 %v4465, %v4450
        %v4468 = vmul.f32 %v4465, %v4451
        %v4469 = vmul.f32 %v4465, %v4452
        %v4470 = vmul.f32 %v4465, %v4453
        %v4471 = vmul.f32 %v4465, %v4454
        %v4472 = vmul.f32 %v4465, %v4455
        %v4473 = vmul.f32 %v4465, %v4456
        %v4474 = vmul.f32 %v4465, %v4457
        %v4475 = vmul.f32 %v4465, %v4458
        %v4476 = vmul.f32 %v4465, %v4459
        %v4477 = vmul.f32 %v4465, %v4460
        %v4478 = vmul.f32 %v4465, %v4461
        %v4479 = vmul.f32 %v4465, %v4462
        %v4480 = vmul.f32 %v4465, %v4463
        %v4481 = vmul.f32 %v4465, %v4464
        %v4482 = vadd.f32 %v4432, %v4466
        %v4483 = vadd.f32 %v4433, %v4467
        %v4484 = vadd.f32 %v4434, %v4468
        %v4485 = vadd.f32 %v4435, %v4469
        %v4486 = vadd.f32 %v4436, %v4470
        %v4487 = vadd.f32 %v4437, %v4471
        %v4488 = vadd.f32 %v4438, %v4472
        %v4489 = vadd.f32 %v4439, %v4473
        %v4490 = vadd.f32 %v4440, %v4474
        %v4491 = vadd.f32 %v4441, %v4475
        %v4492 = vadd.f32 %v4442, %v4476
        %v4493 = vadd.f32 %v4443, %v4477
        %v4494 = vadd.f32 %v4444, %v4478
        %v4495 = vadd.f32 %v4445, %v4479
        %v4496 = vadd.f32 %v4446, %v4480
        %v4497 = vadd.f32 %v4447, %v4481
        %s4498 = sld [smem:[#allocation5 + $0x102]]
        %v4499 = vld [vmem:[%s874] sm:$0xff]
        %v4500 = vld [vmem:[%s874 + $0x8] sm:$0xff]
        %v4501 = vld [vmem:[%s874 + $0x10] sm:$0xff]
        %v4502 = vld [vmem:[%s874 + $0x18] sm:$0xff]
        %v4503 = vld [vmem:[%s874 + $0x20] sm:$0xff]
        %v4504 = vld [vmem:[%s874 + $0x28] sm:$0xff]
        %v4505 = vld [vmem:[%s874 + $0x30] sm:$0xff]
        %v4506 = vld [vmem:[%s874 + $0x38] sm:$0xff]
        %v4507 = vld [vmem:[%s874 + $0x40] sm:$0xff]
        %v4508 = vld [vmem:[%s874 + $0x48] sm:$0xff]
        %v4509 = vld [vmem:[%s874 + $0x50] sm:$0xff]
        %v4510 = vld [vmem:[%s874 + $0x58] sm:$0xff]
        %v4511 = vld [vmem:[%s874 + $0x60] sm:$0xff]
        %v4512 = vld [vmem:[%s874 + $0x68] sm:$0xff]
        %v4513 = vld [vmem:[%s874 + $0x70] sm:$0xff]
        %v4514 = vld [vmem:[%s874 + $0x78] sm:$0xff]
        %v4515 = vstv %s4498
        %v4516 = vmul.f32 %v4515, %v4499
        %v4517 = vmul.f32 %v4515, %v4500
        %v4518 = vmul.f32 %v4515, %v4501
        %v4519 = vmul.f32 %v4515, %v4502
        %v4520 = vmul.f32 %v4515, %v4503
        %v4521 = vmul.f32 %v4515, %v4504
        %v4522 = vmul.f32 %v4515, %v4505
        %v4523 = vmul.f32 %v4515, %v4506
        %v4524 = vmul.f32 %v4515, %v4507
        %v4525 = vmul.f32 %v4515, %v4508
        %v4526 = vmul.f32 %v4515, %v4509
        %v4527 = vmul.f32 %v4515, %v4510
        %v4528 = vmul.f32 %v4515, %v4511
        %v4529 = vmul.f32 %v4515, %v4512
        %v4530 = vmul.f32 %v4515, %v4513
        %v4531 = vmul.f32 %v4515, %v4514
        %v4532 = vadd.f32 %v4482, %v4516
        %v4533 = vadd.f32 %v4483, %v4517
        %v4534 = vadd.f32 %v4484, %v4518
        %v4535 = vadd.f32 %v4485, %v4519
        %v4536 = vadd.f32 %v4486, %v4520
        %v4537 = vadd.f32 %v4487, %v4521
        %v4538 = vadd.f32 %v4488, %v4522
        %v4539 = vadd.f32 %v4489, %v4523
        %v4540 = vadd.f32 %v4490, %v4524
        %v4541 = vadd.f32 %v4491, %v4525
        %v4542 = vadd.f32 %v4492, %v4526
        %v4543 = vadd.f32 %v4493, %v4527
        %v4544 = vadd.f32 %v4494, %v4528
        %v4545 = vadd.f32 %v4495, %v4529
        %v4546 = vadd.f32 %v4496, %v4530
        %v4547 = vadd.f32 %v4497, %v4531
        %s4548 = sld [smem:[#allocation5 + $0x103]]
        %v4549 = vld [vmem:[%s891] sm:$0xff]
        %v4550 = vld [vmem:[%s891 + $0x8] sm:$0xff]
        %v4551 = vld [vmem:[%s891 + $0x10] sm:$0xff]
        %v4552 = vld [vmem:[%s891 + $0x18] sm:$0xff]
        %v4553 = vld [vmem:[%s891 + $0x20] sm:$0xff]
        %v4554 = vld [vmem:[%s891 + $0x28] sm:$0xff]
        %v4555 = vld [vmem:[%s891 + $0x30] sm:$0xff]
        %v4556 = vld [vmem:[%s891 + $0x38] sm:$0xff]
        %v4557 = vld [vmem:[%s891 + $0x40] sm:$0xff]
        %v4558 = vld [vmem:[%s891 + $0x48] sm:$0xff]
        %v4559 = vld [vmem:[%s891 + $0x50] sm:$0xff]
        %v4560 = vld [vmem:[%s891 + $0x58] sm:$0xff]
        %v4561 = vld [vmem:[%s891 + $0x60] sm:$0xff]
        %v4562 = vld [vmem:[%s891 + $0x68] sm:$0xff]
        %v4563 = vld [vmem:[%s891 + $0x70] sm:$0xff]
        %v4564 = vld [vmem:[%s891 + $0x78] sm:$0xff]
        %v4565 = vstv %s4548
        %v4566 = vmul.f32 %v4565, %v4549
        %v4567 = vmul.f32 %v4565, %v4550
        %v4568 = vmul.f32 %v4565, %v4551
        %v4569 = vmul.f32 %v4565, %v4552
        %v4570 = vmul.f32 %v4565, %v4553
        %v4571 = vmul.f32 %v4565, %v4554
        %v4572 = vmul.f32 %v4565, %v4555
        %v4573 = vmul.f32 %v4565, %v4556
        %v4574 = vmul.f32 %v4565, %v4557
        %v4575 = vmul.f32 %v4565, %v4558
        %v4576 = vmul.f32 %v4565, %v4559
        %v4577 = vmul.f32 %v4565, %v4560
        %v4578 = vmul.f32 %v4565, %v4561
        %v4579 = vmul.f32 %v4565, %v4562
        %v4580 = vmul.f32 %v4565, %v4563
        %v4581 = vmul.f32 %v4565, %v4564
        %v4582 = vadd.f32 %v4532, %v4566
        %v4583 = vadd.f32 %v4533, %v4567
        %v4584 = vadd.f32 %v4534, %v4568
        %v4585 = vadd.f32 %v4535, %v4569
        %v4586 = vadd.f32 %v4536, %v4570
        %v4587 = vadd.f32 %v4537, %v4571
        %v4588 = vadd.f32 %v4538, %v4572
        %v4589 = vadd.f32 %v4539, %v4573
        %v4590 = vadd.f32 %v4540, %v4574
        %v4591 = vadd.f32 %v4541, %v4575
        %v4592 = vadd.f32 %v4542, %v4576
        %v4593 = vadd.f32 %v4543, %v4577
        %v4594 = vadd.f32 %v4544, %v4578
        %v4595 = vadd.f32 %v4545, %v4579
        %v4596 = vadd.f32 %v4546, %v4580
        %v4597 = vadd.f32 %v4547, %v4581
        %s4598 = sld [smem:[#allocation5 + $0x104]]
        %v4599 = vld [vmem:[%s917] sm:$0xff]
        %v4600 = vld [vmem:[%s917 + $0x8] sm:$0xff]
        %v4601 = vld [vmem:[%s917 + $0x10] sm:$0xff]
        %v4602 = vld [vmem:[%s917 + $0x18] sm:$0xff]
        %v4603 = vld [vmem:[%s917 + $0x20] sm:$0xff]
        %v4604 = vld [vmem:[%s917 + $0x28] sm:$0xff]
        %v4605 = vld [vmem:[%s917 + $0x30] sm:$0xff]
        %v4606 = vld [vmem:[%s917 + $0x38] sm:$0xff]
        %v4607 = vld [vmem:[%s917 + $0x40] sm:$0xff]
        %v4608 = vld [vmem:[%s917 + $0x48] sm:$0xff]
        %v4609 = vld [vmem:[%s917 + $0x50] sm:$0xff]
        %v4610 = vld [vmem:[%s917 + $0x58] sm:$0xff]
        %v4611 = vld [vmem:[%s917 + $0x60] sm:$0xff]
        %v4612 = vld [vmem:[%s917 + $0x68] sm:$0xff]
        %v4613 = vld [vmem:[%s917 + $0x70] sm:$0xff]
        %v4614 = vld [vmem:[%s917 + $0x78] sm:$0xff]
        %v4615 = vstv %s4598
        %v4616 = vmul.f32 %v4615, %v4599
        %v4617 = vmul.f32 %v4615, %v4600
        %v4618 = vmul.f32 %v4615, %v4601
        %v4619 = vmul.f32 %v4615, %v4602
        %v4620 = vmul.f32 %v4615, %v4603
        %v4621 = vmul.f32 %v4615, %v4604
        %v4622 = vmul.f32 %v4615, %v4605
        %v4623 = vmul.f32 %v4615, %v4606
        %v4624 = vmul.f32 %v4615, %v4607
        %v4625 = vmul.f32 %v4615, %v4608
        %v4626 = vmul.f32 %v4615, %v4609
        %v4627 = vmul.f32 %v4615, %v4610
        %v4628 = vmul.f32 %v4615, %v4611
        %v4629 = vmul.f32 %v4615, %v4612
        %v4630 = vmul.f32 %v4615, %v4613
        %v4631 = vmul.f32 %v4615, %v4614
        %v4632 = vadd.f32 %v4582, %v4616
        %v4633 = vadd.f32 %v4583, %v4617
        %v4634 = vadd.f32 %v4584, %v4618
        %v4635 = vadd.f32 %v4585, %v4619
        %v4636 = vadd.f32 %v4586, %v4620
        %v4637 = vadd.f32 %v4587, %v4621
        %v4638 = vadd.f32 %v4588, %v4622
        %v4639 = vadd.f32 %v4589, %v4623
        %v4640 = vadd.f32 %v4590, %v4624
        %v4641 = vadd.f32 %v4591, %v4625
        %v4642 = vadd.f32 %v4592, %v4626
        %v4643 = vadd.f32 %v4593, %v4627
        %v4644 = vadd.f32 %v4594, %v4628
        %v4645 = vadd.f32 %v4595, %v4629
        %v4646 = vadd.f32 %v4596, %v4630
        %v4647 = vadd.f32 %v4597, %v4631
        %s4648 = sld [smem:[#allocation5 + $0x105]]
        %v4649 = vld [vmem:[%s941] sm:$0xff]
        %v4650 = vld [vmem:[%s941 + $0x8] sm:$0xff]
        %v4651 = vld [vmem:[%s941 + $0x10] sm:$0xff]
        %v4652 = vld [vmem:[%s941 + $0x18] sm:$0xff]
        %v4653 = vld [vmem:[%s941 + $0x20] sm:$0xff]
        %v4654 = vld [vmem:[%s941 + $0x28] sm:$0xff]
        %v4655 = vld [vmem:[%s941 + $0x30] sm:$0xff]
        %v4656 = vld [vmem:[%s941 + $0x38] sm:$0xff]
        %v4657 = vld [vmem:[%s941 + $0x40] sm:$0xff]
        %v4658 = vld [vmem:[%s941 + $0x48] sm:$0xff]
        %v4659 = vld [vmem:[%s941 + $0x50] sm:$0xff]
        %v4660 = vld [vmem:[%s941 + $0x58] sm:$0xff]
        %v4661 = vld [vmem:[%s941 + $0x60] sm:$0xff]
        %v4662 = vld [vmem:[%s941 + $0x68] sm:$0xff]
        %v4663 = vld [vmem:[%s941 + $0x70] sm:$0xff]
        %v4664 = vld [vmem:[%s941 + $0x78] sm:$0xff]
        %v4665 = vstv %s4648
        %v4666 = vmul.f32 %v4665, %v4649
        %v4667 = vmul.f32 %v4665, %v4650
        %v4668 = vmul.f32 %v4665, %v4651
        %v4669 = vmul.f32 %v4665, %v4652
        %v4670 = vmul.f32 %v4665, %v4653
        %v4671 = vmul.f32 %v4665, %v4654
        %v4672 = vmul.f32 %v4665, %v4655
        %v4673 = vmul.f32 %v4665, %v4656
        %v4674 = vmul.f32 %v4665, %v4657
        %v4675 = vmul.f32 %v4665, %v4658
        %v4676 = vmul.f32 %v4665, %v4659
        %v4677 = vmul.f32 %v4665, %v4660
        %v4678 = vmul.f32 %v4665, %v4661
        %v4679 = vmul.f32 %v4665, %v4662
        %v4680 = vmul.f32 %v4665, %v4663
        %v4681 = vmul.f32 %v4665, %v4664
        %v4682 = vadd.f32 %v4632, %v4666
        %v4683 = vadd.f32 %v4633, %v4667
        %v4684 = vadd.f32 %v4634, %v4668
        %v4685 = vadd.f32 %v4635, %v4669
        %v4686 = vadd.f32 %v4636, %v4670
        %v4687 = vadd.f32 %v4637, %v4671
        %v4688 = vadd.f32 %v4638, %v4672
        %v4689 = vadd.f32 %v4639, %v4673
        %v4690 = vadd.f32 %v4640, %v4674
        %v4691 = vadd.f32 %v4641, %v4675
        %v4692 = vadd.f32 %v4642, %v4676
        %v4693 = vadd.f32 %v4643, %v4677
        %v4694 = vadd.f32 %v4644, %v4678
        %v4695 = vadd.f32 %v4645, %v4679
        %v4696 = vadd.f32 %v4646, %v4680
        %v4697 = vadd.f32 %v4647, %v4681
        %s4698 = sld [smem:[#allocation5 + $0x106]]
        %v4699 = vld [vmem:[%s959] sm:$0xff]
        %v4700 = vld [vmem:[%s959 + $0x8] sm:$0xff]
        %v4701 = vld [vmem:[%s959 + $0x10] sm:$0xff]
        %v4702 = vld [vmem:[%s959 + $0x18] sm:$0xff]
        %v4703 = vld [vmem:[%s959 + $0x20] sm:$0xff]
        %v4704 = vld [vmem:[%s959 + $0x28] sm:$0xff]
        %v4705 = vld [vmem:[%s959 + $0x30] sm:$0xff]
        %v4706 = vld [vmem:[%s959 + $0x38] sm:$0xff]
        %v4707 = vld [vmem:[%s959 + $0x40] sm:$0xff]
        %v4708 = vld [vmem:[%s959 + $0x48] sm:$0xff]
        %v4709 = vld [vmem:[%s959 + $0x50] sm:$0xff]
        %v4710 = vld [vmem:[%s959 + $0x58] sm:$0xff]
        %v4711 = vld [vmem:[%s959 + $0x60] sm:$0xff]
        %v4712 = vld [vmem:[%s959 + $0x68] sm:$0xff]
        %v4713 = vld [vmem:[%s959 + $0x70] sm:$0xff]
        %v4714 = vld [vmem:[%s959 + $0x78] sm:$0xff]
        %v4715 = vstv %s4698
        %v4716 = vmul.f32 %v4715, %v4699
        %v4717 = vmul.f32 %v4715, %v4700
        %v4718 = vmul.f32 %v4715, %v4701
        %v4719 = vmul.f32 %v4715, %v4702
        %v4720 = vmul.f32 %v4715, %v4703
        %v4721 = vmul.f32 %v4715, %v4704
        %v4722 = vmul.f32 %v4715, %v4705
        %v4723 = vmul.f32 %v4715, %v4706
        %v4724 = vmul.f32 %v4715, %v4707
        %v4725 = vmul.f32 %v4715, %v4708
        %v4726 = vmul.f32 %v4715, %v4709
        %v4727 = vmul.f32 %v4715, %v4710
        %v4728 = vmul.f32 %v4715, %v4711
        %v4729 = vmul.f32 %v4715, %v4712
        %v4730 = vmul.f32 %v4715, %v4713
        %v4731 = vmul.f32 %v4715, %v4714
        %v4732 = vadd.f32 %v4682, %v4716
        %v4733 = vadd.f32 %v4683, %v4717
        %v4734 = vadd.f32 %v4684, %v4718
        %v4735 = vadd.f32 %v4685, %v4719
        %v4736 = vadd.f32 %v4686, %v4720
        %v4737 = vadd.f32 %v4687, %v4721
        %v4738 = vadd.f32 %v4688, %v4722
        %v4739 = vadd.f32 %v4689, %v4723
        %v4740 = vadd.f32 %v4690, %v4724
        %v4741 = vadd.f32 %v4691, %v4725
        %v4742 = vadd.f32 %v4692, %v4726
        %v4743 = vadd.f32 %v4693, %v4727
        %v4744 = vadd.f32 %v4694, %v4728
        %v4745 = vadd.f32 %v4695, %v4729
        %v4746 = vadd.f32 %v4696, %v4730
        %v4747 = vadd.f32 %v4697, %v4731
        %s4748 = sld [smem:[#allocation5 + $0x107]]
        %v4749 = vld [vmem:[%s977] sm:$0xff]
        %v4750 = vld [vmem:[%s977 + $0x8] sm:$0xff]
        %v4751 = vld [vmem:[%s977 + $0x10] sm:$0xff]
        %v4752 = vld [vmem:[%s977 + $0x18] sm:$0xff]
        %v4753 = vld [vmem:[%s977 + $0x20] sm:$0xff]
        %v4754 = vld [vmem:[%s977 + $0x28] sm:$0xff]
        %v4755 = vld [vmem:[%s977 + $0x30] sm:$0xff]
        %v4756 = vld [vmem:[%s977 + $0x38] sm:$0xff]
        %v4757 = vld [vmem:[%s977 + $0x40] sm:$0xff]
        %v4758 = vld [vmem:[%s977 + $0x48] sm:$0xff]
        %v4759 = vld [vmem:[%s977 + $0x50] sm:$0xff]
        %v4760 = vld [vmem:[%s977 + $0x58] sm:$0xff]
        %v4761 = vld [vmem:[%s977 + $0x60] sm:$0xff]
        %v4762 = vld [vmem:[%s977 + $0x68] sm:$0xff]
        %v4763 = vld [vmem:[%s977 + $0x70] sm:$0xff]
        %v4764 = vld [vmem:[%s977 + $0x78] sm:$0xff]
        %v4765 = vstv %s4748
        %v4766 = vmul.f32 %v4765, %v4749
        %v4767 = vmul.f32 %v4765, %v4750
        %v4768 = vmul.f32 %v4765, %v4751
        %v4769 = vmul.f32 %v4765, %v4752
        %v4770 = vmul.f32 %v4765, %v4753
        %v4771 = vmul.f32 %v4765, %v4754
        %v4772 = vmul.f32 %v4765, %v4755
        %v4773 = vmul.f32 %v4765, %v4756
        %v4774 = vmul.f32 %v4765, %v4757
        %v4775 = vmul.f32 %v4765, %v4758
        %v4776 = vmul.f32 %v4765, %v4759
        %v4777 = vmul.f32 %v4765, %v4760
        %v4778 = vmul.f32 %v4765, %v4761
        %v4779 = vmul.f32 %v4765, %v4762
        %v4780 = vmul.f32 %v4765, %v4763
        %v4781 = vmul.f32 %v4765, %v4764
        %v4782 = vadd.f32 %v4732, %v4766
        %v4783 = vadd.f32 %v4733, %v4767
        %v4784 = vadd.f32 %v4734, %v4768
        %v4785 = vadd.f32 %v4735, %v4769
        %v4786 = vadd.f32 %v4736, %v4770
        %v4787 = vadd.f32 %v4737, %v4771
        %v4788 = vadd.f32 %v4738, %v4772
        %v4789 = vadd.f32 %v4739, %v4773
        %v4790 = vadd.f32 %v4740, %v4774
        %v4791 = vadd.f32 %v4741, %v4775
        %v4792 = vadd.f32 %v4742, %v4776
        %v4793 = vadd.f32 %v4743, %v4777
        %v4794 = vadd.f32 %v4744, %v4778
        %v4795 = vadd.f32 %v4745, %v4779
        %v4796 = vadd.f32 %v4746, %v4780
        %v4797 = vadd.f32 %v4747, %v4781
        %s4798 = sld [smem:[#allocation5 + $0x108]]
        %v4799 = vld [vmem:[%s995] sm:$0xff]
        %v4800 = vld [vmem:[%s995 + $0x8] sm:$0xff]
        %v4801 = vld [vmem:[%s995 + $0x10] sm:$0xff]
        %v4802 = vld [vmem:[%s995 + $0x18] sm:$0xff]
        %v4803 = vld [vmem:[%s995 + $0x20] sm:$0xff]
        %v4804 = vld [vmem:[%s995 + $0x28] sm:$0xff]
        %v4805 = vld [vmem:[%s995 + $0x30] sm:$0xff]
        %v4806 = vld [vmem:[%s995 + $0x38] sm:$0xff]
        %v4807 = vld [vmem:[%s995 + $0x40] sm:$0xff]
        %v4808 = vld [vmem:[%s995 + $0x48] sm:$0xff]
        %v4809 = vld [vmem:[%s995 + $0x50] sm:$0xff]
        %v4810 = vld [vmem:[%s995 + $0x58] sm:$0xff]
        %v4811 = vld [vmem:[%s995 + $0x60] sm:$0xff]
        %v4812 = vld [vmem:[%s995 + $0x68] sm:$0xff]
        %v4813 = vld [vmem:[%s995 + $0x70] sm:$0xff]
        %v4814 = vld [vmem:[%s995 + $0x78] sm:$0xff]
        %v4815 = vstv %s4798
        %v4816 = vmul.f32 %v4815, %v4799
        %v4817 = vmul.f32 %v4815, %v4800
        %v4818 = vmul.f32 %v4815, %v4801
        %v4819 = vmul.f32 %v4815, %v4802
        %v4820 = vmul.f32 %v4815, %v4803
        %v4821 = vmul.f32 %v4815, %v4804
        %v4822 = vmul.f32 %v4815, %v4805
        %v4823 = vmul.f32 %v4815, %v4806
        %v4824 = vmul.f32 %v4815, %v4807
        %v4825 = vmul.f32 %v4815, %v4808
        %v4826 = vmul.f32 %v4815, %v4809
        %v4827 = vmul.f32 %v4815, %v4810
        %v4828 = vmul.f32 %v4815, %v4811
        %v4829 = vmul.f32 %v4815, %v4812
        %v4830 = vmul.f32 %v4815, %v4813
        %v4831 = vmul.f32 %v4815, %v4814
        %v4832 = vadd.f32 %v4782, %v4816
        %v4833 = vadd.f32 %v4783, %v4817
        %v4834 = vadd.f32 %v4784, %v4818
        %v4835 = vadd.f32 %v4785, %v4819
        %v4836 = vadd.f32 %v4786, %v4820
        %v4837 = vadd.f32 %v4787, %v4821
        %v4838 = vadd.f32 %v4788, %v4822
        %v4839 = vadd.f32 %v4789, %v4823
        %v4840 = vadd.f32 %v4790, %v4824
        %v4841 = vadd.f32 %v4791, %v4825
        %v4842 = vadd.f32 %v4792, %v4826
        %v4843 = vadd.f32 %v4793, %v4827
        %v4844 = vadd.f32 %v4794, %v4828
        %v4845 = vadd.f32 %v4795, %v4829
        %v4846 = vadd.f32 %v4796, %v4830
        %v4847 = vadd.f32 %v4797, %v4831
        %s4848 = sld [smem:[#allocation5 + $0x109]]
        %v4849 = vld [vmem:[%s1213] sm:$0xff]
        %v4850 = vld [vmem:[%s1213 + $0x8] sm:$0xff]
        %v4851 = vld [vmem:[%s1213 + $0x10] sm:$0xff]
        %v4852 = vld [vmem:[%s1213 + $0x18] sm:$0xff]
        %v4853 = vld [vmem:[%s1213 + $0x20] sm:$0xff]
        %v4854 = vld [vmem:[%s1213 + $0x28] sm:$0xff]
        %v4855 = vld [vmem:[%s1213 + $0x30] sm:$0xff]
        %v4856 = vld [vmem:[%s1213 + $0x38] sm:$0xff]
        %v4857 = vld [vmem:[%s1213 + $0x40] sm:$0xff]
        %v4858 = vld [vmem:[%s1213 + $0x48] sm:$0xff]
        %v4859 = vld [vmem:[%s1213 + $0x50] sm:$0xff]
        %v4860 = vld [vmem:[%s1213 + $0x58] sm:$0xff]
        %v4861 = vld [vmem:[%s1213 + $0x60] sm:$0xff]
        %v4862 = vld [vmem:[%s1213 + $0x68] sm:$0xff]
        %v4863 = vld [vmem:[%s1213 + $0x70] sm:$0xff]
        %v4864 = vld [vmem:[%s1213 + $0x78] sm:$0xff]
        %v4865 = vstv %s4848
        %v4866 = vmul.f32 %v4865, %v4849
        %v4867 = vmul.f32 %v4865, %v4850
        %v4868 = vmul.f32 %v4865, %v4851
        %v4869 = vmul.f32 %v4865, %v4852
        %v4870 = vmul.f32 %v4865, %v4853
        %v4871 = vmul.f32 %v4865, %v4854
        %v4872 = vmul.f32 %v4865, %v4855
        %v4873 = vmul.f32 %v4865, %v4856
        %v4874 = vmul.f32 %v4865, %v4857
        %v4875 = vmul.f32 %v4865, %v4858
        %v4876 = vmul.f32 %v4865, %v4859
        %v4877 = vmul.f32 %v4865, %v4860
        %v4878 = vmul.f32 %v4865, %v4861
        %v4879 = vmul.f32 %v4865, %v4862
        %v4880 = vmul.f32 %v4865, %v4863
        %v4881 = vmul.f32 %v4865, %v4864
        %v4882 = vadd.f32 %v4832, %v4866
        %v4883 = vadd.f32 %v4833, %v4867
        %v4884 = vadd.f32 %v4834, %v4868
        %v4885 = vadd.f32 %v4835, %v4869
        %v4886 = vadd.f32 %v4836, %v4870
        %v4887 = vadd.f32 %v4837, %v4871
        %v4888 = vadd.f32 %v4838, %v4872
        %v4889 = vadd.f32 %v4839, %v4873
        %v4890 = vadd.f32 %v4840, %v4874
        %v4891 = vadd.f32 %v4841, %v4875
        %v4892 = vadd.f32 %v4842, %v4876
        %v4893 = vadd.f32 %v4843, %v4877
        %v4894 = vadd.f32 %v4844, %v4878
        %v4895 = vadd.f32 %v4845, %v4879
        %v4896 = vadd.f32 %v4846, %v4880
        %v4897 = vadd.f32 %v4847, %v4881
        %s4898 = sld [smem:[#allocation5 + $0x10a]]
        %v4899 = vld [vmem:[%s1358] sm:$0xff]
        %v4900 = vld [vmem:[%s1358 + $0x8] sm:$0xff]
        %v4901 = vld [vmem:[%s1358 + $0x10] sm:$0xff]
        %v4902 = vld [vmem:[%s1358 + $0x18] sm:$0xff]
        %v4903 = vld [vmem:[%s1358 + $0x20] sm:$0xff]
        %v4904 = vld [vmem:[%s1358 + $0x28] sm:$0xff]
        %v4905 = vld [vmem:[%s1358 + $0x30] sm:$0xff]
        %v4906 = vld [vmem:[%s1358 + $0x38] sm:$0xff]
        %v4907 = vld [vmem:[%s1358 + $0x40] sm:$0xff]
        %v4908 = vld [vmem:[%s1358 + $0x48] sm:$0xff]
        %v4909 = vld [vmem:[%s1358 + $0x50] sm:$0xff]
        %v4910 = vld [vmem:[%s1358 + $0x58] sm:$0xff]
        %v4911 = vld [vmem:[%s1358 + $0x60] sm:$0xff]
        %v4912 = vld [vmem:[%s1358 + $0x68] sm:$0xff]
        %v4913 = vld [vmem:[%s1358 + $0x70] sm:$0xff]
        %v4914 = vld [vmem:[%s1358 + $0x78] sm:$0xff]
        %v4915 = vstv %s4898
        %v4916 = vmul.f32 %v4915, %v4899
        %v4917 = vmul.f32 %v4915, %v4900
        %v4918 = vmul.f32 %v4915, %v4901
        %v4919 = vmul.f32 %v4915, %v4902
        %v4920 = vmul.f32 %v4915, %v4903
        %v4921 = vmul.f32 %v4915, %v4904
        %v4922 = vmul.f32 %v4915, %v4905
        %v4923 = vmul.f32 %v4915, %v4906
        %v4924 = vmul.f32 %v4915, %v4907
        %v4925 = vmul.f32 %v4915, %v4908
        %v4926 = vmul.f32 %v4915, %v4909
        %v4927 = vmul.f32 %v4915, %v4910
        %v4928 = vmul.f32 %v4915, %v4911
        %v4929 = vmul.f32 %v4915, %v4912
        %v4930 = vmul.f32 %v4915, %v4913
        %v4931 = vmul.f32 %v4915, %v4914
        %v4932 = vadd.f32 %v4882, %v4916
        %v4933 = vadd.f32 %v4883, %v4917
        %v4934 = vadd.f32 %v4884, %v4918
        %v4935 = vadd.f32 %v4885, %v4919
        %v4936 = vadd.f32 %v4886, %v4920
        %v4937 = vadd.f32 %v4887, %v4921
        %v4938 = vadd.f32 %v4888, %v4922
        %v4939 = vadd.f32 %v4889, %v4923
        %v4940 = vadd.f32 %v4890, %v4924
        %v4941 = vadd.f32 %v4891, %v4925
        %v4942 = vadd.f32 %v4892, %v4926
        %v4943 = vadd.f32 %v4893, %v4927
        %v4944 = vadd.f32 %v4894, %v4928
        %v4945 = vadd.f32 %v4895, %v4929
        %v4946 = vadd.f32 %v4896, %v4930
        %v4947 = vadd.f32 %v4897, %v4931
        %s4948 = sld [smem:[#allocation5 + $0x10b]]
        %v4949 = vld [vmem:[%s1471] sm:$0xff]
        %v4950 = vld [vmem:[%s1471 + $0x8] sm:$0xff]
        %v4951 = vld [vmem:[%s1471 + $0x10] sm:$0xff]
        %v4952 = vld [vmem:[%s1471 + $0x18] sm:$0xff]
        %v4953 = vld [vmem:[%s1471 + $0x20] sm:$0xff]
        %v4954 = vld [vmem:[%s1471 + $0x28] sm:$0xff]
        %v4955 = vld [vmem:[%s1471 + $0x30] sm:$0xff]
        %v4956 = vld [vmem:[%s1471 + $0x38] sm:$0xff]
        %v4957 = vld [vmem:[%s1471 + $0x40] sm:$0xff]
        %v4958 = vld [vmem:[%s1471 + $0x48] sm:$0xff]
        %v4959 = vld [vmem:[%s1471 + $0x50] sm:$0xff]
        %v4960 = vld [vmem:[%s1471 + $0x58] sm:$0xff]
        %v4961 = vld [vmem:[%s1471 + $0x60] sm:$0xff]
        %v4962 = vld [vmem:[%s1471 + $0x68] sm:$0xff]
        %v4963 = vld [vmem:[%s1471 + $0x70] sm:$0xff]
        %v4964 = vld [vmem:[%s1471 + $0x78] sm:$0xff]
        %v4965 = vstv %s4948
        %v4966 = vmul.f32 %v4965, %v4949
        %v4967 = vmul.f32 %v4965, %v4950
        %v4968 = vmul.f32 %v4965, %v4951
        %v4969 = vmul.f32 %v4965, %v4952
        %v4970 = vmul.f32 %v4965, %v4953
        %v4971 = vmul.f32 %v4965, %v4954
        %v4972 = vmul.f32 %v4965, %v4955
        %v4973 = vmul.f32 %v4965, %v4956
        %v4974 = vmul.f32 %v4965, %v4957
        %v4975 = vmul.f32 %v4965, %v4958
        %v4976 = vmul.f32 %v4965, %v4959
        %v4977 = vmul.f32 %v4965, %v4960
        %v4978 = vmul.f32 %v4965, %v4961
        %v4979 = vmul.f32 %v4965, %v4962
        %v4980 = vmul.f32 %v4965, %v4963
        %v4981 = vmul.f32 %v4965, %v4964
        %v4982 = vadd.f32 %v4932, %v4966
        %v4983 = vadd.f32 %v4933, %v4967
        %v4984 = vadd.f32 %v4934, %v4968
        %v4985 = vadd.f32 %v4935, %v4969
        %v4986 = vadd.f32 %v4936, %v4970
        %v4987 = vadd.f32 %v4937, %v4971
        %v4988 = vadd.f32 %v4938, %v4972
        %v4989 = vadd.f32 %v4939, %v4973
        %v4990 = vadd.f32 %v4940, %v4974
        %v4991 = vadd.f32 %v4941, %v4975
        %v4992 = vadd.f32 %v4942, %v4976
        %v4993 = vadd.f32 %v4943, %v4977
        %v4994 = vadd.f32 %v4944, %v4978
        %v4995 = vadd.f32 %v4945, %v4979
        %v4996 = vadd.f32 %v4946, %v4980
        %v4997 = vadd.f32 %v4947, %v4981
        %s4998 = sld [smem:[#allocation5 + $0x10c]]
        %v4999 = vld [vmem:[%s1488] sm:$0xff]
        %v5000 = vld [vmem:[%s1488 + $0x8] sm:$0xff]
        %v5001 = vld [vmem:[%s1488 + $0x10] sm:$0xff]
        %v5002 = vld [vmem:[%s1488 + $0x18] sm:$0xff]
        %v5003 = vld [vmem:[%s1488 + $0x20] sm:$0xff]
        %v5004 = vld [vmem:[%s1488 + $0x28] sm:$0xff]
        %v5005 = vld [vmem:[%s1488 + $0x30] sm:$0xff]
        %v5006 = vld [vmem:[%s1488 + $0x38] sm:$0xff]
        %v5007 = vld [vmem:[%s1488 + $0x40] sm:$0xff]
        %v5008 = vld [vmem:[%s1488 + $0x48] sm:$0xff]
        %v5009 = vld [vmem:[%s1488 + $0x50] sm:$0xff]
        %v5010 = vld [vmem:[%s1488 + $0x58] sm:$0xff]
        %v5011 = vld [vmem:[%s1488 + $0x60] sm:$0xff]
        %v5012 = vld [vmem:[%s1488 + $0x68] sm:$0xff]
        %v5013 = vld [vmem:[%s1488 + $0x70] sm:$0xff]
        %v5014 = vld [vmem:[%s1488 + $0x78] sm:$0xff]
        %v5015 = vstv %s4998
        %v5016 = vmul.f32 %v5015, %v4999
        %v5017 = vmul.f32 %v5015, %v5000
        %v5018 = vmul.f32 %v5015, %v5001
        %v5019 = vmul.f32 %v5015, %v5002
        %v5020 = vmul.f32 %v5015, %v5003
        %v5021 = vmul.f32 %v5015, %v5004
        %v5022 = vmul.f32 %v5015, %v5005
        %v5023 = vmul.f32 %v5015, %v5006
        %v5024 = vmul.f32 %v5015, %v5007
        %v5025 = vmul.f32 %v5015, %v5008
        %v5026 = vmul.f32 %v5015, %v5009
        %v5027 = vmul.f32 %v5015, %v5010
        %v5028 = vmul.f32 %v5015, %v5011
        %v5029 = vmul.f32 %v5015, %v5012
        %v5030 = vmul.f32 %v5015, %v5013
        %v5031 = vmul.f32 %v5015, %v5014
        %v5032 = vadd.f32 %v4982, %v5016
        %v5033 = vadd.f32 %v4983, %v5017
        %v5034 = vadd.f32 %v4984, %v5018
        %v5035 = vadd.f32 %v4985, %v5019
        %v5036 = vadd.f32 %v4986, %v5020
        %v5037 = vadd.f32 %v4987, %v5021
        %v5038 = vadd.f32 %v4988, %v5022
        %v5039 = vadd.f32 %v4989, %v5023
        %v5040 = vadd.f32 %v4990, %v5024
        %v5041 = vadd.f32 %v4991, %v5025
        %v5042 = vadd.f32 %v4992, %v5026
        %v5043 = vadd.f32 %v4993, %v5027
        %v5044 = vadd.f32 %v4994, %v5028
        %v5045 = vadd.f32 %v4995, %v5029
        %v5046 = vadd.f32 %v4996, %v5030
        %v5047 = vadd.f32 %v4997, %v5031
        %s5048 = sld [smem:[#allocation5 + $0x10d]]
        %v5049 = vld [vmem:[%s1514] sm:$0xff]
        %v5050 = vld [vmem:[%s1514 + $0x8] sm:$0xff]
        %v5051 = vld [vmem:[%s1514 + $0x10] sm:$0xff]
        %v5052 = vld [vmem:[%s1514 + $0x18] sm:$0xff]
        %v5053 = vld [vmem:[%s1514 + $0x20] sm:$0xff]
        %v5054 = vld [vmem:[%s1514 + $0x28] sm:$0xff]
        %v5055 = vld [vmem:[%s1514 + $0x30] sm:$0xff]
        %v5056 = vld [vmem:[%s1514 + $0x38] sm:$0xff]
        %v5057 = vld [vmem:[%s1514 + $0x40] sm:$0xff]
        %v5058 = vld [vmem:[%s1514 + $0x48] sm:$0xff]
        %v5059 = vld [vmem:[%s1514 + $0x50] sm:$0xff]
        %v5060 = vld [vmem:[%s1514 + $0x58] sm:$0xff]
        %v5061 = vld [vmem:[%s1514 + $0x60] sm:$0xff]
        %v5062 = vld [vmem:[%s1514 + $0x68] sm:$0xff]
        %v5063 = vld [vmem:[%s1514 + $0x70] sm:$0xff]
        %v5064 = vld [vmem:[%s1514 + $0x78] sm:$0xff]
        %v5065 = vstv %s5048
        %v5066 = vmul.f32 %v5065, %v5049
        %v5067 = vmul.f32 %v5065, %v5050
        %v5068 = vmul.f32 %v5065, %v5051
        %v5069 = vmul.f32 %v5065, %v5052
        %v5070 = vmul.f32 %v5065, %v5053
        %v5071 = vmul.f32 %v5065, %v5054
        %v5072 = vmul.f32 %v5065, %v5055
        %v5073 = vmul.f32 %v5065, %v5056
        %v5074 = vmul.f32 %v5065, %v5057
        %v5075 = vmul.f32 %v5065, %v5058
        %v5076 = vmul.f32 %v5065, %v5059
        %v5077 = vmul.f32 %v5065, %v5060
        %v5078 = vmul.f32 %v5065, %v5061
        %v5079 = vmul.f32 %v5065, %v5062
        %v5080 = vmul.f32 %v5065, %v5063
        %v5081 = vmul.f32 %v5065, %v5064
        %v5082 = vadd.f32 %v5032, %v5066
        %v5083 = vadd.f32 %v5033, %v5067
        %v5084 = vadd.f32 %v5034, %v5068
        %v5085 = vadd.f32 %v5035, %v5069
        %v5086 = vadd.f32 %v5036, %v5070
        %v5087 = vadd.f32 %v5037, %v5071
        %v5088 = vadd.f32 %v5038, %v5072
        %v5089 = vadd.f32 %v5039, %v5073
        %v5090 = vadd.f32 %v5040, %v5074
        %v5091 = vadd.f32 %v5041, %v5075
        %v5092 = vadd.f32 %v5042, %v5076
        %v5093 = vadd.f32 %v5043, %v5077
        %v5094 = vadd.f32 %v5044, %v5078
        %v5095 = vadd.f32 %v5045, %v5079
        %v5096 = vadd.f32 %v5046, %v5080
        %v5097 = vadd.f32 %v5047, %v5081
        %s5098 = sld [smem:[#allocation5 + $0x10e]]
        %v5099 = vld [vmem:[%s1538] sm:$0xff]
        %v5100 = vld [vmem:[%s1538 + $0x8] sm:$0xff]
        %v5101 = vld [vmem:[%s1538 + $0x10] sm:$0xff]
        %v5102 = vld [vmem:[%s1538 + $0x18] sm:$0xff]
        %v5103 = vld [vmem:[%s1538 + $0x20] sm:$0xff]
        %v5104 = vld [vmem:[%s1538 + $0x28] sm:$0xff]
        %v5105 = vld [vmem:[%s1538 + $0x30] sm:$0xff]
        %v5106 = vld [vmem:[%s1538 + $0x38] sm:$0xff]
        %v5107 = vld [vmem:[%s1538 + $0x40] sm:$0xff]
        %v5108 = vld [vmem:[%s1538 + $0x48] sm:$0xff]
        %v5109 = vld [vmem:[%s1538 + $0x50] sm:$0xff]
        %v5110 = vld [vmem:[%s1538 + $0x58] sm:$0xff]
        %v5111 = vld [vmem:[%s1538 + $0x60] sm:$0xff]
        %v5112 = vld [vmem:[%s1538 + $0x68] sm:$0xff]
        %v5113 = vld [vmem:[%s1538 + $0x70] sm:$0xff]
        %v5114 = vld [vmem:[%s1538 + $0x78] sm:$0xff]
        %v5115 = vstv %s5098
        %v5116 = vmul.f32 %v5115, %v5099
        %v5117 = vmul.f32 %v5115, %v5100
        %v5118 = vmul.f32 %v5115, %v5101
        %v5119 = vmul.f32 %v5115, %v5102
        %v5120 = vmul.f32 %v5115, %v5103
        %v5121 = vmul.f32 %v5115, %v5104
        %v5122 = vmul.f32 %v5115, %v5105
        %v5123 = vmul.f32 %v5115, %v5106
        %v5124 = vmul.f32 %v5115, %v5107
        %v5125 = vmul.f32 %v5115, %v5108
        %v5126 = vmul.f32 %v5115, %v5109
        %v5127 = vmul.f32 %v5115, %v5110
        %v5128 = vmul.f32 %v5115, %v5111
        %v5129 = vmul.f32 %v5115, %v5112
        %v5130 = vmul.f32 %v5115, %v5113
        %v5131 = vmul.f32 %v5115, %v5114
        %v5132 = vadd.f32 %v5082, %v5116
        %v5133 = vadd.f32 %v5083, %v5117
        %v5134 = vadd.f32 %v5084, %v5118
        %v5135 = vadd.f32 %v5085, %v5119
        %v5136 = vadd.f32 %v5086, %v5120
        %v5137 = vadd.f32 %v5087, %v5121
        %v5138 = vadd.f32 %v5088, %v5122
        %v5139 = vadd.f32 %v5089, %v5123
        %v5140 = vadd.f32 %v5090, %v5124
        %v5141 = vadd.f32 %v5091, %v5125
        %v5142 = vadd.f32 %v5092, %v5126
        %v5143 = vadd.f32 %v5093, %v5127
        %v5144 = vadd.f32 %v5094, %v5128
        %v5145 = vadd.f32 %v5095, %v5129
        %v5146 = vadd.f32 %v5096, %v5130
        %v5147 = vadd.f32 %v5097, %v5131
        %s5148 = sld [smem:[#allocation5 + $0x10f]]
        %v5149 = vld [vmem:[%s1556] sm:$0xff]
        %v5150 = vld [vmem:[%s1556 + $0x8] sm:$0xff]
        %v5151 = vld [vmem:[%s1556 + $0x10] sm:$0xff]
        %v5152 = vld [vmem:[%s1556 + $0x18] sm:$0xff]
        %v5153 = vld [vmem:[%s1556 + $0x20] sm:$0xff]
        %v5154 = vld [vmem:[%s1556 + $0x28] sm:$0xff]
        %v5155 = vld [vmem:[%s1556 + $0x30] sm:$0xff]
        %v5156 = vld [vmem:[%s1556 + $0x38] sm:$0xff]
        %v5157 = vld [vmem:[%s1556 + $0x40] sm:$0xff]
        %v5158 = vld [vmem:[%s1556 + $0x48] sm:$0xff]
        %v5159 = vld [vmem:[%s1556 + $0x50] sm:$0xff]
        %v5160 = vld [vmem:[%s1556 + $0x58] sm:$0xff]
        %v5161 = vld [vmem:[%s1556 + $0x60] sm:$0xff]
        %v5162 = vld [vmem:[%s1556 + $0x68] sm:$0xff]
        %v5163 = vld [vmem:[%s1556 + $0x70] sm:$0xff]
        %v5164 = vld [vmem:[%s1556 + $0x78] sm:$0xff]
        %v5165 = vstv %s5148
        %v5166 = vmul.f32 %v5165, %v5149
        %v5167 = vmul.f32 %v5165, %v5150
        %v5168 = vmul.f32 %v5165, %v5151
        %v5169 = vmul.f32 %v5165, %v5152
        %v5170 = vmul.f32 %v5165, %v5153
        %v5171 = vmul.f32 %v5165, %v5154
        %v5172 = vmul.f32 %v5165, %v5155
        %v5173 = vmul.f32 %v5165, %v5156
        %v5174 = vmul.f32 %v5165, %v5157
        %v5175 = vmul.f32 %v5165, %v5158
        %v5176 = vmul.f32 %v5165, %v5159
        %v5177 = vmul.f32 %v5165, %v5160
        %v5178 = vmul.f32 %v5165, %v5161
        %v5179 = vmul.f32 %v5165, %v5162
        %v5180 = vmul.f32 %v5165, %v5163
        %v5181 = vmul.f32 %v5165, %v5164
        %v5182 = vadd.f32 %v5132, %v5166
        %v5183 = vadd.f32 %v5133, %v5167
        %v5184 = vadd.f32 %v5134, %v5168
        %v5185 = vadd.f32 %v5135, %v5169
        %v5186 = vadd.f32 %v5136, %v5170
        %v5187 = vadd.f32 %v5137, %v5171
        %v5188 = vadd.f32 %v5138, %v5172
        %v5189 = vadd.f32 %v5139, %v5173
        %v5190 = vadd.f32 %v5140, %v5174
        %v5191 = vadd.f32 %v5141, %v5175
        %v5192 = vadd.f32 %v5142, %v5176
        %v5193 = vadd.f32 %v5143, %v5177
        %v5194 = vadd.f32 %v5144, %v5178
        %v5195 = vadd.f32 %v5145, %v5179
        %v5196 = vadd.f32 %v5146, %v5180
        %v5197 = vadd.f32 %v5147, %v5181
        %s5198 = sld [smem:[#allocation5 + $0x110]]
        %v5199 = vld [vmem:[%s1574] sm:$0xff]
        %v5200 = vld [vmem:[%s1574 + $0x8] sm:$0xff]
        %v5201 = vld [vmem:[%s1574 + $0x10] sm:$0xff]
        %v5202 = vld [vmem:[%s1574 + $0x18] sm:$0xff]
        %v5203 = vld [vmem:[%s1574 + $0x20] sm:$0xff]
        %v5204 = vld [vmem:[%s1574 + $0x28] sm:$0xff]
        %v5205 = vld [vmem:[%s1574 + $0x30] sm:$0xff]
        %v5206 = vld [vmem:[%s1574 + $0x38] sm:$0xff]
        %v5207 = vld [vmem:[%s1574 + $0x40] sm:$0xff]
        %v5208 = vld [vmem:[%s1574 + $0x48] sm:$0xff]
        %v5209 = vld [vmem:[%s1574 + $0x50] sm:$0xff]
        %v5210 = vld [vmem:[%s1574 + $0x58] sm:$0xff]
        %v5211 = vld [vmem:[%s1574 + $0x60] sm:$0xff]
        %v5212 = vld [vmem:[%s1574 + $0x68] sm:$0xff]
        %v5213 = vld [vmem:[%s1574 + $0x70] sm:$0xff]
        %v5214 = vld [vmem:[%s1574 + $0x78] sm:$0xff]
        %v5215 = vstv %s5198
        %v5216 = vmul.f32 %v5215, %v5199
        %v5217 = vmul.f32 %v5215, %v5200
        %v5218 = vmul.f32 %v5215, %v5201
        %v5219 = vmul.f32 %v5215, %v5202
        %v5220 = vmul.f32 %v5215, %v5203
        %v5221 = vmul.f32 %v5215, %v5204
        %v5222 = vmul.f32 %v5215, %v5205
        %v5223 = vmul.f32 %v5215, %v5206
        %v5224 = vmul.f32 %v5215, %v5207
        %v5225 = vmul.f32 %v5215, %v5208
        %v5226 = vmul.f32 %v5215, %v5209
        %v5227 = vmul.f32 %v5215, %v5210
        %v5228 = vmul.f32 %v5215, %v5211
        %v5229 = vmul.f32 %v5215, %v5212
        %v5230 = vmul.f32 %v5215, %v5213
        %v5231 = vmul.f32 %v5215, %v5214
        %v5232 = vadd.f32 %v5182, %v5216
        %v5233 = vadd.f32 %v5183, %v5217
        %v5234 = vadd.f32 %v5184, %v5218
        %v5235 = vadd.f32 %v5185, %v5219
        %v5236 = vadd.f32 %v5186, %v5220
        %v5237 = vadd.f32 %v5187, %v5221
        %v5238 = vadd.f32 %v5188, %v5222
        %v5239 = vadd.f32 %v5189, %v5223
        %v5240 = vadd.f32 %v5190, %v5224
        %v5241 = vadd.f32 %v5191, %v5225
        %v5242 = vadd.f32 %v5192, %v5226
        %v5243 = vadd.f32 %v5193, %v5227
        %v5244 = vadd.f32 %v5194, %v5228
        %v5245 = vadd.f32 %v5195, %v5229
        %v5246 = vadd.f32 %v5196, %v5230
        %v5247 = vadd.f32 %v5197, %v5231
        %s5248 = sld [smem:[#allocation5 + $0x111]]
        %v5249 = vld [vmem:[%s1592] sm:$0xff]
        %v5250 = vld [vmem:[%s1592 + $0x8] sm:$0xff]
        %v5251 = vld [vmem:[%s1592 + $0x10] sm:$0xff]
        %v5252 = vld [vmem:[%s1592 + $0x18] sm:$0xff]
        %v5253 = vld [vmem:[%s1592 + $0x20] sm:$0xff]
        %v5254 = vld [vmem:[%s1592 + $0x28] sm:$0xff]
        %v5255 = vld [vmem:[%s1592 + $0x30] sm:$0xff]
        %v5256 = vld [vmem:[%s1592 + $0x38] sm:$0xff]
        %v5257 = vld [vmem:[%s1592 + $0x40] sm:$0xff]
        %v5258 = vld [vmem:[%s1592 + $0x48] sm:$0xff]
        %v5259 = vld [vmem:[%s1592 + $0x50] sm:$0xff]
        %v5260 = vld [vmem:[%s1592 + $0x58] sm:$0xff]
        %v5261 = vld [vmem:[%s1592 + $0x60] sm:$0xff]
        %v5262 = vld [vmem:[%s1592 + $0x68] sm:$0xff]
        %v5263 = vld [vmem:[%s1592 + $0x70] sm:$0xff]
        %v5264 = vld [vmem:[%s1592 + $0x78] sm:$0xff]
        %v5265 = vstv %s5248
        %v5266 = vmul.f32 %v5265, %v5249
        %v5267 = vmul.f32 %v5265, %v5250
        %v5268 = vmul.f32 %v5265, %v5251
        %v5269 = vmul.f32 %v5265, %v5252
        %v5270 = vmul.f32 %v5265, %v5253
        %v5271 = vmul.f32 %v5265, %v5254
        %v5272 = vmul.f32 %v5265, %v5255
        %v5273 = vmul.f32 %v5265, %v5256
        %v5274 = vmul.f32 %v5265, %v5257
        %v5275 = vmul.f32 %v5265, %v5258
        %v5276 = vmul.f32 %v5265, %v5259
        %v5277 = vmul.f32 %v5265, %v5260
        %v5278 = vmul.f32 %v5265, %v5261
        %v5279 = vmul.f32 %v5265, %v5262
        %v5280 = vmul.f32 %v5265, %v5263
        %v5281 = vmul.f32 %v5265, %v5264
        %v5282 = vadd.f32 %v5232, %v5266
        %v5283 = vadd.f32 %v5233, %v5267
        %v5284 = vadd.f32 %v5234, %v5268
        %v5285 = vadd.f32 %v5235, %v5269
        %v5286 = vadd.f32 %v5236, %v5270
        %v5287 = vadd.f32 %v5237, %v5271
        %v5288 = vadd.f32 %v5238, %v5272
        %v5289 = vadd.f32 %v5239, %v5273
        %v5290 = vadd.f32 %v5240, %v5274
        %v5291 = vadd.f32 %v5241, %v5275
        %v5292 = vadd.f32 %v5242, %v5276
        %v5293 = vadd.f32 %v5243, %v5277
        %v5294 = vadd.f32 %v5244, %v5278
        %v5295 = vadd.f32 %v5245, %v5279
        %v5296 = vadd.f32 %v5246, %v5280
        %v5297 = vadd.f32 %v5247, %v5281
        %s5298 = sld [smem:[#allocation10 + $0x2]]
        %v5299 = vstv %s5298
        %v5300 = vmul.f32 %v5282, %v5299
        %v5301 = vmul.f32 %v5283, %v5299
        %v5302 = vmul.f32 %v5284, %v5299
        %v5303 = vmul.f32 %v5285, %v5299
        %v5304 = vmul.f32 %v5286, %v5299
        %v5305 = vmul.f32 %v5287, %v5299
        %v5306 = vmul.f32 %v5288, %v5299
        %v5307 = vmul.f32 %v5289, %v5299
        %v5308 = vmul.f32 %v5290, %v5299
        %v5309 = vmul.f32 %v5291, %v5299
        %v5310 = vmul.f32 %v5292, %v5299
        %v5311 = vmul.f32 %v5293, %v5299
        %v5312 = vmul.f32 %v5294, %v5299
        %v5313 = vmul.f32 %v5295, %v5299
        %v5314 = vmul.f32 %v5296, %v5299
        %v5315 = vmul.f32 %v5297, %v5299
        %s5316 = sld [smem:[#allocation11 + $0x2]]
        %v5317 = vstv %s5316
        %v5318 = vadd.f32 %v5300, %v5317
        %v5319 = vadd.f32 %v5301, %v5317
        %v5320 = vadd.f32 %v5302, %v5317
        %v5321 = vadd.f32 %v5303, %v5317
        %v5322 = vadd.f32 %v5304, %v5317
        %v5323 = vadd.f32 %v5305, %v5317
        %v5324 = vadd.f32 %v5306, %v5317
        %v5325 = vadd.f32 %v5307, %v5317
        %v5326 = vadd.f32 %v5308, %v5317
        %v5327 = vadd.f32 %v5309, %v5317
        %v5328 = vadd.f32 %v5310, %v5317
        %v5329 = vadd.f32 %v5311, %v5317
        %v5330 = vadd.f32 %v5312, %v5317
        %v5331 = vadd.f32 %v5313, %v5317
        %v5332 = vadd.f32 %v5314, %v5317
        %v5333 = vadd.f32 %v5315, %v5317
        %s5334 = scalar_lea.vmem [#allocation4], 256
        %v5335 = vld [vmem:[%s5334] sm:$0xff]
        %v5336 = vld [vmem:[%s5334 + $0x8] sm:$0xff]
        %v5337 = vld [vmem:[%s5334 + $0x10] sm:$0xff]
        %v5338 = vld [vmem:[%s5334 + $0x18] sm:$0xff]
        %v5339 = vld [vmem:[%s5334 + $0x20] sm:$0xff]
        %v5340 = vld [vmem:[%s5334 + $0x28] sm:$0xff]
        %v5341 = vld [vmem:[%s5334 + $0x30] sm:$0xff]
        %v5342 = vld [vmem:[%s5334 + $0x38] sm:$0xff]
        %v5343 = vld [vmem:[%s5334 + $0x40] sm:$0xff]
        %v5344 = vld [vmem:[%s5334 + $0x48] sm:$0xff]
        %v5345 = vld [vmem:[%s5334 + $0x50] sm:$0xff]
        %v5346 = vld [vmem:[%s5334 + $0x58] sm:$0xff]
        %v5347 = vld [vmem:[%s5334 + $0x60] sm:$0xff]
        %v5348 = vld [vmem:[%s5334 + $0x68] sm:$0xff]
        %v5349 = vld [vmem:[%s5334 + $0x70] sm:$0xff]
        %v5350 = vld [vmem:[%s5334 + $0x78] sm:$0xff]
        %v5351 = vadd.f32 %v5335, %v5318
        %v5352 = vadd.f32 %v5336, %v5319
        %v5353 = vadd.f32 %v5337, %v5320
        %v5354 = vadd.f32 %v5338, %v5321
        %v5355 = vadd.f32 %v5339, %v5322
        %v5356 = vadd.f32 %v5340, %v5323
        %v5357 = vadd.f32 %v5341, %v5324
        %v5358 = vadd.f32 %v5342, %v5325
        %v5359 = vadd.f32 %v5343, %v5326
        %v5360 = vadd.f32 %v5344, %v5327
        %v5361 = vadd.f32 %v5345, %v5328
        %v5362 = vadd.f32 %v5346, %v5329
        %v5363 = vadd.f32 %v5347, %v5330
        %v5364 = vadd.f32 %v5348, %v5331
        %v5365 = vadd.f32 %v5349, %v5332
        %v5366 = vadd.f32 %v5350, %v5333
        %vm5367 = vcmp.ge.f32.partialorder %v5351, 1.0
        %vm5368 = vcmp.ge.f32.partialorder %v5352, 1.0
        %vm5369 = vcmp.ge.f32.partialorder %v5353, 1.0
        %vm5370 = vcmp.ge.f32.partialorder %v5354, 1.0
        %vm5371 = vcmp.ge.f32.partialorder %v5355, 1.0
        %vm5372 = vcmp.ge.f32.partialorder %v5356, 1.0
        %vm5373 = vcmp.ge.f32.partialorder %v5357, 1.0
        %vm5374 = vcmp.ge.f32.partialorder %v5358, 1.0
        %vm5375 = vcmp.ge.f32.partialorder %v5359, 1.0
        %vm5376 = vcmp.ge.f32.partialorder %v5360, 1.0
        %vm5377 = vcmp.ge.f32.partialorder %v5361, 1.0
        %vm5378 = vcmp.ge.f32.partialorder %v5362, 1.0
        %vm5379 = vcmp.ge.f32.partialorder %v5363, 1.0
        %vm5380 = vcmp.ge.f32.partialorder %v5364, 1.0
        %vm5381 = vcmp.ge.f32.partialorder %v5365, 1.0
        %vm5382 = vcmp.ge.f32.partialorder %v5366, 1.0
        %v5383 = vsel %vm5367, 1, 0
        %v5384 = vsel %vm5368, 1, 0
        %v5385 = vsel %vm5369, 1, 0
        %v5386 = vsel %vm5370, 1, 0
        %v5387 = vsel %vm5371, 1, 0
        %v5388 = vsel %vm5372, 1, 0
        %v5389 = vsel %vm5373, 1, 0
        %v5390 = vsel %vm5374, 1, 0
        %v5391 = vsel %vm5375, 1, 0
        %v5392 = vsel %vm5376, 1, 0
        %v5393 = vsel %vm5377, 1, 0
        %v5394 = vsel %vm5378, 1, 0
        %v5395 = vsel %vm5379, 1, 0
        %v5396 = vsel %vm5380, 1, 0
        %v5397 = vsel %vm5381, 1, 0
        %v5398 = vsel %vm5382, 1, 0
        %v5399 = vcvt.s32.f32 %v5383
        %v5400 = vcvt.s32.f32 %v5384
        %v5401 = vcvt.s32.f32 %v5385
        %v5402 = vcvt.s32.f32 %v5386
        %v5403 = vcvt.s32.f32 %v5387
        %v5404 = vcvt.s32.f32 %v5388
        %v5405 = vcvt.s32.f32 %v5389
        %v5406 = vcvt.s32.f32 %v5390
        %v5407 = vcvt.s32.f32 %v5391
        %v5408 = vcvt.s32.f32 %v5392
        %v5409 = vcvt.s32.f32 %v5393
        %v5410 = vcvt.s32.f32 %v5394
        %v5411 = vcvt.s32.f32 %v5395
        %v5412 = vcvt.s32.f32 %v5396
        %v5413 = vcvt.s32.f32 %v5397
        %v5414 = vcvt.s32.f32 %v5398
        %vm5415 = vcmp.gt.f32.partialorder %v5399, 0.0
        %vm5416 = vcmp.gt.f32.partialorder %v5400, 0.0
        %vm5417 = vcmp.gt.f32.partialorder %v5401, 0.0
        %vm5418 = vcmp.gt.f32.partialorder %v5402, 0.0
        %vm5419 = vcmp.gt.f32.partialorder %v5403, 0.0
        %vm5420 = vcmp.gt.f32.partialorder %v5404, 0.0
        %vm5421 = vcmp.gt.f32.partialorder %v5405, 0.0
        %vm5422 = vcmp.gt.f32.partialorder %v5406, 0.0
        %vm5423 = vcmp.gt.f32.partialorder %v5407, 0.0
        %vm5424 = vcmp.gt.f32.partialorder %v5408, 0.0
        %vm5425 = vcmp.gt.f32.partialorder %v5409, 0.0
        %vm5426 = vcmp.gt.f32.partialorder %v5410, 0.0
        %vm5427 = vcmp.gt.f32.partialorder %v5411, 0.0
        %vm5428 = vcmp.gt.f32.partialorder %v5412, 0.0
        %vm5429 = vcmp.gt.f32.partialorder %v5413, 0.0
        %vm5430 = vcmp.gt.f32.partialorder %v5414, 0.0
        %v5431 = vsel %vm5415, 0.0, %v5351
        %v5432 = vsel %vm5416, 0.0, %v5352
        %v5433 = vsel %vm5417, 0.0, %v5353
        %v5434 = vsel %vm5418, 0.0, %v5354
        %v5435 = vsel %vm5419, 0.0, %v5355
        %v5436 = vsel %vm5420, 0.0, %v5356
        %v5437 = vsel %vm5421, 0.0, %v5357
        %v5438 = vsel %vm5422, 0.0, %v5358
        %v5439 = vsel %vm5423, 0.0, %v5359
        %v5440 = vsel %vm5424, 0.0, %v5360
        %v5441 = vsel %vm5425, 0.0, %v5361
        %v5442 = vsel %vm5426, 0.0, %v5362
        %v5443 = vsel %vm5427, 0.0, %v5363
        %v5444 = vsel %vm5428, 0.0, %v5364
        %v5445 = vsel %vm5429, 0.0, %v5365
        %v5446 = vsel %vm5430, 0.0, %v5366
        %5447 = vst [vmem:[%s5334] sm:$0xff] %v5431
        %5448 = vst [vmem:[%s5334 + $0x8] sm:$0xff] %v5432
        %5449 = vst [vmem:[%s5334 + $0x10] sm:$0xff] %v5433
        %5450 = vst [vmem:[%s5334 + $0x18] sm:$0xff] %v5434
        %5451 = vst [vmem:[%s5334 + $0x20] sm:$0xff] %v5435
        %5452 = vst [vmem:[%s5334 + $0x28] sm:$0xff] %v5436
        %5453 = vst [vmem:[%s5334 + $0x30] sm:$0xff] %v5437
        %5454 = vst [vmem:[%s5334 + $0x38] sm:$0xff] %v5438
        %5455 = vst [vmem:[%s5334 + $0x40] sm:$0xff] %v5439
        %5456 = vst [vmem:[%s5334 + $0x48] sm:$0xff] %v5440
        %5457 = vst [vmem:[%s5334 + $0x50] sm:$0xff] %v5441
        %5458 = vst [vmem:[%s5334 + $0x58] sm:$0xff] %v5442
        %5459 = vst [vmem:[%s5334 + $0x60] sm:$0xff] %v5443
        %5460 = vst [vmem:[%s5334 + $0x68] sm:$0xff] %v5444
        %5461 = vst [vmem:[%s5334 + $0x70] sm:$0xff] %v5445
        %5462 = vst [vmem:[%s5334 + $0x78] sm:$0xff] %v5446
        %5463 = vmatprep.subr.mxu0 0.0
        %5464 = vmatpush1.msra.mxu0 %v5414
        %5465 = vmatprep.subr.mxu0 0.0
        %5466 = vmatpush1.msra.mxu0 %v5413
        %5467 = vmatprep.subr.mxu0 0.0
        %5468 = vmatpush1.msra.mxu0 %v5412
        %5469 = vmatprep.subr.mxu0 0.0
        %5470 = vmatpush1.msra.mxu0 %v5411
        %5471 = vmatprep.subr.mxu0 0.0
        %5472 = vmatpush1.msra.mxu0 %v5410
        %5473 = vmatprep.subr.mxu0 0.0
        %5474 = vmatpush1.msra.mxu0 %v5409
        %5475 = vmatprep.subr.mxu0 0.0
        %5476 = vmatpush1.msra.mxu0 %v5408
        %5477 = vmatprep.subr.mxu0 0.0
        %5478 = vmatpush1.msra.mxu0 %v5407
        %5479 = vmatprep.subr.mxu0 0.0
        %5480 = vmatpush1.msra.mxu0 %v5406
        %5481 = vmatprep.subr.mxu0 0.0
        %5482 = vmatpush1.msra.mxu0 %v5405
        %5483 = vmatprep.subr.mxu0 0.0
        %5484 = vmatpush1.msra.mxu0 %v5404
        %5485 = vmatprep.subr.mxu0 0.0
        %5486 = vmatpush1.msra.mxu0 %v5403
        %5487 = vmatprep.subr.mxu0 0.0
        %5488 = vmatpush1.msra.mxu0 %v5402
        %5489 = vmatprep.subr.mxu0 0.0
        %5490 = vmatpush1.msra.mxu0 %v5401
        %5491 = vmatprep.subr.mxu0 0.0
        %5492 = vmatpush1.msra.mxu0 %v5400
        %5493 = vmatprep.subr.mxu0 0.0
        %5494 = vmatpush1.msra.mxu0 %v5399
        %5495 = vmatprep.subr.mxu0 0.0
        %5496 = vmatpush2.msra.mxu0 0.0
        %5497 = vmatprep.subr.mxu0 0.0
        %5498 = vmatpush2.msra.mxu0 0.0
        %5499 = vmatprep.subr.mxu0 0.0
        %5500 = vmatpush2.msra.mxu0 0.0
        %5501 = vmatprep.subr.mxu0 0.0
        %5502 = vmatpush2.msra.mxu0 0.0
        %5503 = vmatprep.subr.mxu0 0.0
        %5504 = vmatpush2.msra.mxu0 0.0
        %5505 = vmatprep.subr.mxu0 0.0
        %5506 = vmatpush2.msra.mxu0 0.0
        %5507 = vmatprep.subr.mxu0 0.0
        %5508 = vmatpush2.msra.mxu0 0.0
        %5509 = vmatprep.subr.mxu0 0.0
        %5510 = vmatpush2.msra.mxu0 0.0
        %5511 = vmatprep.subr.mxu0 0.0
        %5512 = vmatpush2.msra.mxu0 0.0
        %5513 = vmatprep.subr.mxu0 0.0
        %5514 = vmatpush2.msra.mxu0 0.0
        %5515 = vmatprep.subr.mxu0 0.0
        %5516 = vmatpush2.msra.mxu0 0.0
        %5517 = vmatprep.subr.mxu0 0.0
        %5518 = vmatpush2.msra.mxu0 0.0
        %5519 = vmatprep.subr.mxu0 0.0
        %5520 = vmatpush2.msra.mxu0 0.0
        %5521 = vmatprep.subr.mxu0 0.0
        %5522 = vmatpush2.msra.mxu0 0.0
        %5523 = vmatprep.subr.mxu0 0.0
        %5524 = vmatpush2.msra.mxu0 0.0
        %5525 = vmatprep.subr.mxu0 0.0
        %5526 = vmatpush2.msra.mxu0 0.0
        %5527 = vmatprep.mubr.f32.mxu0 0.0
        %5528 = vmatmul.mubr.f32.gmra.mxu0 %v1669
        %v5529 = vpop.f32.mrf.mxu0
        %v5530 = vadd.f32 0.0, %v5529
        %v5531 = vpop.f32.mrf.mxu0
        %5532 = vmatprep.mubr.f32.mxu0 0.0
        %5533 = vmatmul.mubr.f32.gmra.mxu0 %v1670
        %v5534 = vpop.f32.mrf.mxu0
        %v5535 = vadd.f32 0.0, %v5534
        %v5536 = vpop.f32.mrf.mxu0
        %5537 = vmatprep.mubr.f32.mxu0 0.0
        %5538 = vmatmul.mubr.f32.gmra.mxu0 %v1671
        %v5539 = vpop.f32.mrf.mxu0
        %v5540 = vadd.f32 0.0, %v5539
        %v5541 = vpop.f32.mrf.mxu0
        %5542 = vmatprep.mubr.f32.mxu0 0.0
        %5543 = vmatmul.mubr.f32.gmra.mxu0 %v1672
        %v5544 = vpop.f32.mrf.mxu0
        %v5545 = vadd.f32 0.0, %v5544
        %v5546 = vpop.f32.mrf.mxu0
        %5547 = vmatprep.mubr.f32.mxu0 0.0
        %5548 = vmatmul.mubr.f32.gmra.mxu0 %v1673
        %v5549 = vpop.f32.mrf.mxu0
        %v5550 = vadd.f32 0.0, %v5549
        %v5551 = vpop.f32.mrf.mxu0
        %5552 = vmatprep.mubr.f32.mxu0 0.0
        %5553 = vmatmul.mubr.f32.gmra.mxu0 %v1674
        %v5554 = vpop.f32.mrf.mxu0
        %v5555 = vadd.f32 0.0, %v5554
        %v5556 = vpop.f32.mrf.mxu0
        %5557 = vmatprep.mubr.f32.mxu0 0.0
        %5558 = vmatmul.mubr.f32.gmra.mxu0 %v1675
        %v5559 = vpop.f32.mrf.mxu0
        %v5560 = vadd.f32 0.0, %v5559
        %v5561 = vpop.f32.mrf.mxu0
        %5562 = vmatprep.mubr.f32.mxu0 0.0
        %5563 = vmatmul.mubr.f32.gmra.mxu0 %v1676
        %v5564 = vpop.f32.mrf.mxu0
        %v5565 = vadd.f32 0.0, %v5564
        %v5566 = vpop.f32.mrf.mxu0
        %5567 = vdwg.mxu0
        %5568 = vmatprep.subr.mxu0 0.0
        %5569 = vmatpush1.msra.mxu0 %v1766
        %5570 = vmatprep.subr.mxu0 0.0
        %5571 = vmatpush1.msra.mxu0 %v1765
        %5572 = vmatprep.subr.mxu0 0.0
        %5573 = vmatpush1.msra.mxu0 %v1764
        %5574 = vmatprep.subr.mxu0 0.0
        %5575 = vmatpush1.msra.mxu0 %v1763
        %5576 = vmatprep.subr.mxu0 0.0
        %5577 = vmatpush1.msra.mxu0 %v1762
        %5578 = vmatprep.subr.mxu0 0.0
        %5579 = vmatpush1.msra.mxu0 %v1761
        %5580 = vmatprep.subr.mxu0 0.0
        %5581 = vmatpush1.msra.mxu0 %v1760
        %5582 = vmatprep.subr.mxu0 0.0
        %5583 = vmatpush1.msra.mxu0 %v1759
        %5584 = vmatprep.subr.mxu0 0.0
        %5585 = vmatpush1.msra.mxu0 %v1758
        %5586 = vmatprep.subr.mxu0 0.0
        %5587 = vmatpush1.msra.mxu0 %v1757
        %5588 = vmatprep.subr.mxu0 0.0
        %5589 = vmatpush1.msra.mxu0 %v1756
        %5590 = vmatprep.subr.mxu0 0.0
        %5591 = vmatpush1.msra.mxu0 %v1755
        %5592 = vmatprep.subr.mxu0 0.0
        %5593 = vmatpush1.msra.mxu0 %v1754
        %5594 = vmatprep.subr.mxu0 0.0
        %5595 = vmatpush1.msra.mxu0 %v1753
        %5596 = vmatprep.subr.mxu0 0.0
        %5597 = vmatpush1.msra.mxu0 %v1752
        %5598 = vmatprep.subr.mxu0 0.0
        %5599 = vmatpush1.msra.mxu0 %v1751
        %5600 = vmatprep.subr.mxu0 0.0
        %5601 = vmatpush2.msra.mxu0 0.0
        %5602 = vmatprep.subr.mxu0 0.0
        %5603 = vmatpush2.msra.mxu0 0.0
        %5604 = vmatprep.subr.mxu0 0.0
        %5605 = vmatpush2.msra.mxu0 0.0
        %5606 = vmatprep.subr.mxu0 0.0
        %5607 = vmatpush2.msra.mxu0 0.0
        %5608 = vmatprep.subr.mxu0 0.0
        %5609 = vmatpush2.msra.mxu0 0.0
        %5610 = vmatprep.subr.mxu0 0.0
        %5611 = vmatpush2.msra.mxu0 0.0
        %5612 = vmatprep.subr.mxu0 0.0
        %5613 = vmatpush2.msra.mxu0 0.0
        %5614 = vmatprep.subr.mxu0 0.0
        %5615 = vmatpush2.msra.mxu0 0.0
        %5616 = vmatprep.subr.mxu0 0.0
        %5617 = vmatpush2.msra.mxu0 0.0
        %5618 = vmatprep.subr.mxu0 0.0
        %5619 = vmatpush2.msra.mxu0 0.0
        %5620 = vmatprep.subr.mxu0 0.0
        %5621 = vmatpush2.msra.mxu0 0.0
        %5622 = vmatprep.subr.mxu0 0.0
        %5623 = vmatpush2.msra.mxu0 0.0
        %5624 = vmatprep.subr.mxu0 0.0
        %5625 = vmatpush2.msra.mxu0 0.0
        %5626 = vmatprep.subr.mxu0 0.0
        %5627 = vmatpush2.msra.mxu0 0.0
        %5628 = vmatprep.subr.mxu0 0.0
        %5629 = vmatpush2.msra.mxu0 0.0
        %5630 = vmatprep.subr.mxu0 0.0
        %5631 = vmatpush2.msra.mxu0 0.0
        %5632 = vmatprep.mubr.f32.mxu0 0.0
        %5633 = vmatmul.mubr.f32.gmra.mxu0 %v5530
        %v5634 = vpop.f32.mrf.mxu0
        %v5635 = vadd.f32 0.0, %v5634
        %v5636 = vpop.f32.mrf.mxu0
        %5637 = vmatprep.mubr.f32.mxu0 0.0
        %5638 = vmatmul.mubr.f32.gmra.mxu0 %v5535
        %v5639 = vpop.f32.mrf.mxu0
        %v5640 = vadd.f32 0.0, %v5639
        %v5641 = vpop.f32.mrf.mxu0
        %5642 = vmatprep.mubr.f32.mxu0 0.0
        %5643 = vmatmul.mubr.f32.gmra.mxu0 %v5540
        %v5644 = vpop.f32.mrf.mxu0
        %v5645 = vadd.f32 0.0, %v5644
        %v5646 = vpop.f32.mrf.mxu0
        %5647 = vmatprep.mubr.f32.mxu0 0.0
        %5648 = vmatmul.mubr.f32.gmra.mxu0 %v5545
        %v5649 = vpop.f32.mrf.mxu0
        %v5650 = vadd.f32 0.0, %v5649
        %v5651 = vpop.f32.mrf.mxu0
        %5652 = vmatprep.mubr.f32.mxu0 0.0
        %5653 = vmatmul.mubr.f32.gmra.mxu0 %v5550
        %v5654 = vpop.f32.mrf.mxu0
        %v5655 = vadd.f32 0.0, %v5654
        %v5656 = vpop.f32.mrf.mxu0
        %5657 = vmatprep.mubr.f32.mxu0 0.0
        %5658 = vmatmul.mubr.f32.gmra.mxu0 %v5555
        %v5659 = vpop.f32.mrf.mxu0
        %v5660 = vadd.f32 0.0, %v5659
        %v5661 = vpop.f32.mrf.mxu0
        %5662 = vmatprep.mubr.f32.mxu0 0.0
        %5663 = vmatmul.mubr.f32.gmra.mxu0 %v5560
        %v5664 = vpop.f32.mrf.mxu0
        %v5665 = vadd.f32 0.0, %v5664
        %v5666 = vpop.f32.mrf.mxu0
        %5667 = vmatprep.mubr.f32.mxu0 0.0
        %5668 = vmatmul.mubr.f32.gmra.mxu0 %v5565
        %v5669 = vpop.f32.mrf.mxu0
        %v5670 = vadd.f32 0.0, %v5669
        %v5671 = vpop.f32.mrf.mxu0
        %5672 = vdwg.mxu0
        %vm5673 = vcmp.gt.f32.partialorder %v5635, 0.5
        %vm5674 = vcmp.gt.f32.partialorder %v5640, 0.5
        %vm5675 = vcmp.gt.f32.partialorder %v5645, 0.5
        %vm5676 = vcmp.gt.f32.partialorder %v5650, 0.5
        %vm5677 = vcmp.gt.f32.partialorder %v5655, 0.5
        %vm5678 = vcmp.gt.f32.partialorder %v5660, 0.5
        %vm5679 = vcmp.gt.f32.partialorder %v5665, 0.5
        %vm5680 = vcmp.gt.f32.partialorder %v5670, 0.5
        %v5681 = vsel %vm5673, 1, 0
        %v5682 = vsel %vm5674, 1, 0
        %v5683 = vsel %vm5675, 1, 0
        %v5684 = vsel %vm5676, 1, 0
        %v5685 = vsel %vm5677, 1, 0
        %v5686 = vsel %vm5678, 1, 0
        %v5687 = vsel %vm5679, 1, 0
        %v5688 = vsel %vm5680, 1, 0
        %v5689 = vcvt.s32.f32 %v5681
        %v5690 = vcvt.s32.f32 %v5682
        %v5691 = vcvt.s32.f32 %v5683
        %v5692 = vcvt.s32.f32 %v5684
        %v5693 = vcvt.s32.f32 %v5685
        %v5694 = vcvt.s32.f32 %v5686
        %v5695 = vcvt.s32.f32 %v5687
        %v5696 = vcvt.s32.f32 %v5688
        %v5697 = vpack.c.bf16 %v5690, %v5689
        %v5698 = vpack.c.bf16 %v5692, %v5691
        %v5699 = vpack.c.bf16 %v5694, %v5693
        %v5700 = vpack.c.bf16 %v5696, %v5695
        %v5705 = vunpack.c.l.b16 %v5697
        %v5706 = vunpack.c.h.b16 %v5697
        %v5707 = vunpack.c.l.b16 %v5698
        %v5708 = vunpack.c.h.b16 %v5698
        %v5709 = vunpack.c.l.b16 %v5699
        %v5710 = vunpack.c.h.b16 %v5699
        %v5711 = vunpack.c.l.b16 %v5700
        %v5712 = vunpack.c.h.b16 %v5700
        %v5713 = vpack.c.b16 %v5705, %v5705
        %v5714 = vpack.c.b16 %v5706, %v5706
        %v5715 = vpack.c.b16 %v5707, %v5707
        %v5716 = vpack.c.b16 %v5708, %v5708
        %v5717 = vpack.c.b16 %v5709, %v5709
        %v5718 = vpack.c.b16 %v5710, %v5710
        %v5719 = vpack.c.b16 %v5711, %v5711
        %v5720 = vpack.c.b16 %v5712, %v5712
        %s5729 = scalar_lea.vmem %s271, 64 [#allocation14]
        %5730 = vst.msk [vmem:[%s5729] sm:$0xf] %vm3081, %v5713
        %5731 = vst.msk [vmem:[%s5729 + $0x4] sm:$0xf] %vm3081, %v5714
        %5732 = vst.msk [vmem:[%s5729 + $0x8] sm:$0xf] %vm3081, %v5715
        %5733 = vst.msk [vmem:[%s5729 + $0xc] sm:$0xf] %vm3081, %v5716
        %5734 = vst.msk [vmem:[%s5729 + $0x10] sm:$0xf] %vm3081, %v5717
        %5735 = vst.msk [vmem:[%s5729 + $0x14] sm:$0xf] %vm3081, %v5718
        %5736 = vst.msk [vmem:[%s5729 + $0x18] sm:$0xf] %vm3081, %v5719
        %5737 = vst.msk [vmem:[%s5729 + $0x1c] sm:$0xf] %vm3081, %v5720
        %s5738 = sld [smem:[#allocation5 + $0x180]]
        %v5739 = vld [vmem:[#allocation3] sm:$0xff]
        %v5740 = vld [vmem:[#allocation3 + $0x8] sm:$0xff]
        %v5741 = vld [vmem:[#allocation3 + $0x10] sm:$0xff]
        %v5742 = vld [vmem:[#allocation3 + $0x18] sm:$0xff]
        %v5743 = vld [vmem:[#allocation3 + $0x20] sm:$0xff]
        %v5744 = vld [vmem:[#allocation3 + $0x28] sm:$0xff]
        %v5745 = vld [vmem:[#allocation3 + $0x30] sm:$0xff]
        %v5746 = vld [vmem:[#allocation3 + $0x38] sm:$0xff]
        %v5747 = vld [vmem:[#allocation3 + $0x40] sm:$0xff]
        %v5748 = vld [vmem:[#allocation3 + $0x48] sm:$0xff]
        %v5749 = vld [vmem:[#allocation3 + $0x50] sm:$0xff]
        %v5750 = vld [vmem:[#allocation3 + $0x58] sm:$0xff]
        %v5751 = vld [vmem:[#allocation3 + $0x60] sm:$0xff]
        %v5752 = vld [vmem:[#allocation3 + $0x68] sm:$0xff]
        %v5753 = vld [vmem:[#allocation3 + $0x70] sm:$0xff]
        %v5754 = vld [vmem:[#allocation3 + $0x78] sm:$0xff]
        %v5755 = vstv %s5738
        %v5756 = vmul.f32 %v5755, %v5739
        %v5757 = vmul.f32 %v5755, %v5740
        %v5758 = vmul.f32 %v5755, %v5741
        %v5759 = vmul.f32 %v5755, %v5742
        %v5760 = vmul.f32 %v5755, %v5743
        %v5761 = vmul.f32 %v5755, %v5744
        %v5762 = vmul.f32 %v5755, %v5745
        %v5763 = vmul.f32 %v5755, %v5746
        %v5764 = vmul.f32 %v5755, %v5747
        %v5765 = vmul.f32 %v5755, %v5748
        %v5766 = vmul.f32 %v5755, %v5749
        %v5767 = vmul.f32 %v5755, %v5750
        %v5768 = vmul.f32 %v5755, %v5751
        %v5769 = vmul.f32 %v5755, %v5752
        %v5770 = vmul.f32 %v5755, %v5753
        %v5771 = vmul.f32 %v5755, %v5754
        %s5772 = sld [smem:[#allocation5 + $0x181]]
        %v5773 = vld [vmem:[%s760] sm:$0xff]
        %v5774 = vld [vmem:[%s760 + $0x8] sm:$0xff]
        %v5775 = vld [vmem:[%s760 + $0x10] sm:$0xff]
        %v5776 = vld [vmem:[%s760 + $0x18] sm:$0xff]
        %v5777 = vld [vmem:[%s760 + $0x20] sm:$0xff]
        %v5778 = vld [vmem:[%s760 + $0x28] sm:$0xff]
        %v5779 = vld [vmem:[%s760 + $0x30] sm:$0xff]
        %v5780 = vld [vmem:[%s760 + $0x38] sm:$0xff]
        %v5781 = vld [vmem:[%s760 + $0x40] sm:$0xff]
        %v5782 = vld [vmem:[%s760 + $0x48] sm:$0xff]
        %v5783 = vld [vmem:[%s760 + $0x50] sm:$0xff]
        %v5784 = vld [vmem:[%s760 + $0x58] sm:$0xff]
        %v5785 = vld [vmem:[%s760 + $0x60] sm:$0xff]
        %v5786 = vld [vmem:[%s760 + $0x68] sm:$0xff]
        %v5787 = vld [vmem:[%s760 + $0x70] sm:$0xff]
        %v5788 = vld [vmem:[%s760 + $0x78] sm:$0xff]
        %v5789 = vstv %s5772
        %v5790 = vmul.f32 %v5789, %v5773
        %v5791 = vmul.f32 %v5789, %v5774
        %v5792 = vmul.f32 %v5789, %v5775
        %v5793 = vmul.f32 %v5789, %v5776
        %v5794 = vmul.f32 %v5789, %v5777
        %v5795 = vmul.f32 %v5789, %v5778
        %v5796 = vmul.f32 %v5789, %v5779
        %v5797 = vmul.f32 %v5789, %v5780
        %v5798 = vmul.f32 %v5789, %v5781
        %v5799 = vmul.f32 %v5789, %v5782
        %v5800 = vmul.f32 %v5789, %v5783
        %v5801 = vmul.f32 %v5789, %v5784
        %v5802 = vmul.f32 %v5789, %v5785
        %v5803 = vmul.f32 %v5789, %v5786
        %v5804 = vmul.f32 %v5789, %v5787
        %v5805 = vmul.f32 %v5789, %v5788
        %v5806 = vadd.f32 %v5756, %v5790
        %v5807 = vadd.f32 %v5757, %v5791
        %v5808 = vadd.f32 %v5758, %v5792
        %v5809 = vadd.f32 %v5759, %v5793
        %v5810 = vadd.f32 %v5760, %v5794
        %v5811 = vadd.f32 %v5761, %v5795
        %v5812 = vadd.f32 %v5762, %v5796
        %v5813 = vadd.f32 %v5763, %v5797
        %v5814 = vadd.f32 %v5764, %v5798
        %v5815 = vadd.f32 %v5765, %v5799
        %v5816 = vadd.f32 %v5766, %v5800
        %v5817 = vadd.f32 %v5767, %v5801
        %v5818 = vadd.f32 %v5768, %v5802
        %v5819 = vadd.f32 %v5769, %v5803
        %v5820 = vadd.f32 %v5770, %v5804
        %v5821 = vadd.f32 %v5771, %v5805
        %s5822 = sld [smem:[#allocation5 + $0x182]]
        %v5823 = vld [vmem:[%s874] sm:$0xff]
        %v5824 = vld [vmem:[%s874 + $0x8] sm:$0xff]
        %v5825 = vld [vmem:[%s874 + $0x10] sm:$0xff]
        %v5826 = vld [vmem:[%s874 + $0x18] sm:$0xff]
        %v5827 = vld [vmem:[%s874 + $0x20] sm:$0xff]
        %v5828 = vld [vmem:[%s874 + $0x28] sm:$0xff]
        %v5829 = vld [vmem:[%s874 + $0x30] sm:$0xff]
        %v5830 = vld [vmem:[%s874 + $0x38] sm:$0xff]
        %v5831 = vld [vmem:[%s874 + $0x40] sm:$0xff]
        %v5832 = vld [vmem:[%s874 + $0x48] sm:$0xff]
        %v5833 = vld [vmem:[%s874 + $0x50] sm:$0xff]
        %v5834 = vld [vmem:[%s874 + $0x58] sm:$0xff]
        %v5835 = vld [vmem:[%s874 + $0x60] sm:$0xff]
        %v5836 = vld [vmem:[%s874 + $0x68] sm:$0xff]
        %v5837 = vld [vmem:[%s874 + $0x70] sm:$0xff]
        %v5838 = vld [vmem:[%s874 + $0x78] sm:$0xff]
        %v5839 = vstv %s5822
        %v5840 = vmul.f32 %v5839, %v5823
        %v5841 = vmul.f32 %v5839, %v5824
        %v5842 = vmul.f32 %v5839, %v5825
        %v5843 = vmul.f32 %v5839, %v5826
        %v5844 = vmul.f32 %v5839, %v5827
        %v5845 = vmul.f32 %v5839, %v5828
        %v5846 = vmul.f32 %v5839, %v5829
        %v5847 = vmul.f32 %v5839, %v5830
        %v5848 = vmul.f32 %v5839, %v5831
        %v5849 = vmul.f32 %v5839, %v5832
        %v5850 = vmul.f32 %v5839, %v5833
        %v5851 = vmul.f32 %v5839, %v5834
        %v5852 = vmul.f32 %v5839, %v5835
        %v5853 = vmul.f32 %v5839, %v5836
        %v5854 = vmul.f32 %v5839, %v5837
        %v5855 = vmul.f32 %v5839, %v5838
        %v5856 = vadd.f32 %v5806, %v5840
        %v5857 = vadd.f32 %v5807, %v5841
        %v5858 = vadd.f32 %v5808, %v5842
        %v5859 = vadd.f32 %v5809, %v5843
        %v5860 = vadd.f32 %v5810, %v5844
        %v5861 = vadd.f32 %v5811, %v5845
        %v5862 = vadd.f32 %v5812, %v5846
        %v5863 = vadd.f32 %v5813, %v5847
        %v5864 = vadd.f32 %v5814, %v5848
        %v5865 = vadd.f32 %v5815, %v5849
        %v5866 = vadd.f32 %v5816, %v5850
        %v5867 = vadd.f32 %v5817, %v5851
        %v5868 = vadd.f32 %v5818, %v5852
        %v5869 = vadd.f32 %v5819, %v5853
        %v5870 = vadd.f32 %v5820, %v5854
        %v5871 = vadd.f32 %v5821, %v5855
        %s5872 = sld [smem:[#allocation5 + $0x183]]
        %v5873 = vld [vmem:[%s891] sm:$0xff]
        %v5874 = vld [vmem:[%s891 + $0x8] sm:$0xff]
        %v5875 = vld [vmem:[%s891 + $0x10] sm:$0xff]
        %v5876 = vld [vmem:[%s891 + $0x18] sm:$0xff]
        %v5877 = vld [vmem:[%s891 + $0x20] sm:$0xff]
        %v5878 = vld [vmem:[%s891 + $0x28] sm:$0xff]
        %v5879 = vld [vmem:[%s891 + $0x30] sm:$0xff]
        %v5880 = vld [vmem:[%s891 + $0x38] sm:$0xff]
        %v5881 = vld [vmem:[%s891 + $0x40] sm:$0xff]
        %v5882 = vld [vmem:[%s891 + $0x48] sm:$0xff]
        %v5883 = vld [vmem:[%s891 + $0x50] sm:$0xff]
        %v5884 = vld [vmem:[%s891 + $0x58] sm:$0xff]
        %v5885 = vld [vmem:[%s891 + $0x60] sm:$0xff]
        %v5886 = vld [vmem:[%s891 + $0x68] sm:$0xff]
        %v5887 = vld [vmem:[%s891 + $0x70] sm:$0xff]
        %v5888 = vld [vmem:[%s891 + $0x78] sm:$0xff]
        %v5889 = vstv %s5872
        %v5890 = vmul.f32 %v5889, %v5873
        %v5891 = vmul.f32 %v5889, %v5874
        %v5892 = vmul.f32 %v5889, %v5875
        %v5893 = vmul.f32 %v5889, %v5876
        %v5894 = vmul.f32 %v5889, %v5877
        %v5895 = vmul.f32 %v5889, %v5878
        %v5896 = vmul.f32 %v5889, %v5879
        %v5897 = vmul.f32 %v5889, %v5880
        %v5898 = vmul.f32 %v5889, %v5881
        %v5899 = vmul.f32 %v5889, %v5882
        %v5900 = vmul.f32 %v5889, %v5883
        %v5901 = vmul.f32 %v5889, %v5884
        %v5902 = vmul.f32 %v5889, %v5885
        %v5903 = vmul.f32 %v5889, %v5886
        %v5904 = vmul.f32 %v5889, %v5887
        %v5905 = vmul.f32 %v5889, %v5888
        %v5906 = vadd.f32 %v5856, %v5890
        %v5907 = vadd.f32 %v5857, %v5891
        %v5908 = vadd.f32 %v5858, %v5892
        %v5909 = vadd.f32 %v5859, %v5893
        %v5910 = vadd.f32 %v5860, %v5894
        %v5911 = vadd.f32 %v5861, %v5895
        %v5912 = vadd.f32 %v5862, %v5896
        %v5913 = vadd.f32 %v5863, %v5897
        %v5914 = vadd.f32 %v5864, %v5898
        %v5915 = vadd.f32 %v5865, %v5899
        %v5916 = vadd.f32 %v5866, %v5900
        %v5917 = vadd.f32 %v5867, %v5901
        %v5918 = vadd.f32 %v5868, %v5902
        %v5919 = vadd.f32 %v5869, %v5903
        %v5920 = vadd.f32 %v5870, %v5904
        %v5921 = vadd.f32 %v5871, %v5905
        %s5922 = sld [smem:[#allocation5 + $0x184]]
        %v5923 = vld [vmem:[%s917] sm:$0xff]
        %v5924 = vld [vmem:[%s917 + $0x8] sm:$0xff]
        %v5925 = vld [vmem:[%s917 + $0x10] sm:$0xff]
        %v5926 = vld [vmem:[%s917 + $0x18] sm:$0xff]
        %v5927 = vld [vmem:[%s917 + $0x20] sm:$0xff]
        %v5928 = vld [vmem:[%s917 + $0x28] sm:$0xff]
        %v5929 = vld [vmem:[%s917 + $0x30] sm:$0xff]
        %v5930 = vld [vmem:[%s917 + $0x38] sm:$0xff]
        %v5931 = vld [vmem:[%s917 + $0x40] sm:$0xff]
        %v5932 = vld [vmem:[%s917 + $0x48] sm:$0xff]
        %v5933 = vld [vmem:[%s917 + $0x50] sm:$0xff]
        %v5934 = vld [vmem:[%s917 + $0x58] sm:$0xff]
        %v5935 = vld [vmem:[%s917 + $0x60] sm:$0xff]
        %v5936 = vld [vmem:[%s917 + $0x68] sm:$0xff]
        %v5937 = vld [vmem:[%s917 + $0x70] sm:$0xff]
        %v5938 = vld [vmem:[%s917 + $0x78] sm:$0xff]
        %v5939 = vstv %s5922
        %v5940 = vmul.f32 %v5939, %v5923
        %v5941 = vmul.f32 %v5939, %v5924
        %v5942 = vmul.f32 %v5939, %v5925
        %v5943 = vmul.f32 %v5939, %v5926
        %v5944 = vmul.f32 %v5939, %v5927
        %v5945 = vmul.f32 %v5939, %v5928
        %v5946 = vmul.f32 %v5939, %v5929
        %v5947 = vmul.f32 %v5939, %v5930
        %v5948 = vmul.f32 %v5939, %v5931
        %v5949 = vmul.f32 %v5939, %v5932
        %v5950 = vmul.f32 %v5939, %v5933
        %v5951 = vmul.f32 %v5939, %v5934
        %v5952 = vmul.f32 %v5939, %v5935
        %v5953 = vmul.f32 %v5939, %v5936
        %v5954 = vmul.f32 %v5939, %v5937
        %v5955 = vmul.f32 %v5939, %v5938
        %v5956 = vadd.f32 %v5906, %v5940
        %v5957 = vadd.f32 %v5907, %v5941
        %v5958 = vadd.f32 %v5908, %v5942
        %v5959 = vadd.f32 %v5909, %v5943
        %v5960 = vadd.f32 %v5910, %v5944
        %v5961 = vadd.f32 %v5911, %v5945
        %v5962 = vadd.f32 %v5912, %v5946
        %v5963 = vadd.f32 %v5913, %v5947
        %v5964 = vadd.f32 %v5914, %v5948
        %v5965 = vadd.f32 %v5915, %v5949
        %v5966 = vadd.f32 %v5916, %v5950
        %v5967 = vadd.f32 %v5917, %v5951
        %v5968 = vadd.f32 %v5918, %v5952
        %v5969 = vadd.f32 %v5919, %v5953
        %v5970 = vadd.f32 %v5920, %v5954
        %v5971 = vadd.f32 %v5921, %v5955
        %s5972 = sld [smem:[#allocation5 + $0x185]]
        %v5973 = vld [vmem:[%s941] sm:$0xff]
        %v5974 = vld [vmem:[%s941 + $0x8] sm:$0xff]
        %v5975 = vld [vmem:[%s941 + $0x10] sm:$0xff]
        %v5976 = vld [vmem:[%s941 + $0x18] sm:$0xff]
        %v5977 = vld [vmem:[%s941 + $0x20] sm:$0xff]
        %v5978 = vld [vmem:[%s941 + $0x28] sm:$0xff]
        %v5979 = vld [vmem:[%s941 + $0x30] sm:$0xff]
        %v5980 = vld [vmem:[%s941 + $0x38] sm:$0xff]
        %v5981 = vld [vmem:[%s941 + $0x40] sm:$0xff]
        %v5982 = vld [vmem:[%s941 + $0x48] sm:$0xff]
        %v5983 = vld [vmem:[%s941 + $0x50] sm:$0xff]
        %v5984 = vld [vmem:[%s941 + $0x58] sm:$0xff]
        %v5985 = vld [vmem:[%s941 + $0x60] sm:$0xff]
        %v5986 = vld [vmem:[%s941 + $0x68] sm:$0xff]
        %v5987 = vld [vmem:[%s941 + $0x70] sm:$0xff]
        %v5988 = vld [vmem:[%s941 + $0x78] sm:$0xff]
        %v5989 = vstv %s5972
        %v5990 = vmul.f32 %v5989, %v5973
        %v5991 = vmul.f32 %v5989, %v5974
        %v5992 = vmul.f32 %v5989, %v5975
        %v5993 = vmul.f32 %v5989, %v5976
        %v5994 = vmul.f32 %v5989, %v5977
        %v5995 = vmul.f32 %v5989, %v5978
        %v5996 = vmul.f32 %v5989, %v5979
        %v5997 = vmul.f32 %v5989, %v5980
        %v5998 = vmul.f32 %v5989, %v5981
        %v5999 = vmul.f32 %v5989, %v5982
        %v6000 = vmul.f32 %v5989, %v5983
        %v6001 = vmul.f32 %v5989, %v5984
        %v6002 = vmul.f32 %v5989, %v5985
        %v6003 = vmul.f32 %v5989, %v5986
        %v6004 = vmul.f32 %v5989, %v5987
        %v6005 = vmul.f32 %v5989, %v5988
        %v6006 = vadd.f32 %v5956, %v5990
        %v6007 = vadd.f32 %v5957, %v5991
        %v6008 = vadd.f32 %v5958, %v5992
        %v6009 = vadd.f32 %v5959, %v5993
        %v6010 = vadd.f32 %v5960, %v5994
        %v6011 = vadd.f32 %v5961, %v5995
        %v6012 = vadd.f32 %v5962, %v5996
        %v6013 = vadd.f32 %v5963, %v5997
        %v6014 = vadd.f32 %v5964, %v5998
        %v6015 = vadd.f32 %v5965, %v5999
        %v6016 = vadd.f32 %v5966, %v6000
        %v6017 = vadd.f32 %v5967, %v6001
        %v6018 = vadd.f32 %v5968, %v6002
        %v6019 = vadd.f32 %v5969, %v6003
        %v6020 = vadd.f32 %v5970, %v6004
        %v6021 = vadd.f32 %v5971, %v6005
        %s6022 = sld [smem:[#allocation5 + $0x186]]
        %v6023 = vld [vmem:[%s959] sm:$0xff]
        %v6024 = vld [vmem:[%s959 + $0x8] sm:$0xff]
        %v6025 = vld [vmem:[%s959 + $0x10] sm:$0xff]
        %v6026 = vld [vmem:[%s959 + $0x18] sm:$0xff]
        %v6027 = vld [vmem:[%s959 + $0x20] sm:$0xff]
        %v6028 = vld [vmem:[%s959 + $0x28] sm:$0xff]
        %v6029 = vld [vmem:[%s959 + $0x30] sm:$0xff]
        %v6030 = vld [vmem:[%s959 + $0x38] sm:$0xff]
        %v6031 = vld [vmem:[%s959 + $0x40] sm:$0xff]
        %v6032 = vld [vmem:[%s959 + $0x48] sm:$0xff]
        %v6033 = vld [vmem:[%s959 + $0x50] sm:$0xff]
        %v6034 = vld [vmem:[%s959 + $0x58] sm:$0xff]
        %v6035 = vld [vmem:[%s959 + $0x60] sm:$0xff]
        %v6036 = vld [vmem:[%s959 + $0x68] sm:$0xff]
        %v6037 = vld [vmem:[%s959 + $0x70] sm:$0xff]
        %v6038 = vld [vmem:[%s959 + $0x78] sm:$0xff]
        %v6039 = vstv %s6022
        %v6040 = vmul.f32 %v6039, %v6023
        %v6041 = vmul.f32 %v6039, %v6024
        %v6042 = vmul.f32 %v6039, %v6025
        %v6043 = vmul.f32 %v6039, %v6026
        %v6044 = vmul.f32 %v6039, %v6027
        %v6045 = vmul.f32 %v6039, %v6028
        %v6046 = vmul.f32 %v6039, %v6029
        %v6047 = vmul.f32 %v6039, %v6030
        %v6048 = vmul.f32 %v6039, %v6031
        %v6049 = vmul.f32 %v6039, %v6032
        %v6050 = vmul.f32 %v6039, %v6033
        %v6051 = vmul.f32 %v6039, %v6034
        %v6052 = vmul.f32 %v6039, %v6035
        %v6053 = vmul.f32 %v6039, %v6036
        %v6054 = vmul.f32 %v6039, %v6037
        %v6055 = vmul.f32 %v6039, %v6038
        %v6056 = vadd.f32 %v6006, %v6040
        %v6057 = vadd.f32 %v6007, %v6041
        %v6058 = vadd.f32 %v6008, %v6042
        %v6059 = vadd.f32 %v6009, %v6043
        %v6060 = vadd.f32 %v6010, %v6044
        %v6061 = vadd.f32 %v6011, %v6045
        %v6062 = vadd.f32 %v6012, %v6046
        %v6063 = vadd.f32 %v6013, %v6047
        %v6064 = vadd.f32 %v6014, %v6048
        %v6065 = vadd.f32 %v6015, %v6049
        %v6066 = vadd.f32 %v6016, %v6050
        %v6067 = vadd.f32 %v6017, %v6051
        %v6068 = vadd.f32 %v6018, %v6052
        %v6069 = vadd.f32 %v6019, %v6053
        %v6070 = vadd.f32 %v6020, %v6054
        %v6071 = vadd.f32 %v6021, %v6055
        %s6072 = sld [smem:[#allocation5 + $0x187]]
        %v6073 = vld [vmem:[%s977] sm:$0xff]
        %v6074 = vld [vmem:[%s977 + $0x8] sm:$0xff]
        %v6075 = vld [vmem:[%s977 + $0x10] sm:$0xff]
        %v6076 = vld [vmem:[%s977 + $0x18] sm:$0xff]
        %v6077 = vld [vmem:[%s977 + $0x20] sm:$0xff]
        %v6078 = vld [vmem:[%s977 + $0x28] sm:$0xff]
        %v6079 = vld [vmem:[%s977 + $0x30] sm:$0xff]
        %v6080 = vld [vmem:[%s977 + $0x38] sm:$0xff]
        %v6081 = vld [vmem:[%s977 + $0x40] sm:$0xff]
        %v6082 = vld [vmem:[%s977 + $0x48] sm:$0xff]
        %v6083 = vld [vmem:[%s977 + $0x50] sm:$0xff]
        %v6084 = vld [vmem:[%s977 + $0x58] sm:$0xff]
        %v6085 = vld [vmem:[%s977 + $0x60] sm:$0xff]
        %v6086 = vld [vmem:[%s977 + $0x68] sm:$0xff]
        %v6087 = vld [vmem:[%s977 + $0x70] sm:$0xff]
        %v6088 = vld [vmem:[%s977 + $0x78] sm:$0xff]
        %v6089 = vstv %s6072
        %v6090 = vmul.f32 %v6089, %v6073
        %v6091 = vmul.f32 %v6089, %v6074
        %v6092 = vmul.f32 %v6089, %v6075
        %v6093 = vmul.f32 %v6089, %v6076
        %v6094 = vmul.f32 %v6089, %v6077
        %v6095 = vmul.f32 %v6089, %v6078
        %v6096 = vmul.f32 %v6089, %v6079
        %v6097 = vmul.f32 %v6089, %v6080
        %v6098 = vmul.f32 %v6089, %v6081
        %v6099 = vmul.f32 %v6089, %v6082
        %v6100 = vmul.f32 %v6089, %v6083
        %v6101 = vmul.f32 %v6089, %v6084
        %v6102 = vmul.f32 %v6089, %v6085
        %v6103 = vmul.f32 %v6089, %v6086
        %v6104 = vmul.f32 %v6089, %v6087
        %v6105 = vmul.f32 %v6089, %v6088
        %v6106 = vadd.f32 %v6056, %v6090
        %v6107 = vadd.f32 %v6057, %v6091
        %v6108 = vadd.f32 %v6058, %v6092
        %v6109 = vadd.f32 %v6059, %v6093
        %v6110 = vadd.f32 %v6060, %v6094
        %v6111 = vadd.f32 %v6061, %v6095
        %v6112 = vadd.f32 %v6062, %v6096
        %v6113 = vadd.f32 %v6063, %v6097
        %v6114 = vadd.f32 %v6064, %v6098
        %v6115 = vadd.f32 %v6065, %v6099
        %v6116 = vadd.f32 %v6066, %v6100
        %v6117 = vadd.f32 %v6067, %v6101
        %v6118 = vadd.f32 %v6068, %v6102
        %v6119 = vadd.f32 %v6069, %v6103
        %v6120 = vadd.f32 %v6070, %v6104
        %v6121 = vadd.f32 %v6071, %v6105
        %s6122 = sld [smem:[#allocation5 + $0x188]]
        %v6123 = vld [vmem:[%s995] sm:$0xff]
        %v6124 = vld [vmem:[%s995 + $0x8] sm:$0xff]
        %v6125 = vld [vmem:[%s995 + $0x10] sm:$0xff]
        %v6126 = vld [vmem:[%s995 + $0x18] sm:$0xff]
        %v6127 = vld [vmem:[%s995 + $0x20] sm:$0xff]
        %v6128 = vld [vmem:[%s995 + $0x28] sm:$0xff]
        %v6129 = vld [vmem:[%s995 + $0x30] sm:$0xff]
        %v6130 = vld [vmem:[%s995 + $0x38] sm:$0xff]
        %v6131 = vld [vmem:[%s995 + $0x40] sm:$0xff]
        %v6132 = vld [vmem:[%s995 + $0x48] sm:$0xff]
        %v6133 = vld [vmem:[%s995 + $0x50] sm:$0xff]
        %v6134 = vld [vmem:[%s995 + $0x58] sm:$0xff]
        %v6135 = vld [vmem:[%s995 + $0x60] sm:$0xff]
        %v6136 = vld [vmem:[%s995 + $0x68] sm:$0xff]
        %v6137 = vld [vmem:[%s995 + $0x70] sm:$0xff]
        %v6138 = vld [vmem:[%s995 + $0x78] sm:$0xff]
        %v6139 = vstv %s6122
        %v6140 = vmul.f32 %v6139, %v6123
        %v6141 = vmul.f32 %v6139, %v6124
        %v6142 = vmul.f32 %v6139, %v6125
        %v6143 = vmul.f32 %v6139, %v6126
        %v6144 = vmul.f32 %v6139, %v6127
        %v6145 = vmul.f32 %v6139, %v6128
        %v6146 = vmul.f32 %v6139, %v6129
        %v6147 = vmul.f32 %v6139, %v6130
        %v6148 = vmul.f32 %v6139, %v6131
        %v6149 = vmul.f32 %v6139, %v6132
        %v6150 = vmul.f32 %v6139, %v6133
        %v6151 = vmul.f32 %v6139, %v6134
        %v6152 = vmul.f32 %v6139, %v6135
        %v6153 = vmul.f32 %v6139, %v6136
        %v6154 = vmul.f32 %v6139, %v6137
        %v6155 = vmul.f32 %v6139, %v6138
        %v6156 = vadd.f32 %v6106, %v6140
        %v6157 = vadd.f32 %v6107, %v6141
        %v6158 = vadd.f32 %v6108, %v6142
        %v6159 = vadd.f32 %v6109, %v6143
        %v6160 = vadd.f32 %v6110, %v6144
        %v6161 = vadd.f32 %v6111, %v6145
        %v6162 = vadd.f32 %v6112, %v6146
        %v6163 = vadd.f32 %v6113, %v6147
        %v6164 = vadd.f32 %v6114, %v6148
        %v6165 = vadd.f32 %v6115, %v6149
        %v6166 = vadd.f32 %v6116, %v6150
        %v6167 = vadd.f32 %v6117, %v6151
        %v6168 = vadd.f32 %v6118, %v6152
        %v6169 = vadd.f32 %v6119, %v6153
        %v6170 = vadd.f32 %v6120, %v6154
        %v6171 = vadd.f32 %v6121, %v6155
        %s6172 = sld [smem:[#allocation5 + $0x189]]
        %v6173 = vld [vmem:[%s1213] sm:$0xff]
        %v6174 = vld [vmem:[%s1213 + $0x8] sm:$0xff]
        %v6175 = vld [vmem:[%s1213 + $0x10] sm:$0xff]
        %v6176 = vld [vmem:[%s1213 + $0x18] sm:$0xff]
        %v6177 = vld [vmem:[%s1213 + $0x20] sm:$0xff]
        %v6178 = vld [vmem:[%s1213 + $0x28] sm:$0xff]
        %v6179 = vld [vmem:[%s1213 + $0x30] sm:$0xff]
        %v6180 = vld [vmem:[%s1213 + $0x38] sm:$0xff]
        %v6181 = vld [vmem:[%s1213 + $0x40] sm:$0xff]
        %v6182 = vld [vmem:[%s1213 + $0x48] sm:$0xff]
        %v6183 = vld [vmem:[%s1213 + $0x50] sm:$0xff]
        %v6184 = vld [vmem:[%s1213 + $0x58] sm:$0xff]
        %v6185 = vld [vmem:[%s1213 + $0x60] sm:$0xff]
        %v6186 = vld [vmem:[%s1213 + $0x68] sm:$0xff]
        %v6187 = vld [vmem:[%s1213 + $0x70] sm:$0xff]
        %v6188 = vld [vmem:[%s1213 + $0x78] sm:$0xff]
        %v6189 = vstv %s6172
        %v6190 = vmul.f32 %v6189, %v6173
        %v6191 = vmul.f32 %v6189, %v6174
        %v6192 = vmul.f32 %v6189, %v6175
        %v6193 = vmul.f32 %v6189, %v6176
        %v6194 = vmul.f32 %v6189, %v6177
        %v6195 = vmul.f32 %v6189, %v6178
        %v6196 = vmul.f32 %v6189, %v6179
        %v6197 = vmul.f32 %v6189, %v6180
        %v6198 = vmul.f32 %v6189, %v6181
        %v6199 = vmul.f32 %v6189, %v6182
        %v6200 = vmul.f32 %v6189, %v6183
        %v6201 = vmul.f32 %v6189, %v6184
        %v6202 = vmul.f32 %v6189, %v6185
        %v6203 = vmul.f32 %v6189, %v6186
        %v6204 = vmul.f32 %v6189, %v6187
        %v6205 = vmul.f32 %v6189, %v6188
        %v6206 = vadd.f32 %v6156, %v6190
        %v6207 = vadd.f32 %v6157, %v6191
        %v6208 = vadd.f32 %v6158, %v6192
        %v6209 = vadd.f32 %v6159, %v6193
        %v6210 = vadd.f32 %v6160, %v6194
        %v6211 = vadd.f32 %v6161, %v6195
        %v6212 = vadd.f32 %v6162, %v6196
        %v6213 = vadd.f32 %v6163, %v6197
        %v6214 = vadd.f32 %v6164, %v6198
        %v6215 = vadd.f32 %v6165, %v6199
        %v6216 = vadd.f32 %v6166, %v6200
        %v6217 = vadd.f32 %v6167, %v6201
        %v6218 = vadd.f32 %v6168, %v6202
        %v6219 = vadd.f32 %v6169, %v6203
        %v6220 = vadd.f32 %v6170, %v6204
        %v6221 = vadd.f32 %v6171, %v6205
        %s6222 = sld [smem:[#allocation5 + $0x18a]]
        %v6223 = vld [vmem:[%s1358] sm:$0xff]
        %v6224 = vld [vmem:[%s1358 + $0x8] sm:$0xff]
        %v6225 = vld [vmem:[%s1358 + $0x10] sm:$0xff]
        %v6226 = vld [vmem:[%s1358 + $0x18] sm:$0xff]
        %v6227 = vld [vmem:[%s1358 + $0x20] sm:$0xff]
        %v6228 = vld [vmem:[%s1358 + $0x28] sm:$0xff]
        %v6229 = vld [vmem:[%s1358 + $0x30] sm:$0xff]
        %v6230 = vld [vmem:[%s1358 + $0x38] sm:$0xff]
        %v6231 = vld [vmem:[%s1358 + $0x40] sm:$0xff]
        %v6232 = vld [vmem:[%s1358 + $0x48] sm:$0xff]
        %v6233 = vld [vmem:[%s1358 + $0x50] sm:$0xff]
        %v6234 = vld [vmem:[%s1358 + $0x58] sm:$0xff]
        %v6235 = vld [vmem:[%s1358 + $0x60] sm:$0xff]
        %v6236 = vld [vmem:[%s1358 + $0x68] sm:$0xff]
        %v6237 = vld [vmem:[%s1358 + $0x70] sm:$0xff]
        %v6238 = vld [vmem:[%s1358 + $0x78] sm:$0xff]
        %v6239 = vstv %s6222
        %v6240 = vmul.f32 %v6239, %v6223
        %v6241 = vmul.f32 %v6239, %v6224
        %v6242 = vmul.f32 %v6239, %v6225
        %v6243 = vmul.f32 %v6239, %v6226
        %v6244 = vmul.f32 %v6239, %v6227
        %v6245 = vmul.f32 %v6239, %v6228
        %v6246 = vmul.f32 %v6239, %v6229
        %v6247 = vmul.f32 %v6239, %v6230
        %v6248 = vmul.f32 %v6239, %v6231
        %v6249 = vmul.f32 %v6239, %v6232
        %v6250 = vmul.f32 %v6239, %v6233
        %v6251 = vmul.f32 %v6239, %v6234
        %v6252 = vmul.f32 %v6239, %v6235
        %v6253 = vmul.f32 %v6239, %v6236
        %v6254 = vmul.f32 %v6239, %v6237
        %v6255 = vmul.f32 %v6239, %v6238
        %v6256 = vadd.f32 %v6206, %v6240
        %v6257 = vadd.f32 %v6207, %v6241
        %v6258 = vadd.f32 %v6208, %v6242
        %v6259 = vadd.f32 %v6209, %v6243
        %v6260 = vadd.f32 %v6210, %v6244
        %v6261 = vadd.f32 %v6211, %v6245
        %v6262 = vadd.f32 %v6212, %v6246
        %v6263 = vadd.f32 %v6213, %v6247
        %v6264 = vadd.f32 %v6214, %v6248
        %v6265 = vadd.f32 %v6215, %v6249
        %v6266 = vadd.f32 %v6216, %v6250
        %v6267 = vadd.f32 %v6217, %v6251
        %v6268 = vadd.f32 %v6218, %v6252
        %v6269 = vadd.f32 %v6219, %v6253
        %v6270 = vadd.f32 %v6220, %v6254
        %v6271 = vadd.f32 %v6221, %v6255
        %s6272 = sld [smem:[#allocation5 + $0x18b]]
        %v6273 = vld [vmem:[%s1471] sm:$0xff]
        %v6274 = vld [vmem:[%s1471 + $0x8] sm:$0xff]
        %v6275 = vld [vmem:[%s1471 + $0x10] sm:$0xff]
        %v6276 = vld [vmem:[%s1471 + $0x18] sm:$0xff]
        %v6277 = vld [vmem:[%s1471 + $0x20] sm:$0xff]
        %v6278 = vld [vmem:[%s1471 + $0x28] sm:$0xff]
        %v6279 = vld [vmem:[%s1471 + $0x30] sm:$0xff]
        %v6280 = vld [vmem:[%s1471 + $0x38] sm:$0xff]
        %v6281 = vld [vmem:[%s1471 + $0x40] sm:$0xff]
        %v6282 = vld [vmem:[%s1471 + $0x48] sm:$0xff]
        %v6283 = vld [vmem:[%s1471 + $0x50] sm:$0xff]
        %v6284 = vld [vmem:[%s1471 + $0x58] sm:$0xff]
        %v6285 = vld [vmem:[%s1471 + $0x60] sm:$0xff]
        %v6286 = vld [vmem:[%s1471 + $0x68] sm:$0xff]
        %v6287 = vld [vmem:[%s1471 + $0x70] sm:$0xff]
        %v6288 = vld [vmem:[%s1471 + $0x78] sm:$0xff]
        %v6289 = vstv %s6272
        %v6290 = vmul.f32 %v6289, %v6273
        %v6291 = vmul.f32 %v6289, %v6274
        %v6292 = vmul.f32 %v6289, %v6275
        %v6293 = vmul.f32 %v6289, %v6276
        %v6294 = vmul.f32 %v6289, %v6277
        %v6295 = vmul.f32 %v6289, %v6278
        %v6296 = vmul.f32 %v6289, %v6279
        %v6297 = vmul.f32 %v6289, %v6280
        %v6298 = vmul.f32 %v6289, %v6281
        %v6299 = vmul.f32 %v6289, %v6282
        %v6300 = vmul.f32 %v6289, %v6283
        %v6301 = vmul.f32 %v6289, %v6284
        %v6302 = vmul.f32 %v6289, %v6285
        %v6303 = vmul.f32 %v6289, %v6286
        %v6304 = vmul.f32 %v6289, %v6287
        %v6305 = vmul.f32 %v6289, %v6288
        %v6306 = vadd.f32 %v6256, %v6290
        %v6307 = vadd.f32 %v6257, %v6291
        %v6308 = vadd.f32 %v6258, %v6292
        %v6309 = vadd.f32 %v6259, %v6293
        %v6310 = vadd.f32 %v6260, %v6294
        %v6311 = vadd.f32 %v6261, %v6295
        %v6312 = vadd.f32 %v6262, %v6296
        %v6313 = vadd.f32 %v6263, %v6297
        %v6314 = vadd.f32 %v6264, %v6298
        %v6315 = vadd.f32 %v6265, %v6299
        %v6316 = vadd.f32 %v6266, %v6300
        %v6317 = vadd.f32 %v6267, %v6301
        %v6318 = vadd.f32 %v6268, %v6302
        %v6319 = vadd.f32 %v6269, %v6303
        %v6320 = vadd.f32 %v6270, %v6304
        %v6321 = vadd.f32 %v6271, %v6305
        %s6322 = sld [smem:[#allocation5 + $0x18c]]
        %v6323 = vld [vmem:[%s1488] sm:$0xff]
        %v6324 = vld [vmem:[%s1488 + $0x8] sm:$0xff]
        %v6325 = vld [vmem:[%s1488 + $0x10] sm:$0xff]
        %v6326 = vld [vmem:[%s1488 + $0x18] sm:$0xff]
        %v6327 = vld [vmem:[%s1488 + $0x20] sm:$0xff]
        %v6328 = vld [vmem:[%s1488 + $0x28] sm:$0xff]
        %v6329 = vld [vmem:[%s1488 + $0x30] sm:$0xff]
        %v6330 = vld [vmem:[%s1488 + $0x38] sm:$0xff]
        %v6331 = vld [vmem:[%s1488 + $0x40] sm:$0xff]
        %v6332 = vld [vmem:[%s1488 + $0x48] sm:$0xff]
        %v6333 = vld [vmem:[%s1488 + $0x50] sm:$0xff]
        %v6334 = vld [vmem:[%s1488 + $0x58] sm:$0xff]
        %v6335 = vld [vmem:[%s1488 + $0x60] sm:$0xff]
        %v6336 = vld [vmem:[%s1488 + $0x68] sm:$0xff]
        %v6337 = vld [vmem:[%s1488 + $0x70] sm:$0xff]
        %v6338 = vld [vmem:[%s1488 + $0x78] sm:$0xff]
        %v6339 = vstv %s6322
        %v6340 = vmul.f32 %v6339, %v6323
        %v6341 = vmul.f32 %v6339, %v6324
        %v6342 = vmul.f32 %v6339, %v6325
        %v6343 = vmul.f32 %v6339, %v6326
        %v6344 = vmul.f32 %v6339, %v6327
        %v6345 = vmul.f32 %v6339, %v6328
        %v6346 = vmul.f32 %v6339, %v6329
        %v6347 = vmul.f32 %v6339, %v6330
        %v6348 = vmul.f32 %v6339, %v6331
        %v6349 = vmul.f32 %v6339, %v6332
        %v6350 = vmul.f32 %v6339, %v6333
        %v6351 = vmul.f32 %v6339, %v6334
        %v6352 = vmul.f32 %v6339, %v6335
        %v6353 = vmul.f32 %v6339, %v6336
        %v6354 = vmul.f32 %v6339, %v6337
        %v6355 = vmul.f32 %v6339, %v6338
        %v6356 = vadd.f32 %v6306, %v6340
        %v6357 = vadd.f32 %v6307, %v6341
        %v6358 = vadd.f32 %v6308, %v6342
        %v6359 = vadd.f32 %v6309, %v6343
        %v6360 = vadd.f32 %v6310, %v6344
        %v6361 = vadd.f32 %v6311, %v6345
        %v6362 = vadd.f32 %v6312, %v6346
        %v6363 = vadd.f32 %v6313, %v6347
        %v6364 = vadd.f32 %v6314, %v6348
        %v6365 = vadd.f32 %v6315, %v6349
        %v6366 = vadd.f32 %v6316, %v6350
        %v6367 = vadd.f32 %v6317, %v6351
        %v6368 = vadd.f32 %v6318, %v6352
        %v6369 = vadd.f32 %v6319, %v6353
        %v6370 = vadd.f32 %v6320, %v6354
        %v6371 = vadd.f32 %v6321, %v6355
        %s6372 = sld [smem:[#allocation5 + $0x18d]]
        %v6373 = vld [vmem:[%s1514] sm:$0xff]
        %v6374 = vld [vmem:[%s1514 + $0x8] sm:$0xff]
        %v6375 = vld [vmem:[%s1514 + $0x10] sm:$0xff]
        %v6376 = vld [vmem:[%s1514 + $0x18] sm:$0xff]
        %v6377 = vld [vmem:[%s1514 + $0x20] sm:$0xff]
        %v6378 = vld [vmem:[%s1514 + $0x28] sm:$0xff]
        %v6379 = vld [vmem:[%s1514 + $0x30] sm:$0xff]
        %v6380 = vld [vmem:[%s1514 + $0x38] sm:$0xff]
        %v6381 = vld [vmem:[%s1514 + $0x40] sm:$0xff]
        %v6382 = vld [vmem:[%s1514 + $0x48] sm:$0xff]
        %v6383 = vld [vmem:[%s1514 + $0x50] sm:$0xff]
        %v6384 = vld [vmem:[%s1514 + $0x58] sm:$0xff]
        %v6385 = vld [vmem:[%s1514 + $0x60] sm:$0xff]
        %v6386 = vld [vmem:[%s1514 + $0x68] sm:$0xff]
        %v6387 = vld [vmem:[%s1514 + $0x70] sm:$0xff]
        %v6388 = vld [vmem:[%s1514 + $0x78] sm:$0xff]
        %v6389 = vstv %s6372
        %v6390 = vmul.f32 %v6389, %v6373
        %v6391 = vmul.f32 %v6389, %v6374
        %v6392 = vmul.f32 %v6389, %v6375
        %v6393 = vmul.f32 %v6389, %v6376
        %v6394 = vmul.f32 %v6389, %v6377
        %v6395 = vmul.f32 %v6389, %v6378
        %v6396 = vmul.f32 %v6389, %v6379
        %v6397 = vmul.f32 %v6389, %v6380
        %v6398 = vmul.f32 %v6389, %v6381
        %v6399 = vmul.f32 %v6389, %v6382
        %v6400 = vmul.f32 %v6389, %v6383
        %v6401 = vmul.f32 %v6389, %v6384
        %v6402 = vmul.f32 %v6389, %v6385
        %v6403 = vmul.f32 %v6389, %v6386
        %v6404 = vmul.f32 %v6389, %v6387
        %v6405 = vmul.f32 %v6389, %v6388
        %v6406 = vadd.f32 %v6356, %v6390
        %v6407 = vadd.f32 %v6357, %v6391
        %v6408 = vadd.f32 %v6358, %v6392
        %v6409 = vadd.f32 %v6359, %v6393
        %v6410 = vadd.f32 %v6360, %v6394
        %v6411 = vadd.f32 %v6361, %v6395
        %v6412 = vadd.f32 %v6362, %v6396
        %v6413 = vadd.f32 %v6363, %v6397
        %v6414 = vadd.f32 %v6364, %v6398
        %v6415 = vadd.f32 %v6365, %v6399
        %v6416 = vadd.f32 %v6366, %v6400
        %v6417 = vadd.f32 %v6367, %v6401
        %v6418 = vadd.f32 %v6368, %v6402
        %v6419 = vadd.f32 %v6369, %v6403
        %v6420 = vadd.f32 %v6370, %v6404
        %v6421 = vadd.f32 %v6371, %v6405
        %s6422 = sld [smem:[#allocation5 + $0x18e]]
        %v6423 = vld [vmem:[%s1538] sm:$0xff]
        %v6424 = vld [vmem:[%s1538 + $0x8] sm:$0xff]
        %v6425 = vld [vmem:[%s1538 + $0x10] sm:$0xff]
        %v6426 = vld [vmem:[%s1538 + $0x18] sm:$0xff]
        %v6427 = vld [vmem:[%s1538 + $0x20] sm:$0xff]
        %v6428 = vld [vmem:[%s1538 + $0x28] sm:$0xff]
        %v6429 = vld [vmem:[%s1538 + $0x30] sm:$0xff]
        %v6430 = vld [vmem:[%s1538 + $0x38] sm:$0xff]
        %v6431 = vld [vmem:[%s1538 + $0x40] sm:$0xff]
        %v6432 = vld [vmem:[%s1538 + $0x48] sm:$0xff]
        %v6433 = vld [vmem:[%s1538 + $0x50] sm:$0xff]
        %v6434 = vld [vmem:[%s1538 + $0x58] sm:$0xff]
        %v6435 = vld [vmem:[%s1538 + $0x60] sm:$0xff]
        %v6436 = vld [vmem:[%s1538 + $0x68] sm:$0xff]
        %v6437 = vld [vmem:[%s1538 + $0x70] sm:$0xff]
        %v6438 = vld [vmem:[%s1538 + $0x78] sm:$0xff]
        %v6439 = vstv %s6422
        %v6440 = vmul.f32 %v6439, %v6423
        %v6441 = vmul.f32 %v6439, %v6424
        %v6442 = vmul.f32 %v6439, %v6425
        %v6443 = vmul.f32 %v6439, %v6426
        %v6444 = vmul.f32 %v6439, %v6427
        %v6445 = vmul.f32 %v6439, %v6428
        %v6446 = vmul.f32 %v6439, %v6429
        %v6447 = vmul.f32 %v6439, %v6430
        %v6448 = vmul.f32 %v6439, %v6431
        %v6449 = vmul.f32 %v6439, %v6432
        %v6450 = vmul.f32 %v6439, %v6433
        %v6451 = vmul.f32 %v6439, %v6434
        %v6452 = vmul.f32 %v6439, %v6435
        %v6453 = vmul.f32 %v6439, %v6436
        %v6454 = vmul.f32 %v6439, %v6437
        %v6455 = vmul.f32 %v6439, %v6438
        %v6456 = vadd.f32 %v6406, %v6440
        %v6457 = vadd.f32 %v6407, %v6441
        %v6458 = vadd.f32 %v6408, %v6442
        %v6459 = vadd.f32 %v6409, %v6443
        %v6460 = vadd.f32 %v6410, %v6444
        %v6461 = vadd.f32 %v6411, %v6445
        %v6462 = vadd.f32 %v6412, %v6446
        %v6463 = vadd.f32 %v6413, %v6447
        %v6464 = vadd.f32 %v6414, %v6448
        %v6465 = vadd.f32 %v6415, %v6449
        %v6466 = vadd.f32 %v6416, %v6450
        %v6467 = vadd.f32 %v6417, %v6451
        %v6468 = vadd.f32 %v6418, %v6452
        %v6469 = vadd.f32 %v6419, %v6453
        %v6470 = vadd.f32 %v6420, %v6454
        %v6471 = vadd.f32 %v6421, %v6455
        %s6472 = sld [smem:[#allocation5 + $0x18f]]
        %v6473 = vld [vmem:[%s1556] sm:$0xff]
        %v6474 = vld [vmem:[%s1556 + $0x8] sm:$0xff]
        %v6475 = vld [vmem:[%s1556 + $0x10] sm:$0xff]
        %v6476 = vld [vmem:[%s1556 + $0x18] sm:$0xff]
        %v6477 = vld [vmem:[%s1556 + $0x20] sm:$0xff]
        %v6478 = vld [vmem:[%s1556 + $0x28] sm:$0xff]
        %v6479 = vld [vmem:[%s1556 + $0x30] sm:$0xff]
        %v6480 = vld [vmem:[%s1556 + $0x38] sm:$0xff]
        %v6481 = vld [vmem:[%s1556 + $0x40] sm:$0xff]
        %v6482 = vld [vmem:[%s1556 + $0x48] sm:$0xff]
        %v6483 = vld [vmem:[%s1556 + $0x50] sm:$0xff]
        %v6484 = vld [vmem:[%s1556 + $0x58] sm:$0xff]
        %v6485 = vld [vmem:[%s1556 + $0x60] sm:$0xff]
        %v6486 = vld [vmem:[%s1556 + $0x68] sm:$0xff]
        %v6487 = vld [vmem:[%s1556 + $0x70] sm:$0xff]
        %v6488 = vld [vmem:[%s1556 + $0x78] sm:$0xff]
        %v6489 = vstv %s6472
        %v6490 = vmul.f32 %v6489, %v6473
        %v6491 = vmul.f32 %v6489, %v6474
        %v6492 = vmul.f32 %v6489, %v6475
        %v6493 = vmul.f32 %v6489, %v6476
        %v6494 = vmul.f32 %v6489, %v6477
        %v6495 = vmul.f32 %v6489, %v6478
        %v6496 = vmul.f32 %v6489, %v6479
        %v6497 = vmul.f32 %v6489, %v6480
        %v6498 = vmul.f32 %v6489, %v6481
        %v6499 = vmul.f32 %v6489, %v6482
        %v6500 = vmul.f32 %v6489, %v6483
        %v6501 = vmul.f32 %v6489, %v6484
        %v6502 = vmul.f32 %v6489, %v6485
        %v6503 = vmul.f32 %v6489, %v6486
        %v6504 = vmul.f32 %v6489, %v6487
        %v6505 = vmul.f32 %v6489, %v6488
        %v6506 = vadd.f32 %v6456, %v6490
        %v6507 = vadd.f32 %v6457, %v6491
        %v6508 = vadd.f32 %v6458, %v6492
        %v6509 = vadd.f32 %v6459, %v6493
        %v6510 = vadd.f32 %v6460, %v6494
        %v6511 = vadd.f32 %v6461, %v6495
        %v6512 = vadd.f32 %v6462, %v6496
        %v6513 = vadd.f32 %v6463, %v6497
        %v6514 = vadd.f32 %v6464, %v6498
        %v6515 = vadd.f32 %v6465, %v6499
        %v6516 = vadd.f32 %v6466, %v6500
        %v6517 = vadd.f32 %v6467, %v6501
        %v6518 = vadd.f32 %v6468, %v6502
        %v6519 = vadd.f32 %v6469, %v6503
        %v6520 = vadd.f32 %v6470, %v6504
        %v6521 = vadd.f32 %v6471, %v6505
        %s6522 = sld [smem:[#allocation5 + $0x190]]
        %v6523 = vld [vmem:[%s1574] sm:$0xff]
        %v6524 = vld [vmem:[%s1574 + $0x8] sm:$0xff]
        %v6525 = vld [vmem:[%s1574 + $0x10] sm:$0xff]
        %v6526 = vld [vmem:[%s1574 + $0x18] sm:$0xff]
        %v6527 = vld [vmem:[%s1574 + $0x20] sm:$0xff]
        %v6528 = vld [vmem:[%s1574 + $0x28] sm:$0xff]
        %v6529 = vld [vmem:[%s1574 + $0x30] sm:$0xff]
        %v6530 = vld [vmem:[%s1574 + $0x38] sm:$0xff]
        %v6531 = vld [vmem:[%s1574 + $0x40] sm:$0xff]
        %v6532 = vld [vmem:[%s1574 + $0x48] sm:$0xff]
        %v6533 = vld [vmem:[%s1574 + $0x50] sm:$0xff]
        %v6534 = vld [vmem:[%s1574 + $0x58] sm:$0xff]
        %v6535 = vld [vmem:[%s1574 + $0x60] sm:$0xff]
        %v6536 = vld [vmem:[%s1574 + $0x68] sm:$0xff]
        %v6537 = vld [vmem:[%s1574 + $0x70] sm:$0xff]
        %v6538 = vld [vmem:[%s1574 + $0x78] sm:$0xff]
        %v6539 = vstv %s6522
        %v6540 = vmul.f32 %v6539, %v6523
        %v6541 = vmul.f32 %v6539, %v6524
        %v6542 = vmul.f32 %v6539, %v6525
        %v6543 = vmul.f32 %v6539, %v6526
        %v6544 = vmul.f32 %v6539, %v6527
        %v6545 = vmul.f32 %v6539, %v6528
        %v6546 = vmul.f32 %v6539, %v6529
        %v6547 = vmul.f32 %v6539, %v6530
        %v6548 = vmul.f32 %v6539, %v6531
        %v6549 = vmul.f32 %v6539, %v6532
        %v6550 = vmul.f32 %v6539, %v6533
        %v6551 = vmul.f32 %v6539, %v6534
        %v6552 = vmul.f32 %v6539, %v6535
        %v6553 = vmul.f32 %v6539, %v6536
        %v6554 = vmul.f32 %v6539, %v6537
        %v6555 = vmul.f32 %v6539, %v6538
        %v6556 = vadd.f32 %v6506, %v6540
        %v6557 = vadd.f32 %v6507, %v6541
        %v6558 = vadd.f32 %v6508, %v6542
        %v6559 = vadd.f32 %v6509, %v6543
        %v6560 = vadd.f32 %v6510, %v6544
        %v6561 = vadd.f32 %v6511, %v6545
        %v6562 = vadd.f32 %v6512, %v6546
        %v6563 = vadd.f32 %v6513, %v6547
        %v6564 = vadd.f32 %v6514, %v6548
        %v6565 = vadd.f32 %v6515, %v6549
        %v6566 = vadd.f32 %v6516, %v6550
        %v6567 = vadd.f32 %v6517, %v6551
        %v6568 = vadd.f32 %v6518, %v6552
        %v6569 = vadd.f32 %v6519, %v6553
        %v6570 = vadd.f32 %v6520, %v6554
        %v6571 = vadd.f32 %v6521, %v6555
        %s6572 = sld [smem:[#allocation5 + $0x191]]
        %v6573 = vld [vmem:[%s1592] sm:$0xff]
        %v6574 = vld [vmem:[%s1592 + $0x8] sm:$0xff]
        %v6575 = vld [vmem:[%s1592 + $0x10] sm:$0xff]
        %v6576 = vld [vmem:[%s1592 + $0x18] sm:$0xff]
        %v6577 = vld [vmem:[%s1592 + $0x20] sm:$0xff]
        %v6578 = vld [vmem:[%s1592 + $0x28] sm:$0xff]
        %v6579 = vld [vmem:[%s1592 + $0x30] sm:$0xff]
        %v6580 = vld [vmem:[%s1592 + $0x38] sm:$0xff]
        %v6581 = vld [vmem:[%s1592 + $0x40] sm:$0xff]
        %v6582 = vld [vmem:[%s1592 + $0x48] sm:$0xff]
        %v6583 = vld [vmem:[%s1592 + $0x50] sm:$0xff]
        %v6584 = vld [vmem:[%s1592 + $0x58] sm:$0xff]
        %v6585 = vld [vmem:[%s1592 + $0x60] sm:$0xff]
        %v6586 = vld [vmem:[%s1592 + $0x68] sm:$0xff]
        %v6587 = vld [vmem:[%s1592 + $0x70] sm:$0xff]
        %v6588 = vld [vmem:[%s1592 + $0x78] sm:$0xff]
        %v6589 = vstv %s6572
        %v6590 = vmul.f32 %v6589, %v6573
        %v6591 = vmul.f32 %v6589, %v6574
        %v6592 = vmul.f32 %v6589, %v6575
        %v6593 = vmul.f32 %v6589, %v6576
        %v6594 = vmul.f32 %v6589, %v6577
        %v6595 = vmul.f32 %v6589, %v6578
        %v6596 = vmul.f32 %v6589, %v6579
        %v6597 = vmul.f32 %v6589, %v6580
        %v6598 = vmul.f32 %v6589, %v6581
        %v6599 = vmul.f32 %v6589, %v6582
        %v6600 = vmul.f32 %v6589, %v6583
        %v6601 = vmul.f32 %v6589, %v6584
        %v6602 = vmul.f32 %v6589, %v6585
        %v6603 = vmul.f32 %v6589, %v6586
        %v6604 = vmul.f32 %v6589, %v6587
        %v6605 = vmul.f32 %v6589, %v6588
        %v6606 = vadd.f32 %v6556, %v6590
        %v6607 = vadd.f32 %v6557, %v6591
        %v6608 = vadd.f32 %v6558, %v6592
        %v6609 = vadd.f32 %v6559, %v6593
        %v6610 = vadd.f32 %v6560, %v6594
        %v6611 = vadd.f32 %v6561, %v6595
        %v6612 = vadd.f32 %v6562, %v6596
        %v6613 = vadd.f32 %v6563, %v6597
        %v6614 = vadd.f32 %v6564, %v6598
        %v6615 = vadd.f32 %v6565, %v6599
        %v6616 = vadd.f32 %v6566, %v6600
        %v6617 = vadd.f32 %v6567, %v6601
        %v6618 = vadd.f32 %v6568, %v6602
        %v6619 = vadd.f32 %v6569, %v6603
        %v6620 = vadd.f32 %v6570, %v6604
        %v6621 = vadd.f32 %v6571, %v6605
        %s6622 = sld [smem:[#allocation10 + $0x3]]
        %v6623 = vstv %s6622
        %v6624 = vmul.f32 %v6606, %v6623
        %v6625 = vmul.f32 %v6607, %v6623
        %v6626 = vmul.f32 %v6608, %v6623
        %v6627 = vmul.f32 %v6609, %v6623
        %v6628 = vmul.f32 %v6610, %v6623
        %v6629 = vmul.f32 %v6611, %v6623
        %v6630 = vmul.f32 %v6612, %v6623
        %v6631 = vmul.f32 %v6613, %v6623
        %v6632 = vmul.f32 %v6614, %v6623
        %v6633 = vmul.f32 %v6615, %v6623
        %v6634 = vmul.f32 %v6616, %v6623
        %v6635 = vmul.f32 %v6617, %v6623
        %v6636 = vmul.f32 %v6618, %v6623
        %v6637 = vmul.f32 %v6619, %v6623
        %v6638 = vmul.f32 %v6620, %v6623
        %v6639 = vmul.f32 %v6621, %v6623
        %s6640 = sld [smem:[#allocation11 + $0x3]]
        %v6641 = vstv %s6640
        %v6642 = vadd.f32 %v6624, %v6641
        %v6643 = vadd.f32 %v6625, %v6641
        %v6644 = vadd.f32 %v6626, %v6641
        %v6645 = vadd.f32 %v6627, %v6641
        %v6646 = vadd.f32 %v6628, %v6641
        %v6647 = vadd.f32 %v6629, %v6641
        %v6648 = vadd.f32 %v6630, %v6641
        %v6649 = vadd.f32 %v6631, %v6641
        %v6650 = vadd.f32 %v6632, %v6641
        %v6651 = vadd.f32 %v6633, %v6641
        %v6652 = vadd.f32 %v6634, %v6641
        %v6653 = vadd.f32 %v6635, %v6641
        %v6654 = vadd.f32 %v6636, %v6641
        %v6655 = vadd.f32 %v6637, %v6641
        %v6656 = vadd.f32 %v6638, %v6641
        %v6657 = vadd.f32 %v6639, %v6641
        %s6658 = scalar_lea.vmem [#allocation4], 384
        %v6659 = vld [vmem:[%s6658] sm:$0xff]
        %v6660 = vld [vmem:[%s6658 + $0x8] sm:$0xff]
        %v6661 = vld [vmem:[%s6658 + $0x10] sm:$0xff]
        %v6662 = vld [vmem:[%s6658 + $0x18] sm:$0xff]
        %v6663 = vld [vmem:[%s6658 + $0x20] sm:$0xff]
        %v6664 = vld [vmem:[%s6658 + $0x28] sm:$0xff]
        %v6665 = vld [vmem:[%s6658 + $0x30] sm:$0xff]
        %v6666 = vld [vmem:[%s6658 + $0x38] sm:$0xff]
        %v6667 = vld [vmem:[%s6658 + $0x40] sm:$0xff]
        %v6668 = vld [vmem:[%s6658 + $0x48] sm:$0xff]
        %v6669 = vld [vmem:[%s6658 + $0x50] sm:$0xff]
        %v6670 = vld [vmem:[%s6658 + $0x58] sm:$0xff]
        %v6671 = vld [vmem:[%s6658 + $0x60] sm:$0xff]
        %v6672 = vld [vmem:[%s6658 + $0x68] sm:$0xff]
        %v6673 = vld [vmem:[%s6658 + $0x70] sm:$0xff]
        %v6674 = vld [vmem:[%s6658 + $0x78] sm:$0xff]
        %v6675 = vadd.f32 %v6659, %v6642
        %v6676 = vadd.f32 %v6660, %v6643
        %v6677 = vadd.f32 %v6661, %v6644
        %v6678 = vadd.f32 %v6662, %v6645
        %v6679 = vadd.f32 %v6663, %v6646
        %v6680 = vadd.f32 %v6664, %v6647
        %v6681 = vadd.f32 %v6665, %v6648
        %v6682 = vadd.f32 %v6666, %v6649
        %v6683 = vadd.f32 %v6667, %v6650
        %v6684 = vadd.f32 %v6668, %v6651
        %v6685 = vadd.f32 %v6669, %v6652
        %v6686 = vadd.f32 %v6670, %v6653
        %v6687 = vadd.f32 %v6671, %v6654
        %v6688 = vadd.f32 %v6672, %v6655
        %v6689 = vadd.f32 %v6673, %v6656
        %v6690 = vadd.f32 %v6674, %v6657
        %vm6691 = vcmp.ge.f32.partialorder %v6675, 1.0
        %vm6692 = vcmp.ge.f32.partialorder %v6676, 1.0
        %vm6693 = vcmp.ge.f32.partialorder %v6677, 1.0
        %vm6694 = vcmp.ge.f32.partialorder %v6678, 1.0
        %vm6695 = vcmp.ge.f32.partialorder %v6679, 1.0
        %vm6696 = vcmp.ge.f32.partialorder %v6680, 1.0
        %vm6697 = vcmp.ge.f32.partialorder %v6681, 1.0
        %vm6698 = vcmp.ge.f32.partialorder %v6682, 1.0
        %vm6699 = vcmp.ge.f32.partialorder %v6683, 1.0
        %vm6700 = vcmp.ge.f32.partialorder %v6684, 1.0
        %vm6701 = vcmp.ge.f32.partialorder %v6685, 1.0
        %vm6702 = vcmp.ge.f32.partialorder %v6686, 1.0
        %vm6703 = vcmp.ge.f32.partialorder %v6687, 1.0
        %vm6704 = vcmp.ge.f32.partialorder %v6688, 1.0
        %vm6705 = vcmp.ge.f32.partialorder %v6689, 1.0
        %vm6706 = vcmp.ge.f32.partialorder %v6690, 1.0
        %v6707 = vsel %vm6691, 1, 0
        %v6708 = vsel %vm6692, 1, 0
        %v6709 = vsel %vm6693, 1, 0
        %v6710 = vsel %vm6694, 1, 0
        %v6711 = vsel %vm6695, 1, 0
        %v6712 = vsel %vm6696, 1, 0
        %v6713 = vsel %vm6697, 1, 0
        %v6714 = vsel %vm6698, 1, 0
        %v6715 = vsel %vm6699, 1, 0
        %v6716 = vsel %vm6700, 1, 0
        %v6717 = vsel %vm6701, 1, 0
        %v6718 = vsel %vm6702, 1, 0
        %v6719 = vsel %vm6703, 1, 0
        %v6720 = vsel %vm6704, 1, 0
        %v6721 = vsel %vm6705, 1, 0
        %v6722 = vsel %vm6706, 1, 0
        %v6723 = vcvt.s32.f32 %v6707
        %v6724 = vcvt.s32.f32 %v6708
        %v6725 = vcvt.s32.f32 %v6709
        %v6726 = vcvt.s32.f32 %v6710
        %v6727 = vcvt.s32.f32 %v6711
        %v6728 = vcvt.s32.f32 %v6712
        %v6729 = vcvt.s32.f32 %v6713
        %v6730 = vcvt.s32.f32 %v6714
        %v6731 = vcvt.s32.f32 %v6715
        %v6732 = vcvt.s32.f32 %v6716
        %v6733 = vcvt.s32.f32 %v6717
        %v6734 = vcvt.s32.f32 %v6718
        %v6735 = vcvt.s32.f32 %v6719
        %v6736 = vcvt.s32.f32 %v6720
        %v6737 = vcvt.s32.f32 %v6721
        %v6738 = vcvt.s32.f32 %v6722
        %vm6739 = vcmp.gt.f32.partialorder %v6723, 0.0
        %vm6740 = vcmp.gt.f32.partialorder %v6724, 0.0
        %vm6741 = vcmp.gt.f32.partialorder %v6725, 0.0
        %vm6742 = vcmp.gt.f32.partialorder %v6726, 0.0
        %vm6743 = vcmp.gt.f32.partialorder %v6727, 0.0
        %vm6744 = vcmp.gt.f32.partialorder %v6728, 0.0
        %vm6745 = vcmp.gt.f32.partialorder %v6729, 0.0
        %vm6746 = vcmp.gt.f32.partialorder %v6730, 0.0
        %vm6747 = vcmp.gt.f32.partialorder %v6731, 0.0
        %vm6748 = vcmp.gt.f32.partialorder %v6732, 0.0
        %vm6749 = vcmp.gt.f32.partialorder %v6733, 0.0
        %vm6750 = vcmp.gt.f32.partialorder %v6734, 0.0
        %vm6751 = vcmp.gt.f32.partialorder %v6735, 0.0
        %vm6752 = vcmp.gt.f32.partialorder %v6736, 0.0
        %vm6753 = vcmp.gt.f32.partialorder %v6737, 0.0
        %vm6754 = vcmp.gt.f32.partialorder %v6738, 0.0
        %v6755 = vsel %vm6739, 0.0, %v6675
        %v6756 = vsel %vm6740, 0.0, %v6676
        %v6757 = vsel %vm6741, 0.0, %v6677
        %v6758 = vsel %vm6742, 0.0, %v6678
        %v6759 = vsel %vm6743, 0.0, %v6679
        %v6760 = vsel %vm6744, 0.0, %v6680
        %v6761 = vsel %vm6745, 0.0, %v6681
        %v6762 = vsel %vm6746, 0.0, %v6682
        %v6763 = vsel %vm6747, 0.0, %v6683
        %v6764 = vsel %vm6748, 0.0, %v6684
        %v6765 = vsel %vm6749, 0.0, %v6685
        %v6766 = vsel %vm6750, 0.0, %v6686
        %v6767 = vsel %vm6751, 0.0, %v6687
        %v6768 = vsel %vm6752, 0.0, %v6688
        %v6769 = vsel %vm6753, 0.0, %v6689
        %v6770 = vsel %vm6754, 0.0, %v6690
        %6771 = vst [vmem:[%s6658] sm:$0xff] %v6755
        %6772 = vst [vmem:[%s6658 + $0x8] sm:$0xff] %v6756
        %6773 = vst [vmem:[%s6658 + $0x10] sm:$0xff] %v6757
        %6774 = vst [vmem:[%s6658 + $0x18] sm:$0xff] %v6758
        %6775 = vst [vmem:[%s6658 + $0x20] sm:$0xff] %v6759
        %6776 = vst [vmem:[%s6658 + $0x28] sm:$0xff] %v6760
        %6777 = vst [vmem:[%s6658 + $0x30] sm:$0xff] %v6761
        %6778 = vst [vmem:[%s6658 + $0x38] sm:$0xff] %v6762
        %6779 = vst [vmem:[%s6658 + $0x40] sm:$0xff] %v6763
        %6780 = vst [vmem:[%s6658 + $0x48] sm:$0xff] %v6764
        %6781 = vst [vmem:[%s6658 + $0x50] sm:$0xff] %v6765
        %6782 = vst [vmem:[%s6658 + $0x58] sm:$0xff] %v6766
        %6783 = vst [vmem:[%s6658 + $0x60] sm:$0xff] %v6767
        %6784 = vst [vmem:[%s6658 + $0x68] sm:$0xff] %v6768
        %6785 = vst [vmem:[%s6658 + $0x70] sm:$0xff] %v6769
        %6786 = vst [vmem:[%s6658 + $0x78] sm:$0xff] %v6770
        %6787 = vmatprep.subr.mxu0 0.0
        %6788 = vmatpush1.msra.mxu0 %v6738
        %6789 = vmatprep.subr.mxu0 0.0
        %6790 = vmatpush1.msra.mxu0 %v6737
        %6791 = vmatprep.subr.mxu0 0.0
        %6792 = vmatpush1.msra.mxu0 %v6736
        %6793 = vmatprep.subr.mxu0 0.0
        %6794 = vmatpush1.msra.mxu0 %v6735
        %6795 = vmatprep.subr.mxu0 0.0
        %6796 = vmatpush1.msra.mxu0 %v6734
        %6797 = vmatprep.subr.mxu0 0.0
        %6798 = vmatpush1.msra.mxu0 %v6733
        %6799 = vmatprep.subr.mxu0 0.0
        %6800 = vmatpush1.msra.mxu0 %v6732
        %6801 = vmatprep.subr.mxu0 0.0
        %6802 = vmatpush1.msra.mxu0 %v6731
        %6803 = vmatprep.subr.mxu0 0.0
        %6804 = vmatpush1.msra.mxu0 %v6730
        %6805 = vmatprep.subr.mxu0 0.0
        %6806 = vmatpush1.msra.mxu0 %v6729
        %6807 = vmatprep.subr.mxu0 0.0
        %6808 = vmatpush1.msra.mxu0 %v6728
        %6809 = vmatprep.subr.mxu0 0.0
        %6810 = vmatpush1.msra.mxu0 %v6727
        %6811 = vmatprep.subr.mxu0 0.0
        %6812 = vmatpush1.msra.mxu0 %v6726
        %6813 = vmatprep.subr.mxu0 0.0
        %6814 = vmatpush1.msra.mxu0 %v6725
        %6815 = vmatprep.subr.mxu0 0.0
        %6816 = vmatpush1.msra.mxu0 %v6724
        %6817 = vmatprep.subr.mxu0 0.0
        %6818 = vmatpush1.msra.mxu0 %v6723
        %6819 = vmatprep.subr.mxu0 0.0
        %6820 = vmatpush2.msra.mxu0 0.0
        %6821 = vmatprep.subr.mxu0 0.0
        %6822 = vmatpush2.msra.mxu0 0.0
        %6823 = vmatprep.subr.mxu0 0.0
        %6824 = vmatpush2.msra.mxu0 0.0
        %6825 = vmatprep.subr.mxu0 0.0
        %6826 = vmatpush2.msra.mxu0 0.0
        %6827 = vmatprep.subr.mxu0 0.0
        %6828 = vmatpush2.msra.mxu0 0.0
        %6829 = vmatprep.subr.mxu0 0.0
        %6830 = vmatpush2.msra.mxu0 0.0
        %6831 = vmatprep.subr.mxu0 0.0
        %6832 = vmatpush2.msra.mxu0 0.0
        %6833 = vmatprep.subr.mxu0 0.0
        %6834 = vmatpush2.msra.mxu0 0.0
        %6835 = vmatprep.subr.mxu0 0.0
        %6836 = vmatpush2.msra.mxu0 0.0
        %6837 = vmatprep.subr.mxu0 0.0
        %6838 = vmatpush2.msra.mxu0 0.0
        %6839 = vmatprep.subr.mxu0 0.0
        %6840 = vmatpush2.msra.mxu0 0.0
        %6841 = vmatprep.subr.mxu0 0.0
        %6842 = vmatpush2.msra.mxu0 0.0
        %6843 = vmatprep.subr.mxu0 0.0
        %6844 = vmatpush2.msra.mxu0 0.0
        %6845 = vmatprep.subr.mxu0 0.0
        %6846 = vmatpush2.msra.mxu0 0.0
        %6847 = vmatprep.subr.mxu0 0.0
        %6848 = vmatpush2.msra.mxu0 0.0
        %6849 = vmatprep.subr.mxu0 0.0
        %6850 = vmatpush2.msra.mxu0 0.0
        %6851 = vmatprep.mubr.f32.mxu0 0.0
        %6852 = vmatmul.mubr.f32.gmra.mxu0 %v1669
        %v6853 = vpop.f32.mrf.mxu0
        %v6854 = vadd.f32 0.0, %v6853
        %v6855 = vpop.f32.mrf.mxu0
        %6856 = vmatprep.mubr.f32.mxu0 0.0
        %6857 = vmatmul.mubr.f32.gmra.mxu0 %v1670
        %v6858 = vpop.f32.mrf.mxu0
        %v6859 = vadd.f32 0.0, %v6858
        %v6860 = vpop.f32.mrf.mxu0
        %6861 = vmatprep.mubr.f32.mxu0 0.0
        %6862 = vmatmul.mubr.f32.gmra.mxu0 %v1671
        %v6863 = vpop.f32.mrf.mxu0
        %v6864 = vadd.f32 0.0, %v6863
        %v6865 = vpop.f32.mrf.mxu0
        %6866 = vmatprep.mubr.f32.mxu0 0.0
        %6867 = vmatmul.mubr.f32.gmra.mxu0 %v1672
        %v6868 = vpop.f32.mrf.mxu0
        %v6869 = vadd.f32 0.0, %v6868
        %v6870 = vpop.f32.mrf.mxu0
        %6871 = vmatprep.mubr.f32.mxu0 0.0
        %6872 = vmatmul.mubr.f32.gmra.mxu0 %v1673
        %v6873 = vpop.f32.mrf.mxu0
        %v6874 = vadd.f32 0.0, %v6873
        %v6875 = vpop.f32.mrf.mxu0
        %6876 = vmatprep.mubr.f32.mxu0 0.0
        %6877 = vmatmul.mubr.f32.gmra.mxu0 %v1674
        %v6878 = vpop.f32.mrf.mxu0
        %v6879 = vadd.f32 0.0, %v6878
        %v6880 = vpop.f32.mrf.mxu0
        %6881 = vmatprep.mubr.f32.mxu0 0.0
        %6882 = vmatmul.mubr.f32.gmra.mxu0 %v1675
        %v6883 = vpop.f32.mrf.mxu0
        %v6884 = vadd.f32 0.0, %v6883
        %v6885 = vpop.f32.mrf.mxu0
        %6886 = vmatprep.mubr.f32.mxu0 0.0
        %6887 = vmatmul.mubr.f32.gmra.mxu0 %v1676
        %v6888 = vpop.f32.mrf.mxu0
        %v6889 = vadd.f32 0.0, %v6888
        %v6890 = vpop.f32.mrf.mxu0
        %6891 = vdwg.mxu0
        %6892 = vmatprep.subr.mxu0 0.0
        %6893 = vmatpush1.msra.mxu0 %v1766
        %6894 = vmatprep.subr.mxu0 0.0
        %6895 = vmatpush1.msra.mxu0 %v1765
        %6896 = vmatprep.subr.mxu0 0.0
        %6897 = vmatpush1.msra.mxu0 %v1764
        %6898 = vmatprep.subr.mxu0 0.0
        %6899 = vmatpush1.msra.mxu0 %v1763
        %6900 = vmatprep.subr.mxu0 0.0
        %6901 = vmatpush1.msra.mxu0 %v1762
        %6902 = vmatprep.subr.mxu0 0.0
        %6903 = vmatpush1.msra.mxu0 %v1761
        %6904 = vmatprep.subr.mxu0 0.0
        %6905 = vmatpush1.msra.mxu0 %v1760
        %6906 = vmatprep.subr.mxu0 0.0
        %6907 = vmatpush1.msra.mxu0 %v1759
        %6908 = vmatprep.subr.mxu0 0.0
        %6909 = vmatpush1.msra.mxu0 %v1758
        %6910 = vmatprep.subr.mxu0 0.0
        %6911 = vmatpush1.msra.mxu0 %v1757
        %6912 = vmatprep.subr.mxu0 0.0
        %6913 = vmatpush1.msra.mxu0 %v1756
        %6914 = vmatprep.subr.mxu0 0.0
        %6915 = vmatpush1.msra.mxu0 %v1755
        %6916 = vmatprep.subr.mxu0 0.0
        %6917 = vmatpush1.msra.mxu0 %v1754
        %6918 = vmatprep.subr.mxu0 0.0
        %6919 = vmatpush1.msra.mxu0 %v1753
        %6920 = vmatprep.subr.mxu0 0.0
        %6921 = vmatpush1.msra.mxu0 %v1752
        %6922 = vmatprep.subr.mxu0 0.0
        %6923 = vmatpush1.msra.mxu0 %v1751
        %6924 = vmatprep.subr.mxu0 0.0
        %6925 = vmatpush2.msra.mxu0 0.0
        %6926 = vmatprep.subr.mxu0 0.0
        %6927 = vmatpush2.msra.mxu0 0.0
        %6928 = vmatprep.subr.mxu0 0.0
        %6929 = vmatpush2.msra.mxu0 0.0
        %6930 = vmatprep.subr.mxu0 0.0
        %6931 = vmatpush2.msra.mxu0 0.0
        %6932 = vmatprep.subr.mxu0 0.0
        %6933 = vmatpush2.msra.mxu0 0.0
        %6934 = vmatprep.subr.mxu0 0.0
        %6935 = vmatpush2.msra.mxu0 0.0
        %6936 = vmatprep.subr.mxu0 0.0
        %6937 = vmatpush2.msra.mxu0 0.0
        %6938 = vmatprep.subr.mxu0 0.0
        %6939 = vmatpush2.msra.mxu0 0.0
        %6940 = vmatprep.subr.mxu0 0.0
        %6941 = vmatpush2.msra.mxu0 0.0
        %6942 = vmatprep.subr.mxu0 0.0
        %6943 = vmatpush2.msra.mxu0 0.0
        %6944 = vmatprep.subr.mxu0 0.0
        %6945 = vmatpush2.msra.mxu0 0.0
        %6946 = vmatprep.subr.mxu0 0.0
        %6947 = vmatpush2.msra.mxu0 0.0
        %6948 = vmatprep.subr.mxu0 0.0
        %6949 = vmatpush2.msra.mxu0 0.0
        %6950 = vmatprep.subr.mxu0 0.0
        %6951 = vmatpush2.msra.mxu0 0.0
        %6952 = vmatprep.subr.mxu0 0.0
        %6953 = vmatpush2.msra.mxu0 0.0
        %6954 = vmatprep.subr.mxu0 0.0
        %6955 = vmatpush2.msra.mxu0 0.0
        %6956 = vmatprep.mubr.f32.mxu0 0.0
        %6957 = vmatmul.mubr.f32.gmra.mxu0 %v6854
        %v6958 = vpop.f32.mrf.mxu0
        %v6959 = vadd.f32 0.0, %v6958
        %v6960 = vpop.f32.mrf.mxu0
        %6961 = vmatprep.mubr.f32.mxu0 0.0
        %6962 = vmatmul.mubr.f32.gmra.mxu0 %v6859
        %v6963 = vpop.f32.mrf.mxu0
        %v6964 = vadd.f32 0.0, %v6963
        %v6965 = vpop.f32.mrf.mxu0
        %6966 = vmatprep.mubr.f32.mxu0 0.0
        %6967 = vmatmul.mubr.f32.gmra.mxu0 %v6864
        %v6968 = vpop.f32.mrf.mxu0
        %v6969 = vadd.f32 0.0, %v6968
        %v6970 = vpop.f32.mrf.mxu0
        %6971 = vmatprep.mubr.f32.mxu0 0.0
        %6972 = vmatmul.mubr.f32.gmra.mxu0 %v6869
        %v6973 = vpop.f32.mrf.mxu0
        %v6974 = vadd.f32 0.0, %v6973
        %v6975 = vpop.f32.mrf.mxu0
        %6976 = vmatprep.mubr.f32.mxu0 0.0
        %6977 = vmatmul.mubr.f32.gmra.mxu0 %v6874
        %v6978 = vpop.f32.mrf.mxu0
        %v6979 = vadd.f32 0.0, %v6978
        %v6980 = vpop.f32.mrf.mxu0
        %6981 = vmatprep.mubr.f32.mxu0 0.0
        %6982 = vmatmul.mubr.f32.gmra.mxu0 %v6879
        %v6983 = vpop.f32.mrf.mxu0
        %v6984 = vadd.f32 0.0, %v6983
        %v6985 = vpop.f32.mrf.mxu0
        %6986 = vmatprep.mubr.f32.mxu0 0.0
        %6987 = vmatmul.mubr.f32.gmra.mxu0 %v6884
        %v6988 = vpop.f32.mrf.mxu0
        %v6989 = vadd.f32 0.0, %v6988
        %v6990 = vpop.f32.mrf.mxu0
        %6991 = vmatprep.mubr.f32.mxu0 0.0
        %6992 = vmatmul.mubr.f32.gmra.mxu0 %v6889
        %v6993 = vpop.f32.mrf.mxu0
        %v6994 = vadd.f32 0.0, %v6993
        %v6995 = vpop.f32.mrf.mxu0
        %6996 = vdwg.mxu0
        %vm6997 = vcmp.gt.f32.partialorder %v6959, 0.5
        %vm6998 = vcmp.gt.f32.partialorder %v6964, 0.5
        %vm6999 = vcmp.gt.f32.partialorder %v6969, 0.5
        %vm7000 = vcmp.gt.f32.partialorder %v6974, 0.5
        %vm7001 = vcmp.gt.f32.partialorder %v6979, 0.5
        %vm7002 = vcmp.gt.f32.partialorder %v6984, 0.5
        %vm7003 = vcmp.gt.f32.partialorder %v6989, 0.5
        %vm7004 = vcmp.gt.f32.partialorder %v6994, 0.5
        %v7005 = vsel %vm6997, 1, 0
        %v7006 = vsel %vm6998, 1, 0
        %v7007 = vsel %vm6999, 1, 0
        %v7008 = vsel %vm7000, 1, 0
        %v7009 = vsel %vm7001, 1, 0
        %v7010 = vsel %vm7002, 1, 0
        %v7011 = vsel %vm7003, 1, 0
        %v7012 = vsel %vm7004, 1, 0
        %v7013 = vcvt.s32.f32 %v7005
        %v7014 = vcvt.s32.f32 %v7006
        %v7015 = vcvt.s32.f32 %v7007
        %v7016 = vcvt.s32.f32 %v7008
        %v7017 = vcvt.s32.f32 %v7009
        %v7018 = vcvt.s32.f32 %v7010
        %v7019 = vcvt.s32.f32 %v7011
        %v7020 = vcvt.s32.f32 %v7012
        %v7021 = vpack.c.bf16 %v7014, %v7013
        %v7022 = vpack.c.bf16 %v7016, %v7015
        %v7023 = vpack.c.bf16 %v7018, %v7017
        %v7024 = vpack.c.bf16 %v7020, %v7019
        %v7029 = vunpack.c.l.b16 %v7021
        %v7030 = vunpack.c.h.b16 %v7021
        %v7031 = vunpack.c.l.b16 %v7022
        %v7032 = vunpack.c.h.b16 %v7022
        %v7033 = vunpack.c.l.b16 %v7023
        %v7034 = vunpack.c.h.b16 %v7023
        %v7035 = vunpack.c.l.b16 %v7024
        %v7036 = vunpack.c.h.b16 %v7024
        %v7037 = vpack.c.b16 %v7029, %v7029
        %v7038 = vpack.c.b16 %v7030, %v7030
        %v7039 = vpack.c.b16 %v7031, %v7031
        %v7040 = vpack.c.b16 %v7032, %v7032
        %v7041 = vpack.c.b16 %v7033, %v7033
        %v7042 = vpack.c.b16 %v7034, %v7034
        %v7043 = vpack.c.b16 %v7035, %v7035
        %v7044 = vpack.c.b16 %v7036, %v7036
        %s7053 = scalar_lea.vmem %s271, 96 [#allocation14]
        %7054 = vst.msk [vmem:[%s7053] sm:$0xf] %vm3081, %v7037
        %7055 = vst.msk [vmem:[%s7053 + $0x4] sm:$0xf] %vm3081, %v7038
        %7056 = vst.msk [vmem:[%s7053 + $0x8] sm:$0xf] %vm3081, %v7039
        %7057 = vst.msk [vmem:[%s7053 + $0xc] sm:$0xf] %vm3081, %v7040
        %7058 = vst.msk [vmem:[%s7053 + $0x10] sm:$0xf] %vm3081, %v7041
        %7059 = vst.msk [vmem:[%s7053 + $0x14] sm:$0xf] %vm3081, %v7042
        %7060 = vst.msk [vmem:[%s7053 + $0x18] sm:$0xf] %vm3081, %v7043
        %7061 = vst.msk [vmem:[%s7053 + $0x1c] sm:$0xf] %vm3081, %v7044
        %s7062 = sand.u32 %s137, 1
        %s7063 = scalar_lea.sflag [#allocation7], %s7062
        %s7064 = sand.u32 %s137, 1
        %s7065 = smul.addr %s7064, 128
        %s7066 = scalar_lea.vmem [#allocation14], %s7065
        // Predicated region
        $region57: #{tpu_custom_call.1} parent=35 // pred_check
          %p7067 = pneg %p147
        $region58: #{tpu_custom_call.1} parent=35 // pred_check_branch
          %7069 = sbr.rel (%p7067) target = $region60
        $region59: #{tpu_custom_call.1} parent=35 // pred_region
          %s7071 = ssub.s32 2048, 2048
          %7072 = vsyncadd %s7063, %s7071
          %s7073 = smul.addr %s28, 32
          %s7074 = smul.addr %s29, 64
          %s7075 = sadd.s32 %s7073, %s7074
          %s7076 = smul.addr %s7075, 64
          %s7077 = scalar_lea.hbm %s4, %s7076
          %s7078 = sshll.u32 %s7066, 4
          %s7079 = int_to_ptr.vmem [resolvable:$true] %s7078
          %7084 = dma.vmem_to_hbm [thread:$0]  %s7079, 2048, %s7077, %s7063, 64, 64, 4
        $region60: #{tpu_custom_call.1} parent=35 // pred_fallthru
          _
      $region36: #{tpu_custom_call.1} parent=5 // pred_fallthru
        _
      %p7085 = scmp.le.s32.totalorder 2, %s19
      // Predicated region
      $region61: #{tpu_custom_call.1} parent=5 // pred_check
        %p7086 = pneg %p7085
      $region62: #{tpu_custom_call.1} parent=5 // pred_check_branch
        %7088 = sbr.rel (%p7086) target = $region64
      $region63: #{tpu_custom_call.1} parent=5 // pred_region
        %s7089 = ssub.s32 %s19, 2
        // Predicated region
        $region65: #{tpu_custom_call.1} parent=63 // pred_check
          %p7090 = pneg %p153
        $region66: #{tpu_custom_call.1} parent=63 // pred_check_branch
          %7092 = sbr.rel (%p7090) target = $region68
        $region67: #{tpu_custom_call.1} parent=63 // pred_region
          %s7093 = sand.u32 %s138, 1
          %s7094 = scalar_lea.sflag [#allocation7], %s7093
          %s7095 = sand.u32 %s138, 1
          %s7096 = smul.addr %s7095, 128
          %s7097 = scalar_lea.vmem [#allocation14], %s7096
          %7098 = dma.done %s7094, 2048
        $region68: #{tpu_custom_call.1} parent=63 // pred_fallthru
          _
      $region64: #{tpu_custom_call.1} parent=5 // pred_fallthru
        _
    $region6: #{tpu_custom_call.1} parent=1 // loop_footer
      %s23 = sadd.s32 1, %s19
    $region7: #{tpu_custom_call.1} parent=1 // loop_footer_branch
      %18 = sbr.rel target = $region3
    $region8: #{tpu_custom_call.1} parent=1 // loop_exit
      _
    %7099 = vsyncpa [#allocation6], 1
    %s7100 = scalar_lea.sflag [#allocation6], 1
    %7101 = vsyncpa %s7100, 1
    %7102 = vsyncpa [#allocation7], 1
    %s7103 = scalar_lea.sflag [#allocation7], 1
    %7104 = vsyncpa %s7103, 1
    %7105 = vsyncpa [#allocation8], 1
    %s7106 = scalar_lea.sflag [#allocation8], 1
    %7107 = vsyncpa %s7106, 1
    %7108 = vsyncpa [#allocation9], 1
    %s7109 = scalar_lea.sflag [#allocation9], 1
    %7110 = vsyncpa %s7109, 1
    %7111 = vsyncpa [#allocation12], 1

</llo_original>
